<compile_context>
chip_gen: v6e
topology: v6e:2x2x1
jax: 0.10.0
libtpu: 0.0.40
codegen_flags: <defaults>
</compile_context>

<pallas_src>
import functools

import jax
import jax.numpy as jnp
from jax import lax
from jax.experimental import pallas as pl
from jax.experimental.pallas import tpu as pltpu
from jax.scipy.special import gammaln


_HALF_LOG_2PI = 0.9189385332046727
_LN2 = 0.6931471805599453
_SQRT_2 = 1.4142135623730951
_STIRLING_C = (1.0 / 12.0, -1.0 / 360.0, 1.0 / 1260.0, -1.0 / 1680.0)


def _vlog(x):
    """Natural log of positive, finite, normal f32 `x`, evaluated on the VPU.

    Bitcast exponent/mantissa split + atanh-series mantissa polynomial; the
    only EUP op is one single-pass approx reciprocal (Newton-refined on the
    VPU).  Absolute error ~3e-7 per unit of |log x|.  NOT a drop-in for
    jnp.log where NaN / <=0 inputs must propagate — callers here guarantee
    positive arguments on valid elements; garbage in masked-out padding is
    discarded by the validity mask downstream.
    """
    bits = pltpu.bitcast(x, jnp.int32)
    e = (jnp.right_shift(bits, 23) & 0xFF) - 127
    m = pltpu.bitcast((bits & 0x007FFFFF) | 0x3F800000, jnp.float32)   # [1, 2)
    big = m > _SQRT_2
    m = jnp.where(big, m * 0.5, m)                    # [~0.7071, ~1.4142]
    e = jnp.where(big, e + 1, e).astype(jnp.float32)
    d = m + 1.0
    r = pl.reciprocal(d, approx=True)
    r = r * (2.0 - d * r)                             # one Newton step -> ~f32-exact
    s = (m - 1.0) * r                                 # |s| <= 0.1716 (m-1 exact)
    s2 = s * s
    p = s2 * (1.0 / 3.0 + s2 * (0.2 + s2 * (1.0 / 7.0 + s2 * (1.0 / 9.0))))
    return e * _LN2 + 2.0 * (s + s * p)


def _lgamma_parts(z):
    """Stirling lgamma for z > 0, split so shift logs can be merged.

    Returns (main, prod) with  lgamma(z) = main - log(prod);  prod == 1 where
    no small-argument shift is needed, so several prods can be multiplied
    together and pushed through a single log by the caller.
    """
    small = z < 8.0
    y = jnp.where(small, z + 8.0, z)
    prod = z
    for i in range(1, 8):
        prod = prod * (z + float(i))
    prod = jnp.where(small, prod, 1.0)                # in [~5e-7, ~2.6e8]
    u = pl.reciprocal(y, approx=True)                 # corr <= 0.0105 -> approx ok
    u2 = u * u
    corr = u * (_STIRLING_C[0]
                + u2 * (_STIRLING_C[1]
                        + u2 * (_STIRLING_C[2]
                                + u2 * _STIRLING_C[3])))
    main = (y - 0.5) * _vlog(y) - y + _HALF_LOG_2PI + corr
    return main, prod


# ----------------------------------------------------------------------------
# Elementwise ZINB negative log-likelihood, accumulated per row-shard.
# ----------------------------------------------------------------------------
def _zinb_kernel(max_ref, x_ref, xr_ref, pi_ref, th_ref, out_ref, acc_ref, *,
                 eps0, n_rows, n_cols, tiles_per_shard, tile_rows,
                 mask_rows, mask_cols):
    j = pl.program_id(1)          # row-tile index within this shard
    k = pl.program_id(2)          # column-tile index
    nj = pl.num_programs(1)
    nk = pl.num_programs(2)

    @pl.when((j == 0) & (k == 0))
    def _():
        acc_ref[...] = jnp.zeros_like(acc_ref)

    max1 = max_ref[0]             # f32 scalar from SMEM

    X = x_ref[...]
    XR = xr_ref[...]
    PI = pi_ref[...]
    TH = th_ref[...]

    # inf -> max1, nan -> self.eps (unconditional where == torch's guarded where)
    TH = jnp.where(jnp.isinf(TH), max1, TH)
    XR = jnp.where(jnp.isinf(XR), max1, XR)
    PI = jnp.where(jnp.isnan(PI), eps0, PI)
    TH = jnp.where(jnp.isnan(TH), eps0, TH)
    XR = jnp.where(jnp.isnan(XR), eps0, XR)

    eps = 1e-10
    TH = jnp.minimum(TH, 1e6)

    # --- lgamma terms (Stirling; the three shift logs merged into two _vlog) --
    mA, pA = _lgamma_parts(TH + eps)
    mB, pB = _lgamma_parts(X + 1.0)
    mC, pC = _lgamma_parts(X + TH + eps)
    # pA*pB in [~5e-7, ~6.7e16]: safely inside f32 normals.
    shift = _vlog(pA * pB) - _vlog(pC)
    t1 = (mA + mB - mC) - shift

    # --- ZINB body -----------------------------------------------------------
    # Shared l1p = log(1 + XR/(TH+eps))  (reference's cancellation-free form);
    # the divide is a Newton-refined approx reciprocal (f32-division accurate).
    d = TH + eps
    r = pl.reciprocal(d, approx=True)
    r = r * (2.0 - d * r)
    l1p = jnp.log(1.0 + XR * r)
    lT = jnp.log(d)
    lXR = jnp.log(XR + eps)

    t2 = (TH + X) * l1p + X * (lT - lXR)
    nb = t1 + t2
    nb = jnp.where(jnp.isnan(nb), max1, nb)

    nb_case = nb - jnp.log(1.0 - PI + eps)

    # pow(TH/(TH+XR+eps), TH) == exp(-TH*log(1+(XR+eps)/TH)) ~= exp(-TH*l1p)
    # (eps placement differs by ~1e-10 relative; exact at TH == 0).
    zero_nb = jnp.exp(-TH * l1p)
    zero_case = -jnp.log(PI + (1.0 - PI) * zero_nb + eps)

    res = jnp.where(X < 1e-8, zero_case, nb_case)
    res = jnp.where(jnp.isnan(res), max1, res)

    # Validity mask: only built when the shape is ragged w.r.t. the tiles or a
    # clamped shard tile may be duplicated (static trace-time decision).
    if mask_rows or mask_cols:
        cond = None
        if mask_rows:
            row0 = (pl.program_id(0) * tiles_per_shard + j) * tile_rows
            rows = lax.broadcasted_iota(jnp.int32, res.shape, 0) + row0
            cond = rows < n_rows
        if mask_cols:
            col0 = k * res.shape[1]
            cols = lax.broadcasted_iota(jnp.int32, res.shape, 1) + col0
            cc = cols < n_cols
            cond = cc if cond is None else (cond & cc)
        res = jnp.where(cond, res, 0.0)

    # Fold (tile_rows, tile_cols) -> (8, tile_cols) with static, sublane-tile
    # aligned slices (VALU only), and accumulate into the per-shard scratch.
    tr, tc = res.shape
    part = res[0:8, :]
    for rr in range(8, tr, 8):
        part = part + res[rr:rr + 8, :]
    acc_ref[...] += part

    # Epilogue (once per shard): fold lanes to a dense (8, 128) partial-sum
    # block; the wrapper does the final scalar reduction.
    @pl.when((j == nj - 1) & (k == nk - 1))
    def _():
        acc = acc_ref[...]
        folded = acc[:, 0:128]
        for g in range(128, tc, 128):
            folded = folded + acc[:, g:g + 128]
        out_ref[...] = folded


# ----------------------------------------------------------------------------
# Wrapper
# ----------------------------------------------------------------------------
def _round_up(x, m):
    return ((x + m - 1) // m) * m


def lzinb_loss(X, X_recon, PI, THETA, eps=1e-6, *,
               tile_rows=512, tile_cols=1024, num_row_shards=1):
    """Mean ZINB negative log-likelihood (matches the PyTorch LZINBLoss).

    num_row_shards: leading grid axis.  Keep 1 on single-TensorCore chips
    (v5e / v6e).  Set 2 on v7x: the leading axis then uses CORE_PARALLEL
    semantics so this EUP-bound elementwise kernel runs on both cores.
    """
    X = X.astype(jnp.float32)
    X_recon = X_recon.astype(jnp.float32)
    PI = PI.astype(jnp.float32)
    THETA = THETA.astype(jnp.float32)

    R, C = X.shape

    # Clip tiles to the (8,128)-rounded array extent; big inputs get full tiles.
    tr = min(tile_rows, _round_up(R, 8))
    tc = min(tile_cols, _round_up(C, 128))
    nr = pl.cdiv(R, tr)                  # row tiles
    nc = pl.cdiv(C, tc)                  # column tiles
    P = max(1, min(int(num_row_shards), nr))
    spr = pl.cdiv(nr, P)                 # row tiles per shard

    mask_rows = (R % tr != 0) or (nr % P != 0)
    mask_cols = (C % tc != 0)

    # Global max of THETA and X_recon (plain XLA, memory-bound reduction).
    max1 = jnp.maximum(jnp.max(THETA), jnp.max(X_recon)).reshape(1)

    def tile_map(p, j, k):
        # Clamp so a short trailing shard never DMAs out of bounds; the
        # in-kernel row mask zeroes any duplicated tile's contribution.
        return (jnp.minimum(p * spr + j, nr - 1), k)

    tile_spec = pl.BlockSpec((tr, tc), tile_map)

    kernel = functools.partial(
        _zinb_kernel, eps0=eps, n_rows=R, n_cols=C,
        tiles_per_shard=spr, tile_rows=tr,
        mask_rows=mask_rows, mask_cols=mask_cols)

    lead = pltpu.CORE_PARALLEL if P > 1 else "arbitrary"

    partials = pl.pallas_call(
        kernel,
        out_shape=jax.ShapeDtypeStruct((P * 8, 128), jnp.float32),
        grid=(P, spr, nc),
        in_specs=[
            pl.BlockSpec(memory_space=pltpu.MemorySpace.SMEM),  # max1 scalar
            tile_spec, tile_spec, tile_spec, tile_spec,
        ],
        out_specs=pl.BlockSpec((8, 128), lambda p, j, k: (p, 0)),
        scratch_shapes=[pltpu.VMEM((8, tc), jnp.float32)],
        compiler_params=pltpu.CompilerParams(
            dimension_semantics=(lead, "arbitrary", "arbitrary"),
            # 512x1024 f32 tiles, 4 operands double-buffered ~ 16 MiB live:
            # raise the scoped-VMEM limit past v5e's 16 MiB default (physical
            # VMEM: 128 MiB v5e/v6e, 64 MiB per core on v7x).
            vmem_limit_bytes=32 * 1024 * 1024),
    )(max1, X, X_recon, PI, THETA)

    return jnp.sum(partials) / (R * C)


# ----------------------------------------------------------------------------
# Pure-JAX reference (mirrors the PyTorch module) for a tolerance check.
# ----------------------------------------------------------------------------
def _reference_loss(X, X_recon, PI, THETA, eps=1e-6):
    max1 = jnp.maximum(jnp.max(THETA), jnp.max(X_recon))
    THETA = jnp.where(jnp.isinf(THETA), max1, THETA)
    X_recon = jnp.where(jnp.isinf(X_recon), max1, X_recon)
    PI = jnp.where(jnp.isnan(PI), eps, PI)
    THETA = jnp.where(jnp.isnan(THETA), eps, THETA)
    X_recon = jnp.where(jnp.isnan(X_recon), eps, X_recon)
    e = 1e-10
    THETA = jnp.minimum(THETA, 1e6)
    t1 = gammaln(THETA + e) + gammaln(X + 1.0) - gammaln(X + THETA + e)
    t2 = (THETA + X) * jnp.log(1.0 + X_recon / (THETA + e)) + X * (
        jnp.log(THETA + e) - jnp.log(X_recon + e))
    nb = t1 + t2
    nb = jnp.where(jnp.isnan(nb), max1, nb)
    nb_case = nb - jnp.log(1.0 - PI + e)
    zero_nb = jnp.power(THETA / (THETA + X_recon + e), THETA)
    zero_case = -jnp.log(PI + (1.0 - PI) * zero_nb + e)
    res = jnp.where(X < 1e-8, zero_case, nb_case)
    res = jnp.where(jnp.isnan(res), max1, res)
    return jnp.mean(res)


if __name__ == "__main__":
    key = jax.random.PRNGKey(0)
    k1, k2, k3, k4, k5 = jax.random.split(key, 5)

    # (cells, genes); intentionally ragged w.r.t. the 64x256 tiles used below
    # so the multi-tile accumulation and the validity-mask path are exercised.
    R, C = 100, 384

    # count-like data with ~30% structural zeros
    counts = jnp.round(jax.random.gamma(k1, 2.0, (R, C)) * 3.0)
    X = jnp.where(jax.random.uniform(k2, (R, C)) < 0.3, 0.0, counts).astype(jnp.float32)
    X_recon = jax.random.uniform(k3, (R, C), minval=0.1, maxval=10.0).astype(jnp.float32)
    PI = jax.random.uniform(k4, (R, C), minval=0.01, maxval=0.9).astype(jnp.float32)
    THETA = jax.random.uniform(k5, (R, C), minval=0.5, maxval=5.0).astype(jnp.float32)

    loss = jax.block_until_ready(
        lzinb_loss(X, X_recon, PI, THETA, tile_rows=64, tile_cols=256))
    ref = jax.block_until_ready(_reference_loss(X, X_recon, PI, THETA))

    assert bool(jnp.isfinite(loss)), loss
    assert abs(float(loss) - float(ref)) <= 1e-2 * (1.0 + abs(float(ref))), (loss, ref)
    print("KERNEL_OK")
</pallas_src>

<mosaic_0001>
module attributes {stable_mosaic.version = 11 : i64} {
  func.func @_zinb_kernel(%arg0: i32, %arg1: i32, %arg2: i32, %arg3: memref<1xf32, #tpu.memory_space<smem>>, %arg4: memref<64x256xf32, #tpu.memory_space<vmem>>, %arg5: memref<64x256xf32, #tpu.memory_space<vmem>>, %arg6: memref<64x256xf32, #tpu.memory_space<vmem>>, %arg7: memref<64x256xf32, #tpu.memory_space<vmem>>, %arg8: memref<8x128xf32, #tpu.memory_space<vmem>>, %arg9: memref<8x256xf32, #tpu.memory_space<vmem>>) attributes {dimension_semantics = [#tpu.dimension_semantics<arbitrary>, #tpu.dimension_semantics<arbitrary>, #tpu.dimension_semantics<arbitrary>], iteration_bounds = array<i64: 1, 2, 2>, scalar_prefetch = 0 : i64, scratch_operands = 1 : i64, tpu.core_type = #tpu.core_type<tc>, window_params = [{transform_indices = @transform_0, window_bounds = array<i64: 1>}, {transform_indices = @transform_1, window_bounds = array<i64: 64, 256>}, {transform_indices = @transform_2, window_bounds = array<i64: 64, 256>}, {transform_indices = @transform_3, window_bounds = array<i64: 64, 256>}, {transform_indices = @transform_4, window_bounds = array<i64: 64, 256>}, {transform_indices = @transform_5, window_bounds = array<i64: 8, 128>}]} {
    %c0_i32 = arith.constant 0 : i32
    %0 = arith.cmpi eq, %arg1, %c0_i32 : i32
    %c0_i32_0 = arith.constant 0 : i32
    %1 = arith.cmpi eq, %arg2, %c0_i32_0 : i32
    %2 = arith.andi %0, %1 : i1
    %3 = arith.extui %2 : i1 to i32
    %c0_i32_1 = arith.constant 0 : i32
    %4 = arith.cmpi ne, %3, %c0_i32_1 : i32
    scf.if %4 {
      %cst_164 = arith.constant 0.000000e+00 : f32
      %526 = vector.broadcast %cst_164 : f32 to vector<8x256xf32>
      %c0_165 = arith.constant 0 : index
      %c0_166 = arith.constant 0 : index
      %527 = vector.load %arg9[%c0_165, %c0_166] : memref<8x256xf32, #tpu.memory_space<vmem>>, vector<8x256xf32>
      tpu.vector_store %arg9[%c0_165, %c0_166], %526 {strides = array<i32>} : memref<8x256xf32, #tpu.memory_space<vmem>>, vector<8x256xf32>,
    } else {
    }
    %c0 = arith.constant 0 : index
    %5 = memref.load %arg3[%c0] : memref<1xf32, #tpu.memory_space<smem>>
    %c0_2 = arith.constant 0 : index
    %c0_3 = arith.constant 0 : index
    %6 = vector.load %arg4[%c0_2, %c0_3] : memref<64x256xf32, #tpu.memory_space<vmem>>, vector<64x256xf32>
    %c0_4 = arith.constant 0 : index
    %c0_5 = arith.constant 0 : index
    %7 = vector.load %arg5[%c0_4, %c0_5] : memref<64x256xf32, #tpu.memory_space<vmem>>, vector<64x256xf32>
    %c0_6 = arith.constant 0 : index
    %c0_7 = arith.constant 0 : index
    %8 = vector.load %arg6[%c0_6, %c0_7] : memref<64x256xf32, #tpu.memory_space<vmem>>, vector<64x256xf32>
    %c0_8 = arith.constant 0 : index
    %c0_9 = arith.constant 0 : index
    %9 = vector.load %arg7[%c0_8, %c0_9] : memref<64x256xf32, #tpu.memory_space<vmem>>, vector<64x256xf32>
    %10 = math.absf %9 : vector<64x256xf32>
    %cst = arith.constant 0x7F800000 : f32
    %11 = vector.broadcast %cst : f32 to vector<64x256xf32>
    %12 = arith.cmpf oeq, %10, %11 : vector<64x256xf32>
    %13 = vector.broadcast %5 : f32 to vector<64x256xf32>
    %14 = arith.select %12, %13, %9 : vector<64x256xi1>, vector<64x256xf32>
    %15 = math.absf %7 : vector<64x256xf32>
    %cst_10 = arith.constant 0x7F800000 : f32
    %16 = vector.broadcast %cst_10 : f32 to vector<64x256xf32>
    %17 = arith.cmpf oeq, %15, %16 : vector<64x256xf32>
    %18 = vector.broadcast %5 : f32 to vector<64x256xf32>
    %19 = arith.select %17, %18, %7 : vector<64x256xi1>, vector<64x256xf32>
    %20 = arith.cmpf one, %8, %8 : vector<64x256xf32>
    %cst_11 = arith.constant 9.99999997E-7 : f32
    %21 = vector.broadcast %cst_11 : f32 to vector<64x256xf32>
    %22 = arith.select %20, %21, %8 : vector<64x256xi1>, vector<64x256xf32>
    %23 = arith.cmpf one, %14, %14 : vector<64x256xf32>
    %cst_12 = arith.constant 9.99999997E-7 : f32
    %24 = vector.broadcast %cst_12 : f32 to vector<64x256xf32>
    %25 = arith.select %23, %24, %14 : vector<64x256xi1>, vector<64x256xf32>
    %26 = arith.cmpf one, %19, %19 : vector<64x256xf32>
    %cst_13 = arith.constant 9.99999997E-7 : f32
    %27 = vector.broadcast %cst_13 : f32 to vector<64x256xf32>
    %28 = arith.select %26, %27, %19 : vector<64x256xi1>, vector<64x256xf32>
    %cst_14 = arith.constant 1.000000e+06 : f32
    %29 = vector.broadcast %cst_14 : f32 to vector<64x256xf32>
    %30 = arith.minimumf %25, %29 : vector<64x256xf32>
    %cst_15 = arith.constant 1.000000e-10 : f32
    %31 = vector.broadcast %cst_15 : f32 to vector<64x256xf32>
    %32 = arith.addf %30, %31 : vector<64x256xf32>
    %cst_16 = arith.constant 8.000000e+00 : f32
    %33 = vector.broadcast %cst_16 : f32 to vector<64x256xf32>
    %34 = arith.cmpf olt, %32, %33 : vector<64x256xf32>
    %cst_17 = arith.constant 8.000000e+00 : f32
    %35 = vector.broadcast %cst_17 : f32 to vector<64x256xf32>
    %36 = arith.addf %32, %35 : vector<64x256xf32>
    %37 = arith.select %34, %36, %32 : vector<64x256xi1>, vector<64x256xf32>
    %cst_18 = arith.constant 1.000000e+00 : f32
    %38 = vector.broadcast %cst_18 : f32 to vector<64x256xf32>
    %39 = arith.addf %32, %38 : vector<64x256xf32>
    %40 = arith.mulf %32, %39 : vector<64x256xf32>
    %cst_19 = arith.constant 2.000000e+00 : f32
    %41 = vector.broadcast %cst_19 : f32 to vector<64x256xf32>
    %42 = arith.addf %32, %41 : vector<64x256xf32>
    %43 = arith.mulf %40, %42 : vector<64x256xf32>
    %cst_20 = arith.constant 3.000000e+00 : f32
    %44 = vector.broadcast %cst_20 : f32 to vector<64x256xf32>
    %45 = arith.addf %32, %44 : vector<64x256xf32>
    %46 = arith.mulf %43, %45 : vector<64x256xf32>
    %cst_21 = arith.constant 4.000000e+00 : f32
    %47 = vector.broadcast %cst_21 : f32 to vector<64x256xf32>
    %48 = arith.addf %32, %47 : vector<64x256xf32>
    %49 = arith.mulf %46, %48 : vector<64x256xf32>
    %cst_22 = arith.constant 5.000000e+00 : f32
    %50 = vector.broadcast %cst_22 : f32 to vector<64x256xf32>
    %51 = arith.addf %32, %50 : vector<64x256xf32>
    %52 = arith.mulf %49, %51 : vector<64x256xf32>
    %cst_23 = arith.constant 6.000000e+00 : f32
    %53 = vector.broadcast %cst_23 : f32 to vector<64x256xf32>
    %54 = arith.addf %32, %53 : vector<64x256xf32>
    %55 = arith.mulf %52, %54 : vector<64x256xf32>
    %cst_24 = arith.constant 7.000000e+00 : f32
    %56 = vector.broadcast %cst_24 : f32 to vector<64x256xf32>
    %57 = arith.addf %32, %56 : vector<64x256xf32>
    %58 = arith.mulf %55, %57 : vector<64x256xf32>
    %cst_25 = arith.constant 1.000000e+00 : f32
    %59 = vector.broadcast %cst_25 : f32 to vector<64x256xf32>
    %60 = arith.select %34, %58, %59 : vector<64x256xi1>, vector<64x256xf32>
    %61 = tpu.reciprocal %37 {approx = true} : vector<64x256xf32> -> vector<64x256xf32>
    %62 = arith.mulf %61, %61 : vector<64x256xf32>
    %cst_26 = arith.constant -5.95238118E-4 : f32
    %63 = vector.broadcast %cst_26 : f32 to vector<64x256xf32>
    %64 = arith.mulf %62, %63 : vector<64x256xf32>
    %cst_27 = arith.constant 7.93650805E-4 : f32
    %65 = vector.broadcast %cst_27 : f32 to vector<64x256xf32>
    %66 = arith.addf %65, %64 : vector<64x256xf32>
    %67 = arith.mulf %62, %66 : vector<64x256xf32>
    %cst_28 = arith.constant -0.00277777785 : f32
    %68 = vector.broadcast %cst_28 : f32 to vector<64x256xf32>
    %69 = arith.addf %68, %67 : vector<64x256xf32>
    %70 = arith.mulf %62, %69 : vector<64x256xf32>
    %cst_29 = arith.constant 0.0833333358 : f32
    %71 = vector.broadcast %cst_29 : f32 to vector<64x256xf32>
    %72 = arith.addf %71, %70 : vector<64x256xf32>
    %73 = arith.mulf %61, %72 : vector<64x256xf32>
    %cst_30 = arith.constant 5.000000e-01 : f32
    %74 = vector.broadcast %cst_30 : f32 to vector<64x256xf32>
    %75 = arith.subf %37, %74 : vector<64x256xf32>
    %76 = tpu.bitcast %37 : vector<64x256xf32> -> vector<64x256xi32>
    %c23_i32 = arith.constant 23 : i32
    %77 = vector.broadcast %c23_i32 : i32 to vector<64x256xi32>
    %78 = arith.shrsi %76, %77 : vector<64x256xi32>
    %c255_i32 = arith.constant 255 : i32
    %79 = vector.broadcast %c255_i32 : i32 to vector<64x256xi32>
    %80 = arith.andi %78, %79 : vector<64x256xi32>
    %c127_i32 = arith.constant 127 : i32
    %81 = vector.broadcast %c127_i32 : i32 to vector<64x256xi32>
    %82 = arith.subi %80, %81 : vector<64x256xi32>
    %c8388607_i32 = arith.constant 8388607 : i32
    %83 = vector.broadcast %c8388607_i32 : i32 to vector<64x256xi32>
    %84 = arith.andi %76, %83 : vector<64x256xi32>
    %c1065353216_i32 = arith.constant 1065353216 : i32
    %85 = vector.broadcast %c1065353216_i32 : i32 to vector<64x256xi32>
    %86 = arith.ori %84, %85 : vector<64x256xi32>
    %87 = tpu.bitcast %86 : vector<64x256xi32> -> vector<64x256xf32>
    %cst_31 = arith.constant 1.41421354 : f32
    %88 = vector.broadcast %cst_31 : f32 to vector<64x256xf32>
    %89 = arith.cmpf ogt, %87, %88 : vector<64x256xf32>
    %cst_32 = arith.constant 5.000000e-01 : f32
    %90 = vector.broadcast %cst_32 : f32 to vector<64x256xf32>
    %91 = arith.mulf %87, %90 : vector<64x256xf32>
    %92 = arith.select %89, %91, %87 : vector<64x256xi1>, vector<64x256xf32>
    %c1_i32 = arith.constant 1 : i32
    %93 = vector.broadcast %c1_i32 : i32 to vector<64x256xi32>
    %94 = arith.addi %82, %93 : vector<64x256xi32>
    %95 = arith.select %89, %94, %82 : vector<64x256xi1>, vector<64x256xi32>
    %96 = arith.sitofp %95 : vector<64x256xi32> to vector<64x256xf32>
    %cst_33 = arith.constant 1.000000e+00 : f32
    %97 = vector.broadcast %cst_33 : f32 to vector<64x256xf32>
    %98 = arith.addf %92, %97 : vector<64x256xf32>
    %99 = tpu.reciprocal %98 {approx = true} : vector<64x256xf32> -> vector<64x256xf32>
    %100 = arith.mulf %98, %99 : vector<64x256xf32>
    %cst_34 = arith.constant 2.000000e+00 : f32
    %101 = vector.broadcast %cst_34 : f32 to vector<64x256xf32>
    %102 = arith.subf %101, %100 : vector<64x256xf32>
    %103 = arith.mulf %99, %102 : vector<64x256xf32>
    %cst_35 = arith.constant 1.000000e+00 : f32
    %104 = vector.broadcast %cst_35 : f32 to vector<64x256xf32>
    %105 = arith.subf %92, %104 : vector<64x256xf32>
    %106 = arith.mulf %105, %103 : vector<64x256xf32>
    %107 = arith.mulf %106, %106 : vector<64x256xf32>
    %cst_36 = arith.constant 0.111111112 : f32
    %108 = vector.broadcast %cst_36 : f32 to vector<64x256xf32>
    %109 = arith.mulf %107, %108 : vector<64x256xf32>
    %cst_37 = arith.constant 0.142857149 : f32
    %110 = vector.broadcast %cst_37 : f32 to vector<64x256xf32>
    %111 = arith.addf %110, %109 : vector<64x256xf32>
    %112 = arith.mulf %107, %111 : vector<64x256xf32>
    %cst_38 = arith.constant 2.000000e-01 : f32
    %113 = vector.broadcast %cst_38 : f32 to vector<64x256xf32>
    %114 = arith.addf %113, %112 : vector<64x256xf32>
    %115 = arith.mulf %107, %114 : vector<64x256xf32>
    %cst_39 = arith.constant 0.333333343 : f32
    %116 = vector.broadcast %cst_39 : f32 to vector<64x256xf32>
    %117 = arith.addf %116, %115 : vector<64x256xf32>
    %118 = arith.mulf %107, %117 : vector<64x256xf32>
    %cst_40 = arith.constant 0.693147182 : f32
    %119 = vector.broadcast %cst_40 : f32 to vector<64x256xf32>
    %120 = arith.mulf %96, %119 : vector<64x256xf32>
    %121 = arith.mulf %106, %118 : vector<64x256xf32>
    %122 = arith.addf %106, %121 : vector<64x256xf32>
    %cst_41 = arith.constant 2.000000e+00 : f32
    %123 = vector.broadcast %cst_41 : f32 to vector<64x256xf32>
    %124 = arith.mulf %123, %122 : vector<64x256xf32>
    %125 = arith.addf %120, %124 : vector<64x256xf32>
    %126 = arith.mulf %75, %125 : vector<64x256xf32>
    %127 = arith.subf %126, %37 : vector<64x256xf32>
    %cst_42 = arith.constant 0.918938517 : f32
    %128 = vector.broadcast %cst_42 : f32 to vector<64x256xf32>
    %129 = arith.addf %127, %128 : vector<64x256xf32>
    %130 = arith.addf %129, %73 : vector<64x256xf32>
    %cst_43 = arith.constant 1.000000e+00 : f32
    %131 = vector.broadcast %cst_43 : f32 to vector<64x256xf32>
    %132 = arith.addf %6, %131 : vector<64x256xf32>
    %cst_44 = arith.constant 8.000000e+00 : f32
    %133 = vector.broadcast %cst_44 : f32 to vector<64x256xf32>
    %134 = arith.cmpf olt, %132, %133 : vector<64x256xf32>
    %cst_45 = arith.constant 8.000000e+00 : f32
    %135 = vector.broadcast %cst_45 : f32 to vector<64x256xf32>
    %136 = arith.addf %132, %135 : vector<64x256xf32>
    %137 = arith.select %134, %136, %132 : vector<64x256xi1>, vector<64x256xf32>
    %cst_46 = arith.constant 1.000000e+00 : f32
    %138 = vector.broadcast %cst_46 : f32 to vector<64x256xf32>
    %139 = arith.addf %132, %138 : vector<64x256xf32>
    %140 = arith.mulf %132, %139 : vector<64x256xf32>
    %cst_47 = arith.constant 2.000000e+00 : f32
    %141 = vector.broadcast %cst_47 : f32 to vector<64x256xf32>
    %142 = arith.addf %132, %141 : vector<64x256xf32>
    %143 = arith.mulf %140, %142 : vector<64x256xf32>
    %cst_48 = arith.constant 3.000000e+00 : f32
    %144 = vector.broadcast %cst_48 : f32 to vector<64x256xf32>
    %145 = arith.addf %132, %144 : vector<64x256xf32>
    %146 = arith.mulf %143, %145 : vector<64x256xf32>
    %cst_49 = arith.constant 4.000000e+00 : f32
    %147 = vector.broadcast %cst_49 : f32 to vector<64x256xf32>
    %148 = arith.addf %132, %147 : vector<64x256xf32>
    %149 = arith.mulf %146, %148 : vector<64x256xf32>
    %cst_50 = arith.constant 5.000000e+00 : f32
    %150 = vector.broadcast %cst_50 : f32 to vector<64x256xf32>
    %151 = arith.addf %132, %150 : vector<64x256xf32>
    %152 = arith.mulf %149, %151 : vector<64x256xf32>
    %cst_51 = arith.constant 6.000000e+00 : f32
    %153 = vector.broadcast %cst_51 : f32 to vector<64x256xf32>
    %154 = arith.addf %132, %153 : vector<64x256xf32>
    %155 = arith.mulf %152, %154 : vector<64x256xf32>
    %cst_52 = arith.constant 7.000000e+00 : f32
    %156 = vector.broadcast %cst_52 : f32 to vector<64x256xf32>
    %157 = arith.addf %132, %156 : vector<64x256xf32>
    %158 = arith.mulf %155, %157 : vector<64x256xf32>
    %cst_53 = arith.constant 1.000000e+00 : f32
    %159 = vector.broadcast %cst_53 : f32 to vector<64x256xf32>
    %160 = arith.select %134, %158, %159 : vector<64x256xi1>, vector<64x256xf32>
    %161 = tpu.reciprocal %137 {approx = true} : vector<64x256xf32> -> vector<64x256xf32>
    %162 = arith.mulf %161, %161 : vector<64x256xf32>
    %cst_54 = arith.constant -5.95238118E-4 : f32
    %163 = vector.broadcast %cst_54 : f32 to vector<64x256xf32>
    %164 = arith.mulf %162, %163 : vector<64x256xf32>
    %cst_55 = arith.constant 7.93650805E-4 : f32
    %165 = vector.broadcast %cst_55 : f32 to vector<64x256xf32>
    %166 = arith.addf %165, %164 : vector<64x256xf32>
    %167 = arith.mulf %162, %166 : vector<64x256xf32>
    %cst_56 = arith.constant -0.00277777785 : f32
    %168 = vector.broadcast %cst_56 : f32 to vector<64x256xf32>
    %169 = arith.addf %168, %167 : vector<64x256xf32>
    %170 = arith.mulf %162, %169 : vector<64x256xf32>
    %cst_57 = arith.constant 0.0833333358 : f32
    %171 = vector.broadcast %cst_57 : f32 to vector<64x256xf32>
    %172 = arith.addf %171, %170 : vector<64x256xf32>
    %173 = arith.mulf %161, %172 : vector<64x256xf32>
    %cst_58 = arith.constant 5.000000e-01 : f32
    %174 = vector.broadcast %cst_58 : f32 to vector<64x256xf32>
    %175 = arith.subf %137, %174 : vector<64x256xf32>
    %176 = tpu.bitcast %137 : vector<64x256xf32> -> vector<64x256xi32>
    %c23_i32_59 = arith.constant 23 : i32
    %177 = vector.broadcast %c23_i32_59 : i32 to vector<64x256xi32>
    %178 = arith.shrsi %176, %177 : vector<64x256xi32>
    %c255_i32_60 = arith.constant 255 : i32
    %179 = vector.broadcast %c255_i32_60 : i32 to vector<64x256xi32>
    %180 = arith.andi %178, %179 : vector<64x256xi32>
    %c127_i32_61 = arith.constant 127 : i32
    %181 = vector.broadcast %c127_i32_61 : i32 to vector<64x256xi32>
    %182 = arith.subi %180, %181 : vector<64x256xi32>
    %c8388607_i32_62 = arith.constant 8388607 : i32
    %183 = vector.broadcast %c8388607_i32_62 : i32 to vector<64x256xi32>
    %184 = arith.andi %176, %183 : vector<64x256xi32>
    %c1065353216_i32_63 = arith.constant 1065353216 : i32
    %185 = vector.broadcast %c1065353216_i32_63 : i32 to vector<64x256xi32>
    %186 = arith.ori %184, %185 : vector<64x256xi32>
    %187 = tpu.bitcast %186 : vector<64x256xi32> -> vector<64x256xf32>
    %cst_64 = arith.constant 1.41421354 : f32
    %188 = vector.broadcast %cst_64 : f32 to vector<64x256xf32>
    %189 = arith.cmpf ogt, %187, %188 : vector<64x256xf32>
    %cst_65 = arith.constant 5.000000e-01 : f32
    %190 = vector.broadcast %cst_65 : f32 to vector<64x256xf32>
    %191 = arith.mulf %187, %190 : vector<64x256xf32>
    %192 = arith.select %189, %191, %187 : vector<64x256xi1>, vector<64x256xf32>
    %c1_i32_66 = arith.constant 1 : i32
    %193 = vector.broadcast %c1_i32_66 : i32 to vector<64x256xi32>
    %194 = arith.addi %182, %193 : vector<64x256xi32>
    %195 = arith.select %189, %194, %182 : vector<64x256xi1>, vector<64x256xi32>
    %196 = arith.sitofp %195 : vector<64x256xi32> to vector<64x256xf32>
    %cst_67 = arith.constant 1.000000e+00 : f32
    %197 = vector.broadcast %cst_67 : f32 to vector<64x256xf32>
    %198 = arith.addf %192, %197 : vector<64x256xf32>
    %199 = tpu.reciprocal %198 {approx = true} : vector<64x256xf32> -> vector<64x256xf32>
    %200 = arith.mulf %198, %199 : vector<64x256xf32>
    %cst_68 = arith.constant 2.000000e+00 : f32
    %201 = vector.broadcast %cst_68 : f32 to vector<64x256xf32>
    %202 = arith.subf %201, %200 : vector<64x256xf32>
    %203 = arith.mulf %199, %202 : vector<64x256xf32>
    %cst_69 = arith.constant 1.000000e+00 : f32
    %204 = vector.broadcast %cst_69 : f32 to vector<64x256xf32>
    %205 = arith.subf %192, %204 : vector<64x256xf32>
    %206 = arith.mulf %205, %203 : vector<64x256xf32>
    %207 = arith.mulf %206, %206 : vector<64x256xf32>
    %cst_70 = arith.constant 0.111111112 : f32
    %208 = vector.broadcast %cst_70 : f32 to vector<64x256xf32>
    %209 = arith.mulf %207, %208 : vector<64x256xf32>
    %cst_71 = arith.constant 0.142857149 : f32
    %210 = vector.broadcast %cst_71 : f32 to vector<64x256xf32>
    %211 = arith.addf %210, %209 : vector<64x256xf32>
    %212 = arith.mulf %207, %211 : vector<64x256xf32>
    %cst_72 = arith.constant 2.000000e-01 : f32
    %213 = vector.broadcast %cst_72 : f32 to vector<64x256xf32>
    %214 = arith.addf %213, %212 : vector<64x256xf32>
    %215 = arith.mulf %207, %214 : vector<64x256xf32>
    %cst_73 = arith.constant 0.333333343 : f32
    %216 = vector.broadcast %cst_73 : f32 to vector<64x256xf32>
    %217 = arith.addf %216, %215 : vector<64x256xf32>
    %218 = arith.mulf %207, %217 : vector<64x256xf32>
    %cst_74 = arith.constant 0.693147182 : f32
    %219 = vector.broadcast %cst_74 : f32 to vector<64x256xf32>
    %220 = arith.mulf %196, %219 : vector<64x256xf32>
    %221 = arith.mulf %206, %218 : vector<64x256xf32>
    %222 = arith.addf %206, %221 : vector<64x256xf32>
    %cst_75 = arith.constant 2.000000e+00 : f32
    %223 = vector.broadcast %cst_75 : f32 to vector<64x256xf32>
    %224 = arith.mulf %223, %222 : vector<64x256xf32>
    %225 = arith.addf %220, %224 : vector<64x256xf32>
    %226 = arith.mulf %175, %225 : vector<64x256xf32>
    %227 = arith.subf %226, %137 : vector<64x256xf32>
    %cst_76 = arith.constant 0.918938517 : f32
    %228 = vector.broadcast %cst_76 : f32 to vector<64x256xf32>
    %229 = arith.addf %227, %228 : vector<64x256xf32>
    %230 = arith.addf %229, %173 : vector<64x256xf32>
    %231 = arith.addf %6, %30 : vector<64x256xf32>
    %cst_77 = arith.constant 1.000000e-10 : f32
    %232 = vector.broadcast %cst_77 : f32 to vector<64x256xf32>
    %233 = arith.addf %231, %232 : vector<64x256xf32>
    %cst_78 = arith.constant 8.000000e+00 : f32
    %234 = vector.broadcast %cst_78 : f32 to vector<64x256xf32>
    %235 = arith.cmpf olt, %233, %234 : vector<64x256xf32>
    %cst_79 = arith.constant 8.000000e+00 : f32
    %236 = vector.broadcast %cst_79 : f32 to vector<64x256xf32>
    %237 = arith.addf %233, %236 : vector<64x256xf32>
    %238 = arith.select %235, %237, %233 : vector<64x256xi1>, vector<64x256xf32>
    %cst_80 = arith.constant 1.000000e+00 : f32
    %239 = vector.broadcast %cst_80 : f32 to vector<64x256xf32>
    %240 = arith.addf %233, %239 : vector<64x256xf32>
    %241 = arith.mulf %233, %240 : vector<64x256xf32>
    %cst_81 = arith.constant 2.000000e+00 : f32
    %242 = vector.broadcast %cst_81 : f32 to vector<64x256xf32>
    %243 = arith.addf %233, %242 : vector<64x256xf32>
    %244 = arith.mulf %241, %243 : vector<64x256xf32>
    %cst_82 = arith.constant 3.000000e+00 : f32
    %245 = vector.broadcast %cst_82 : f32 to vector<64x256xf32>
    %246 = arith.addf %233, %245 : vector<64x256xf32>
    %247 = arith.mulf %244, %246 : vector<64x256xf32>
    %cst_83 = arith.constant 4.000000e+00 : f32
    %248 = vector.broadcast %cst_83 : f32 to vector<64x256xf32>
    %249 = arith.addf %233, %248 : vector<64x256xf32>
    %250 = arith.mulf %247, %249 : vector<64x256xf32>
    %cst_84 = arith.constant 5.000000e+00 : f32
    %251 = vector.broadcast %cst_84 : f32 to vector<64x256xf32>
    %252 = arith.addf %233, %251 : vector<64x256xf32>
    %253 = arith.mulf %250, %252 : vector<64x256xf32>
    %cst_85 = arith.constant 6.000000e+00 : f32
    %254 = vector.broadcast %cst_85 : f32 to vector<64x256xf32>
    %255 = arith.addf %233, %254 : vector<64x256xf32>
    %256 = arith.mulf %253, %255 : vector<64x256xf32>
    %cst_86 = arith.constant 7.000000e+00 : f32
    %257 = vector.broadcast %cst_86 : f32 to vector<64x256xf32>
    %258 = arith.addf %233, %257 : vector<64x256xf32>
    %259 = arith.mulf %256, %258 : vector<64x256xf32>
    %cst_87 = arith.constant 1.000000e+00 : f32
    %260 = vector.broadcast %cst_87 : f32 to vector<64x256xf32>
    %261 = arith.select %235, %259, %260 : vector<64x256xi1>, vector<64x256xf32>
    %262 = tpu.reciprocal %238 {approx = true} : vector<64x256xf32> -> vector<64x256xf32>
    %263 = arith.mulf %262, %262 : vector<64x256xf32>
    %cst_88 = arith.constant -5.95238118E-4 : f32
    %264 = vector.broadcast %cst_88 : f32 to vector<64x256xf32>
    %265 = arith.mulf %263, %264 : vector<64x256xf32>
    %cst_89 = arith.constant 7.93650805E-4 : f32
    %266 = vector.broadcast %cst_89 : f32 to vector<64x256xf32>
    %267 = arith.addf %266, %265 : vector<64x256xf32>
    %268 = arith.mulf %263, %267 : vector<64x256xf32>
    %cst_90 = arith.constant -0.00277777785 : f32
    %269 = vector.broadcast %cst_90 : f32 to vector<64x256xf32>
    %270 = arith.addf %269, %268 : vector<64x256xf32>
    %271 = arith.mulf %263, %270 : vector<64x256xf32>
    %cst_91 = arith.constant 0.0833333358 : f32
    %272 = vector.broadcast %cst_91 : f32 to vector<64x256xf32>
    %273 = arith.addf %272, %271 : vector<64x256xf32>
    %274 = arith.mulf %262, %273 : vector<64x256xf32>
    %cst_92 = arith.constant 5.000000e-01 : f32
    %275 = vector.broadcast %cst_92 : f32 to vector<64x256xf32>
    %276 = arith.subf %238, %275 : vector<64x256xf32>
    %277 = tpu.bitcast %238 : vector<64x256xf32> -> vector<64x256xi32>
    %c23_i32_93 = arith.constant 23 : i32
    %278 = vector.broadcast %c23_i32_93 : i32 to vector<64x256xi32>
    %279 = arith.shrsi %277, %278 : vector<64x256xi32>
    %c255_i32_94 = arith.constant 255 : i32
    %280 = vector.broadcast %c255_i32_94 : i32 to vector<64x256xi32>
    %281 = arith.andi %279, %280 : vector<64x256xi32>
    %c127_i32_95 = arith.constant 127 : i32
    %282 = vector.broadcast %c127_i32_95 : i32 to vector<64x256xi32>
    %283 = arith.subi %281, %282 : vector<64x256xi32>
    %c8388607_i32_96 = arith.constant 8388607 : i32
    %284 = vector.broadcast %c8388607_i32_96 : i32 to vector<64x256xi32>
    %285 = arith.andi %277, %284 : vector<64x256xi32>
    %c1065353216_i32_97 = arith.constant 1065353216 : i32
    %286 = vector.broadcast %c1065353216_i32_97 : i32 to vector<64x256xi32>
    %287 = arith.ori %285, %286 : vector<64x256xi32>
    %288 = tpu.bitcast %287 : vector<64x256xi32> -> vector<64x256xf32>
    %cst_98 = arith.constant 1.41421354 : f32
    %289 = vector.broadcast %cst_98 : f32 to vector<64x256xf32>
    %290 = arith.cmpf ogt, %288, %289 : vector<64x256xf32>
    %cst_99 = arith.constant 5.000000e-01 : f32
    %291 = vector.broadcast %cst_99 : f32 to vector<64x256xf32>
    %292 = arith.mulf %288, %291 : vector<64x256xf32>
    %293 = arith.select %290, %292, %288 : vector<64x256xi1>, vector<64x256xf32>
    %c1_i32_100 = arith.constant 1 : i32
    %294 = vector.broadcast %c1_i32_100 : i32 to vector<64x256xi32>
    %295 = arith.addi %283, %294 : vector<64x256xi32>
    %296 = arith.select %290, %295, %283 : vector<64x256xi1>, vector<64x256xi32>
    %297 = arith.sitofp %296 : vector<64x256xi32> to vector<64x256xf32>
    %cst_101 = arith.constant 1.000000e+00 : f32
    %298 = vector.broadcast %cst_101 : f32 to vector<64x256xf32>
    %299 = arith.addf %293, %298 : vector<64x256xf32>
    %300 = tpu.reciprocal %299 {approx = true} : vector<64x256xf32> -> vector<64x256xf32>
    %301 = arith.mulf %299, %300 : vector<64x256xf32>
    %cst_102 = arith.constant 2.000000e+00 : f32
    %302 = vector.broadcast %cst_102 : f32 to vector<64x256xf32>
    %303 = arith.subf %302, %301 : vector<64x256xf32>
    %304 = arith.mulf %300, %303 : vector<64x256xf32>
    %cst_103 = arith.constant 1.000000e+00 : f32
    %305 = vector.broadcast %cst_103 : f32 to vector<64x256xf32>
    %306 = arith.subf %293, %305 : vector<64x256xf32>
    %307 = arith.mulf %306, %304 : vector<64x256xf32>
    %308 = arith.mulf %307, %307 : vector<64x256xf32>
    %cst_104 = arith.constant 0.111111112 : f32
    %309 = vector.broadcast %cst_104 : f32 to vector<64x256xf32>
    %310 = arith.mulf %308, %309 : vector<64x256xf32>
    %cst_105 = arith.constant 0.142857149 : f32
    %311 = vector.broadcast %cst_105 : f32 to vector<64x256xf32>
    %312 = arith.addf %311, %310 : vector<64x256xf32>
    %313 = arith.mulf %308, %312 : vector<64x256xf32>
    %cst_106 = arith.constant 2.000000e-01 : f32
    %314 = vector.broadcast %cst_106 : f32 to vector<64x256xf32>
    %315 = arith.addf %314, %313 : vector<64x256xf32>
    %316 = arith.mulf %308, %315 : vector<64x256xf32>
    %cst_107 = arith.constant 0.333333343 : f32
    %317 = vector.broadcast %cst_107 : f32 to vector<64x256xf32>
    %318 = arith.addf %317, %316 : vector<64x256xf32>
    %319 = arith.mulf %308, %318 : vector<64x256xf32>
    %cst_108 = arith.constant 0.693147182 : f32
    %320 = vector.broadcast %cst_108 : f32 to vector<64x256xf32>
    %321 = arith.mulf %297, %320 : vector<64x256xf32>
    %322 = arith.mulf %307, %319 : vector<64x256xf32>
    %323 = arith.addf %307, %322 : vector<64x256xf32>
    %cst_109 = arith.constant 2.000000e+00 : f32
    %324 = vector.broadcast %cst_109 : f32 to vector<64x256xf32>
    %325 = arith.mulf %324, %323 : vector<64x256xf32>
    %326 = arith.addf %321, %325 : vector<64x256xf32>
    %327 = arith.mulf %276, %326 : vector<64x256xf32>
    %328 = arith.subf %327, %238 : vector<64x256xf32>
    %cst_110 = arith.constant 0.918938517 : f32
    %329 = vector.broadcast %cst_110 : f32 to vector<64x256xf32>
    %330 = arith.addf %328, %329 : vector<64x256xf32>
    %331 = arith.addf %330, %274 : vector<64x256xf32>
    %332 = arith.mulf %60, %160 : vector<64x256xf32>
    %333 = tpu.bitcast %332 : vector<64x256xf32> -> vector<64x256xi32>
    %c23_i32_111 = arith.constant 23 : i32
    %334 = vector.broadcast %c23_i32_111 : i32 to vector<64x256xi32>
    %335 = arith.shrsi %333, %334 : vector<64x256xi32>
    %c255_i32_112 = arith.constant 255 : i32
    %336 = vector.broadcast %c255_i32_112 : i32 to vector<64x256xi32>
    %337 = arith.andi %335, %336 : vector<64x256xi32>
    %c127_i32_113 = arith.constant 127 : i32
    %338 = vector.broadcast %c127_i32_113 : i32 to vector<64x256xi32>
    %339 = arith.subi %337, %338 : vector<64x256xi32>
    %c8388607_i32_114 = arith.constant 8388607 : i32
    %340 = vector.broadcast %c8388607_i32_114 : i32 to vector<64x256xi32>
    %341 = arith.andi %333, %340 : vector<64x256xi32>
    %c1065353216_i32_115 = arith.constant 1065353216 : i32
    %342 = vector.broadcast %c1065353216_i32_115 : i32 to vector<64x256xi32>
    %343 = arith.ori %341, %342 : vector<64x256xi32>
    %344 = tpu.bitcast %343 : vector<64x256xi32> -> vector<64x256xf32>
    %cst_116 = arith.constant 1.41421354 : f32
    %345 = vector.broadcast %cst_116 : f32 to vector<64x256xf32>
    %346 = arith.cmpf ogt, %344, %345 : vector<64x256xf32>
    %cst_117 = arith.constant 5.000000e-01 : f32
    %347 = vector.broadcast %cst_117 : f32 to vector<64x256xf32>
    %348 = arith.mulf %344, %347 : vector<64x256xf32>
    %349 = arith.select %346, %348, %344 : vector<64x256xi1>, vector<64x256xf32>
    %c1_i32_118 = arith.constant 1 : i32
    %350 = vector.broadcast %c1_i32_118 : i32 to vector<64x256xi32>
    %351 = arith.addi %339, %350 : vector<64x256xi32>
    %352 = arith.select %346, %351, %339 : vector<64x256xi1>, vector<64x256xi32>
    %353 = arith.sitofp %352 : vector<64x256xi32> to vector<64x256xf32>
    %cst_119 = arith.constant 1.000000e+00 : f32
    %354 = vector.broadcast %cst_119 : f32 to vector<64x256xf32>
    %355 = arith.addf %349, %354 : vector<64x256xf32>
    %356 = tpu.reciprocal %355 {approx = true} : vector<64x256xf32> -> vector<64x256xf32>
    %357 = arith.mulf %355, %356 : vector<64x256xf32>
    %cst_120 = arith.constant 2.000000e+00 : f32
    %358 = vector.broadcast %cst_120 : f32 to vector<64x256xf32>
    %359 = arith.subf %358, %357 : vector<64x256xf32>
    %360 = arith.mulf %356, %359 : vector<64x256xf32>
    %cst_121 = arith.constant 1.000000e+00 : f32
    %361 = vector.broadcast %cst_121 : f32 to vector<64x256xf32>
    %362 = arith.subf %349, %361 : vector<64x256xf32>
    %363 = arith.mulf %362, %360 : vector<64x256xf32>
    %364 = arith.mulf %363, %363 : vector<64x256xf32>
    %cst_122 = arith.constant 0.111111112 : f32
    %365 = vector.broadcast %cst_122 : f32 to vector<64x256xf32>
    %366 = arith.mulf %364, %365 : vector<64x256xf32>
    %cst_123 = arith.constant 0.142857149 : f32
    %367 = vector.broadcast %cst_123 : f32 to vector<64x256xf32>
    %368 = arith.addf %367, %366 : vector<64x256xf32>
    %369 = arith.mulf %364, %368 : vector<64x256xf32>
    %cst_124 = arith.constant 2.000000e-01 : f32
    %370 = vector.broadcast %cst_124 : f32 to vector<64x256xf32>
    %371 = arith.addf %370, %369 : vector<64x256xf32>
    %372 = arith.mulf %364, %371 : vector<64x256xf32>
    %cst_125 = arith.constant 0.333333343 : f32
    %373 = vector.broadcast %cst_125 : f32 to vector<64x256xf32>
    %374 = arith.addf %373, %372 : vector<64x256xf32>
    %375 = arith.mulf %364, %374 : vector<64x256xf32>
    %cst_126 = arith.constant 0.693147182 : f32
    %376 = vector.broadcast %cst_126 : f32 to vector<64x256xf32>
    %377 = arith.mulf %353, %376 : vector<64x256xf32>
    %378 = arith.mulf %363, %375 : vector<64x256xf32>
    %379 = arith.addf %363, %378 : vector<64x256xf32>
    %cst_127 = arith.constant 2.000000e+00 : f32
    %380 = vector.broadcast %cst_127 : f32 to vector<64x256xf32>
    %381 = arith.mulf %380, %379 : vector<64x256xf32>
    %382 = arith.addf %377, %381 : vector<64x256xf32>
    %383 = tpu.bitcast %261 : vector<64x256xf32> -> vector<64x256xi32>
    %c23_i32_128 = arith.constant 23 : i32
    %384 = vector.broadcast %c23_i32_128 : i32 to vector<64x256xi32>
    %385 = arith.shrsi %383, %384 : vector<64x256xi32>
    %c255_i32_129 = arith.constant 255 : i32
    %386 = vector.broadcast %c255_i32_129 : i32 to vector<64x256xi32>
    %387 = arith.andi %385, %386 : vector<64x256xi32>
    %c127_i32_130 = arith.constant 127 : i32
    %388 = vector.broadcast %c127_i32_130 : i32 to vector<64x256xi32>
    %389 = arith.subi %387, %388 : vector<64x256xi32>
    %c8388607_i32_131 = arith.constant 8388607 : i32
    %390 = vector.broadcast %c8388607_i32_131 : i32 to vector<64x256xi32>
    %391 = arith.andi %383, %390 : vector<64x256xi32>
    %c1065353216_i32_132 = arith.constant 1065353216 : i32
    %392 = vector.broadcast %c1065353216_i32_132 : i32 to vector<64x256xi32>
    %393 = arith.ori %391, %392 : vector<64x256xi32>
    %394 = tpu.bitcast %393 : vector<64x256xi32> -> vector<64x256xf32>
    %cst_133 = arith.constant 1.41421354 : f32
    %395 = vector.broadcast %cst_133 : f32 to vector<64x256xf32>
    %396 = arith.cmpf ogt, %394, %395 : vector<64x256xf32>
    %cst_134 = arith.constant 5.000000e-01 : f32
    %397 = vector.broadcast %cst_134 : f32 to vector<64x256xf32>
    %398 = arith.mulf %394, %397 : vector<64x256xf32>
    %399 = arith.select %396, %398, %394 : vector<64x256xi1>, vector<64x256xf32>
    %c1_i32_135 = arith.constant 1 : i32
    %400 = vector.broadcast %c1_i32_135 : i32 to vector<64x256xi32>
    %401 = arith.addi %389, %400 : vector<64x256xi32>
    %402 = arith.select %396, %401, %389 : vector<64x256xi1>, vector<64x256xi32>
    %403 = arith.sitofp %402 : vector<64x256xi32> to vector<64x256xf32>
    %cst_136 = arith.constant 1.000000e+00 : f32
    %404 = vector.broadcast %cst_136 : f32 to vector<64x256xf32>
    %405 = arith.addf %399, %404 : vector<64x256xf32>
    %406 = tpu.reciprocal %405 {approx = true} : vector<64x256xf32> -> vector<64x256xf32>
    %407 = arith.mulf %405, %406 : vector<64x256xf32>
    %cst_137 = arith.constant 2.000000e+00 : f32
    %408 = vector.broadcast %cst_137 : f32 to vector<64x256xf32>
    %409 = arith.subf %408, %407 : vector<64x256xf32>
    %410 = arith.mulf %406, %409 : vector<64x256xf32>
    %cst_138 = arith.constant 1.000000e+00 : f32
    %411 = vector.broadcast %cst_138 : f32 to vector<64x256xf32>
    %412 = arith.subf %399, %411 : vector<64x256xf32>
    %413 = arith.mulf %412, %410 : vector<64x256xf32>
    %414 = arith.mulf %413, %413 : vector<64x256xf32>
    %cst_139 = arith.constant 0.111111112 : f32
    %415 = vector.broadcast %cst_139 : f32 to vector<64x256xf32>
    %416 = arith.mulf %414, %415 : vector<64x256xf32>
    %cst_140 = arith.constant 0.142857149 : f32
    %417 = vector.broadcast %cst_140 : f32 to vector<64x256xf32>
    %418 = arith.addf %417, %416 : vector<64x256xf32>
    %419 = arith.mulf %414, %418 : vector<64x256xf32>
    %cst_141 = arith.constant 2.000000e-01 : f32
    %420 = vector.broadcast %cst_141 : f32 to vector<64x256xf32>
    %421 = arith.addf %420, %419 : vector<64x256xf32>
    %422 = arith.mulf %414, %421 : vector<64x256xf32>
    %cst_142 = arith.constant 0.333333343 : f32
    %423 = vector.broadcast %cst_142 : f32 to vector<64x256xf32>
    %424 = arith.addf %423, %422 : vector<64x256xf32>
    %425 = arith.mulf %414, %424 : vector<64x256xf32>
    %cst_143 = arith.constant 0.693147182 : f32
    %426 = vector.broadcast %cst_143 : f32 to vector<64x256xf32>
    %427 = arith.mulf %403, %426 : vector<64x256xf32>
    %428 = arith.mulf %413, %425 : vector<64x256xf32>
    %429 = arith.addf %413, %428 : vector<64x256xf32>
    %cst_144 = arith.constant 2.000000e+00 : f32
    %430 = vector.broadcast %cst_144 : f32 to vector<64x256xf32>
    %431 = arith.mulf %430, %429 : vector<64x256xf32>
    %432 = arith.addf %427, %431 : vector<64x256xf32>
    %433 = arith.subf %382, %432 : vector<64x256xf32>
    %434 = arith.addf %130, %230 : vector<64x256xf32>
    %435 = arith.subf %434, %331 : vector<64x256xf32>
    %436 = arith.subf %435, %433 : vector<64x256xf32>
    %cst_145 = arith.constant 1.000000e-10 : f32
    %437 = vector.broadcast %cst_145 : f32 to vector<64x256xf32>
    %438 = arith.addf %30, %437 : vector<64x256xf32>
    %439 = tpu.reciprocal %438 {approx = true} : vector<64x256xf32> -> vector<64x256xf32>
    %440 = arith.mulf %438, %439 : vector<64x256xf32>
    %cst_146 = arith.constant 2.000000e+00 : f32
    %441 = vector.broadcast %cst_146 : f32 to vector<64x256xf32>
    %442 = arith.subf %441, %440 : vector<64x256xf32>
    %443 = arith.mulf %439, %442 : vector<64x256xf32>
    %444 = arith.mulf %28, %443 : vector<64x256xf32>
    %cst_147 = arith.constant 1.000000e+00 : f32
    %445 = vector.broadcast %cst_147 : f32 to vector<64x256xf32>
    %446 = arith.addf %445, %444 : vector<64x256xf32>
    %447 = math.log %446 : vector<64x256xf32>
    %448 = math.log %438 : vector<64x256xf32>
    %cst_148 = arith.constant 1.000000e-10 : f32
    %449 = vector.broadcast %cst_148 : f32 to vector<64x256xf32>
    %450 = arith.addf %28, %449 : vector<64x256xf32>
    %451 = math.log %450 : vector<64x256xf32>
    %452 = arith.addf %30, %6 : vector<64x256xf32>
    %453 = arith.mulf %452, %447 : vector<64x256xf32>
    %454 = arith.subf %448, %451 : vector<64x256xf32>
    %455 = arith.mulf %6, %454 : vector<64x256xf32>
    %456 = arith.addf %453, %455 : vector<64x256xf32>
    %457 = arith.addf %436, %456 : vector<64x256xf32>
    %458 = arith.cmpf one, %457, %457 : vector<64x256xf32>
    %459 = vector.broadcast %5 : f32 to vector<64x256xf32>
    %460 = arith.select %458, %459, %457 : vector<64x256xi1>, vector<64x256xf32>
    %cst_149 = arith.constant 1.000000e+00 : f32
    %461 = vector.broadcast %cst_149 : f32 to vector<64x256xf32>
    %462 = arith.subf %461, %22 : vector<64x256xf32>
    %cst_150 = arith.constant 1.000000e-10 : f32
    %463 = vector.broadcast %cst_150 : f32 to vector<64x256xf32>
    %464 = arith.addf %462, %463 : vector<64x256xf32>
    %465 = math.log %464 : vector<64x256xf32>
    %466 = arith.subf %460, %465 : vector<64x256xf32>
    %cst_151 = arith.constant 0.000000e+00 : f32
    %467 = vector.broadcast %cst_151 : f32 to vector<64x256xf32>
    %468 = arith.subf %467, %30 : vector<64x256xf32>
    %469 = arith.mulf %468, %447 : vector<64x256xf32>
    %470 = math.exp %469 : vector<64x256xf32>
    %cst_152 = arith.constant 1.000000e+00 : f32
    %471 = vector.broadcast %cst_152 : f32 to vector<64x256xf32>
    %472 = arith.subf %471, %22 : vector<64x256xf32>
    %473 = arith.mulf %472, %470 : vector<64x256xf32>
    %474 = arith.addf %22, %473 : vector<64x256xf32>
    %cst_153 = arith.constant 1.000000e-10 : f32
    %475 = vector.broadcast %cst_153 : f32 to vector<64x256xf32>
    %476 = arith.addf %474, %475 : vector<64x256xf32>
    %477 = math.log %476 : vector<64x256xf32>
    %cst_154 = arith.constant 0.000000e+00 : f32
    %478 = vector.broadcast %cst_154 : f32 to vector<64x256xf32>
    %479 = arith.subf %478, %477 : vector<64x256xf32>
    %cst_155 = arith.constant 9.99999993E-9 : f32
    %480 = vector.broadcast %cst_155 : f32 to vector<64x256xf32>
    %481 = arith.cmpf olt, %6, %480 : vector<64x256xf32>
    %482 = arith.select %481, %479, %466 : vector<64x256xi1>, vector<64x256xf32>
    %483 = arith.cmpf one, %482, %482 : vector<64x256xf32>
    %484 = vector.broadcast %5 : f32 to vector<64x256xf32>
    %485 = arith.select %483, %484, %482 : vector<64x256xi1>, vector<64x256xf32>
    %c2_i32 = arith.constant 2 : i32
    %486 = arith.muli %arg0, %c2_i32 : i32
    %487 = arith.addi %486, %arg1 : i32
    %c64_i32 = arith.constant 64 : i32
    %488 = arith.muli %487, %c64_i32 : i32
    %489 = tpu.iota {dimensions = array<i32: 0>} : vector<64x256xi32>
    %490 = vector.broadcast %488 : i32 to vector<64x256xi32>
    %491 = arith.addi %489, %490 : vector<64x256xi32>
    %c100_i32 = arith.constant 100 : i32
    %492 = vector.broadcast %c100_i32 : i32 to vector<64x256xi32>
    %493 = arith.cmpi slt, %491, %492 : vector<64x256xi32>
    %c256_i32 = arith.constant 256 : i32
    %494 = arith.muli %arg2, %c256_i32 : i32
    %495 = tpu.iota {dimensions = array<i32: 1>} : vector<64x256xi32>
    %496 = vector.broadcast %494 : i32 to vector<64x256xi32>
    %497 = arith.addi %495, %496 : vector<64x256xi32>
    %c384_i32 = arith.constant 384 : i32
    %498 = vector.broadcast %c384_i32 : i32 to vector<64x256xi32>
    %499 = arith.cmpi slt, %497, %498 : vector<64x256xi32>
    %500 = arith.andi %493, %499 : vector<64x256xi1>
    %cst_156 = arith.constant 0.000000e+00 : f32
    %501 = vector.broadcast %cst_156 : f32 to vector<64x256xf32>
    %502 = arith.select %500, %485, %501 : vector<64x256xi1>, vector<64x256xf32>
    %503 = vector.extract_strided_slice %502 {offsets = [0, 0], sizes = [8, 256], strides = [1, 1]} : vector<64x256xf32> to vector<8x256xf32>
    %504 = vector.extract_strided_slice %502 {offsets = [8, 0], sizes = [8, 256], strides = [1, 1]} : vector<64x256xf32> to vector<8x256xf32>
    %505 = arith.addf %503, %504 : vector<8x256xf32>
    %506 = vector.extract_strided_slice %502 {offsets = [16, 0], sizes = [8, 256], strides = [1, 1]} : vector<64x256xf32> to vector<8x256xf32>
    %507 = arith.addf %505, %506 : vector<8x256xf32>
    %508 = vector.extract_strided_slice %502 {offsets = [24, 0], sizes = [8, 256], strides = [1, 1]} : vector<64x256xf32> to vector<8x256xf32>
    %509 = arith.addf %507, %508 : vector<8x256xf32>
    %510 = vector.extract_strided_slice %502 {offsets = [32, 0], sizes = [8, 256], strides = [1, 1]} : vector<64x256xf32> to vector<8x256xf32>
    %511 = arith.addf %509, %510 : vector<8x256xf32>
    %512 = vector.extract_strided_slice %502 {offsets = [40, 0], sizes = [8, 256], strides = [1, 1]} : vector<64x256xf32> to vector<8x256xf32>
    %513 = arith.addf %511, %512 : vector<8x256xf32>
    %514 = vector.extract_strided_slice %502 {offsets = [48, 0], sizes = [8, 256], strides = [1, 1]} : vector<64x256xf32> to vector<8x256xf32>
    %515 = arith.addf %513, %514 : vector<8x256xf32>
    %516 = vector.extract_strided_slice %502 {offsets = [56, 0], sizes = [8, 256], strides = [1, 1]} : vector<64x256xf32> to vector<8x256xf32>
    %517 = arith.addf %515, %516 : vector<8x256xf32>
    %c0_157 = arith.constant 0 : index
    %c0_158 = arith.constant 0 : index
    %518 = vector.load %arg9[%c0_157, %c0_158] : memref<8x256xf32, #tpu.memory_space<vmem>>, vector<8x256xf32>
    %519 = arith.addf %518, %517 : vector<8x256xf32>
    %c0_159 = arith.constant 0 : index
    %c0_160 = arith.constant 0 : index
    %520 = vector.load %arg9[%c0_159, %c0_160] : memref<8x256xf32, #tpu.memory_space<vmem>>, vector<8x256xf32>
    tpu.vector_store %arg9[%c0_159, %c0_160], %519 {strides = array<i32>} : memref<8x256xf32, #tpu.memory_space<vmem>>, vector<8x256xf32>,
    %c1_i32_161 = arith.constant 1 : i32
    %521 = arith.cmpi eq, %arg1, %c1_i32_161 : i32
    %c1_i32_162 = arith.constant 1 : i32
    %522 = arith.cmpi eq, %arg2, %c1_i32_162 : i32
    %523 = arith.andi %521, %522 : i1
    %524 = arith.extui %523 : i1 to i32
    %c0_i32_163 = arith.constant 0 : i32
    %525 = arith.cmpi ne, %524, %c0_i32_163 : i32
    scf.if %525 {
      %c0_164 = arith.constant 0 : index
      %c0_165 = arith.constant 0 : index
      %526 = vector.load %arg9[%c0_164, %c0_165] : memref<8x256xf32, #tpu.memory_space<vmem>>, vector<8x256xf32>
      %527 = vector.extract_strided_slice %526 {offsets = [0, 0], sizes = [8, 128], strides = [1, 1]} : vector<8x256xf32> to vector<8x128xf32>
      %528 = vector.extract_strided_slice %526 {offsets = [0, 128], sizes = [8, 128], strides = [1, 1]} : vector<8x256xf32> to vector<8x128xf32>
      %529 = arith.addf %527, %528 : vector<8x128xf32>
      %c0_166 = arith.constant 0 : index
      %c0_167 = arith.constant 0 : index
      %530 = vector.load %arg8[%c0_166, %c0_167] : memref<8x128xf32, #tpu.memory_space<vmem>>, vector<8x128xf32>
      tpu.vector_store %arg8[%c0_166, %c0_167], %529 {strides = array<i32>} : memref<8x128xf32, #tpu.memory_space<vmem>>, vector<8x128xf32>,
    } else {
    }
    return
  }
  func.func @transform_0(%arg0: i32, %arg1: i32, %arg2: i32) -> i32 {
    %c0_i32 = arith.constant 0 : i32
    %c0_i32_0 = arith.constant 0 : i32
    return %c0_i32 : i32
  }
  func.func @transform_1(%arg0: i32, %arg1: i32, %arg2: i32) -> (i32, i32) {
    %c2_i32 = arith.constant 2 : i32
    %0 = arith.muli %arg0, %c2_i32 : i32
    %1 = arith.addi %0, %arg1 : i32
    %c1_i32 = arith.constant 1 : i32
    %2 = arith.minsi %1, %c1_i32 : i32
    %c0_i32 = arith.constant 0 : i32
    return %2, %arg2 : i32, i32
  }
  func.func @transform_2(%arg0: i32, %arg1: i32, %arg2: i32) -> (i32, i32) {
    %c2_i32 = arith.constant 2 : i32
    %0 = arith.muli %arg0, %c2_i32 : i32
    %1 = arith.addi %0, %arg1 : i32
    %c1_i32 = arith.constant 1 : i32
    %2 = arith.minsi %1, %c1_i32 : i32
    %c0_i32 = arith.constant 0 : i32
    return %2, %arg2 : i32, i32
  }
  func.func @transform_3(%arg0: i32, %arg1: i32, %arg2: i32) -> (i32, i32) {
    %c2_i32 = arith.constant 2 : i32
    %0 = arith.muli %arg0, %c2_i32 : i32
    %1 = arith.addi %0, %arg1 : i32
    %c1_i32 = arith.constant 1 : i32
    %2 = arith.minsi %1, %c1_i32 : i32
    %c0_i32 = arith.constant 0 : i32
    return %2, %arg2 : i32, i32
  }
  func.func @transform_4(%arg0: i32, %arg1: i32, %arg2: i32) -> (i32, i32) {
    %c2_i32 = arith.constant 2 : i32
    %0 = arith.muli %arg0, %c2_i32 : i32
    %1 = arith.addi %0, %arg1 : i32
    %c1_i32 = arith.constant 1 : i32
    %2 = arith.minsi %1, %c1_i32 : i32
    %c0_i32 = arith.constant 0 : i32
    return %2, %arg2 : i32, i32
  }
  func.func @transform_5(%arg0: i32, %arg1: i32, %arg2: i32) -> (i32, i32) {
    %c0_i32 = arith.constant 0 : i32
    %c0_i32_0 = arith.constant 0 : i32
    return %arg0, %c0_i32 : i32, i32
  }
}

</mosaic_0001>

<llo_original>
// kernel: tpu_custom_call.1
$region0: #{tpu_custom_call.1}
  #allocation0 [shape = 'u32[]', space=smem, size = 0x4, offset = 0x4, fixed_abs, tag = 'smem constant byte address 0x4 - core index']
  #allocation1 [shape = 'u32[144,128]{1,0:T(1,128)}', space=vmem, size = 0x12000, scoped, tag = 'internal scratch']
  #allocation2 [shape = 'f32[8,256]{1,0:T(8,128)}', space=vmem, size = 0x2000, scoped, tag = 'scratch operand']
  #allocation3 [shape = 'f32[1]{0:T(128)S(6)}', space=smem, size = 0x200, scoped, tag = 'scoped memory for tpu_custom_call.1']
  %s0 = inlined_call_operand.<no memory space> [shape: f32[1], index: 0, kind: input, shape index: {}]
  %s1 = inlined_call_operand.hbm [shape: f32[100,384], index: 1, kind: input, shape index: {}]
  %s2 = inlined_call_operand.hbm [shape: f32[100,384], index: 2, kind: input, shape index: {}]
  %s3 = inlined_call_operand.hbm [shape: f32[100,384], index: 3, kind: input, shape index: {}]
  %s4 = inlined_call_operand.hbm [shape: f32[100,384], index: 4, kind: input, shape index: {}]
  %s5 = inlined_call_operand.hbm [shape: f32[8,128], index: 5, kind: output, shape index: {}]
  %s6 = sld [smem:[#allocation0]]
  $region77: #{tpu_custom_call.1} parent=0
    _
  %s8 = ssub.s32 1, %s6
  %s9 = scalar_select 0, %s8, %s6
  %10 = sst [smem:[#allocation3]] %s0
  $region1: #{tpu_custom_call.1} parent=0
    #allocation4 [shape = 'u8[131072]{0}', space=vmem, size = 0x20000, scoped, tag = 'input window, operand 1']
    #allocation5 [shape = 's32[2]{0}', space=sflag, size = 0x8, scoped, tag = 'scoped memory for tpu_custom_call.1']
    #allocation6 [shape = 's32[2]{0}', space=sflag, size = 0x8, scoped, tag = 'scoped memory for tpu_custom_call.1']
    #allocation7 [shape = 'u8[131072]{0}', space=vmem, size = 0x20000, scoped, tag = 'input window, operand 2']
    #allocation8 [shape = 's32[2]{0}', space=sflag, size = 0x8, scoped, tag = 'scoped memory for tpu_custom_call.1']
    #allocation9 [shape = 'u8[131072]{0}', space=vmem, size = 0x20000, scoped, tag = 'input window, operand 3']
    #allocation10 [shape = 'u8[131072]{0}', space=vmem, size = 0x20000, scoped, tag = 'input window, operand 4']
    #allocation11 [shape = 's32[2]{0}', space=sflag, size = 0x8, scoped, tag = 'scoped memory for tpu_custom_call.1']
    #allocation12 [shape = 'u8[4096]{0}', space=vmem, size = 0x1000, scoped, tag = 'output window, operand 0, single buffered']
    %11 = vsyncpa [#allocation5], 0
    %s12 = scalar_lea.sflag [#allocation5], 1
    %13 = vsyncpa %s12, 0
    %14 = vsyncpa [#allocation8], 0
    %s15 = scalar_lea.sflag [#allocation8], 1
    %16 = vsyncpa %s15, 0
    %17 = vsyncpa [#allocation11], 0
    %s18 = scalar_lea.sflag [#allocation11], 1
    %19 = vsyncpa %s18, 0
    %20 = vsyncpa [#allocation6], 0
    loop: start=0, step=1, limit=6
    $region2: #{tpu_custom_call.1} parent=1 // loop_pre_header
      _
    $region3: #{tpu_custom_call.1} parent=1 // loop_header
      %s22 = sphi 0, %s26
      %p23 = scmp.ge.s32.totalorder %s22, 6
      %s29 = sphi 0, %s48
      %s30 = sphi 0, %s44
      %s31 = sphi 0, %s40
      %s32 = sphi 0, %s29
      %s33 = sphi 0, %s30
      %s34 = sphi 0, %s31
      %s35 = sphi 0, %s32
      %s36 = sphi 0, %s33
      %s37 = sphi 0, %s34
      %s49 = sphi 0, %s49
      %s51 = sphi 0, %s49
      %s52 = sphi 0, %s51
      %s66 = sphi 0, %s52
      %s82 = sphi 0, %s84
      %s85 = sphi 0, %s82
      %s86 = sphi 0, %s85
      %s102 = sphi 0, %s86
      %s118 = sphi 0, %s120
      %s121 = sphi 0, %s118
      %s122 = sphi 0, %s121
      %s138 = sphi 0, %s122
      %s154 = sphi 0, %s156
      %s157 = sphi 0, %s154
      %s158 = sphi 0, %s157
      %s174 = sphi 0, %s158
      %s190 = sphi 0, %s192
      %s193 = sphi 0, %s190
      %s194 = sphi 0, %s193
      %s210 = sphi 0, %s194
      %s216 = sphi 0, %s218
      %s219 = sphi 0, %s216
      %s220 = sphi 0, %s219
      %s236 = sphi 0, %s220
    $region4: #{tpu_custom_call.1} parent=1 // loop_header_branch
      %25 = sbr.rel (%p23) target = $region8
    $region5: #{tpu_custom_call.1} parent=1 // loop_body
      %s27 = ssub.s32 %s22, 1
      %s28 = ssub.s32 %s22, 2
      %s38 = sadd.s32 1, %s31
      %p39 = scmp.ge.s32.totalorder %s38, 2
      %s40 = scalar_select %p39, 0, %s38
      %s41 = sadd.s32 1, %s30
      %s42 = scalar_select %p39, %s41, %s30
      %p43 = scmp.ge.s32.totalorder %s42, 2
      %s44 = scalar_select %p43, 0, %s42
      %s45 = sadd.s32 1, %s29
      %s46 = scalar_select %p43, %s45, %s29
      %p47 = scmp.ge.s32.totalorder %s46, 1
      %s48 = scalar_select %p47, 0, %s46
      %s50 = sadd.s32 %s49, 1
      %p53 = scmp.eq.s32.totalorder %s22, 3
      %p54 = scmp.ne.s32.totalorder %s49, %s51
      %p55 = scmp.eq.s32.totalorder %s22, 0
      %p56 = por %p54, %p55
      %p57 = scmp.ne.s32.totalorder %s49, %s51
      %p58 = scmp.eq.s32.totalorder %s27, 3
      %p59 = por %p57, %p58
      %p60 = scmp.ne.s32.totalorder %s51, %s52
      %p61 = scmp.eq.s32.totalorder %s27, 0
      %p62 = por %p60, %p61
      %p63 = scmp.ne.s32.totalorder %s51, %s52
      %p64 = scmp.eq.s32.totalorder %s28, 3
      %p65 = por %p63, %p64
      %p67 = scmp.ne.s32.totalorder %s52, %s66
      %p68 = scmp.eq.s32.totalorder %s28, 0
      %p69 = por %p67, %p68
      %s70 = smul.u32 %s29, 2
      %s71 = sadd.s32 %s70, %s30
      %p72 = scmp.lt.s32.totalorder %s71, 1
      %s73 = scalar_select %p72, %s71, 1
      %s74 = smul.u32 %s48, 2
      %s75 = sadd.s32 %s74, %s44
      %p76 = scmp.lt.s32.totalorder %s75, 1
      %s77 = scalar_select %p76, %s75, 1
      %s78 = ssub.s32 %s73, %s77
      %s79 = ssub.s32 %s31, %s40
      %s80 = sor.u32 %s78, %s79
      %p81 = scmp.eq.s32.totalorder %s80, 0
      %s83 = sadd.s32 %s82, 1
      %s84 = scalar_select %p81, %s82, %s83
      %p87 = pneg %p81
      %p88 = scmp.eq.s32.totalorder %s22, 3
      %p89 = por %p87, %p88
      %p90 = scmp.ne.s32.totalorder %s82, %s85
      %p91 = scmp.eq.s32.totalorder %s22, 0
      %p92 = por %p90, %p91
      %p93 = scmp.ne.s32.totalorder %s82, %s85
      %p94 = scmp.eq.s32.totalorder %s27, 3
      %p95 = por %p93, %p94
      %p96 = scmp.ne.s32.totalorder %s85, %s86
      %p97 = scmp.eq.s32.totalorder %s27, 0
      %p98 = por %p96, %p97
      %p99 = scmp.ne.s32.totalorder %s85, %s86
      %p100 = scmp.eq.s32.totalorder %s28, 3
      %p101 = por %p99, %p100
      %p103 = scmp.ne.s32.totalorder %s86, %s102
      %p104 = scmp.eq.s32.totalorder %s28, 0
      %p105 = por %p103, %p104
      %s106 = smul.u32 %s29, 2
      %s107 = sadd.s32 %s106, %s30
      %p108 = scmp.lt.s32.totalorder %s107, 1
      %s109 = scalar_select %p108, %s107, 1
      %s110 = smul.u32 %s48, 2
      %s111 = sadd.s32 %s110, %s44
      %p112 = scmp.lt.s32.totalorder %s111, 1
      %s113 = scalar_select %p112, %s111, 1
      %s114 = ssub.s32 %s109, %s113
      %s115 = ssub.s32 %s31, %s40
      %s116 = sor.u32 %s114, %s115
      %p117 = scmp.eq.s32.totalorder %s116, 0
      %s119 = sadd.s32 %s118, 1
      %s120 = scalar_select %p117, %s118, %s119
      %p123 = pneg %p117
      %p124 = scmp.eq.s32.totalorder %s22, 3
      %p125 = por %p123, %p124
      %p126 = scmp.ne.s32.totalorder %s118, %s121
      %p127 = scmp.eq.s32.totalorder %s22, 0
      %p128 = por %p126, %p127
      %p129 = scmp.ne.s32.totalorder %s118, %s121
      %p130 = scmp.eq.s32.totalorder %s27, 3
      %p131 = por %p129, %p130
      %p132 = scmp.ne.s32.totalorder %s121, %s122
      %p133 = scmp.eq.s32.totalorder %s27, 0
      %p134 = por %p132, %p133
      %p135 = scmp.ne.s32.totalorder %s121, %s122
      %p136 = scmp.eq.s32.totalorder %s28, 3
      %p137 = por %p135, %p136
      %p139 = scmp.ne.s32.totalorder %s122, %s138
      %p140 = scmp.eq.s32.totalorder %s28, 0
      %p141 = por %p139, %p140
      %s142 = smul.u32 %s29, 2
      %s143 = sadd.s32 %s142, %s30
      %p144 = scmp.lt.s32.totalorder %s143, 1
      %s145 = scalar_select %p144, %s143, 1
      %s146 = smul.u32 %s48, 2
      %s147 = sadd.s32 %s146, %s44
      %p148 = scmp.lt.s32.totalorder %s147, 1
      %s149 = scalar_select %p148, %s147, 1
      %s150 = ssub.s32 %s145, %s149
      %s151 = ssub.s32 %s31, %s40
      %s152 = sor.u32 %s150, %s151
      %p153 = scmp.eq.s32.totalorder %s152, 0
      %s155 = sadd.s32 %s154, 1
      %s156 = scalar_select %p153, %s154, %s155
      %p159 = pneg %p153
      %p160 = scmp.eq.s32.totalorder %s22, 3
      %p161 = por %p159, %p160
      %p162 = scmp.ne.s32.totalorder %s154, %s157
      %p163 = scmp.eq.s32.totalorder %s22, 0
      %p164 = por %p162, %p163
      %p165 = scmp.ne.s32.totalorder %s154, %s157
      %p166 = scmp.eq.s32.totalorder %s27, 3
      %p167 = por %p165, %p166
      %p168 = scmp.ne.s32.totalorder %s157, %s158
      %p169 = scmp.eq.s32.totalorder %s27, 0
      %p170 = por %p168, %p169
      %p171 = scmp.ne.s32.totalorder %s157, %s158
      %p172 = scmp.eq.s32.totalorder %s28, 3
      %p173 = por %p171, %p172
      %p175 = scmp.ne.s32.totalorder %s158, %s174
      %p176 = scmp.eq.s32.totalorder %s28, 0
      %p177 = por %p175, %p176
      %s178 = smul.u32 %s29, 2
      %s179 = sadd.s32 %s178, %s30
      %p180 = scmp.lt.s32.totalorder %s179, 1
      %s181 = scalar_select %p180, %s179, 1
      %s182 = smul.u32 %s48, 2
      %s183 = sadd.s32 %s182, %s44
      %p184 = scmp.lt.s32.totalorder %s183, 1
      %s185 = scalar_select %p184, %s183, 1
      %s186 = ssub.s32 %s181, %s185
      %s187 = ssub.s32 %s31, %s40
      %s188 = sor.u32 %s186, %s187
      %p189 = scmp.eq.s32.totalorder %s188, 0
      %s191 = sadd.s32 %s190, 1
      %s192 = scalar_select %p189, %s190, %s191
      %p195 = pneg %p189
      %p196 = scmp.eq.s32.totalorder %s22, 3
      %p197 = por %p195, %p196
      %p198 = scmp.ne.s32.totalorder %s190, %s193
      %p199 = scmp.eq.s32.totalorder %s22, 0
      %p200 = por %p198, %p199
      %p201 = scmp.ne.s32.totalorder %s190, %s193
      %p202 = scmp.eq.s32.totalorder %s27, 3
      %p203 = por %p201, %p202
      %p204 = scmp.ne.s32.totalorder %s193, %s194
      %p205 = scmp.eq.s32.totalorder %s27, 0
      %p206 = por %p204, %p205
      %p207 = scmp.ne.s32.totalorder %s193, %s194
      %p208 = scmp.eq.s32.totalorder %s28, 3
      %p209 = por %p207, %p208
      %p211 = scmp.ne.s32.totalorder %s194, %s210
      %p212 = scmp.eq.s32.totalorder %s28, 0
      %p213 = por %p211, %p212
      %s214 = ssub.s32 %s29, %s48
      %p215 = scmp.eq.s32.totalorder %s214, 0
      %s217 = sadd.s32 %s216, 1
      %s218 = scalar_select %p215, %s216, %s217
      %p221 = pneg %p215
      %p222 = scmp.eq.s32.totalorder %s22, 3
      %p223 = por %p221, %p222
      %p224 = scmp.ne.s32.totalorder %s216, %s219
      %p225 = scmp.eq.s32.totalorder %s22, 0
      %p226 = por %p224, %p225
      %p227 = scmp.ne.s32.totalorder %s216, %s219
      %p228 = scmp.eq.s32.totalorder %s27, 3
      %p229 = por %p227, %p228
      %p230 = scmp.ne.s32.totalorder %s219, %s220
      %p231 = scmp.eq.s32.totalorder %s27, 0
      %p232 = por %p230, %p231
      %p233 = scmp.ne.s32.totalorder %s219, %s220
      %p234 = scmp.eq.s32.totalorder %s28, 3
      %p235 = por %p233, %p234
      %p237 = scmp.ne.s32.totalorder %s220, %s236
      %p238 = scmp.eq.s32.totalorder %s28, 0
      %p239 = por %p237, %p238
      %p240 = scmp.le.s32.totalorder 1, %s22
      %p241 = scmp.lt.s32.totalorder %s22, 5
      %p242 = pnand %p240, %p241
      %p243 = pneg %p242
      // Predicated region
      $region9: #{tpu_custom_call.1} parent=5 // pred_check
        _
      $region10: #{tpu_custom_call.1} parent=5 // pred_check_branch
        %245 = sbr.rel (%p242) target = $region12
      $region11: #{tpu_custom_call.1} parent=5 // pred_region
        %s246 = ssub.s32 %s22, 1
        // Predicated region
        $region13: #{tpu_custom_call.1} parent=11 // pred_check
          %p247 = pneg %p62
        $region14: #{tpu_custom_call.1} parent=11 // pred_check_branch
          %249 = sbr.rel (%p247) target = $region16
        $region15: #{tpu_custom_call.1} parent=11 // pred_region
          _
        $region16: #{tpu_custom_call.1} parent=11 // pred_fallthru
          _
      $region12: #{tpu_custom_call.1} parent=5 // pred_fallthru
        _
      %p250 = scmp.lt.s32.totalorder %s22, 4
      // Predicated region
      $region17: #{tpu_custom_call.1} parent=5 // pred_check
        %p251 = pneg %p250
      $region18: #{tpu_custom_call.1} parent=5 // pred_check_branch
        %253 = sbr.rel (%p251) target = $region20
      $region19: #{tpu_custom_call.1} parent=5 // pred_region
        // Predicated region
        $region21: #{tpu_custom_call.1} parent=19 // pred_check
          %p254 = pneg %p92
        $region22: #{tpu_custom_call.1} parent=19 // pred_check_branch
          %256 = sbr.rel (%p254) target = $region24
        $region23: #{tpu_custom_call.1} parent=19 // pred_region
          %s257 = sand.u32 %s82, 1
          %s258 = scalar_lea.sflag [#allocation5], %s257
          %s259 = sand.u32 %s82, 1
          %s260 = smul.addr %s259, 128
          %s261 = scalar_lea.vmem [#allocation4], %s260
          %s262 = smul.u32 %s29, 2
          %s263 = sadd.s32 %s262, %s30
          %p264 = scmp.lt.s32.totalorder %s263, 1
          %s265 = scalar_select %p264, %s263, 1
          %s266 = smul.u32 8, %s265
          %s267 = smul.u32 2, %s31
          %s268 = ssub.s32 13, %s266
          %p269 = scmp.lt.s32.totalorder %s268, 8
          %s270 = scalar_select %p269, %s268, 8
          %s271 = smul.u32 128, %s270
          %s272 = ssub.s32 3, %s267
          %p273 = scmp.lt.s32.totalorder %s272, 2
          %s274 = scalar_select %p273, %s272, 2
          %s275 = smul.u32 %s271, %s274
          %s277 = ssub.s32 2048, %s275
          %278 = vsyncadd %s258, %s277
          %p279 = scmp.ne.s32.totalorder 0, %s275
          %s280 = smul.addr %s266, 3
          %s281 = sadd.s32 %s267, %s280
          %s282 = smul.addr %s281, 128
          %s283 = scalar_lea.hbm %s1, %s282
          %s284 = smul.u32 %s274, 8
          %s285 = smul.u32 %s284, %s270
          %s286 = sshll.u32 %s261, 4
          %s287 = int_to_ptr.vmem [resolvable:$true] %s286
          %s288 = sshll.u32 %s285, 4
          %292 = dma.hbm_to_vmem [thread:$0]  (%p279), %s283, %s288, %s287, %s258, 384, 256, %s284
        $region24: #{tpu_custom_call.1} parent=19 // pred_fallthru
          _
        // Predicated region
        $region25: #{tpu_custom_call.1} parent=19 // pred_check
          %p293 = pneg %p128
        $region26: #{tpu_custom_call.1} parent=19 // pred_check_branch
          %295 = sbr.rel (%p293) target = $region28
        $region27: #{tpu_custom_call.1} parent=19 // pred_region
          %s296 = sand.u32 %s22, 1
          %s297 = scalar_lea.sflag [#allocation8], %s296
          %s298 = sand.u32 %s118, 1
          %s299 = smul.addr %s298, 128
          %s300 = scalar_lea.vmem [#allocation7], %s299
          %s301 = smul.u32 %s29, 2
          %s302 = sadd.s32 %s301, %s30
          %p303 = scmp.lt.s32.totalorder %s302, 1
          %s304 = scalar_select %p303, %s302, 1
          %s305 = smul.u32 8, %s304
          %s306 = smul.u32 2, %s31
          %s307 = ssub.s32 13, %s305
          %p308 = scmp.lt.s32.totalorder %s307, 8
          %s309 = scalar_select %p308, %s307, 8
          %s310 = smul.u32 128, %s309
          %s311 = ssub.s32 3, %s306
          %p312 = scmp.lt.s32.totalorder %s311, 2
          %s313 = scalar_select %p312, %s311, 2
          %s314 = smul.u32 %s310, %s313
          %s316 = ssub.s32 2048, %s314
          %317 = vsyncadd %s297, %s316
          %p318 = scmp.ne.s32.totalorder 0, %s314
          %s319 = smul.addr %s305, 3
          %s320 = sadd.s32 %s306, %s319
          %s321 = smul.addr %s320, 128
          %s322 = scalar_lea.hbm %s2, %s321
          %s323 = smul.u32 %s313, 8
          %s324 = smul.u32 %s323, %s309
          %s325 = sshll.u32 %s300, 4
          %s326 = int_to_ptr.vmem [resolvable:$true] %s325
          %s327 = sshll.u32 %s324, 4
          %331 = dma.hbm_to_vmem [thread:$0]  (%p318), %s322, %s327, %s326, %s297, 384, 256, %s323
        $region28: #{tpu_custom_call.1} parent=19 // pred_fallthru
          _
        // Predicated region
        $region29: #{tpu_custom_call.1} parent=19 // pred_check
          %p332 = pneg %p164
        $region30: #{tpu_custom_call.1} parent=19 // pred_check_branch
          %334 = sbr.rel (%p332) target = $region32
        $region31: #{tpu_custom_call.1} parent=19 // pred_region
          %s335 = sand.u32 %s22, 1
          %s336 = scalar_lea.sflag [#allocation8], %s335
          %s337 = sand.u32 %s154, 1
          %s338 = smul.addr %s337, 128
          %s339 = scalar_lea.vmem [#allocation9], %s338
          %s340 = smul.u32 %s29, 2
          %s341 = sadd.s32 %s340, %s30
          %p342 = scmp.lt.s32.totalorder %s341, 1
          %s343 = scalar_select %p342, %s341, 1
          %s344 = smul.u32 8, %s343
          %s345 = smul.u32 2, %s31
          %s346 = ssub.s32 13, %s344
          %p347 = scmp.lt.s32.totalorder %s346, 8
          %s348 = scalar_select %p347, %s346, 8
          %s349 = smul.u32 128, %s348
          %s350 = ssub.s32 3, %s345
          %p351 = scmp.lt.s32.totalorder %s350, 2
          %s352 = scalar_select %p351, %s350, 2
          %s353 = smul.u32 %s349, %s352
          %s355 = ssub.s32 2048, %s353
          %356 = vsyncadd %s336, %s355
          %p357 = scmp.ne.s32.totalorder 0, %s353
          %s358 = smul.addr %s344, 3
          %s359 = sadd.s32 %s345, %s358
          %s360 = smul.addr %s359, 128
          %s361 = scalar_lea.hbm %s3, %s360
          %s362 = smul.u32 %s352, 8
          %s363 = smul.u32 %s362, %s348
          %s364 = sshll.u32 %s339, 4
          %s365 = int_to_ptr.vmem [resolvable:$true] %s364
          %s366 = sshll.u32 %s363, 4
          %370 = dma.hbm_to_vmem [thread:$0]  (%p357), %s361, %s366, %s365, %s336, 384, 256, %s362
        $region32: #{tpu_custom_call.1} parent=19 // pred_fallthru
          _
        // Predicated region
        $region33: #{tpu_custom_call.1} parent=19 // pred_check
          %p371 = pneg %p200
        $region34: #{tpu_custom_call.1} parent=19 // pred_check_branch
          %373 = sbr.rel (%p371) target = $region36
        $region35: #{tpu_custom_call.1} parent=19 // pred_region
          %s374 = sand.u32 %s190, 1
          %s375 = scalar_lea.sflag [#allocation11], %s374
          %s376 = sand.u32 %s190, 1
          %s377 = smul.addr %s376, 128
          %s378 = scalar_lea.vmem [#allocation10], %s377
          %s379 = smul.u32 %s29, 2
          %s380 = sadd.s32 %s379, %s30
          %p381 = scmp.lt.s32.totalorder %s380, 1
          %s382 = scalar_select %p381, %s380, 1
          %s383 = smul.u32 8, %s382
          %s384 = smul.u32 2, %s31
          %s385 = ssub.s32 13, %s383
          %p386 = scmp.lt.s32.totalorder %s385, 8
          %s387 = scalar_select %p386, %s385, 8
          %s388 = smul.u32 128, %s387
          %s389 = ssub.s32 3, %s384
          %p390 = scmp.lt.s32.totalorder %s389, 2
          %s391 = scalar_select %p390, %s389, 2
          %s392 = smul.u32 %s388, %s391
          %s394 = ssub.s32 2048, %s392
          %395 = vsyncadd %s375, %s394
          %p396 = scmp.ne.s32.totalorder 0, %s392
          %s397 = smul.addr %s383, 3
          %s398 = sadd.s32 %s384, %s397
          %s399 = smul.addr %s398, 128
          %s400 = scalar_lea.hbm %s4, %s399
          %s401 = smul.u32 %s391, 8
          %s402 = smul.u32 %s401, %s387
          %s403 = sshll.u32 %s378, 4
          %s404 = int_to_ptr.vmem [resolvable:$true] %s403
          %s405 = sshll.u32 %s402, 4
          %409 = dma.hbm_to_vmem [thread:$0]  (%p396), %s400, %s405, %s404, %s375, 384, 256, %s401
        $region36: #{tpu_custom_call.1} parent=19 // pred_fallthru
          _
      $region20: #{tpu_custom_call.1} parent=5 // pred_fallthru
        _
      %p410 = scmp.le.s32.totalorder 1, %s22
      %p411 = scmp.lt.s32.totalorder %s22, 5
      %p412 = pnand %p410, %p411
      %p413 = pneg %p412
      // Predicated region
      $region37: #{tpu_custom_call.1} parent=5 // pred_check
        _
      $region38: #{tpu_custom_call.1} parent=5 // pred_check_branch
        %415 = sbr.rel (%p412) target = $region40
      $region39: #{tpu_custom_call.1} parent=5 // pred_region
        %s416 = ssub.s32 %s22, 1
        %s417 = sand.u32 %s85, 1
        %s418 = scalar_lea.sflag [#allocation5], %s417
        %s419 = sand.u32 %s85, 1
        %s420 = smul.addr %s419, 128
        %s421 = scalar_lea.vmem [#allocation4], %s420
        // Predicated region
        $region41: #{tpu_custom_call.1} parent=39 // pred_check
          %p422 = pneg %p98
        $region42: #{tpu_custom_call.1} parent=39 // pred_check_branch
          %424 = sbr.rel (%p422) target = $region44
        $region43: #{tpu_custom_call.1} parent=39 // pred_region
          %425 = dma.done %s418, 2048
        $region44: #{tpu_custom_call.1} parent=39 // pred_fallthru
          _
        %s426 = sand.u32 %s27, 1
        %s427 = scalar_lea.sflag [#allocation8], %s426
        %s428 = sand.u32 %s121, 1
        %s429 = smul.addr %s428, 128
        %s430 = scalar_lea.vmem [#allocation7], %s429
        // Predicated region
        $region45: #{tpu_custom_call.1} parent=39 // pred_check
          %p431 = pneg %p134
        $region46: #{tpu_custom_call.1} parent=39 // pred_check_branch
          %433 = sbr.rel (%p431) target = $region48
        $region47: #{tpu_custom_call.1} parent=39 // pred_region
          %434 = dma.done %s427, 2048
        $region48: #{tpu_custom_call.1} parent=39 // pred_fallthru
          _
        %s435 = sand.u32 %s27, 1
        %s436 = scalar_lea.sflag [#allocation8], %s435
        %s437 = sand.u32 %s157, 1
        %s438 = smul.addr %s437, 128
        %s439 = scalar_lea.vmem [#allocation9], %s438
        // Predicated region
        $region49: #{tpu_custom_call.1} parent=39 // pred_check
          %p440 = pneg %p170
        $region50: #{tpu_custom_call.1} parent=39 // pred_check_branch
          %442 = sbr.rel (%p440) target = $region52
        $region51: #{tpu_custom_call.1} parent=39 // pred_region
          %443 = dma.done %s436, 2048
        $region52: #{tpu_custom_call.1} parent=39 // pred_fallthru
          _
        %s444 = sand.u32 %s193, 1
        %s445 = scalar_lea.sflag [#allocation11], %s444
        %s446 = sand.u32 %s193, 1
        %s447 = smul.addr %s446, 128
        %s448 = scalar_lea.vmem [#allocation10], %s447
        // Predicated region
        $region53: #{tpu_custom_call.1} parent=39 // pred_check
          %p449 = pneg %p206
        $region54: #{tpu_custom_call.1} parent=39 // pred_check_branch
          %451 = sbr.rel (%p449) target = $region56
        $region55: #{tpu_custom_call.1} parent=39 // pred_region
          %452 = dma.done %s445, 2048
        $region56: #{tpu_custom_call.1} parent=39 // pred_fallthru
          _
        %p453 = pneg %p62
        %p454 = pneg %p59
        %s455 = sand.u32 %s85, 1
        %s456 = scalar_lea.sflag [#allocation5], %s455
        %s457 = sand.u32 %s85, 1
        %s458 = smul.addr %s457, 128
        %s459 = scalar_lea.vmem [#allocation4], %s458
        %p460 = pneg %p98
        %p461 = pneg %p95
        %s462 = sand.u32 %s27, 1
        %s463 = scalar_lea.sflag [#allocation8], %s462
        %s464 = sand.u32 %s121, 1
        %s465 = smul.addr %s464, 128
        %s466 = scalar_lea.vmem [#allocation7], %s465
        %p467 = pneg %p134
        %p468 = pneg %p131
        %s469 = sand.u32 %s27, 1
        %s470 = scalar_lea.sflag [#allocation8], %s469
        %s471 = sand.u32 %s157, 1
        %s472 = smul.addr %s471, 128
        %s473 = scalar_lea.vmem [#allocation9], %s472
        %p474 = pneg %p170
        %p475 = pneg %p167
        %s476 = sand.u32 %s193, 1
        %s477 = scalar_lea.sflag [#allocation11], %s476
        %s478 = sand.u32 %s193, 1
        %s479 = smul.addr %s478, 128
        %s480 = scalar_lea.vmem [#allocation10], %s479
        %p481 = pneg %p206
        %p482 = pneg %p203
        %p483 = pneg %p232
        %p484 = pneg %p229
        %s485 = smul.u32 %s32, 2
        %s486 = sadd.s32 %s485, %s33
        %p487 = scmp.lt.s32.totalorder %s486, 1
        %s488 = scalar_select %p487, %s486, 1
        %s489 = smul.u32 8, %s488
        %s490 = smul.u32 2, %s34
        %s491 = ssub.s32 13, %s489
        %p492 = scmp.lt.s32.totalorder %s491, 8
        %s493 = scalar_select %p492, %s491, 8
        %s494 = smul.u32 128, %s493
        %s495 = ssub.s32 3, %s490
        %p496 = scmp.lt.s32.totalorder %s495, 2
        %s497 = scalar_select %p496, %s495, 2
        %s498 = smul.u32 %s494, %s497
        %s499 = smul.u32 %s32, 2
        %s500 = sadd.s32 %s499, %s33
        %p501 = scmp.lt.s32.totalorder %s500, 1
        %s502 = scalar_select %p501, %s500, 1
        %s503 = smul.u32 8, %s502
        %s504 = smul.u32 2, %s34
        %s505 = ssub.s32 13, %s503
        %p506 = scmp.lt.s32.totalorder %s505, 8
        %s507 = scalar_select %p506, %s505, 8
        %s508 = smul.u32 128, %s507
        %s509 = ssub.s32 3, %s504
        %p510 = scmp.lt.s32.totalorder %s509, 2
        %s511 = scalar_select %p510, %s509, 2
        %s512 = smul.u32 %s508, %s511
        %s513 = smul.u32 %s32, 2
        %s514 = sadd.s32 %s513, %s33
        %p515 = scmp.lt.s32.totalorder %s514, 1
        %s516 = scalar_select %p515, %s514, 1
        %s517 = smul.u32 8, %s516
        %s518 = smul.u32 2, %s34
        %s519 = ssub.s32 13, %s517
        %p520 = scmp.lt.s32.totalorder %s519, 8
        %s521 = scalar_select %p520, %s519, 8
        %s522 = smul.u32 128, %s521
        %s523 = ssub.s32 3, %s518
        %p524 = scmp.lt.s32.totalorder %s523, 2
        %s525 = scalar_select %p524, %s523, 2
        %s526 = smul.u32 %s522, %s525
        %s527 = smul.u32 %s32, 2
        %s528 = sadd.s32 %s527, %s33
        %p529 = scmp.lt.s32.totalorder %s528, 1
        %s530 = scalar_select %p529, %s528, 1
        %s531 = smul.u32 8, %s530
        %s532 = smul.u32 2, %s34
        %s533 = ssub.s32 13, %s531
        %p534 = scmp.lt.s32.totalorder %s533, 8
        %s535 = scalar_select %p534, %s533, 8
        %s536 = smul.u32 128, %s535
        %s537 = ssub.s32 3, %s532
        %p538 = scmp.lt.s32.totalorder %s537, 2
        %s539 = scalar_select %p538, %s537, 2
        %s540 = smul.u32 %s536, %s539
        %p541 = scmp.eq.s32.totalorder %s33, 0
        %p542 = scmp.eq.s32.totalorder %s34, 0
        %p543 = pnand %p541, %p542
        %p544 = pneg %p543
        // Predicated region
        $region57: #{tpu_custom_call.1} parent=39 // pred_check
          _
        $region58: #{tpu_custom_call.1} parent=39 // pred_check_branch
          %546 = sbr.rel (%p543) target = $region60
        $region59: #{tpu_custom_call.1} parent=39 // pred_region
          %547 = vst [vmem:[#allocation2] sm:$0xff] 0.0
          %548 = vst [vmem:[#allocation2 + $0x8] sm:$0xff] 0.0
        $region60: #{tpu_custom_call.1} parent=39 // pred_fallthru
          _
        %s549 = sld [smem:[#allocation3]]
        %v550 = vld [vmem:[%s421] sm:$0xff]
        %v551 = vld [vmem:[%s421 + $0x8] sm:$0xff]
        %v552 = vld [vmem:[%s421 + $0x10] sm:$0xff]
        %v553 = vld [vmem:[%s421 + $0x18] sm:$0xff]
        %v554 = vld [vmem:[%s421 + $0x20] sm:$0xff]
        %v555 = vld [vmem:[%s421 + $0x28] sm:$0xff]
        %v556 = vld [vmem:[%s421 + $0x30] sm:$0xff]
        %v557 = vld [vmem:[%s421 + $0x38] sm:$0xff]
        %v558 = vld [vmem:[%s421 + $0x40] sm:$0xff]
        %v559 = vld [vmem:[%s421 + $0x48] sm:$0xff]
        %v560 = vld [vmem:[%s421 + $0x50] sm:$0xff]
        %v561 = vld [vmem:[%s421 + $0x58] sm:$0xff]
        %v562 = vld [vmem:[%s421 + $0x60] sm:$0xff]
        %v563 = vld [vmem:[%s421 + $0x68] sm:$0xff]
        %v564 = vld [vmem:[%s421 + $0x70] sm:$0xff]
        %v565 = vld [vmem:[%s421 + $0x78] sm:$0xff]
        %v566 = vld [vmem:[%s430] sm:$0xff]
        %v567 = vld [vmem:[%s430 + $0x8] sm:$0xff]
        %v568 = vld [vmem:[%s430 + $0x10] sm:$0xff]
        %v569 = vld [vmem:[%s430 + $0x18] sm:$0xff]
        %v570 = vld [vmem:[%s430 + $0x20] sm:$0xff]
        %v571 = vld [vmem:[%s430 + $0x28] sm:$0xff]
        %v572 = vld [vmem:[%s430 + $0x30] sm:$0xff]
        %v573 = vld [vmem:[%s430 + $0x38] sm:$0xff]
        %v574 = vld [vmem:[%s430 + $0x40] sm:$0xff]
        %v575 = vld [vmem:[%s430 + $0x48] sm:$0xff]
        %v576 = vld [vmem:[%s430 + $0x50] sm:$0xff]
        %v577 = vld [vmem:[%s430 + $0x58] sm:$0xff]
        %v578 = vld [vmem:[%s430 + $0x60] sm:$0xff]
        %v579 = vld [vmem:[%s430 + $0x68] sm:$0xff]
        %v580 = vld [vmem:[%s430 + $0x70] sm:$0xff]
        %v581 = vld [vmem:[%s430 + $0x78] sm:$0xff]
        %v582 = vld [vmem:[%s439] sm:$0xff]
        %v583 = vld [vmem:[%s439 + $0x8] sm:$0xff]
        %v584 = vld [vmem:[%s439 + $0x10] sm:$0xff]
        %v585 = vld [vmem:[%s439 + $0x18] sm:$0xff]
        %v586 = vld [vmem:[%s439 + $0x20] sm:$0xff]
        %v587 = vld [vmem:[%s439 + $0x28] sm:$0xff]
        %v588 = vld [vmem:[%s439 + $0x30] sm:$0xff]
        %v589 = vld [vmem:[%s439 + $0x38] sm:$0xff]
        %v590 = vld [vmem:[%s439 + $0x40] sm:$0xff]
        %v591 = vld [vmem:[%s439 + $0x48] sm:$0xff]
        %v592 = vld [vmem:[%s439 + $0x50] sm:$0xff]
        %v593 = vld [vmem:[%s439 + $0x58] sm:$0xff]
        %v594 = vld [vmem:[%s439 + $0x60] sm:$0xff]
        %v595 = vld [vmem:[%s439 + $0x68] sm:$0xff]
        %v596 = vld [vmem:[%s439 + $0x70] sm:$0xff]
        %v597 = vld [vmem:[%s439 + $0x78] sm:$0xff]
        %v598 = vld [vmem:[%s448] sm:$0xff]
        %v599 = vld [vmem:[%s448 + $0x8] sm:$0xff]
        %v600 = vld [vmem:[%s448 + $0x10] sm:$0xff]
        %v601 = vld [vmem:[%s448 + $0x18] sm:$0xff]
        %v602 = vld [vmem:[%s448 + $0x20] sm:$0xff]
        %v603 = vld [vmem:[%s448 + $0x28] sm:$0xff]
        %v604 = vld [vmem:[%s448 + $0x30] sm:$0xff]
        %v605 = vld [vmem:[%s448 + $0x38] sm:$0xff]
        %v606 = vld [vmem:[%s448 + $0x40] sm:$0xff]
        %v607 = vld [vmem:[%s448 + $0x48] sm:$0xff]
        %v608 = vld [vmem:[%s448 + $0x50] sm:$0xff]
        %v609 = vld [vmem:[%s448 + $0x58] sm:$0xff]
        %v610 = vld [vmem:[%s448 + $0x60] sm:$0xff]
        %v611 = vld [vmem:[%s448 + $0x68] sm:$0xff]
        %v612 = vld [vmem:[%s448 + $0x70] sm:$0xff]
        %v613 = vld [vmem:[%s448 + $0x78] sm:$0xff]
        %v614 = vand.u32 2147483647, %v598
        %v615 = vand.u32 2147483647, %v599
        %v616 = vand.u32 2147483647, %v600
        %v617 = vand.u32 2147483647, %v601
        %v618 = vand.u32 2147483647, %v602
        %v619 = vand.u32 2147483647, %v603
        %v620 = vand.u32 2147483647, %v604
        %v621 = vand.u32 2147483647, %v605
        %v622 = vand.u32 2147483647, %v606
        %v623 = vand.u32 2147483647, %v607
        %v624 = vand.u32 2147483647, %v608
        %v625 = vand.u32 2147483647, %v609
        %v626 = vand.u32 2147483647, %v610
        %v627 = vand.u32 2147483647, %v611
        %v628 = vand.u32 2147483647, %v612
        %v629 = vand.u32 2147483647, %v613
        %vm630 = vcmp.eq.f32.partialorder %v614, inf
        %vm631 = vcmp.eq.f32.partialorder %v615, inf
        %vm632 = vcmp.eq.f32.partialorder %v616, inf
        %vm633 = vcmp.eq.f32.partialorder %v617, inf
        %vm634 = vcmp.eq.f32.partialorder %v618, inf
        %vm635 = vcmp.eq.f32.partialorder %v619, inf
        %vm636 = vcmp.eq.f32.partialorder %v620, inf
        %vm637 = vcmp.eq.f32.partialorder %v621, inf
        %vm638 = vcmp.eq.f32.partialorder %v622, inf
        %vm639 = vcmp.eq.f32.partialorder %v623, inf
        %vm640 = vcmp.eq.f32.partialorder %v624, inf
        %vm641 = vcmp.eq.f32.partialorder %v625, inf
        %vm642 = vcmp.eq.f32.partialorder %v626, inf
        %vm643 = vcmp.eq.f32.partialorder %v627, inf
        %vm644 = vcmp.eq.f32.partialorder %v628, inf
        %vm645 = vcmp.eq.f32.partialorder %v629, inf
        %v646 = vstv %s549
        %v647 = vsel %vm630, %v646, %v598
        %v648 = vsel %vm631, %v646, %v599
        %v649 = vsel %vm632, %v646, %v600
        %v650 = vsel %vm633, %v646, %v601
        %v651 = vsel %vm634, %v646, %v602
        %v652 = vsel %vm635, %v646, %v603
        %v653 = vsel %vm636, %v646, %v604
        %v654 = vsel %vm637, %v646, %v605
        %v655 = vsel %vm638, %v646, %v606
        %v656 = vsel %vm639, %v646, %v607
        %v657 = vsel %vm640, %v646, %v608
        %v658 = vsel %vm641, %v646, %v609
        %v659 = vsel %vm642, %v646, %v610
        %v660 = vsel %vm643, %v646, %v611
        %v661 = vsel %vm644, %v646, %v612
        %v662 = vsel %vm645, %v646, %v613
        %v663 = vand.u32 2147483647, %v566
        %v664 = vand.u32 2147483647, %v567
        %v665 = vand.u32 2147483647, %v568
        %v666 = vand.u32 2147483647, %v569
        %v667 = vand.u32 2147483647, %v570
        %v668 = vand.u32 2147483647, %v571
        %v669 = vand.u32 2147483647, %v572
        %v670 = vand.u32 2147483647, %v573
        %v671 = vand.u32 2147483647, %v574
        %v672 = vand.u32 2147483647, %v575
        %v673 = vand.u32 2147483647, %v576
        %v674 = vand.u32 2147483647, %v577
        %v675 = vand.u32 2147483647, %v578
        %v676 = vand.u32 2147483647, %v579
        %v677 = vand.u32 2147483647, %v580
        %v678 = vand.u32 2147483647, %v581
        %vm679 = vcmp.eq.f32.partialorder %v663, inf
        %vm680 = vcmp.eq.f32.partialorder %v664, inf
        %vm681 = vcmp.eq.f32.partialorder %v665, inf
        %vm682 = vcmp.eq.f32.partialorder %v666, inf
        %vm683 = vcmp.eq.f32.partialorder %v667, inf
        %vm684 = vcmp.eq.f32.partialorder %v668, inf
        %vm685 = vcmp.eq.f32.partialorder %v669, inf
        %vm686 = vcmp.eq.f32.partialorder %v670, inf
        %vm687 = vcmp.eq.f32.partialorder %v671, inf
        %vm688 = vcmp.eq.f32.partialorder %v672, inf
        %vm689 = vcmp.eq.f32.partialorder %v673, inf
        %vm690 = vcmp.eq.f32.partialorder %v674, inf
        %vm691 = vcmp.eq.f32.partialorder %v675, inf
        %vm692 = vcmp.eq.f32.partialorder %v676, inf
        %vm693 = vcmp.eq.f32.partialorder %v677, inf
        %vm694 = vcmp.eq.f32.partialorder %v678, inf
        %v695 = vsel %vm679, %v646, %v566
        %v696 = vsel %vm680, %v646, %v567
        %v697 = vsel %vm681, %v646, %v568
        %v698 = vsel %vm682, %v646, %v569
        %v699 = vsel %vm683, %v646, %v570
        %v700 = vsel %vm684, %v646, %v571
        %v701 = vsel %vm685, %v646, %v572
        %v702 = vsel %vm686, %v646, %v573
        %v703 = vsel %vm687, %v646, %v574
        %v704 = vsel %vm688, %v646, %v575
        %v705 = vsel %vm689, %v646, %v576
        %v706 = vsel %vm690, %v646, %v577
        %v707 = vsel %vm691, %v646, %v578
        %v708 = vsel %vm692, %v646, %v579
        %v709 = vsel %vm693, %v646, %v580
        %v710 = vsel %vm694, %v646, %v581
        %vm711 = vcmp.ne.f32.partialorder %v582, %v582
        %vm712 = vcmp.ne.f32.partialorder %v583, %v583
        %vm713 = vcmp.ne.f32.partialorder %v584, %v584
        %vm714 = vcmp.ne.f32.partialorder %v585, %v585
        %vm715 = vcmp.ne.f32.partialorder %v586, %v586
        %vm716 = vcmp.ne.f32.partialorder %v587, %v587
        %vm717 = vcmp.ne.f32.partialorder %v588, %v588
        %vm718 = vcmp.ne.f32.partialorder %v589, %v589
        %vm719 = vcmp.ne.f32.partialorder %v590, %v590
        %vm720 = vcmp.ne.f32.partialorder %v591, %v591
        %vm721 = vcmp.ne.f32.partialorder %v592, %v592
        %vm722 = vcmp.ne.f32.partialorder %v593, %v593
        %vm723 = vcmp.ne.f32.partialorder %v594, %v594
        %vm724 = vcmp.ne.f32.partialorder %v595, %v595
        %vm725 = vcmp.ne.f32.partialorder %v596, %v596
        %vm726 = vcmp.ne.f32.partialorder %v597, %v597
        %v727 = vsel %vm711, 1e-06, %v582
        %v728 = vsel %vm712, 1e-06, %v583
        %v729 = vsel %vm713, 1e-06, %v584
        %v730 = vsel %vm714, 1e-06, %v585
        %v731 = vsel %vm715, 1e-06, %v586
        %v732 = vsel %vm716, 1e-06, %v587
        %v733 = vsel %vm717, 1e-06, %v588
        %v734 = vsel %vm718, 1e-06, %v589
        %v735 = vsel %vm719, 1e-06, %v590
        %v736 = vsel %vm720, 1e-06, %v591
        %v737 = vsel %vm721, 1e-06, %v592
        %v738 = vsel %vm722, 1e-06, %v593
        %v739 = vsel %vm723, 1e-06, %v594
        %v740 = vsel %vm724, 1e-06, %v595
        %v741 = vsel %vm725, 1e-06, %v596
        %v742 = vsel %vm726, 1e-06, %v597
        %vm743 = vcmp.ne.f32.partialorder %v647, %v647
        %vm744 = vcmp.ne.f32.partialorder %v648, %v648
        %vm745 = vcmp.ne.f32.partialorder %v649, %v649
        %vm746 = vcmp.ne.f32.partialorder %v650, %v650
        %vm747 = vcmp.ne.f32.partialorder %v651, %v651
        %vm748 = vcmp.ne.f32.partialorder %v652, %v652
        %vm749 = vcmp.ne.f32.partialorder %v653, %v653
        %vm750 = vcmp.ne.f32.partialorder %v654, %v654
        %vm751 = vcmp.ne.f32.partialorder %v655, %v655
        %vm752 = vcmp.ne.f32.partialorder %v656, %v656
        %vm753 = vcmp.ne.f32.partialorder %v657, %v657
        %vm754 = vcmp.ne.f32.partialorder %v658, %v658
        %vm755 = vcmp.ne.f32.partialorder %v659, %v659
        %vm756 = vcmp.ne.f32.partialorder %v660, %v660
        %vm757 = vcmp.ne.f32.partialorder %v661, %v661
        %vm758 = vcmp.ne.f32.partialorder %v662, %v662
        %v759 = vsel %vm743, 1e-06, %v647
        %v760 = vsel %vm744, 1e-06, %v648
        %v761 = vsel %vm745, 1e-06, %v649
        %v762 = vsel %vm746, 1e-06, %v650
        %v763 = vsel %vm747, 1e-06, %v651
        %v764 = vsel %vm748, 1e-06, %v652
        %v765 = vsel %vm749, 1e-06, %v653
        %v766 = vsel %vm750, 1e-06, %v654
        %v767 = vsel %vm751, 1e-06, %v655
        %v768 = vsel %vm752, 1e-06, %v656
        %v769 = vsel %vm753, 1e-06, %v657
        %v770 = vsel %vm754, 1e-06, %v658
        %v771 = vsel %vm755, 1e-06, %v659
        %v772 = vsel %vm756, 1e-06, %v660
        %v773 = vsel %vm757, 1e-06, %v661
        %v774 = vsel %vm758, 1e-06, %v662
        %vm775 = vcmp.ne.f32.partialorder %v695, %v695
        %vm776 = vcmp.ne.f32.partialorder %v696, %v696
        %vm777 = vcmp.ne.f32.partialorder %v697, %v697
        %vm778 = vcmp.ne.f32.partialorder %v698, %v698
        %vm779 = vcmp.ne.f32.partialorder %v699, %v699
        %vm780 = vcmp.ne.f32.partialorder %v700, %v700
        %vm781 = vcmp.ne.f32.partialorder %v701, %v701
        %vm782 = vcmp.ne.f32.partialorder %v702, %v702
        %vm783 = vcmp.ne.f32.partialorder %v703, %v703
        %vm784 = vcmp.ne.f32.partialorder %v704, %v704
        %vm785 = vcmp.ne.f32.partialorder %v705, %v705
        %vm786 = vcmp.ne.f32.partialorder %v706, %v706
        %vm787 = vcmp.ne.f32.partialorder %v707, %v707
        %vm788 = vcmp.ne.f32.partialorder %v708, %v708
        %vm789 = vcmp.ne.f32.partialorder %v709, %v709
        %vm790 = vcmp.ne.f32.partialorder %v710, %v710
        %v791 = vsel %vm775, 1e-06, %v695
        %v792 = vsel %vm776, 1e-06, %v696
        %v793 = vsel %vm777, 1e-06, %v697
        %v794 = vsel %vm778, 1e-06, %v698
        %v795 = vsel %vm779, 1e-06, %v699
        %v796 = vsel %vm780, 1e-06, %v700
        %v797 = vsel %vm781, 1e-06, %v701
        %v798 = vsel %vm782, 1e-06, %v702
        %v799 = vsel %vm783, 1e-06, %v703
        %v800 = vsel %vm784, 1e-06, %v704
        %v801 = vsel %vm785, 1e-06, %v705
        %v802 = vsel %vm786, 1e-06, %v706
        %v803 = vsel %vm787, 1e-06, %v707
        %v804 = vsel %vm788, 1e-06, %v708
        %v805 = vsel %vm789, 1e-06, %v709
        %v806 = vsel %vm790, 1e-06, %v710
        %v807 = vmin.f32 %v759, 1000000.0
        %v808 = vmin.f32 %v760, 1000000.0
        %v809 = vmin.f32 %v761, 1000000.0
        %v810 = vmin.f32 %v762, 1000000.0
        %v811 = vmin.f32 %v763, 1000000.0
        %v812 = vmin.f32 %v764, 1000000.0
        %v813 = vmin.f32 %v765, 1000000.0
        %v814 = vmin.f32 %v766, 1000000.0
        %v815 = vmin.f32 %v767, 1000000.0
        %v816 = vmin.f32 %v768, 1000000.0
        %v817 = vmin.f32 %v769, 1000000.0
        %v818 = vmin.f32 %v770, 1000000.0
        %v819 = vmin.f32 %v771, 1000000.0
        %v820 = vmin.f32 %v772, 1000000.0
        %v821 = vmin.f32 %v773, 1000000.0
        %v822 = vmin.f32 %v774, 1000000.0
        %v823 = vadd.f32 %v807, 1e-10
        %v824 = vadd.f32 %v808, 1e-10
        %v825 = vadd.f32 %v809, 1e-10
        %v826 = vadd.f32 %v810, 1e-10
        %v827 = vadd.f32 %v811, 1e-10
        %v828 = vadd.f32 %v812, 1e-10
        %v829 = vadd.f32 %v813, 1e-10
        %v830 = vadd.f32 %v814, 1e-10
        %v831 = vadd.f32 %v815, 1e-10
        %v832 = vadd.f32 %v816, 1e-10
        %v833 = vadd.f32 %v817, 1e-10
        %v834 = vadd.f32 %v818, 1e-10
        %v835 = vadd.f32 %v819, 1e-10
        %v836 = vadd.f32 %v820, 1e-10
        %v837 = vadd.f32 %v821, 1e-10
        %v838 = vadd.f32 %v822, 1e-10
        %vm839 = vcmp.lt.f32.partialorder %v823, 8.0
        %vm840 = vcmp.lt.f32.partialorder %v824, 8.0
        %vm841 = vcmp.lt.f32.partialorder %v825, 8.0
        %vm842 = vcmp.lt.f32.partialorder %v826, 8.0
        %vm843 = vcmp.lt.f32.partialorder %v827, 8.0
        %vm844 = vcmp.lt.f32.partialorder %v828, 8.0
        %vm845 = vcmp.lt.f32.partialorder %v829, 8.0
        %vm846 = vcmp.lt.f32.partialorder %v830, 8.0
        %vm847 = vcmp.lt.f32.partialorder %v831, 8.0
        %vm848 = vcmp.lt.f32.partialorder %v832, 8.0
        %vm849 = vcmp.lt.f32.partialorder %v833, 8.0
        %vm850 = vcmp.lt.f32.partialorder %v834, 8.0
        %vm851 = vcmp.lt.f32.partialorder %v835, 8.0
        %vm852 = vcmp.lt.f32.partialorder %v836, 8.0
        %vm853 = vcmp.lt.f32.partialorder %v837, 8.0
        %vm854 = vcmp.lt.f32.partialorder %v838, 8.0
        %v855 = vadd.f32 %v823, 8.0
        %v856 = vadd.f32 %v824, 8.0
        %v857 = vadd.f32 %v825, 8.0
        %v858 = vadd.f32 %v826, 8.0
        %v859 = vadd.f32 %v827, 8.0
        %v860 = vadd.f32 %v828, 8.0
        %v861 = vadd.f32 %v829, 8.0
        %v862 = vadd.f32 %v830, 8.0
        %v863 = vadd.f32 %v831, 8.0
        %v864 = vadd.f32 %v832, 8.0
        %v865 = vadd.f32 %v833, 8.0
        %v866 = vadd.f32 %v834, 8.0
        %v867 = vadd.f32 %v835, 8.0
        %v868 = vadd.f32 %v836, 8.0
        %v869 = vadd.f32 %v837, 8.0
        %v870 = vadd.f32 %v838, 8.0
        %v871 = vsel %vm839, %v855, %v823
        %v872 = vsel %vm840, %v856, %v824
        %v873 = vsel %vm841, %v857, %v825
        %v874 = vsel %vm842, %v858, %v826
        %v875 = vsel %vm843, %v859, %v827
        %v876 = vsel %vm844, %v860, %v828
        %v877 = vsel %vm845, %v861, %v829
        %v878 = vsel %vm846, %v862, %v830
        %v879 = vsel %vm847, %v863, %v831
        %v880 = vsel %vm848, %v864, %v832
        %v881 = vsel %vm849, %v865, %v833
        %v882 = vsel %vm850, %v866, %v834
        %v883 = vsel %vm851, %v867, %v835
        %v884 = vsel %vm852, %v868, %v836
        %v885 = vsel %vm853, %v869, %v837
        %v886 = vsel %vm854, %v870, %v838
        %v887 = vadd.f32 %v823, 1.0
        %v888 = vadd.f32 %v824, 1.0
        %v889 = vadd.f32 %v825, 1.0
        %v890 = vadd.f32 %v826, 1.0
        %v891 = vadd.f32 %v827, 1.0
        %v892 = vadd.f32 %v828, 1.0
        %v893 = vadd.f32 %v829, 1.0
        %v894 = vadd.f32 %v830, 1.0
        %v895 = vadd.f32 %v831, 1.0
        %v896 = vadd.f32 %v832, 1.0
        %v897 = vadd.f32 %v833, 1.0
        %v898 = vadd.f32 %v834, 1.0
        %v899 = vadd.f32 %v835, 1.0
        %v900 = vadd.f32 %v836, 1.0
        %v901 = vadd.f32 %v837, 1.0
        %v902 = vadd.f32 %v838, 1.0
        %v903 = vmul.f32 %v823, %v887
        %v904 = vmul.f32 %v824, %v888
        %v905 = vmul.f32 %v825, %v889
        %v906 = vmul.f32 %v826, %v890
        %v907 = vmul.f32 %v827, %v891
        %v908 = vmul.f32 %v828, %v892
        %v909 = vmul.f32 %v829, %v893
        %v910 = vmul.f32 %v830, %v894
        %v911 = vmul.f32 %v831, %v895
        %v912 = vmul.f32 %v832, %v896
        %v913 = vmul.f32 %v833, %v897
        %v914 = vmul.f32 %v834, %v898
        %v915 = vmul.f32 %v835, %v899
        %v916 = vmul.f32 %v836, %v900
        %v917 = vmul.f32 %v837, %v901
        %v918 = vmul.f32 %v838, %v902
        %v919 = vadd.f32 %v823, 2.0
        %v920 = vadd.f32 %v824, 2.0
        %v921 = vadd.f32 %v825, 2.0
        %v922 = vadd.f32 %v826, 2.0
        %v923 = vadd.f32 %v827, 2.0
        %v924 = vadd.f32 %v828, 2.0
        %v925 = vadd.f32 %v829, 2.0
        %v926 = vadd.f32 %v830, 2.0
        %v927 = vadd.f32 %v831, 2.0
        %v928 = vadd.f32 %v832, 2.0
        %v929 = vadd.f32 %v833, 2.0
        %v930 = vadd.f32 %v834, 2.0
        %v931 = vadd.f32 %v835, 2.0
        %v932 = vadd.f32 %v836, 2.0
        %v933 = vadd.f32 %v837, 2.0
        %v934 = vadd.f32 %v838, 2.0
        %v935 = vmul.f32 %v903, %v919
        %v936 = vmul.f32 %v904, %v920
        %v937 = vmul.f32 %v905, %v921
        %v938 = vmul.f32 %v906, %v922
        %v939 = vmul.f32 %v907, %v923
        %v940 = vmul.f32 %v908, %v924
        %v941 = vmul.f32 %v909, %v925
        %v942 = vmul.f32 %v910, %v926
        %v943 = vmul.f32 %v911, %v927
        %v944 = vmul.f32 %v912, %v928
        %v945 = vmul.f32 %v913, %v929
        %v946 = vmul.f32 %v914, %v930
        %v947 = vmul.f32 %v915, %v931
        %v948 = vmul.f32 %v916, %v932
        %v949 = vmul.f32 %v917, %v933
        %v950 = vmul.f32 %v918, %v934
        %v951 = vadd.f32 %v823, 3.0
        %v952 = vadd.f32 %v824, 3.0
        %v953 = vadd.f32 %v825, 3.0
        %v954 = vadd.f32 %v826, 3.0
        %v955 = vadd.f32 %v827, 3.0
        %v956 = vadd.f32 %v828, 3.0
        %v957 = vadd.f32 %v829, 3.0
        %v958 = vadd.f32 %v830, 3.0
        %v959 = vadd.f32 %v831, 3.0
        %v960 = vadd.f32 %v832, 3.0
        %v961 = vadd.f32 %v833, 3.0
        %v962 = vadd.f32 %v834, 3.0
        %v963 = vadd.f32 %v835, 3.0
        %v964 = vadd.f32 %v836, 3.0
        %v965 = vadd.f32 %v837, 3.0
        %v966 = vadd.f32 %v838, 3.0
        %v967 = vmul.f32 %v935, %v951
        %v968 = vmul.f32 %v936, %v952
        %v969 = vmul.f32 %v937, %v953
        %v970 = vmul.f32 %v938, %v954
        %v971 = vmul.f32 %v939, %v955
        %v972 = vmul.f32 %v940, %v956
        %v973 = vmul.f32 %v941, %v957
        %v974 = vmul.f32 %v942, %v958
        %v975 = vmul.f32 %v943, %v959
        %v976 = vmul.f32 %v944, %v960
        %v977 = vmul.f32 %v945, %v961
        %v978 = vmul.f32 %v946, %v962
        %v979 = vmul.f32 %v947, %v963
        %v980 = vmul.f32 %v948, %v964
        %v981 = vmul.f32 %v949, %v965
        %v982 = vmul.f32 %v950, %v966
        %v983 = vadd.f32 %v823, 4.0
        %v984 = vadd.f32 %v824, 4.0
        %v985 = vadd.f32 %v825, 4.0
        %v986 = vadd.f32 %v826, 4.0
        %v987 = vadd.f32 %v827, 4.0
        %v988 = vadd.f32 %v828, 4.0
        %v989 = vadd.f32 %v829, 4.0
        %v990 = vadd.f32 %v830, 4.0
        %v991 = vadd.f32 %v831, 4.0
        %v992 = vadd.f32 %v832, 4.0
        %v993 = vadd.f32 %v833, 4.0
        %v994 = vadd.f32 %v834, 4.0
        %v995 = vadd.f32 %v835, 4.0
        %v996 = vadd.f32 %v836, 4.0
        %v997 = vadd.f32 %v837, 4.0
        %v998 = vadd.f32 %v838, 4.0
        %v999 = vmul.f32 %v967, %v983
        %v1000 = vmul.f32 %v968, %v984
        %v1001 = vmul.f32 %v969, %v985
        %v1002 = vmul.f32 %v970, %v986
        %v1003 = vmul.f32 %v971, %v987
        %v1004 = vmul.f32 %v972, %v988
        %v1005 = vmul.f32 %v973, %v989
        %v1006 = vmul.f32 %v974, %v990
        %v1007 = vmul.f32 %v975, %v991
        %v1008 = vmul.f32 %v976, %v992
        %v1009 = vmul.f32 %v977, %v993
        %v1010 = vmul.f32 %v978, %v994
        %v1011 = vmul.f32 %v979, %v995
        %v1012 = vmul.f32 %v980, %v996
        %v1013 = vmul.f32 %v981, %v997
        %v1014 = vmul.f32 %v982, %v998
        %v1015 = vadd.f32 %v823, 5.0
        %v1016 = vadd.f32 %v824, 5.0
        %v1017 = vadd.f32 %v825, 5.0
        %v1018 = vadd.f32 %v826, 5.0
        %v1019 = vadd.f32 %v827, 5.0
        %v1020 = vadd.f32 %v828, 5.0
        %v1021 = vadd.f32 %v829, 5.0
        %v1022 = vadd.f32 %v830, 5.0
        %v1023 = vadd.f32 %v831, 5.0
        %v1024 = vadd.f32 %v832, 5.0
        %v1025 = vadd.f32 %v833, 5.0
        %v1026 = vadd.f32 %v834, 5.0
        %v1027 = vadd.f32 %v835, 5.0
        %v1028 = vadd.f32 %v836, 5.0
        %v1029 = vadd.f32 %v837, 5.0
        %v1030 = vadd.f32 %v838, 5.0
        %v1031 = vmul.f32 %v999, %v1015
        %v1032 = vmul.f32 %v1000, %v1016
        %v1033 = vmul.f32 %v1001, %v1017
        %v1034 = vmul.f32 %v1002, %v1018
        %v1035 = vmul.f32 %v1003, %v1019
        %v1036 = vmul.f32 %v1004, %v1020
        %v1037 = vmul.f32 %v1005, %v1021
        %v1038 = vmul.f32 %v1006, %v1022
        %v1039 = vmul.f32 %v1007, %v1023
        %v1040 = vmul.f32 %v1008, %v1024
        %v1041 = vmul.f32 %v1009, %v1025
        %v1042 = vmul.f32 %v1010, %v1026
        %v1043 = vmul.f32 %v1011, %v1027
        %v1044 = vmul.f32 %v1012, %v1028
        %v1045 = vmul.f32 %v1013, %v1029
        %v1046 = vmul.f32 %v1014, %v1030
        %v1047 = vadd.f32 %v823, 6.0
        %v1048 = vadd.f32 %v824, 6.0
        %v1049 = vadd.f32 %v825, 6.0
        %v1050 = vadd.f32 %v826, 6.0
        %v1051 = vadd.f32 %v827, 6.0
        %v1052 = vadd.f32 %v828, 6.0
        %v1053 = vadd.f32 %v829, 6.0
        %v1054 = vadd.f32 %v830, 6.0
        %v1055 = vadd.f32 %v831, 6.0
        %v1056 = vadd.f32 %v832, 6.0
        %v1057 = vadd.f32 %v833, 6.0
        %v1058 = vadd.f32 %v834, 6.0
        %v1059 = vadd.f32 %v835, 6.0
        %v1060 = vadd.f32 %v836, 6.0
        %v1061 = vadd.f32 %v837, 6.0
        %v1062 = vadd.f32 %v838, 6.0
        %v1063 = vmul.f32 %v1031, %v1047
        %v1064 = vmul.f32 %v1032, %v1048
        %v1065 = vmul.f32 %v1033, %v1049
        %v1066 = vmul.f32 %v1034, %v1050
        %v1067 = vmul.f32 %v1035, %v1051
        %v1068 = vmul.f32 %v1036, %v1052
        %v1069 = vmul.f32 %v1037, %v1053
        %v1070 = vmul.f32 %v1038, %v1054
        %v1071 = vmul.f32 %v1039, %v1055
        %v1072 = vmul.f32 %v1040, %v1056
        %v1073 = vmul.f32 %v1041, %v1057
        %v1074 = vmul.f32 %v1042, %v1058
        %v1075 = vmul.f32 %v1043, %v1059
        %v1076 = vmul.f32 %v1044, %v1060
        %v1077 = vmul.f32 %v1045, %v1061
        %v1078 = vmul.f32 %v1046, %v1062
        %v1079 = vadd.f32 %v823, 7.0
        %v1080 = vadd.f32 %v824, 7.0
        %v1081 = vadd.f32 %v825, 7.0
        %v1082 = vadd.f32 %v826, 7.0
        %v1083 = vadd.f32 %v827, 7.0
        %v1084 = vadd.f32 %v828, 7.0
        %v1085 = vadd.f32 %v829, 7.0
        %v1086 = vadd.f32 %v830, 7.0
        %v1087 = vadd.f32 %v831, 7.0
        %v1088 = vadd.f32 %v832, 7.0
        %v1089 = vadd.f32 %v833, 7.0
        %v1090 = vadd.f32 %v834, 7.0
        %v1091 = vadd.f32 %v835, 7.0
        %v1092 = vadd.f32 %v836, 7.0
        %v1093 = vadd.f32 %v837, 7.0
        %v1094 = vadd.f32 %v838, 7.0
        %v1095 = vmul.f32 %v1063, %v1079
        %v1096 = vmul.f32 %v1064, %v1080
        %v1097 = vmul.f32 %v1065, %v1081
        %v1098 = vmul.f32 %v1066, %v1082
        %v1099 = vmul.f32 %v1067, %v1083
        %v1100 = vmul.f32 %v1068, %v1084
        %v1101 = vmul.f32 %v1069, %v1085
        %v1102 = vmul.f32 %v1070, %v1086
        %v1103 = vmul.f32 %v1071, %v1087
        %v1104 = vmul.f32 %v1072, %v1088
        %v1105 = vmul.f32 %v1073, %v1089
        %v1106 = vmul.f32 %v1074, %v1090
        %v1107 = vmul.f32 %v1075, %v1091
        %v1108 = vmul.f32 %v1076, %v1092
        %v1109 = vmul.f32 %v1077, %v1093
        %v1110 = vmul.f32 %v1078, %v1094
        %v1111 = vsel %vm839, %v1095, 1.0
        %v1112 = vsel %vm840, %v1096, 1.0
        %v1113 = vsel %vm841, %v1097, 1.0
        %v1114 = vsel %vm842, %v1098, 1.0
        %v1115 = vsel %vm843, %v1099, 1.0
        %v1116 = vsel %vm844, %v1100, 1.0
        %v1117 = vsel %vm845, %v1101, 1.0
        %v1118 = vsel %vm846, %v1102, 1.0
        %v1119 = vsel %vm847, %v1103, 1.0
        %v1120 = vsel %vm848, %v1104, 1.0
        %v1121 = vsel %vm849, %v1105, 1.0
        %v1122 = vsel %vm850, %v1106, 1.0
        %v1123 = vsel %vm851, %v1107, 1.0
        %v1124 = vsel %vm852, %v1108, 1.0
        %v1125 = vsel %vm853, %v1109, 1.0
        %v1126 = vsel %vm854, %v1110, 1.0
        %v1127 = vrcp.pop %v871
        %v1128 = vrcp.pop %v872
        %v1129 = vrcp.pop %v873
        %v1130 = vrcp.pop %v874
        %v1131 = vrcp.pop %v875
        %v1132 = vrcp.pop %v876
        %v1133 = vrcp.pop %v877
        %v1134 = vrcp.pop %v878
        %v1135 = vrcp.pop %v879
        %v1136 = vrcp.pop %v880
        %v1137 = vrcp.pop %v881
        %v1138 = vrcp.pop %v882
        %v1139 = vrcp.pop %v883
        %v1140 = vrcp.pop %v884
        %v1141 = vrcp.pop %v885
        %v1142 = vrcp.pop %v886
        %v1143 = vmul.f32 %v1127, %v1127
        %v1144 = vmul.f32 %v1128, %v1128
        %v1145 = vmul.f32 %v1129, %v1129
        %v1146 = vmul.f32 %v1130, %v1130
        %v1147 = vmul.f32 %v1131, %v1131
        %v1148 = vmul.f32 %v1132, %v1132
        %v1149 = vmul.f32 %v1133, %v1133
        %v1150 = vmul.f32 %v1134, %v1134
        %v1151 = vmul.f32 %v1135, %v1135
        %v1152 = vmul.f32 %v1136, %v1136
        %v1153 = vmul.f32 %v1137, %v1137
        %v1154 = vmul.f32 %v1138, %v1138
        %v1155 = vmul.f32 %v1139, %v1139
        %v1156 = vmul.f32 %v1140, %v1140
        %v1157 = vmul.f32 %v1141, %v1141
        %v1158 = vmul.f32 %v1142, %v1142
        %v1159 = vmul.f32 %v1143, -0.0005952381
        %v1160 = vmul.f32 %v1144, -0.0005952381
        %v1161 = vmul.f32 %v1145, -0.0005952381
        %v1162 = vmul.f32 %v1146, -0.0005952381
        %v1163 = vmul.f32 %v1147, -0.0005952381
        %v1164 = vmul.f32 %v1148, -0.0005952381
        %v1165 = vmul.f32 %v1149, -0.0005952381
        %v1166 = vmul.f32 %v1150, -0.0005952381
        %v1167 = vmul.f32 %v1151, -0.0005952381
        %v1168 = vmul.f32 %v1152, -0.0005952381
        %v1169 = vmul.f32 %v1153, -0.0005952381
        %v1170 = vmul.f32 %v1154, -0.0005952381
        %v1171 = vmul.f32 %v1155, -0.0005952381
        %v1172 = vmul.f32 %v1156, -0.0005952381
        %v1173 = vmul.f32 %v1157, -0.0005952381
        %v1174 = vmul.f32 %v1158, -0.0005952381
        %v1175 = vadd.f32 %v1159, 0.0007936508
        %v1176 = vadd.f32 %v1160, 0.0007936508
        %v1177 = vadd.f32 %v1161, 0.0007936508
        %v1178 = vadd.f32 %v1162, 0.0007936508
        %v1179 = vadd.f32 %v1163, 0.0007936508
        %v1180 = vadd.f32 %v1164, 0.0007936508
        %v1181 = vadd.f32 %v1165, 0.0007936508
        %v1182 = vadd.f32 %v1166, 0.0007936508
        %v1183 = vadd.f32 %v1167, 0.0007936508
        %v1184 = vadd.f32 %v1168, 0.0007936508
        %v1185 = vadd.f32 %v1169, 0.0007936508
        %v1186 = vadd.f32 %v1170, 0.0007936508
        %v1187 = vadd.f32 %v1171, 0.0007936508
        %v1188 = vadd.f32 %v1172, 0.0007936508
        %v1189 = vadd.f32 %v1173, 0.0007936508
        %v1190 = vadd.f32 %v1174, 0.0007936508
        %v1191 = vmul.f32 %v1143, %v1175
        %v1192 = vmul.f32 %v1144, %v1176
        %v1193 = vmul.f32 %v1145, %v1177
        %v1194 = vmul.f32 %v1146, %v1178
        %v1195 = vmul.f32 %v1147, %v1179
        %v1196 = vmul.f32 %v1148, %v1180
        %v1197 = vmul.f32 %v1149, %v1181
        %v1198 = vmul.f32 %v1150, %v1182
        %v1199 = vmul.f32 %v1151, %v1183
        %v1200 = vmul.f32 %v1152, %v1184
        %v1201 = vmul.f32 %v1153, %v1185
        %v1202 = vmul.f32 %v1154, %v1186
        %v1203 = vmul.f32 %v1155, %v1187
        %v1204 = vmul.f32 %v1156, %v1188
        %v1205 = vmul.f32 %v1157, %v1189
        %v1206 = vmul.f32 %v1158, %v1190
        %v1207 = vadd.f32 %v1191, -0.0027777778
        %v1208 = vadd.f32 %v1192, -0.0027777778
        %v1209 = vadd.f32 %v1193, -0.0027777778
        %v1210 = vadd.f32 %v1194, -0.0027777778
        %v1211 = vadd.f32 %v1195, -0.0027777778
        %v1212 = vadd.f32 %v1196, -0.0027777778
        %v1213 = vadd.f32 %v1197, -0.0027777778
        %v1214 = vadd.f32 %v1198, -0.0027777778
        %v1215 = vadd.f32 %v1199, -0.0027777778
        %v1216 = vadd.f32 %v1200, -0.0027777778
        %v1217 = vadd.f32 %v1201, -0.0027777778
        %v1218 = vadd.f32 %v1202, -0.0027777778
        %v1219 = vadd.f32 %v1203, -0.0027777778
        %v1220 = vadd.f32 %v1204, -0.0027777778
        %v1221 = vadd.f32 %v1205, -0.0027777778
        %v1222 = vadd.f32 %v1206, -0.0027777778
        %v1223 = vmul.f32 %v1143, %v1207
        %v1224 = vmul.f32 %v1144, %v1208
        %v1225 = vmul.f32 %v1145, %v1209
        %v1226 = vmul.f32 %v1146, %v1210
        %v1227 = vmul.f32 %v1147, %v1211
        %v1228 = vmul.f32 %v1148, %v1212
        %v1229 = vmul.f32 %v1149, %v1213
        %v1230 = vmul.f32 %v1150, %v1214
        %v1231 = vmul.f32 %v1151, %v1215
        %v1232 = vmul.f32 %v1152, %v1216
        %v1233 = vmul.f32 %v1153, %v1217
        %v1234 = vmul.f32 %v1154, %v1218
        %v1235 = vmul.f32 %v1155, %v1219
        %v1236 = vmul.f32 %v1156, %v1220
        %v1237 = vmul.f32 %v1157, %v1221
        %v1238 = vmul.f32 %v1158, %v1222
        %v1239 = vadd.f32 %v1223, 0.083333336
        %v1240 = vadd.f32 %v1224, 0.083333336
        %v1241 = vadd.f32 %v1225, 0.083333336
        %v1242 = vadd.f32 %v1226, 0.083333336
        %v1243 = vadd.f32 %v1227, 0.083333336
        %v1244 = vadd.f32 %v1228, 0.083333336
        %v1245 = vadd.f32 %v1229, 0.083333336
        %v1246 = vadd.f32 %v1230, 0.083333336
        %v1247 = vadd.f32 %v1231, 0.083333336
        %v1248 = vadd.f32 %v1232, 0.083333336
        %v1249 = vadd.f32 %v1233, 0.083333336
        %v1250 = vadd.f32 %v1234, 0.083333336
        %v1251 = vadd.f32 %v1235, 0.083333336
        %v1252 = vadd.f32 %v1236, 0.083333336
        %v1253 = vadd.f32 %v1237, 0.083333336
        %v1254 = vadd.f32 %v1238, 0.083333336
        %v1255 = vmul.f32 %v1127, %v1239
        %v1256 = vmul.f32 %v1128, %v1240
        %v1257 = vmul.f32 %v1129, %v1241
        %v1258 = vmul.f32 %v1130, %v1242
        %v1259 = vmul.f32 %v1131, %v1243
        %v1260 = vmul.f32 %v1132, %v1244
        %v1261 = vmul.f32 %v1133, %v1245
        %v1262 = vmul.f32 %v1134, %v1246
        %v1263 = vmul.f32 %v1135, %v1247
        %v1264 = vmul.f32 %v1136, %v1248
        %v1265 = vmul.f32 %v1137, %v1249
        %v1266 = vmul.f32 %v1138, %v1250
        %v1267 = vmul.f32 %v1139, %v1251
        %v1268 = vmul.f32 %v1140, %v1252
        %v1269 = vmul.f32 %v1141, %v1253
        %v1270 = vmul.f32 %v1142, %v1254
        %v1271 = vsub.f32 %v871, 0.5
        %v1272 = vsub.f32 %v872, 0.5
        %v1273 = vsub.f32 %v873, 0.5
        %v1274 = vsub.f32 %v874, 0.5
        %v1275 = vsub.f32 %v875, 0.5
        %v1276 = vsub.f32 %v876, 0.5
        %v1277 = vsub.f32 %v877, 0.5
        %v1278 = vsub.f32 %v878, 0.5
        %v1279 = vsub.f32 %v879, 0.5
        %v1280 = vsub.f32 %v880, 0.5
        %v1281 = vsub.f32 %v881, 0.5
        %v1282 = vsub.f32 %v882, 0.5
        %v1283 = vsub.f32 %v883, 0.5
        %v1284 = vsub.f32 %v884, 0.5
        %v1285 = vsub.f32 %v885, 0.5
        %v1286 = vsub.f32 %v886, 0.5
        %v1303 = vshra.s32 %v871, 23
        %v1304 = vshra.s32 %v872, 23
        %v1305 = vshra.s32 %v873, 23
        %v1306 = vshra.s32 %v874, 23
        %v1307 = vshra.s32 %v875, 23
        %v1308 = vshra.s32 %v876, 23
        %v1309 = vshra.s32 %v877, 23
        %v1310 = vshra.s32 %v878, 23
        %v1311 = vshra.s32 %v879, 23
        %v1312 = vshra.s32 %v880, 23
        %v1313 = vshra.s32 %v881, 23
        %v1314 = vshra.s32 %v882, 23
        %v1315 = vshra.s32 %v883, 23
        %v1316 = vshra.s32 %v884, 23
        %v1317 = vshra.s32 %v885, 23
        %v1318 = vshra.s32 %v886, 23
        %v1319 = vand.u32 %v1303, 255
        %v1320 = vand.u32 %v1304, 255
        %v1321 = vand.u32 %v1305, 255
        %v1322 = vand.u32 %v1306, 255
        %v1323 = vand.u32 %v1307, 255
        %v1324 = vand.u32 %v1308, 255
        %v1325 = vand.u32 %v1309, 255
        %v1326 = vand.u32 %v1310, 255
        %v1327 = vand.u32 %v1311, 255
        %v1328 = vand.u32 %v1312, 255
        %v1329 = vand.u32 %v1313, 255
        %v1330 = vand.u32 %v1314, 255
        %v1331 = vand.u32 %v1315, 255
        %v1332 = vand.u32 %v1316, 255
        %v1333 = vand.u32 %v1317, 255
        %v1334 = vand.u32 %v1318, 255
        %v1335 = vsub.s32 %v1319, 127
        %v1336 = vsub.s32 %v1320, 127
        %v1337 = vsub.s32 %v1321, 127
        %v1338 = vsub.s32 %v1322, 127
        %v1339 = vsub.s32 %v1323, 127
        %v1340 = vsub.s32 %v1324, 127
        %v1341 = vsub.s32 %v1325, 127
        %v1342 = vsub.s32 %v1326, 127
        %v1343 = vsub.s32 %v1327, 127
        %v1344 = vsub.s32 %v1328, 127
        %v1345 = vsub.s32 %v1329, 127
        %v1346 = vsub.s32 %v1330, 127
        %v1347 = vsub.s32 %v1331, 127
        %v1348 = vsub.s32 %v1332, 127
        %v1349 = vsub.s32 %v1333, 127
        %v1350 = vsub.s32 %v1334, 127
        %v1351 = vand.u32 %v871, 8388607
        %v1352 = vand.u32 %v872, 8388607
        %v1353 = vand.u32 %v873, 8388607
        %v1354 = vand.u32 %v874, 8388607
        %v1355 = vand.u32 %v875, 8388607
        %v1356 = vand.u32 %v876, 8388607
        %v1357 = vand.u32 %v877, 8388607
        %v1358 = vand.u32 %v878, 8388607
        %v1359 = vand.u32 %v879, 8388607
        %v1360 = vand.u32 %v880, 8388607
        %v1361 = vand.u32 %v881, 8388607
        %v1362 = vand.u32 %v882, 8388607
        %v1363 = vand.u32 %v883, 8388607
        %v1364 = vand.u32 %v884, 8388607
        %v1365 = vand.u32 %v885, 8388607
        %v1366 = vand.u32 %v886, 8388607
        %v1367 = vor.u32 %v1351, 1065353216
        %v1368 = vor.u32 %v1352, 1065353216
        %v1369 = vor.u32 %v1353, 1065353216
        %v1370 = vor.u32 %v1354, 1065353216
        %v1371 = vor.u32 %v1355, 1065353216
        %v1372 = vor.u32 %v1356, 1065353216
        %v1373 = vor.u32 %v1357, 1065353216
        %v1374 = vor.u32 %v1358, 1065353216
        %v1375 = vor.u32 %v1359, 1065353216
        %v1376 = vor.u32 %v1360, 1065353216
        %v1377 = vor.u32 %v1361, 1065353216
        %v1378 = vor.u32 %v1362, 1065353216
        %v1379 = vor.u32 %v1363, 1065353216
        %v1380 = vor.u32 %v1364, 1065353216
        %v1381 = vor.u32 %v1365, 1065353216
        %v1382 = vor.u32 %v1366, 1065353216
        %vm1399 = vcmp.gt.f32.partialorder %v1367, 1.4142135
        %vm1400 = vcmp.gt.f32.partialorder %v1368, 1.4142135
        %vm1401 = vcmp.gt.f32.partialorder %v1369, 1.4142135
        %vm1402 = vcmp.gt.f32.partialorder %v1370, 1.4142135
        %vm1403 = vcmp.gt.f32.partialorder %v1371, 1.4142135
        %vm1404 = vcmp.gt.f32.partialorder %v1372, 1.4142135
        %vm1405 = vcmp.gt.f32.partialorder %v1373, 1.4142135
        %vm1406 = vcmp.gt.f32.partialorder %v1374, 1.4142135
        %vm1407 = vcmp.gt.f32.partialorder %v1375, 1.4142135
        %vm1408 = vcmp.gt.f32.partialorder %v1376, 1.4142135
        %vm1409 = vcmp.gt.f32.partialorder %v1377, 1.4142135
        %vm1410 = vcmp.gt.f32.partialorder %v1378, 1.4142135
        %vm1411 = vcmp.gt.f32.partialorder %v1379, 1.4142135
        %vm1412 = vcmp.gt.f32.partialorder %v1380, 1.4142135
        %vm1413 = vcmp.gt.f32.partialorder %v1381, 1.4142135
        %vm1414 = vcmp.gt.f32.partialorder %v1382, 1.4142135
        %v1415 = vmul.f32 %v1367, 0.5
        %v1416 = vmul.f32 %v1368, 0.5
        %v1417 = vmul.f32 %v1369, 0.5
        %v1418 = vmul.f32 %v1370, 0.5
        %v1419 = vmul.f32 %v1371, 0.5
        %v1420 = vmul.f32 %v1372, 0.5
        %v1421 = vmul.f32 %v1373, 0.5
        %v1422 = vmul.f32 %v1374, 0.5
        %v1423 = vmul.f32 %v1375, 0.5
        %v1424 = vmul.f32 %v1376, 0.5
        %v1425 = vmul.f32 %v1377, 0.5
        %v1426 = vmul.f32 %v1378, 0.5
        %v1427 = vmul.f32 %v1379, 0.5
        %v1428 = vmul.f32 %v1380, 0.5
        %v1429 = vmul.f32 %v1381, 0.5
        %v1430 = vmul.f32 %v1382, 0.5
        %v1431 = vsel %vm1399, %v1415, %v1367
        %v1432 = vsel %vm1400, %v1416, %v1368
        %v1433 = vsel %vm1401, %v1417, %v1369
        %v1434 = vsel %vm1402, %v1418, %v1370
        %v1435 = vsel %vm1403, %v1419, %v1371
        %v1436 = vsel %vm1404, %v1420, %v1372
        %v1437 = vsel %vm1405, %v1421, %v1373
        %v1438 = vsel %vm1406, %v1422, %v1374
        %v1439 = vsel %vm1407, %v1423, %v1375
        %v1440 = vsel %vm1408, %v1424, %v1376
        %v1441 = vsel %vm1409, %v1425, %v1377
        %v1442 = vsel %vm1410, %v1426, %v1378
        %v1443 = vsel %vm1411, %v1427, %v1379
        %v1444 = vsel %vm1412, %v1428, %v1380
        %v1445 = vsel %vm1413, %v1429, %v1381
        %v1446 = vsel %vm1414, %v1430, %v1382
        %v1447 = vadd.s32 %v1335, 1
        %v1448 = vadd.s32 %v1336, 1
        %v1449 = vadd.s32 %v1337, 1
        %v1450 = vadd.s32 %v1338, 1
        %v1451 = vadd.s32 %v1339, 1
        %v1452 = vadd.s32 %v1340, 1
        %v1453 = vadd.s32 %v1341, 1
        %v1454 = vadd.s32 %v1342, 1
        %v1455 = vadd.s32 %v1343, 1
        %v1456 = vadd.s32 %v1344, 1
        %v1457 = vadd.s32 %v1345, 1
        %v1458 = vadd.s32 %v1346, 1
        %v1459 = vadd.s32 %v1347, 1
        %v1460 = vadd.s32 %v1348, 1
        %v1461 = vadd.s32 %v1349, 1
        %v1462 = vadd.s32 %v1350, 1
        %v1463 = vsel %vm1399, %v1447, %v1335
        %v1464 = vsel %vm1400, %v1448, %v1336
        %v1465 = vsel %vm1401, %v1449, %v1337
        %v1466 = vsel %vm1402, %v1450, %v1338
        %v1467 = vsel %vm1403, %v1451, %v1339
        %v1468 = vsel %vm1404, %v1452, %v1340
        %v1469 = vsel %vm1405, %v1453, %v1341
        %v1470 = vsel %vm1406, %v1454, %v1342
        %v1471 = vsel %vm1407, %v1455, %v1343
        %v1472 = vsel %vm1408, %v1456, %v1344
        %v1473 = vsel %vm1409, %v1457, %v1345
        %v1474 = vsel %vm1410, %v1458, %v1346
        %v1475 = vsel %vm1411, %v1459, %v1347
        %v1476 = vsel %vm1412, %v1460, %v1348
        %v1477 = vsel %vm1413, %v1461, %v1349
        %v1478 = vsel %vm1414, %v1462, %v1350
        %v1479 = vcvt.s32.f32 %v1463
        %v1480 = vcvt.s32.f32 %v1464
        %v1481 = vcvt.s32.f32 %v1465
        %v1482 = vcvt.s32.f32 %v1466
        %v1483 = vcvt.s32.f32 %v1467
        %v1484 = vcvt.s32.f32 %v1468
        %v1485 = vcvt.s32.f32 %v1469
        %v1486 = vcvt.s32.f32 %v1470
        %v1487 = vcvt.s32.f32 %v1471
        %v1488 = vcvt.s32.f32 %v1472
        %v1489 = vcvt.s32.f32 %v1473
        %v1490 = vcvt.s32.f32 %v1474
        %v1491 = vcvt.s32.f32 %v1475
        %v1492 = vcvt.s32.f32 %v1476
        %v1493 = vcvt.s32.f32 %v1477
        %v1494 = vcvt.s32.f32 %v1478
        %v1495 = vadd.f32 %v1431, 1.0
        %v1496 = vadd.f32 %v1432, 1.0
        %v1497 = vadd.f32 %v1433, 1.0
        %v1498 = vadd.f32 %v1434, 1.0
        %v1499 = vadd.f32 %v1435, 1.0
        %v1500 = vadd.f32 %v1436, 1.0
        %v1501 = vadd.f32 %v1437, 1.0
        %v1502 = vadd.f32 %v1438, 1.0
        %v1503 = vadd.f32 %v1439, 1.0
        %v1504 = vadd.f32 %v1440, 1.0
        %v1505 = vadd.f32 %v1441, 1.0
        %v1506 = vadd.f32 %v1442, 1.0
        %v1507 = vadd.f32 %v1443, 1.0
        %v1508 = vadd.f32 %v1444, 1.0
        %v1509 = vadd.f32 %v1445, 1.0
        %v1510 = vadd.f32 %v1446, 1.0
        %v1511 = vrcp.pop %v1495
        %v1512 = vrcp.pop %v1496
        %v1513 = vrcp.pop %v1497
        %v1514 = vrcp.pop %v1498
        %v1515 = vrcp.pop %v1499
        %v1516 = vrcp.pop %v1500
        %v1517 = vrcp.pop %v1501
        %v1518 = vrcp.pop %v1502
        %v1519 = vrcp.pop %v1503
        %v1520 = vrcp.pop %v1504
        %v1521 = vrcp.pop %v1505
        %v1522 = vrcp.pop %v1506
        %v1523 = vrcp.pop %v1507
        %v1524 = vrcp.pop %v1508
        %v1525 = vrcp.pop %v1509
        %v1526 = vrcp.pop %v1510
        %v1527 = vmul.f32 %v1495, %v1511
        %v1528 = vmul.f32 %v1496, %v1512
        %v1529 = vmul.f32 %v1497, %v1513
        %v1530 = vmul.f32 %v1498, %v1514
        %v1531 = vmul.f32 %v1499, %v1515
        %v1532 = vmul.f32 %v1500, %v1516
        %v1533 = vmul.f32 %v1501, %v1517
        %v1534 = vmul.f32 %v1502, %v1518
        %v1535 = vmul.f32 %v1503, %v1519
        %v1536 = vmul.f32 %v1504, %v1520
        %v1537 = vmul.f32 %v1505, %v1521
        %v1538 = vmul.f32 %v1506, %v1522
        %v1539 = vmul.f32 %v1507, %v1523
        %v1540 = vmul.f32 %v1508, %v1524
        %v1541 = vmul.f32 %v1509, %v1525
        %v1542 = vmul.f32 %v1510, %v1526
        %v1543 = vsub.f32 2.0, %v1527
        %v1544 = vsub.f32 2.0, %v1528
        %v1545 = vsub.f32 2.0, %v1529
        %v1546 = vsub.f32 2.0, %v1530
        %v1547 = vsub.f32 2.0, %v1531
        %v1548 = vsub.f32 2.0, %v1532
        %v1549 = vsub.f32 2.0, %v1533
        %v1550 = vsub.f32 2.0, %v1534
        %v1551 = vsub.f32 2.0, %v1535
        %v1552 = vsub.f32 2.0, %v1536
        %v1553 = vsub.f32 2.0, %v1537
        %v1554 = vsub.f32 2.0, %v1538
        %v1555 = vsub.f32 2.0, %v1539
        %v1556 = vsub.f32 2.0, %v1540
        %v1557 = vsub.f32 2.0, %v1541
        %v1558 = vsub.f32 2.0, %v1542
        %v1559 = vmul.f32 %v1511, %v1543
        %v1560 = vmul.f32 %v1512, %v1544
        %v1561 = vmul.f32 %v1513, %v1545
        %v1562 = vmul.f32 %v1514, %v1546
        %v1563 = vmul.f32 %v1515, %v1547
        %v1564 = vmul.f32 %v1516, %v1548
        %v1565 = vmul.f32 %v1517, %v1549
        %v1566 = vmul.f32 %v1518, %v1550
        %v1567 = vmul.f32 %v1519, %v1551
        %v1568 = vmul.f32 %v1520, %v1552
        %v1569 = vmul.f32 %v1521, %v1553
        %v1570 = vmul.f32 %v1522, %v1554
        %v1571 = vmul.f32 %v1523, %v1555
        %v1572 = vmul.f32 %v1524, %v1556
        %v1573 = vmul.f32 %v1525, %v1557
        %v1574 = vmul.f32 %v1526, %v1558
        %v1575 = vsub.f32 %v1431, 1.0
        %v1576 = vsub.f32 %v1432, 1.0
        %v1577 = vsub.f32 %v1433, 1.0
        %v1578 = vsub.f32 %v1434, 1.0
        %v1579 = vsub.f32 %v1435, 1.0
        %v1580 = vsub.f32 %v1436, 1.0
        %v1581 = vsub.f32 %v1437, 1.0
        %v1582 = vsub.f32 %v1438, 1.0
        %v1583 = vsub.f32 %v1439, 1.0
        %v1584 = vsub.f32 %v1440, 1.0
        %v1585 = vsub.f32 %v1441, 1.0
        %v1586 = vsub.f32 %v1442, 1.0
        %v1587 = vsub.f32 %v1443, 1.0
        %v1588 = vsub.f32 %v1444, 1.0
        %v1589 = vsub.f32 %v1445, 1.0
        %v1590 = vsub.f32 %v1446, 1.0
        %v1591 = vmul.f32 %v1575, %v1559
        %v1592 = vmul.f32 %v1576, %v1560
        %v1593 = vmul.f32 %v1577, %v1561
        %v1594 = vmul.f32 %v1578, %v1562
        %v1595 = vmul.f32 %v1579, %v1563
        %v1596 = vmul.f32 %v1580, %v1564
        %v1597 = vmul.f32 %v1581, %v1565
        %v1598 = vmul.f32 %v1582, %v1566
        %v1599 = vmul.f32 %v1583, %v1567
        %v1600 = vmul.f32 %v1584, %v1568
        %v1601 = vmul.f32 %v1585, %v1569
        %v1602 = vmul.f32 %v1586, %v1570
        %v1603 = vmul.f32 %v1587, %v1571
        %v1604 = vmul.f32 %v1588, %v1572
        %v1605 = vmul.f32 %v1589, %v1573
        %v1606 = vmul.f32 %v1590, %v1574
        %v1607 = vmul.f32 %v1591, %v1591
        %v1608 = vmul.f32 %v1592, %v1592
        %v1609 = vmul.f32 %v1593, %v1593
        %v1610 = vmul.f32 %v1594, %v1594
        %v1611 = vmul.f32 %v1595, %v1595
        %v1612 = vmul.f32 %v1596, %v1596
        %v1613 = vmul.f32 %v1597, %v1597
        %v1614 = vmul.f32 %v1598, %v1598
        %v1615 = vmul.f32 %v1599, %v1599
        %v1616 = vmul.f32 %v1600, %v1600
        %v1617 = vmul.f32 %v1601, %v1601
        %v1618 = vmul.f32 %v1602, %v1602
        %v1619 = vmul.f32 %v1603, %v1603
        %v1620 = vmul.f32 %v1604, %v1604
        %v1621 = vmul.f32 %v1605, %v1605
        %v1622 = vmul.f32 %v1606, %v1606
        %v1623 = vmul.f32 %v1607, 0.11111111
        %v1624 = vmul.f32 %v1608, 0.11111111
        %v1625 = vmul.f32 %v1609, 0.11111111
        %v1626 = vmul.f32 %v1610, 0.11111111
        %v1627 = vmul.f32 %v1611, 0.11111111
        %v1628 = vmul.f32 %v1612, 0.11111111
        %v1629 = vmul.f32 %v1613, 0.11111111
        %v1630 = vmul.f32 %v1614, 0.11111111
        %v1631 = vmul.f32 %v1615, 0.11111111
        %v1632 = vmul.f32 %v1616, 0.11111111
        %v1633 = vmul.f32 %v1617, 0.11111111
        %v1634 = vmul.f32 %v1618, 0.11111111
        %v1635 = vmul.f32 %v1619, 0.11111111
        %v1636 = vmul.f32 %v1620, 0.11111111
        %v1637 = vmul.f32 %v1621, 0.11111111
        %v1638 = vmul.f32 %v1622, 0.11111111
        %v1639 = vadd.f32 %v1623, 0.14285715
        %v1640 = vadd.f32 %v1624, 0.14285715
        %v1641 = vadd.f32 %v1625, 0.14285715
        %v1642 = vadd.f32 %v1626, 0.14285715
        %v1643 = vadd.f32 %v1627, 0.14285715
        %v1644 = vadd.f32 %v1628, 0.14285715
        %v1645 = vadd.f32 %v1629, 0.14285715
        %v1646 = vadd.f32 %v1630, 0.14285715
        %v1647 = vadd.f32 %v1631, 0.14285715
        %v1648 = vadd.f32 %v1632, 0.14285715
        %v1649 = vadd.f32 %v1633, 0.14285715
        %v1650 = vadd.f32 %v1634, 0.14285715
        %v1651 = vadd.f32 %v1635, 0.14285715
        %v1652 = vadd.f32 %v1636, 0.14285715
        %v1653 = vadd.f32 %v1637, 0.14285715
        %v1654 = vadd.f32 %v1638, 0.14285715
        %v1655 = vmul.f32 %v1607, %v1639
        %v1656 = vmul.f32 %v1608, %v1640
        %v1657 = vmul.f32 %v1609, %v1641
        %v1658 = vmul.f32 %v1610, %v1642
        %v1659 = vmul.f32 %v1611, %v1643
        %v1660 = vmul.f32 %v1612, %v1644
        %v1661 = vmul.f32 %v1613, %v1645
        %v1662 = vmul.f32 %v1614, %v1646
        %v1663 = vmul.f32 %v1615, %v1647
        %v1664 = vmul.f32 %v1616, %v1648
        %v1665 = vmul.f32 %v1617, %v1649
        %v1666 = vmul.f32 %v1618, %v1650
        %v1667 = vmul.f32 %v1619, %v1651
        %v1668 = vmul.f32 %v1620, %v1652
        %v1669 = vmul.f32 %v1621, %v1653
        %v1670 = vmul.f32 %v1622, %v1654
        %v1671 = vadd.f32 %v1655, 0.2
        %v1672 = vadd.f32 %v1656, 0.2
        %v1673 = vadd.f32 %v1657, 0.2
        %v1674 = vadd.f32 %v1658, 0.2
        %v1675 = vadd.f32 %v1659, 0.2
        %v1676 = vadd.f32 %v1660, 0.2
        %v1677 = vadd.f32 %v1661, 0.2
        %v1678 = vadd.f32 %v1662, 0.2
        %v1679 = vadd.f32 %v1663, 0.2
        %v1680 = vadd.f32 %v1664, 0.2
        %v1681 = vadd.f32 %v1665, 0.2
        %v1682 = vadd.f32 %v1666, 0.2
        %v1683 = vadd.f32 %v1667, 0.2
        %v1684 = vadd.f32 %v1668, 0.2
        %v1685 = vadd.f32 %v1669, 0.2
        %v1686 = vadd.f32 %v1670, 0.2
        %v1687 = vmul.f32 %v1607, %v1671
        %v1688 = vmul.f32 %v1608, %v1672
        %v1689 = vmul.f32 %v1609, %v1673
        %v1690 = vmul.f32 %v1610, %v1674
        %v1691 = vmul.f32 %v1611, %v1675
        %v1692 = vmul.f32 %v1612, %v1676
        %v1693 = vmul.f32 %v1613, %v1677
        %v1694 = vmul.f32 %v1614, %v1678
        %v1695 = vmul.f32 %v1615, %v1679
        %v1696 = vmul.f32 %v1616, %v1680
        %v1697 = vmul.f32 %v1617, %v1681
        %v1698 = vmul.f32 %v1618, %v1682
        %v1699 = vmul.f32 %v1619, %v1683
        %v1700 = vmul.f32 %v1620, %v1684
        %v1701 = vmul.f32 %v1621, %v1685
        %v1702 = vmul.f32 %v1622, %v1686
        %v1703 = vadd.f32 %v1687, 0.33333334
        %v1704 = vadd.f32 %v1688, 0.33333334
        %v1705 = vadd.f32 %v1689, 0.33333334
        %v1706 = vadd.f32 %v1690, 0.33333334
        %v1707 = vadd.f32 %v1691, 0.33333334
        %v1708 = vadd.f32 %v1692, 0.33333334
        %v1709 = vadd.f32 %v1693, 0.33333334
        %v1710 = vadd.f32 %v1694, 0.33333334
        %v1711 = vadd.f32 %v1695, 0.33333334
        %v1712 = vadd.f32 %v1696, 0.33333334
        %v1713 = vadd.f32 %v1697, 0.33333334
        %v1714 = vadd.f32 %v1698, 0.33333334
        %v1715 = vadd.f32 %v1699, 0.33333334
        %v1716 = vadd.f32 %v1700, 0.33333334
        %v1717 = vadd.f32 %v1701, 0.33333334
        %v1718 = vadd.f32 %v1702, 0.33333334
        %v1719 = vmul.f32 %v1607, %v1703
        %v1720 = vmul.f32 %v1608, %v1704
        %v1721 = vmul.f32 %v1609, %v1705
        %v1722 = vmul.f32 %v1610, %v1706
        %v1723 = vmul.f32 %v1611, %v1707
        %v1724 = vmul.f32 %v1612, %v1708
        %v1725 = vmul.f32 %v1613, %v1709
        %v1726 = vmul.f32 %v1614, %v1710
        %v1727 = vmul.f32 %v1615, %v1711
        %v1728 = vmul.f32 %v1616, %v1712
        %v1729 = vmul.f32 %v1617, %v1713
        %v1730 = vmul.f32 %v1618, %v1714
        %v1731 = vmul.f32 %v1619, %v1715
        %v1732 = vmul.f32 %v1620, %v1716
        %v1733 = vmul.f32 %v1621, %v1717
        %v1734 = vmul.f32 %v1622, %v1718
        %v1735 = vmul.f32 %v1479, 0.6931472
        %v1736 = vmul.f32 %v1480, 0.6931472
        %v1737 = vmul.f32 %v1481, 0.6931472
        %v1738 = vmul.f32 %v1482, 0.6931472
        %v1739 = vmul.f32 %v1483, 0.6931472
        %v1740 = vmul.f32 %v1484, 0.6931472
        %v1741 = vmul.f32 %v1485, 0.6931472
        %v1742 = vmul.f32 %v1486, 0.6931472
        %v1743 = vmul.f32 %v1487, 0.6931472
        %v1744 = vmul.f32 %v1488, 0.6931472
        %v1745 = vmul.f32 %v1489, 0.6931472
        %v1746 = vmul.f32 %v1490, 0.6931472
        %v1747 = vmul.f32 %v1491, 0.6931472
        %v1748 = vmul.f32 %v1492, 0.6931472
        %v1749 = vmul.f32 %v1493, 0.6931472
        %v1750 = vmul.f32 %v1494, 0.6931472
        %v1751 = vmul.f32 %v1591, %v1719
        %v1752 = vmul.f32 %v1592, %v1720
        %v1753 = vmul.f32 %v1593, %v1721
        %v1754 = vmul.f32 %v1594, %v1722
        %v1755 = vmul.f32 %v1595, %v1723
        %v1756 = vmul.f32 %v1596, %v1724
        %v1757 = vmul.f32 %v1597, %v1725
        %v1758 = vmul.f32 %v1598, %v1726
        %v1759 = vmul.f32 %v1599, %v1727
        %v1760 = vmul.f32 %v1600, %v1728
        %v1761 = vmul.f32 %v1601, %v1729
        %v1762 = vmul.f32 %v1602, %v1730
        %v1763 = vmul.f32 %v1603, %v1731
        %v1764 = vmul.f32 %v1604, %v1732
        %v1765 = vmul.f32 %v1605, %v1733
        %v1766 = vmul.f32 %v1606, %v1734
        %v1767 = vadd.f32 %v1591, %v1751
        %v1768 = vadd.f32 %v1592, %v1752
        %v1769 = vadd.f32 %v1593, %v1753
        %v1770 = vadd.f32 %v1594, %v1754
        %v1771 = vadd.f32 %v1595, %v1755
        %v1772 = vadd.f32 %v1596, %v1756
        %v1773 = vadd.f32 %v1597, %v1757
        %v1774 = vadd.f32 %v1598, %v1758
        %v1775 = vadd.f32 %v1599, %v1759
        %v1776 = vadd.f32 %v1600, %v1760
        %v1777 = vadd.f32 %v1601, %v1761
        %v1778 = vadd.f32 %v1602, %v1762
        %v1779 = vadd.f32 %v1603, %v1763
        %v1780 = vadd.f32 %v1604, %v1764
        %v1781 = vadd.f32 %v1605, %v1765
        %v1782 = vadd.f32 %v1606, %v1766
        %v1783 = vmul.f32 %v1767, 2.0
        %v1784 = vmul.f32 %v1768, 2.0
        %v1785 = vmul.f32 %v1769, 2.0
        %v1786 = vmul.f32 %v1770, 2.0
        %v1787 = vmul.f32 %v1771, 2.0
        %v1788 = vmul.f32 %v1772, 2.0
        %v1789 = vmul.f32 %v1773, 2.0
        %v1790 = vmul.f32 %v1774, 2.0
        %v1791 = vmul.f32 %v1775, 2.0
        %v1792 = vmul.f32 %v1776, 2.0
        %v1793 = vmul.f32 %v1777, 2.0
        %v1794 = vmul.f32 %v1778, 2.0
        %v1795 = vmul.f32 %v1779, 2.0
        %v1796 = vmul.f32 %v1780, 2.0
        %v1797 = vmul.f32 %v1781, 2.0
        %v1798 = vmul.f32 %v1782, 2.0
        %v1799 = vadd.f32 %v1735, %v1783
        %v1800 = vadd.f32 %v1736, %v1784
        %v1801 = vadd.f32 %v1737, %v1785
        %v1802 = vadd.f32 %v1738, %v1786
        %v1803 = vadd.f32 %v1739, %v1787
        %v1804 = vadd.f32 %v1740, %v1788
        %v1805 = vadd.f32 %v1741, %v1789
        %v1806 = vadd.f32 %v1742, %v1790
        %v1807 = vadd.f32 %v1743, %v1791
        %v1808 = vadd.f32 %v1744, %v1792
        %v1809 = vadd.f32 %v1745, %v1793
        %v1810 = vadd.f32 %v1746, %v1794
        %v1811 = vadd.f32 %v1747, %v1795
        %v1812 = vadd.f32 %v1748, %v1796
        %v1813 = vadd.f32 %v1749, %v1797
        %v1814 = vadd.f32 %v1750, %v1798
        %v1815 = vmul.f32 %v1271, %v1799
        %v1816 = vmul.f32 %v1272, %v1800
        %v1817 = vmul.f32 %v1273, %v1801
        %v1818 = vmul.f32 %v1274, %v1802
        %v1819 = vmul.f32 %v1275, %v1803
        %v1820 = vmul.f32 %v1276, %v1804
        %v1821 = vmul.f32 %v1277, %v1805
        %v1822 = vmul.f32 %v1278, %v1806
        %v1823 = vmul.f32 %v1279, %v1807
        %v1824 = vmul.f32 %v1280, %v1808
        %v1825 = vmul.f32 %v1281, %v1809
        %v1826 = vmul.f32 %v1282, %v1810
        %v1827 = vmul.f32 %v1283, %v1811
        %v1828 = vmul.f32 %v1284, %v1812
        %v1829 = vmul.f32 %v1285, %v1813
        %v1830 = vmul.f32 %v1286, %v1814
        %v1831 = vsub.f32 %v1815, %v871
        %v1832 = vsub.f32 %v1816, %v872
        %v1833 = vsub.f32 %v1817, %v873
        %v1834 = vsub.f32 %v1818, %v874
        %v1835 = vsub.f32 %v1819, %v875
        %v1836 = vsub.f32 %v1820, %v876
        %v1837 = vsub.f32 %v1821, %v877
        %v1838 = vsub.f32 %v1822, %v878
        %v1839 = vsub.f32 %v1823, %v879
        %v1840 = vsub.f32 %v1824, %v880
        %v1841 = vsub.f32 %v1825, %v881
        %v1842 = vsub.f32 %v1826, %v882
        %v1843 = vsub.f32 %v1827, %v883
        %v1844 = vsub.f32 %v1828, %v884
        %v1845 = vsub.f32 %v1829, %v885
        %v1846 = vsub.f32 %v1830, %v886
        %v1847 = vadd.f32 %v1831, 0.9189385
        %v1848 = vadd.f32 %v1832, 0.9189385
        %v1849 = vadd.f32 %v1833, 0.9189385
        %v1850 = vadd.f32 %v1834, 0.9189385
        %v1851 = vadd.f32 %v1835, 0.9189385
        %v1852 = vadd.f32 %v1836, 0.9189385
        %v1853 = vadd.f32 %v1837, 0.9189385
        %v1854 = vadd.f32 %v1838, 0.9189385
        %v1855 = vadd.f32 %v1839, 0.9189385
        %v1856 = vadd.f32 %v1840, 0.9189385
        %v1857 = vadd.f32 %v1841, 0.9189385
        %v1858 = vadd.f32 %v1842, 0.9189385
        %v1859 = vadd.f32 %v1843, 0.9189385
        %v1860 = vadd.f32 %v1844, 0.9189385
        %v1861 = vadd.f32 %v1845, 0.9189385
        %v1862 = vadd.f32 %v1846, 0.9189385
        %v1863 = vadd.f32 %v1847, %v1255
        %v1864 = vadd.f32 %v1848, %v1256
        %v1865 = vadd.f32 %v1849, %v1257
        %v1866 = vadd.f32 %v1850, %v1258
        %v1867 = vadd.f32 %v1851, %v1259
        %v1868 = vadd.f32 %v1852, %v1260
        %v1869 = vadd.f32 %v1853, %v1261
        %v1870 = vadd.f32 %v1854, %v1262
        %v1871 = vadd.f32 %v1855, %v1263
        %v1872 = vadd.f32 %v1856, %v1264
        %v1873 = vadd.f32 %v1857, %v1265
        %v1874 = vadd.f32 %v1858, %v1266
        %v1875 = vadd.f32 %v1859, %v1267
        %v1876 = vadd.f32 %v1860, %v1268
        %v1877 = vadd.f32 %v1861, %v1269
        %v1878 = vadd.f32 %v1862, %v1270
        %v1879 = vadd.f32 %v550, 1.0
        %v1880 = vadd.f32 %v551, 1.0
        %v1881 = vadd.f32 %v552, 1.0
        %v1882 = vadd.f32 %v553, 1.0
        %v1883 = vadd.f32 %v554, 1.0
        %v1884 = vadd.f32 %v555, 1.0
        %v1885 = vadd.f32 %v556, 1.0
        %v1886 = vadd.f32 %v557, 1.0
        %v1887 = vadd.f32 %v558, 1.0
        %v1888 = vadd.f32 %v559, 1.0
        %v1889 = vadd.f32 %v560, 1.0
        %v1890 = vadd.f32 %v561, 1.0
        %v1891 = vadd.f32 %v562, 1.0
        %v1892 = vadd.f32 %v563, 1.0
        %v1893 = vadd.f32 %v564, 1.0
        %v1894 = vadd.f32 %v565, 1.0
        %vm1895 = vcmp.lt.f32.partialorder %v1879, 8.0
        %vm1896 = vcmp.lt.f32.partialorder %v1880, 8.0
        %vm1897 = vcmp.lt.f32.partialorder %v1881, 8.0
        %vm1898 = vcmp.lt.f32.partialorder %v1882, 8.0
        %vm1899 = vcmp.lt.f32.partialorder %v1883, 8.0
        %vm1900 = vcmp.lt.f32.partialorder %v1884, 8.0
        %vm1901 = vcmp.lt.f32.partialorder %v1885, 8.0
        %vm1902 = vcmp.lt.f32.partialorder %v1886, 8.0
        %vm1903 = vcmp.lt.f32.partialorder %v1887, 8.0
        %vm1904 = vcmp.lt.f32.partialorder %v1888, 8.0
        %vm1905 = vcmp.lt.f32.partialorder %v1889, 8.0
        %vm1906 = vcmp.lt.f32.partialorder %v1890, 8.0
        %vm1907 = vcmp.lt.f32.partialorder %v1891, 8.0
        %vm1908 = vcmp.lt.f32.partialorder %v1892, 8.0
        %vm1909 = vcmp.lt.f32.partialorder %v1893, 8.0
        %vm1910 = vcmp.lt.f32.partialorder %v1894, 8.0
        %v1911 = vadd.f32 %v1879, 8.0
        %v1912 = vadd.f32 %v1880, 8.0
        %v1913 = vadd.f32 %v1881, 8.0
        %v1914 = vadd.f32 %v1882, 8.0
        %v1915 = vadd.f32 %v1883, 8.0
        %v1916 = vadd.f32 %v1884, 8.0
        %v1917 = vadd.f32 %v1885, 8.0
        %v1918 = vadd.f32 %v1886, 8.0
        %v1919 = vadd.f32 %v1887, 8.0
        %v1920 = vadd.f32 %v1888, 8.0
        %v1921 = vadd.f32 %v1889, 8.0
        %v1922 = vadd.f32 %v1890, 8.0
        %v1923 = vadd.f32 %v1891, 8.0
        %v1924 = vadd.f32 %v1892, 8.0
        %v1925 = vadd.f32 %v1893, 8.0
        %v1926 = vadd.f32 %v1894, 8.0
        %v1927 = vsel %vm1895, %v1911, %v1879
        %v1928 = vsel %vm1896, %v1912, %v1880
        %v1929 = vsel %vm1897, %v1913, %v1881
        %v1930 = vsel %vm1898, %v1914, %v1882
        %v1931 = vsel %vm1899, %v1915, %v1883
        %v1932 = vsel %vm1900, %v1916, %v1884
        %v1933 = vsel %vm1901, %v1917, %v1885
        %v1934 = vsel %vm1902, %v1918, %v1886
        %v1935 = vsel %vm1903, %v1919, %v1887
        %v1936 = vsel %vm1904, %v1920, %v1888
        %v1937 = vsel %vm1905, %v1921, %v1889
        %v1938 = vsel %vm1906, %v1922, %v1890
        %v1939 = vsel %vm1907, %v1923, %v1891
        %v1940 = vsel %vm1908, %v1924, %v1892
        %v1941 = vsel %vm1909, %v1925, %v1893
        %v1942 = vsel %vm1910, %v1926, %v1894
        %v1943 = vadd.f32 %v1879, 1.0
        %v1944 = vadd.f32 %v1880, 1.0
        %v1945 = vadd.f32 %v1881, 1.0
        %v1946 = vadd.f32 %v1882, 1.0
        %v1947 = vadd.f32 %v1883, 1.0
        %v1948 = vadd.f32 %v1884, 1.0
        %v1949 = vadd.f32 %v1885, 1.0
        %v1950 = vadd.f32 %v1886, 1.0
        %v1951 = vadd.f32 %v1887, 1.0
        %v1952 = vadd.f32 %v1888, 1.0
        %v1953 = vadd.f32 %v1889, 1.0
        %v1954 = vadd.f32 %v1890, 1.0
        %v1955 = vadd.f32 %v1891, 1.0
        %v1956 = vadd.f32 %v1892, 1.0
        %v1957 = vadd.f32 %v1893, 1.0
        %v1958 = vadd.f32 %v1894, 1.0
        %v1959 = vmul.f32 %v1879, %v1943
        %v1960 = vmul.f32 %v1880, %v1944
        %v1961 = vmul.f32 %v1881, %v1945
        %v1962 = vmul.f32 %v1882, %v1946
        %v1963 = vmul.f32 %v1883, %v1947
        %v1964 = vmul.f32 %v1884, %v1948
        %v1965 = vmul.f32 %v1885, %v1949
        %v1966 = vmul.f32 %v1886, %v1950
        %v1967 = vmul.f32 %v1887, %v1951
        %v1968 = vmul.f32 %v1888, %v1952
        %v1969 = vmul.f32 %v1889, %v1953
        %v1970 = vmul.f32 %v1890, %v1954
        %v1971 = vmul.f32 %v1891, %v1955
        %v1972 = vmul.f32 %v1892, %v1956
        %v1973 = vmul.f32 %v1893, %v1957
        %v1974 = vmul.f32 %v1894, %v1958
        %v1975 = vadd.f32 %v1879, 2.0
        %v1976 = vadd.f32 %v1880, 2.0
        %v1977 = vadd.f32 %v1881, 2.0
        %v1978 = vadd.f32 %v1882, 2.0
        %v1979 = vadd.f32 %v1883, 2.0
        %v1980 = vadd.f32 %v1884, 2.0
        %v1981 = vadd.f32 %v1885, 2.0
        %v1982 = vadd.f32 %v1886, 2.0
        %v1983 = vadd.f32 %v1887, 2.0
        %v1984 = vadd.f32 %v1888, 2.0
        %v1985 = vadd.f32 %v1889, 2.0
        %v1986 = vadd.f32 %v1890, 2.0
        %v1987 = vadd.f32 %v1891, 2.0
        %v1988 = vadd.f32 %v1892, 2.0
        %v1989 = vadd.f32 %v1893, 2.0
        %v1990 = vadd.f32 %v1894, 2.0
        %v1991 = vmul.f32 %v1959, %v1975
        %v1992 = vmul.f32 %v1960, %v1976
        %v1993 = vmul.f32 %v1961, %v1977
        %v1994 = vmul.f32 %v1962, %v1978
        %v1995 = vmul.f32 %v1963, %v1979
        %v1996 = vmul.f32 %v1964, %v1980
        %v1997 = vmul.f32 %v1965, %v1981
        %v1998 = vmul.f32 %v1966, %v1982
        %v1999 = vmul.f32 %v1967, %v1983
        %v2000 = vmul.f32 %v1968, %v1984
        %v2001 = vmul.f32 %v1969, %v1985
        %v2002 = vmul.f32 %v1970, %v1986
        %v2003 = vmul.f32 %v1971, %v1987
        %v2004 = vmul.f32 %v1972, %v1988
        %v2005 = vmul.f32 %v1973, %v1989
        %v2006 = vmul.f32 %v1974, %v1990
        %v2007 = vadd.f32 %v1879, 3.0
        %v2008 = vadd.f32 %v1880, 3.0
        %v2009 = vadd.f32 %v1881, 3.0
        %v2010 = vadd.f32 %v1882, 3.0
        %v2011 = vadd.f32 %v1883, 3.0
        %v2012 = vadd.f32 %v1884, 3.0
        %v2013 = vadd.f32 %v1885, 3.0
        %v2014 = vadd.f32 %v1886, 3.0
        %v2015 = vadd.f32 %v1887, 3.0
        %v2016 = vadd.f32 %v1888, 3.0
        %v2017 = vadd.f32 %v1889, 3.0
        %v2018 = vadd.f32 %v1890, 3.0
        %v2019 = vadd.f32 %v1891, 3.0
        %v2020 = vadd.f32 %v1892, 3.0
        %v2021 = vadd.f32 %v1893, 3.0
        %v2022 = vadd.f32 %v1894, 3.0
        %v2023 = vmul.f32 %v1991, %v2007
        %v2024 = vmul.f32 %v1992, %v2008
        %v2025 = vmul.f32 %v1993, %v2009
        %v2026 = vmul.f32 %v1994, %v2010
        %v2027 = vmul.f32 %v1995, %v2011
        %v2028 = vmul.f32 %v1996, %v2012
        %v2029 = vmul.f32 %v1997, %v2013
        %v2030 = vmul.f32 %v1998, %v2014
        %v2031 = vmul.f32 %v1999, %v2015
        %v2032 = vmul.f32 %v2000, %v2016
        %v2033 = vmul.f32 %v2001, %v2017
        %v2034 = vmul.f32 %v2002, %v2018
        %v2035 = vmul.f32 %v2003, %v2019
        %v2036 = vmul.f32 %v2004, %v2020
        %v2037 = vmul.f32 %v2005, %v2021
        %v2038 = vmul.f32 %v2006, %v2022
        %v2039 = vadd.f32 %v1879, 4.0
        %v2040 = vadd.f32 %v1880, 4.0
        %v2041 = vadd.f32 %v1881, 4.0
        %v2042 = vadd.f32 %v1882, 4.0
        %v2043 = vadd.f32 %v1883, 4.0
        %v2044 = vadd.f32 %v1884, 4.0
        %v2045 = vadd.f32 %v1885, 4.0
        %v2046 = vadd.f32 %v1886, 4.0
        %v2047 = vadd.f32 %v1887, 4.0
        %v2048 = vadd.f32 %v1888, 4.0
        %v2049 = vadd.f32 %v1889, 4.0
        %v2050 = vadd.f32 %v1890, 4.0
        %v2051 = vadd.f32 %v1891, 4.0
        %v2052 = vadd.f32 %v1892, 4.0
        %v2053 = vadd.f32 %v1893, 4.0
        %v2054 = vadd.f32 %v1894, 4.0
        %v2055 = vmul.f32 %v2023, %v2039
        %v2056 = vmul.f32 %v2024, %v2040
        %v2057 = vmul.f32 %v2025, %v2041
        %v2058 = vmul.f32 %v2026, %v2042
        %v2059 = vmul.f32 %v2027, %v2043
        %v2060 = vmul.f32 %v2028, %v2044
        %v2061 = vmul.f32 %v2029, %v2045
        %v2062 = vmul.f32 %v2030, %v2046
        %v2063 = vmul.f32 %v2031, %v2047
        %v2064 = vmul.f32 %v2032, %v2048
        %v2065 = vmul.f32 %v2033, %v2049
        %v2066 = vmul.f32 %v2034, %v2050
        %v2067 = vmul.f32 %v2035, %v2051
        %v2068 = vmul.f32 %v2036, %v2052
        %v2069 = vmul.f32 %v2037, %v2053
        %v2070 = vmul.f32 %v2038, %v2054
        %v2071 = vadd.f32 %v1879, 5.0
        %v2072 = vadd.f32 %v1880, 5.0
        %v2073 = vadd.f32 %v1881, 5.0
        %v2074 = vadd.f32 %v1882, 5.0
        %v2075 = vadd.f32 %v1883, 5.0
        %v2076 = vadd.f32 %v1884, 5.0
        %v2077 = vadd.f32 %v1885, 5.0
        %v2078 = vadd.f32 %v1886, 5.0
        %v2079 = vadd.f32 %v1887, 5.0
        %v2080 = vadd.f32 %v1888, 5.0
        %v2081 = vadd.f32 %v1889, 5.0
        %v2082 = vadd.f32 %v1890, 5.0
        %v2083 = vadd.f32 %v1891, 5.0
        %v2084 = vadd.f32 %v1892, 5.0
        %v2085 = vadd.f32 %v1893, 5.0
        %v2086 = vadd.f32 %v1894, 5.0
        %v2087 = vmul.f32 %v2055, %v2071
        %v2088 = vmul.f32 %v2056, %v2072
        %v2089 = vmul.f32 %v2057, %v2073
        %v2090 = vmul.f32 %v2058, %v2074
        %v2091 = vmul.f32 %v2059, %v2075
        %v2092 = vmul.f32 %v2060, %v2076
        %v2093 = vmul.f32 %v2061, %v2077
        %v2094 = vmul.f32 %v2062, %v2078
        %v2095 = vmul.f32 %v2063, %v2079
        %v2096 = vmul.f32 %v2064, %v2080
        %v2097 = vmul.f32 %v2065, %v2081
        %v2098 = vmul.f32 %v2066, %v2082
        %v2099 = vmul.f32 %v2067, %v2083
        %v2100 = vmul.f32 %v2068, %v2084
        %v2101 = vmul.f32 %v2069, %v2085
        %v2102 = vmul.f32 %v2070, %v2086
        %v2103 = vadd.f32 %v1879, 6.0
        %v2104 = vadd.f32 %v1880, 6.0
        %v2105 = vadd.f32 %v1881, 6.0
        %v2106 = vadd.f32 %v1882, 6.0
        %v2107 = vadd.f32 %v1883, 6.0
        %v2108 = vadd.f32 %v1884, 6.0
        %v2109 = vadd.f32 %v1885, 6.0
        %v2110 = vadd.f32 %v1886, 6.0
        %v2111 = vadd.f32 %v1887, 6.0
        %v2112 = vadd.f32 %v1888, 6.0
        %v2113 = vadd.f32 %v1889, 6.0
        %v2114 = vadd.f32 %v1890, 6.0
        %v2115 = vadd.f32 %v1891, 6.0
        %v2116 = vadd.f32 %v1892, 6.0
        %v2117 = vadd.f32 %v1893, 6.0
        %v2118 = vadd.f32 %v1894, 6.0
        %v2119 = vmul.f32 %v2087, %v2103
        %v2120 = vmul.f32 %v2088, %v2104
        %v2121 = vmul.f32 %v2089, %v2105
        %v2122 = vmul.f32 %v2090, %v2106
        %v2123 = vmul.f32 %v2091, %v2107
        %v2124 = vmul.f32 %v2092, %v2108
        %v2125 = vmul.f32 %v2093, %v2109
        %v2126 = vmul.f32 %v2094, %v2110
        %v2127 = vmul.f32 %v2095, %v2111
        %v2128 = vmul.f32 %v2096, %v2112
        %v2129 = vmul.f32 %v2097, %v2113
        %v2130 = vmul.f32 %v2098, %v2114
        %v2131 = vmul.f32 %v2099, %v2115
        %v2132 = vmul.f32 %v2100, %v2116
        %v2133 = vmul.f32 %v2101, %v2117
        %v2134 = vmul.f32 %v2102, %v2118
        %v2135 = vadd.f32 %v1879, 7.0
        %v2136 = vadd.f32 %v1880, 7.0
        %v2137 = vadd.f32 %v1881, 7.0
        %v2138 = vadd.f32 %v1882, 7.0
        %v2139 = vadd.f32 %v1883, 7.0
        %v2140 = vadd.f32 %v1884, 7.0
        %v2141 = vadd.f32 %v1885, 7.0
        %v2142 = vadd.f32 %v1886, 7.0
        %v2143 = vadd.f32 %v1887, 7.0
        %v2144 = vadd.f32 %v1888, 7.0
        %v2145 = vadd.f32 %v1889, 7.0
        %v2146 = vadd.f32 %v1890, 7.0
        %v2147 = vadd.f32 %v1891, 7.0
        %v2148 = vadd.f32 %v1892, 7.0
        %v2149 = vadd.f32 %v1893, 7.0
        %v2150 = vadd.f32 %v1894, 7.0
        %v2151 = vmul.f32 %v2119, %v2135
        %v2152 = vmul.f32 %v2120, %v2136
        %v2153 = vmul.f32 %v2121, %v2137
        %v2154 = vmul.f32 %v2122, %v2138
        %v2155 = vmul.f32 %v2123, %v2139
        %v2156 = vmul.f32 %v2124, %v2140
        %v2157 = vmul.f32 %v2125, %v2141
        %v2158 = vmul.f32 %v2126, %v2142
        %v2159 = vmul.f32 %v2127, %v2143
        %v2160 = vmul.f32 %v2128, %v2144
        %v2161 = vmul.f32 %v2129, %v2145
        %v2162 = vmul.f32 %v2130, %v2146
        %v2163 = vmul.f32 %v2131, %v2147
        %v2164 = vmul.f32 %v2132, %v2148
        %v2165 = vmul.f32 %v2133, %v2149
        %v2166 = vmul.f32 %v2134, %v2150
        %v2167 = vsel %vm1895, %v2151, 1.0
        %v2168 = vsel %vm1896, %v2152, 1.0
        %v2169 = vsel %vm1897, %v2153, 1.0
        %v2170 = vsel %vm1898, %v2154, 1.0
        %v2171 = vsel %vm1899, %v2155, 1.0
        %v2172 = vsel %vm1900, %v2156, 1.0
        %v2173 = vsel %vm1901, %v2157, 1.0
        %v2174 = vsel %vm1902, %v2158, 1.0
        %v2175 = vsel %vm1903, %v2159, 1.0
        %v2176 = vsel %vm1904, %v2160, 1.0
        %v2177 = vsel %vm1905, %v2161, 1.0
        %v2178 = vsel %vm1906, %v2162, 1.0
        %v2179 = vsel %vm1907, %v2163, 1.0
        %v2180 = vsel %vm1908, %v2164, 1.0
        %v2181 = vsel %vm1909, %v2165, 1.0
        %v2182 = vsel %vm1910, %v2166, 1.0
        %v2183 = vrcp.pop %v1927
        %v2184 = vrcp.pop %v1928
        %v2185 = vrcp.pop %v1929
        %v2186 = vrcp.pop %v1930
        %v2187 = vrcp.pop %v1931
        %v2188 = vrcp.pop %v1932
        %v2189 = vrcp.pop %v1933
        %v2190 = vrcp.pop %v1934
        %v2191 = vrcp.pop %v1935
        %v2192 = vrcp.pop %v1936
        %v2193 = vrcp.pop %v1937
        %v2194 = vrcp.pop %v1938
        %v2195 = vrcp.pop %v1939
        %v2196 = vrcp.pop %v1940
        %v2197 = vrcp.pop %v1941
        %v2198 = vrcp.pop %v1942
        %v2199 = vmul.f32 %v2183, %v2183
        %v2200 = vmul.f32 %v2184, %v2184
        %v2201 = vmul.f32 %v2185, %v2185
        %v2202 = vmul.f32 %v2186, %v2186
        %v2203 = vmul.f32 %v2187, %v2187
        %v2204 = vmul.f32 %v2188, %v2188
        %v2205 = vmul.f32 %v2189, %v2189
        %v2206 = vmul.f32 %v2190, %v2190
        %v2207 = vmul.f32 %v2191, %v2191
        %v2208 = vmul.f32 %v2192, %v2192
        %v2209 = vmul.f32 %v2193, %v2193
        %v2210 = vmul.f32 %v2194, %v2194
        %v2211 = vmul.f32 %v2195, %v2195
        %v2212 = vmul.f32 %v2196, %v2196
        %v2213 = vmul.f32 %v2197, %v2197
        %v2214 = vmul.f32 %v2198, %v2198
        %v2215 = vmul.f32 %v2199, -0.0005952381
        %v2216 = vmul.f32 %v2200, -0.0005952381
        %v2217 = vmul.f32 %v2201, -0.0005952381
        %v2218 = vmul.f32 %v2202, -0.0005952381
        %v2219 = vmul.f32 %v2203, -0.0005952381
        %v2220 = vmul.f32 %v2204, -0.0005952381
        %v2221 = vmul.f32 %v2205, -0.0005952381
        %v2222 = vmul.f32 %v2206, -0.0005952381
        %v2223 = vmul.f32 %v2207, -0.0005952381
        %v2224 = vmul.f32 %v2208, -0.0005952381
        %v2225 = vmul.f32 %v2209, -0.0005952381
        %v2226 = vmul.f32 %v2210, -0.0005952381
        %v2227 = vmul.f32 %v2211, -0.0005952381
        %v2228 = vmul.f32 %v2212, -0.0005952381
        %v2229 = vmul.f32 %v2213, -0.0005952381
        %v2230 = vmul.f32 %v2214, -0.0005952381
        %v2231 = vadd.f32 %v2215, 0.0007936508
        %v2232 = vadd.f32 %v2216, 0.0007936508
        %v2233 = vadd.f32 %v2217, 0.0007936508
        %v2234 = vadd.f32 %v2218, 0.0007936508
        %v2235 = vadd.f32 %v2219, 0.0007936508
        %v2236 = vadd.f32 %v2220, 0.0007936508
        %v2237 = vadd.f32 %v2221, 0.0007936508
        %v2238 = vadd.f32 %v2222, 0.0007936508
        %v2239 = vadd.f32 %v2223, 0.0007936508
        %v2240 = vadd.f32 %v2224, 0.0007936508
        %v2241 = vadd.f32 %v2225, 0.0007936508
        %v2242 = vadd.f32 %v2226, 0.0007936508
        %v2243 = vadd.f32 %v2227, 0.0007936508
        %v2244 = vadd.f32 %v2228, 0.0007936508
        %v2245 = vadd.f32 %v2229, 0.0007936508
        %v2246 = vadd.f32 %v2230, 0.0007936508
        %v2247 = vmul.f32 %v2199, %v2231
        %v2248 = vmul.f32 %v2200, %v2232
        %v2249 = vmul.f32 %v2201, %v2233
        %v2250 = vmul.f32 %v2202, %v2234
        %v2251 = vmul.f32 %v2203, %v2235
        %v2252 = vmul.f32 %v2204, %v2236
        %v2253 = vmul.f32 %v2205, %v2237
        %v2254 = vmul.f32 %v2206, %v2238
        %v2255 = vmul.f32 %v2207, %v2239
        %v2256 = vmul.f32 %v2208, %v2240
        %v2257 = vmul.f32 %v2209, %v2241
        %v2258 = vmul.f32 %v2210, %v2242
        %v2259 = vmul.f32 %v2211, %v2243
        %v2260 = vmul.f32 %v2212, %v2244
        %v2261 = vmul.f32 %v2213, %v2245
        %v2262 = vmul.f32 %v2214, %v2246
        %v2263 = vadd.f32 %v2247, -0.0027777778
        %v2264 = vadd.f32 %v2248, -0.0027777778
        %v2265 = vadd.f32 %v2249, -0.0027777778
        %v2266 = vadd.f32 %v2250, -0.0027777778
        %v2267 = vadd.f32 %v2251, -0.0027777778
        %v2268 = vadd.f32 %v2252, -0.0027777778
        %v2269 = vadd.f32 %v2253, -0.0027777778
        %v2270 = vadd.f32 %v2254, -0.0027777778
        %v2271 = vadd.f32 %v2255, -0.0027777778
        %v2272 = vadd.f32 %v2256, -0.0027777778
        %v2273 = vadd.f32 %v2257, -0.0027777778
        %v2274 = vadd.f32 %v2258, -0.0027777778
        %v2275 = vadd.f32 %v2259, -0.0027777778
        %v2276 = vadd.f32 %v2260, -0.0027777778
        %v2277 = vadd.f32 %v2261, -0.0027777778
        %v2278 = vadd.f32 %v2262, -0.0027777778
        %v2279 = vmul.f32 %v2199, %v2263
        %v2280 = vmul.f32 %v2200, %v2264
        %v2281 = vmul.f32 %v2201, %v2265
        %v2282 = vmul.f32 %v2202, %v2266
        %v2283 = vmul.f32 %v2203, %v2267
        %v2284 = vmul.f32 %v2204, %v2268
        %v2285 = vmul.f32 %v2205, %v2269
        %v2286 = vmul.f32 %v2206, %v2270
        %v2287 = vmul.f32 %v2207, %v2271
        %v2288 = vmul.f32 %v2208, %v2272
        %v2289 = vmul.f32 %v2209, %v2273
        %v2290 = vmul.f32 %v2210, %v2274
        %v2291 = vmul.f32 %v2211, %v2275
        %v2292 = vmul.f32 %v2212, %v2276
        %v2293 = vmul.f32 %v2213, %v2277
        %v2294 = vmul.f32 %v2214, %v2278
        %v2295 = vadd.f32 %v2279, 0.083333336
        %v2296 = vadd.f32 %v2280, 0.083333336
        %v2297 = vadd.f32 %v2281, 0.083333336
        %v2298 = vadd.f32 %v2282, 0.083333336
        %v2299 = vadd.f32 %v2283, 0.083333336
        %v2300 = vadd.f32 %v2284, 0.083333336
        %v2301 = vadd.f32 %v2285, 0.083333336
        %v2302 = vadd.f32 %v2286, 0.083333336
        %v2303 = vadd.f32 %v2287, 0.083333336
        %v2304 = vadd.f32 %v2288, 0.083333336
        %v2305 = vadd.f32 %v2289, 0.083333336
        %v2306 = vadd.f32 %v2290, 0.083333336
        %v2307 = vadd.f32 %v2291, 0.083333336
        %v2308 = vadd.f32 %v2292, 0.083333336
        %v2309 = vadd.f32 %v2293, 0.083333336
        %v2310 = vadd.f32 %v2294, 0.083333336
        %v2311 = vmul.f32 %v2183, %v2295
        %v2312 = vmul.f32 %v2184, %v2296
        %v2313 = vmul.f32 %v2185, %v2297
        %v2314 = vmul.f32 %v2186, %v2298
        %v2315 = vmul.f32 %v2187, %v2299
        %v2316 = vmul.f32 %v2188, %v2300
        %v2317 = vmul.f32 %v2189, %v2301
        %v2318 = vmul.f32 %v2190, %v2302
        %v2319 = vmul.f32 %v2191, %v2303
        %v2320 = vmul.f32 %v2192, %v2304
        %v2321 = vmul.f32 %v2193, %v2305
        %v2322 = vmul.f32 %v2194, %v2306
        %v2323 = vmul.f32 %v2195, %v2307
        %v2324 = vmul.f32 %v2196, %v2308
        %v2325 = vmul.f32 %v2197, %v2309
        %v2326 = vmul.f32 %v2198, %v2310
        %v2327 = vsub.f32 %v1927, 0.5
        %v2328 = vsub.f32 %v1928, 0.5
        %v2329 = vsub.f32 %v1929, 0.5
        %v2330 = vsub.f32 %v1930, 0.5
        %v2331 = vsub.f32 %v1931, 0.5
        %v2332 = vsub.f32 %v1932, 0.5
        %v2333 = vsub.f32 %v1933, 0.5
        %v2334 = vsub.f32 %v1934, 0.5
        %v2335 = vsub.f32 %v1935, 0.5
        %v2336 = vsub.f32 %v1936, 0.5
        %v2337 = vsub.f32 %v1937, 0.5
        %v2338 = vsub.f32 %v1938, 0.5
        %v2339 = vsub.f32 %v1939, 0.5
        %v2340 = vsub.f32 %v1940, 0.5
        %v2341 = vsub.f32 %v1941, 0.5
        %v2342 = vsub.f32 %v1942, 0.5
        %v2359 = vshra.s32 %v1927, 23
        %v2360 = vshra.s32 %v1928, 23
        %v2361 = vshra.s32 %v1929, 23
        %v2362 = vshra.s32 %v1930, 23
        %v2363 = vshra.s32 %v1931, 23
        %v2364 = vshra.s32 %v1932, 23
        %v2365 = vshra.s32 %v1933, 23
        %v2366 = vshra.s32 %v1934, 23
        %v2367 = vshra.s32 %v1935, 23
        %v2368 = vshra.s32 %v1936, 23
        %v2369 = vshra.s32 %v1937, 23
        %v2370 = vshra.s32 %v1938, 23
        %v2371 = vshra.s32 %v1939, 23
        %v2372 = vshra.s32 %v1940, 23
        %v2373 = vshra.s32 %v1941, 23
        %v2374 = vshra.s32 %v1942, 23
        %v2375 = vand.u32 %v2359, 255
        %v2376 = vand.u32 %v2360, 255
        %v2377 = vand.u32 %v2361, 255
        %v2378 = vand.u32 %v2362, 255
        %v2379 = vand.u32 %v2363, 255
        %v2380 = vand.u32 %v2364, 255
        %v2381 = vand.u32 %v2365, 255
        %v2382 = vand.u32 %v2366, 255
        %v2383 = vand.u32 %v2367, 255
        %v2384 = vand.u32 %v2368, 255
        %v2385 = vand.u32 %v2369, 255
        %v2386 = vand.u32 %v2370, 255
        %v2387 = vand.u32 %v2371, 255
        %v2388 = vand.u32 %v2372, 255
        %v2389 = vand.u32 %v2373, 255
        %v2390 = vand.u32 %v2374, 255
        %v2391 = vsub.s32 %v2375, 127
        %v2392 = vsub.s32 %v2376, 127
        %v2393 = vsub.s32 %v2377, 127
        %v2394 = vsub.s32 %v2378, 127
        %v2395 = vsub.s32 %v2379, 127
        %v2396 = vsub.s32 %v2380, 127
        %v2397 = vsub.s32 %v2381, 127
        %v2398 = vsub.s32 %v2382, 127
        %v2399 = vsub.s32 %v2383, 127
        %v2400 = vsub.s32 %v2384, 127
        %v2401 = vsub.s32 %v2385, 127
        %v2402 = vsub.s32 %v2386, 127
        %v2403 = vsub.s32 %v2387, 127
        %v2404 = vsub.s32 %v2388, 127
        %v2405 = vsub.s32 %v2389, 127
        %v2406 = vsub.s32 %v2390, 127
        %v2407 = vand.u32 %v1927, 8388607
        %v2408 = vand.u32 %v1928, 8388607
        %v2409 = vand.u32 %v1929, 8388607
        %v2410 = vand.u32 %v1930, 8388607
        %v2411 = vand.u32 %v1931, 8388607
        %v2412 = vand.u32 %v1932, 8388607
        %v2413 = vand.u32 %v1933, 8388607
        %v2414 = vand.u32 %v1934, 8388607
        %v2415 = vand.u32 %v1935, 8388607
        %v2416 = vand.u32 %v1936, 8388607
        %v2417 = vand.u32 %v1937, 8388607
        %v2418 = vand.u32 %v1938, 8388607
        %v2419 = vand.u32 %v1939, 8388607
        %v2420 = vand.u32 %v1940, 8388607
        %v2421 = vand.u32 %v1941, 8388607
        %v2422 = vand.u32 %v1942, 8388607
        %v2423 = vor.u32 %v2407, 1065353216
        %v2424 = vor.u32 %v2408, 1065353216
        %v2425 = vor.u32 %v2409, 1065353216
        %v2426 = vor.u32 %v2410, 1065353216
        %v2427 = vor.u32 %v2411, 1065353216
        %v2428 = vor.u32 %v2412, 1065353216
        %v2429 = vor.u32 %v2413, 1065353216
        %v2430 = vor.u32 %v2414, 1065353216
        %v2431 = vor.u32 %v2415, 1065353216
        %v2432 = vor.u32 %v2416, 1065353216
        %v2433 = vor.u32 %v2417, 1065353216
        %v2434 = vor.u32 %v2418, 1065353216
        %v2435 = vor.u32 %v2419, 1065353216
        %v2436 = vor.u32 %v2420, 1065353216
        %v2437 = vor.u32 %v2421, 1065353216
        %v2438 = vor.u32 %v2422, 1065353216
        %vm2455 = vcmp.gt.f32.partialorder %v2423, 1.4142135
        %vm2456 = vcmp.gt.f32.partialorder %v2424, 1.4142135
        %vm2457 = vcmp.gt.f32.partialorder %v2425, 1.4142135
        %vm2458 = vcmp.gt.f32.partialorder %v2426, 1.4142135
        %vm2459 = vcmp.gt.f32.partialorder %v2427, 1.4142135
        %vm2460 = vcmp.gt.f32.partialorder %v2428, 1.4142135
        %vm2461 = vcmp.gt.f32.partialorder %v2429, 1.4142135
        %vm2462 = vcmp.gt.f32.partialorder %v2430, 1.4142135
        %vm2463 = vcmp.gt.f32.partialorder %v2431, 1.4142135
        %vm2464 = vcmp.gt.f32.partialorder %v2432, 1.4142135
        %vm2465 = vcmp.gt.f32.partialorder %v2433, 1.4142135
        %vm2466 = vcmp.gt.f32.partialorder %v2434, 1.4142135
        %vm2467 = vcmp.gt.f32.partialorder %v2435, 1.4142135
        %vm2468 = vcmp.gt.f32.partialorder %v2436, 1.4142135
        %vm2469 = vcmp.gt.f32.partialorder %v2437, 1.4142135
        %vm2470 = vcmp.gt.f32.partialorder %v2438, 1.4142135
        %v2471 = vmul.f32 %v2423, 0.5
        %v2472 = vmul.f32 %v2424, 0.5
        %v2473 = vmul.f32 %v2425, 0.5
        %v2474 = vmul.f32 %v2426, 0.5
        %v2475 = vmul.f32 %v2427, 0.5
        %v2476 = vmul.f32 %v2428, 0.5
        %v2477 = vmul.f32 %v2429, 0.5
        %v2478 = vmul.f32 %v2430, 0.5
        %v2479 = vmul.f32 %v2431, 0.5
        %v2480 = vmul.f32 %v2432, 0.5
        %v2481 = vmul.f32 %v2433, 0.5
        %v2482 = vmul.f32 %v2434, 0.5
        %v2483 = vmul.f32 %v2435, 0.5
        %v2484 = vmul.f32 %v2436, 0.5
        %v2485 = vmul.f32 %v2437, 0.5
        %v2486 = vmul.f32 %v2438, 0.5
        %v2487 = vsel %vm2455, %v2471, %v2423
        %v2488 = vsel %vm2456, %v2472, %v2424
        %v2489 = vsel %vm2457, %v2473, %v2425
        %v2490 = vsel %vm2458, %v2474, %v2426
        %v2491 = vsel %vm2459, %v2475, %v2427
        %v2492 = vsel %vm2460, %v2476, %v2428
        %v2493 = vsel %vm2461, %v2477, %v2429
        %v2494 = vsel %vm2462, %v2478, %v2430
        %v2495 = vsel %vm2463, %v2479, %v2431
        %v2496 = vsel %vm2464, %v2480, %v2432
        %v2497 = vsel %vm2465, %v2481, %v2433
        %v2498 = vsel %vm2466, %v2482, %v2434
        %v2499 = vsel %vm2467, %v2483, %v2435
        %v2500 = vsel %vm2468, %v2484, %v2436
        %v2501 = vsel %vm2469, %v2485, %v2437
        %v2502 = vsel %vm2470, %v2486, %v2438
        %v2503 = vadd.s32 %v2391, 1
        %v2504 = vadd.s32 %v2392, 1
        %v2505 = vadd.s32 %v2393, 1
        %v2506 = vadd.s32 %v2394, 1
        %v2507 = vadd.s32 %v2395, 1
        %v2508 = vadd.s32 %v2396, 1
        %v2509 = vadd.s32 %v2397, 1
        %v2510 = vadd.s32 %v2398, 1
        %v2511 = vadd.s32 %v2399, 1
        %v2512 = vadd.s32 %v2400, 1
        %v2513 = vadd.s32 %v2401, 1
        %v2514 = vadd.s32 %v2402, 1
        %v2515 = vadd.s32 %v2403, 1
        %v2516 = vadd.s32 %v2404, 1
        %v2517 = vadd.s32 %v2405, 1
        %v2518 = vadd.s32 %v2406, 1
        %v2519 = vsel %vm2455, %v2503, %v2391
        %v2520 = vsel %vm2456, %v2504, %v2392
        %v2521 = vsel %vm2457, %v2505, %v2393
        %v2522 = vsel %vm2458, %v2506, %v2394
        %v2523 = vsel %vm2459, %v2507, %v2395
        %v2524 = vsel %vm2460, %v2508, %v2396
        %v2525 = vsel %vm2461, %v2509, %v2397
        %v2526 = vsel %vm2462, %v2510, %v2398
        %v2527 = vsel %vm2463, %v2511, %v2399
        %v2528 = vsel %vm2464, %v2512, %v2400
        %v2529 = vsel %vm2465, %v2513, %v2401
        %v2530 = vsel %vm2466, %v2514, %v2402
        %v2531 = vsel %vm2467, %v2515, %v2403
        %v2532 = vsel %vm2468, %v2516, %v2404
        %v2533 = vsel %vm2469, %v2517, %v2405
        %v2534 = vsel %vm2470, %v2518, %v2406
        %v2535 = vcvt.s32.f32 %v2519
        %v2536 = vcvt.s32.f32 %v2520
        %v2537 = vcvt.s32.f32 %v2521
        %v2538 = vcvt.s32.f32 %v2522
        %v2539 = vcvt.s32.f32 %v2523
        %v2540 = vcvt.s32.f32 %v2524
        %v2541 = vcvt.s32.f32 %v2525
        %v2542 = vcvt.s32.f32 %v2526
        %v2543 = vcvt.s32.f32 %v2527
        %v2544 = vcvt.s32.f32 %v2528
        %v2545 = vcvt.s32.f32 %v2529
        %v2546 = vcvt.s32.f32 %v2530
        %v2547 = vcvt.s32.f32 %v2531
        %v2548 = vcvt.s32.f32 %v2532
        %v2549 = vcvt.s32.f32 %v2533
        %v2550 = vcvt.s32.f32 %v2534
        %v2551 = vadd.f32 %v2487, 1.0
        %v2552 = vadd.f32 %v2488, 1.0
        %v2553 = vadd.f32 %v2489, 1.0
        %v2554 = vadd.f32 %v2490, 1.0
        %v2555 = vadd.f32 %v2491, 1.0
        %v2556 = vadd.f32 %v2492, 1.0
        %v2557 = vadd.f32 %v2493, 1.0
        %v2558 = vadd.f32 %v2494, 1.0
        %v2559 = vadd.f32 %v2495, 1.0
        %v2560 = vadd.f32 %v2496, 1.0
        %v2561 = vadd.f32 %v2497, 1.0
        %v2562 = vadd.f32 %v2498, 1.0
        %v2563 = vadd.f32 %v2499, 1.0
        %v2564 = vadd.f32 %v2500, 1.0
        %v2565 = vadd.f32 %v2501, 1.0
        %v2566 = vadd.f32 %v2502, 1.0
        %v2567 = vrcp.pop %v2551
        %v2568 = vrcp.pop %v2552
        %v2569 = vrcp.pop %v2553
        %v2570 = vrcp.pop %v2554
        %v2571 = vrcp.pop %v2555
        %v2572 = vrcp.pop %v2556
        %v2573 = vrcp.pop %v2557
        %v2574 = vrcp.pop %v2558
        %v2575 = vrcp.pop %v2559
        %v2576 = vrcp.pop %v2560
        %v2577 = vrcp.pop %v2561
        %v2578 = vrcp.pop %v2562
        %v2579 = vrcp.pop %v2563
        %v2580 = vrcp.pop %v2564
        %v2581 = vrcp.pop %v2565
        %v2582 = vrcp.pop %v2566
        %v2583 = vmul.f32 %v2551, %v2567
        %v2584 = vmul.f32 %v2552, %v2568
        %v2585 = vmul.f32 %v2553, %v2569
        %v2586 = vmul.f32 %v2554, %v2570
        %v2587 = vmul.f32 %v2555, %v2571
        %v2588 = vmul.f32 %v2556, %v2572
        %v2589 = vmul.f32 %v2557, %v2573
        %v2590 = vmul.f32 %v2558, %v2574
        %v2591 = vmul.f32 %v2559, %v2575
        %v2592 = vmul.f32 %v2560, %v2576
        %v2593 = vmul.f32 %v2561, %v2577
        %v2594 = vmul.f32 %v2562, %v2578
        %v2595 = vmul.f32 %v2563, %v2579
        %v2596 = vmul.f32 %v2564, %v2580
        %v2597 = vmul.f32 %v2565, %v2581
        %v2598 = vmul.f32 %v2566, %v2582
        %v2599 = vsub.f32 2.0, %v2583
        %v2600 = vsub.f32 2.0, %v2584
        %v2601 = vsub.f32 2.0, %v2585
        %v2602 = vsub.f32 2.0, %v2586
        %v2603 = vsub.f32 2.0, %v2587
        %v2604 = vsub.f32 2.0, %v2588
        %v2605 = vsub.f32 2.0, %v2589
        %v2606 = vsub.f32 2.0, %v2590
        %v2607 = vsub.f32 2.0, %v2591
        %v2608 = vsub.f32 2.0, %v2592
        %v2609 = vsub.f32 2.0, %v2593
        %v2610 = vsub.f32 2.0, %v2594
        %v2611 = vsub.f32 2.0, %v2595
        %v2612 = vsub.f32 2.0, %v2596
        %v2613 = vsub.f32 2.0, %v2597
        %v2614 = vsub.f32 2.0, %v2598
        %v2615 = vmul.f32 %v2567, %v2599
        %v2616 = vmul.f32 %v2568, %v2600
        %v2617 = vmul.f32 %v2569, %v2601
        %v2618 = vmul.f32 %v2570, %v2602
        %v2619 = vmul.f32 %v2571, %v2603
        %v2620 = vmul.f32 %v2572, %v2604
        %v2621 = vmul.f32 %v2573, %v2605
        %v2622 = vmul.f32 %v2574, %v2606
        %v2623 = vmul.f32 %v2575, %v2607
        %v2624 = vmul.f32 %v2576, %v2608
        %v2625 = vmul.f32 %v2577, %v2609
        %v2626 = vmul.f32 %v2578, %v2610
        %v2627 = vmul.f32 %v2579, %v2611
        %v2628 = vmul.f32 %v2580, %v2612
        %v2629 = vmul.f32 %v2581, %v2613
        %v2630 = vmul.f32 %v2582, %v2614
        %v2631 = vsub.f32 %v2487, 1.0
        %v2632 = vsub.f32 %v2488, 1.0
        %v2633 = vsub.f32 %v2489, 1.0
        %v2634 = vsub.f32 %v2490, 1.0
        %v2635 = vsub.f32 %v2491, 1.0
        %v2636 = vsub.f32 %v2492, 1.0
        %v2637 = vsub.f32 %v2493, 1.0
        %v2638 = vsub.f32 %v2494, 1.0
        %v2639 = vsub.f32 %v2495, 1.0
        %v2640 = vsub.f32 %v2496, 1.0
        %v2641 = vsub.f32 %v2497, 1.0
        %v2642 = vsub.f32 %v2498, 1.0
        %v2643 = vsub.f32 %v2499, 1.0
        %v2644 = vsub.f32 %v2500, 1.0
        %v2645 = vsub.f32 %v2501, 1.0
        %v2646 = vsub.f32 %v2502, 1.0
        %v2647 = vmul.f32 %v2631, %v2615
        %v2648 = vmul.f32 %v2632, %v2616
        %v2649 = vmul.f32 %v2633, %v2617
        %v2650 = vmul.f32 %v2634, %v2618
        %v2651 = vmul.f32 %v2635, %v2619
        %v2652 = vmul.f32 %v2636, %v2620
        %v2653 = vmul.f32 %v2637, %v2621
        %v2654 = vmul.f32 %v2638, %v2622
        %v2655 = vmul.f32 %v2639, %v2623
        %v2656 = vmul.f32 %v2640, %v2624
        %v2657 = vmul.f32 %v2641, %v2625
        %v2658 = vmul.f32 %v2642, %v2626
        %v2659 = vmul.f32 %v2643, %v2627
        %v2660 = vmul.f32 %v2644, %v2628
        %v2661 = vmul.f32 %v2645, %v2629
        %v2662 = vmul.f32 %v2646, %v2630
        %v2663 = vmul.f32 %v2647, %v2647
        %v2664 = vmul.f32 %v2648, %v2648
        %v2665 = vmul.f32 %v2649, %v2649
        %v2666 = vmul.f32 %v2650, %v2650
        %v2667 = vmul.f32 %v2651, %v2651
        %v2668 = vmul.f32 %v2652, %v2652
        %v2669 = vmul.f32 %v2653, %v2653
        %v2670 = vmul.f32 %v2654, %v2654
        %v2671 = vmul.f32 %v2655, %v2655
        %v2672 = vmul.f32 %v2656, %v2656
        %v2673 = vmul.f32 %v2657, %v2657
        %v2674 = vmul.f32 %v2658, %v2658
        %v2675 = vmul.f32 %v2659, %v2659
        %v2676 = vmul.f32 %v2660, %v2660
        %v2677 = vmul.f32 %v2661, %v2661
        %v2678 = vmul.f32 %v2662, %v2662
        %v2679 = vmul.f32 %v2663, 0.11111111
        %v2680 = vmul.f32 %v2664, 0.11111111
        %v2681 = vmul.f32 %v2665, 0.11111111
        %v2682 = vmul.f32 %v2666, 0.11111111
        %v2683 = vmul.f32 %v2667, 0.11111111
        %v2684 = vmul.f32 %v2668, 0.11111111
        %v2685 = vmul.f32 %v2669, 0.11111111
        %v2686 = vmul.f32 %v2670, 0.11111111
        %v2687 = vmul.f32 %v2671, 0.11111111
        %v2688 = vmul.f32 %v2672, 0.11111111
        %v2689 = vmul.f32 %v2673, 0.11111111
        %v2690 = vmul.f32 %v2674, 0.11111111
        %v2691 = vmul.f32 %v2675, 0.11111111
        %v2692 = vmul.f32 %v2676, 0.11111111
        %v2693 = vmul.f32 %v2677, 0.11111111
        %v2694 = vmul.f32 %v2678, 0.11111111
        %v2695 = vadd.f32 %v2679, 0.14285715
        %v2696 = vadd.f32 %v2680, 0.14285715
        %v2697 = vadd.f32 %v2681, 0.14285715
        %v2698 = vadd.f32 %v2682, 0.14285715
        %v2699 = vadd.f32 %v2683, 0.14285715
        %v2700 = vadd.f32 %v2684, 0.14285715
        %v2701 = vadd.f32 %v2685, 0.14285715
        %v2702 = vadd.f32 %v2686, 0.14285715
        %v2703 = vadd.f32 %v2687, 0.14285715
        %v2704 = vadd.f32 %v2688, 0.14285715
        %v2705 = vadd.f32 %v2689, 0.14285715
        %v2706 = vadd.f32 %v2690, 0.14285715
        %v2707 = vadd.f32 %v2691, 0.14285715
        %v2708 = vadd.f32 %v2692, 0.14285715
        %v2709 = vadd.f32 %v2693, 0.14285715
        %v2710 = vadd.f32 %v2694, 0.14285715
        %v2711 = vmul.f32 %v2663, %v2695
        %v2712 = vmul.f32 %v2664, %v2696
        %v2713 = vmul.f32 %v2665, %v2697
        %v2714 = vmul.f32 %v2666, %v2698
        %v2715 = vmul.f32 %v2667, %v2699
        %v2716 = vmul.f32 %v2668, %v2700
        %v2717 = vmul.f32 %v2669, %v2701
        %v2718 = vmul.f32 %v2670, %v2702
        %v2719 = vmul.f32 %v2671, %v2703
        %v2720 = vmul.f32 %v2672, %v2704
        %v2721 = vmul.f32 %v2673, %v2705
        %v2722 = vmul.f32 %v2674, %v2706
        %v2723 = vmul.f32 %v2675, %v2707
        %v2724 = vmul.f32 %v2676, %v2708
        %v2725 = vmul.f32 %v2677, %v2709
        %v2726 = vmul.f32 %v2678, %v2710
        %v2727 = vadd.f32 %v2711, 0.2
        %v2728 = vadd.f32 %v2712, 0.2
        %v2729 = vadd.f32 %v2713, 0.2
        %v2730 = vadd.f32 %v2714, 0.2
        %v2731 = vadd.f32 %v2715, 0.2
        %v2732 = vadd.f32 %v2716, 0.2
        %v2733 = vadd.f32 %v2717, 0.2
        %v2734 = vadd.f32 %v2718, 0.2
        %v2735 = vadd.f32 %v2719, 0.2
        %v2736 = vadd.f32 %v2720, 0.2
        %v2737 = vadd.f32 %v2721, 0.2
        %v2738 = vadd.f32 %v2722, 0.2
        %v2739 = vadd.f32 %v2723, 0.2
        %v2740 = vadd.f32 %v2724, 0.2
        %v2741 = vadd.f32 %v2725, 0.2
        %v2742 = vadd.f32 %v2726, 0.2
        %v2743 = vmul.f32 %v2663, %v2727
        %v2744 = vmul.f32 %v2664, %v2728
        %v2745 = vmul.f32 %v2665, %v2729
        %v2746 = vmul.f32 %v2666, %v2730
        %v2747 = vmul.f32 %v2667, %v2731
        %v2748 = vmul.f32 %v2668, %v2732
        %v2749 = vmul.f32 %v2669, %v2733
        %v2750 = vmul.f32 %v2670, %v2734
        %v2751 = vmul.f32 %v2671, %v2735
        %v2752 = vmul.f32 %v2672, %v2736
        %v2753 = vmul.f32 %v2673, %v2737
        %v2754 = vmul.f32 %v2674, %v2738
        %v2755 = vmul.f32 %v2675, %v2739
        %v2756 = vmul.f32 %v2676, %v2740
        %v2757 = vmul.f32 %v2677, %v2741
        %v2758 = vmul.f32 %v2678, %v2742
        %v2759 = vadd.f32 %v2743, 0.33333334
        %v2760 = vadd.f32 %v2744, 0.33333334
        %v2761 = vadd.f32 %v2745, 0.33333334
        %v2762 = vadd.f32 %v2746, 0.33333334
        %v2763 = vadd.f32 %v2747, 0.33333334
        %v2764 = vadd.f32 %v2748, 0.33333334
        %v2765 = vadd.f32 %v2749, 0.33333334
        %v2766 = vadd.f32 %v2750, 0.33333334
        %v2767 = vadd.f32 %v2751, 0.33333334
        %v2768 = vadd.f32 %v2752, 0.33333334
        %v2769 = vadd.f32 %v2753, 0.33333334
        %v2770 = vadd.f32 %v2754, 0.33333334
        %v2771 = vadd.f32 %v2755, 0.33333334
        %v2772 = vadd.f32 %v2756, 0.33333334
        %v2773 = vadd.f32 %v2757, 0.33333334
        %v2774 = vadd.f32 %v2758, 0.33333334
        %v2775 = vmul.f32 %v2663, %v2759
        %v2776 = vmul.f32 %v2664, %v2760
        %v2777 = vmul.f32 %v2665, %v2761
        %v2778 = vmul.f32 %v2666, %v2762
        %v2779 = vmul.f32 %v2667, %v2763
        %v2780 = vmul.f32 %v2668, %v2764
        %v2781 = vmul.f32 %v2669, %v2765
        %v2782 = vmul.f32 %v2670, %v2766
        %v2783 = vmul.f32 %v2671, %v2767
        %v2784 = vmul.f32 %v2672, %v2768
        %v2785 = vmul.f32 %v2673, %v2769
        %v2786 = vmul.f32 %v2674, %v2770
        %v2787 = vmul.f32 %v2675, %v2771
        %v2788 = vmul.f32 %v2676, %v2772
        %v2789 = vmul.f32 %v2677, %v2773
        %v2790 = vmul.f32 %v2678, %v2774
        %v2791 = vmul.f32 %v2535, 0.6931472
        %v2792 = vmul.f32 %v2536, 0.6931472
        %v2793 = vmul.f32 %v2537, 0.6931472
        %v2794 = vmul.f32 %v2538, 0.6931472
        %v2795 = vmul.f32 %v2539, 0.6931472
        %v2796 = vmul.f32 %v2540, 0.6931472
        %v2797 = vmul.f32 %v2541, 0.6931472
        %v2798 = vmul.f32 %v2542, 0.6931472
        %v2799 = vmul.f32 %v2543, 0.6931472
        %v2800 = vmul.f32 %v2544, 0.6931472
        %v2801 = vmul.f32 %v2545, 0.6931472
        %v2802 = vmul.f32 %v2546, 0.6931472
        %v2803 = vmul.f32 %v2547, 0.6931472
        %v2804 = vmul.f32 %v2548, 0.6931472
        %v2805 = vmul.f32 %v2549, 0.6931472
        %v2806 = vmul.f32 %v2550, 0.6931472
        %v2807 = vmul.f32 %v2647, %v2775
        %v2808 = vmul.f32 %v2648, %v2776
        %v2809 = vmul.f32 %v2649, %v2777
        %v2810 = vmul.f32 %v2650, %v2778
        %v2811 = vmul.f32 %v2651, %v2779
        %v2812 = vmul.f32 %v2652, %v2780
        %v2813 = vmul.f32 %v2653, %v2781
        %v2814 = vmul.f32 %v2654, %v2782
        %v2815 = vmul.f32 %v2655, %v2783
        %v2816 = vmul.f32 %v2656, %v2784
        %v2817 = vmul.f32 %v2657, %v2785
        %v2818 = vmul.f32 %v2658, %v2786
        %v2819 = vmul.f32 %v2659, %v2787
        %v2820 = vmul.f32 %v2660, %v2788
        %v2821 = vmul.f32 %v2661, %v2789
        %v2822 = vmul.f32 %v2662, %v2790
        %v2823 = vadd.f32 %v2647, %v2807
        %v2824 = vadd.f32 %v2648, %v2808
        %v2825 = vadd.f32 %v2649, %v2809
        %v2826 = vadd.f32 %v2650, %v2810
        %v2827 = vadd.f32 %v2651, %v2811
        %v2828 = vadd.f32 %v2652, %v2812
        %v2829 = vadd.f32 %v2653, %v2813
        %v2830 = vadd.f32 %v2654, %v2814
        %v2831 = vadd.f32 %v2655, %v2815
        %v2832 = vadd.f32 %v2656, %v2816
        %v2833 = vadd.f32 %v2657, %v2817
        %v2834 = vadd.f32 %v2658, %v2818
        %v2835 = vadd.f32 %v2659, %v2819
        %v2836 = vadd.f32 %v2660, %v2820
        %v2837 = vadd.f32 %v2661, %v2821
        %v2838 = vadd.f32 %v2662, %v2822
        %v2839 = vmul.f32 %v2823, 2.0
        %v2840 = vmul.f32 %v2824, 2.0
        %v2841 = vmul.f32 %v2825, 2.0
        %v2842 = vmul.f32 %v2826, 2.0
        %v2843 = vmul.f32 %v2827, 2.0
        %v2844 = vmul.f32 %v2828, 2.0
        %v2845 = vmul.f32 %v2829, 2.0
        %v2846 = vmul.f32 %v2830, 2.0
        %v2847 = vmul.f32 %v2831, 2.0
        %v2848 = vmul.f32 %v2832, 2.0
        %v2849 = vmul.f32 %v2833, 2.0
        %v2850 = vmul.f32 %v2834, 2.0
        %v2851 = vmul.f32 %v2835, 2.0
        %v2852 = vmul.f32 %v2836, 2.0
        %v2853 = vmul.f32 %v2837, 2.0
        %v2854 = vmul.f32 %v2838, 2.0
        %v2855 = vadd.f32 %v2791, %v2839
        %v2856 = vadd.f32 %v2792, %v2840
        %v2857 = vadd.f32 %v2793, %v2841
        %v2858 = vadd.f32 %v2794, %v2842
        %v2859 = vadd.f32 %v2795, %v2843
        %v2860 = vadd.f32 %v2796, %v2844
        %v2861 = vadd.f32 %v2797, %v2845
        %v2862 = vadd.f32 %v2798, %v2846
        %v2863 = vadd.f32 %v2799, %v2847
        %v2864 = vadd.f32 %v2800, %v2848
        %v2865 = vadd.f32 %v2801, %v2849
        %v2866 = vadd.f32 %v2802, %v2850
        %v2867 = vadd.f32 %v2803, %v2851
        %v2868 = vadd.f32 %v2804, %v2852
        %v2869 = vadd.f32 %v2805, %v2853
        %v2870 = vadd.f32 %v2806, %v2854
        %v2871 = vmul.f32 %v2327, %v2855
        %v2872 = vmul.f32 %v2328, %v2856
        %v2873 = vmul.f32 %v2329, %v2857
        %v2874 = vmul.f32 %v2330, %v2858
        %v2875 = vmul.f32 %v2331, %v2859
        %v2876 = vmul.f32 %v2332, %v2860
        %v2877 = vmul.f32 %v2333, %v2861
        %v2878 = vmul.f32 %v2334, %v2862
        %v2879 = vmul.f32 %v2335, %v2863
        %v2880 = vmul.f32 %v2336, %v2864
        %v2881 = vmul.f32 %v2337, %v2865
        %v2882 = vmul.f32 %v2338, %v2866
        %v2883 = vmul.f32 %v2339, %v2867
        %v2884 = vmul.f32 %v2340, %v2868
        %v2885 = vmul.f32 %v2341, %v2869
        %v2886 = vmul.f32 %v2342, %v2870
        %v2887 = vsub.f32 %v2871, %v1927
        %v2888 = vsub.f32 %v2872, %v1928
        %v2889 = vsub.f32 %v2873, %v1929
        %v2890 = vsub.f32 %v2874, %v1930
        %v2891 = vsub.f32 %v2875, %v1931
        %v2892 = vsub.f32 %v2876, %v1932
        %v2893 = vsub.f32 %v2877, %v1933
        %v2894 = vsub.f32 %v2878, %v1934
        %v2895 = vsub.f32 %v2879, %v1935
        %v2896 = vsub.f32 %v2880, %v1936
        %v2897 = vsub.f32 %v2881, %v1937
        %v2898 = vsub.f32 %v2882, %v1938
        %v2899 = vsub.f32 %v2883, %v1939
        %v2900 = vsub.f32 %v2884, %v1940
        %v2901 = vsub.f32 %v2885, %v1941
        %v2902 = vsub.f32 %v2886, %v1942
        %v2903 = vadd.f32 %v2887, 0.9189385
        %v2904 = vadd.f32 %v2888, 0.9189385
        %v2905 = vadd.f32 %v2889, 0.9189385
        %v2906 = vadd.f32 %v2890, 0.9189385
        %v2907 = vadd.f32 %v2891, 0.9189385
        %v2908 = vadd.f32 %v2892, 0.9189385
        %v2909 = vadd.f32 %v2893, 0.9189385
        %v2910 = vadd.f32 %v2894, 0.9189385
        %v2911 = vadd.f32 %v2895, 0.9189385
        %v2912 = vadd.f32 %v2896, 0.9189385
        %v2913 = vadd.f32 %v2897, 0.9189385
        %v2914 = vadd.f32 %v2898, 0.9189385
        %v2915 = vadd.f32 %v2899, 0.9189385
        %v2916 = vadd.f32 %v2900, 0.9189385
        %v2917 = vadd.f32 %v2901, 0.9189385
        %v2918 = vadd.f32 %v2902, 0.9189385
        %v2919 = vadd.f32 %v2903, %v2311
        %v2920 = vadd.f32 %v2904, %v2312
        %v2921 = vadd.f32 %v2905, %v2313
        %v2922 = vadd.f32 %v2906, %v2314
        %v2923 = vadd.f32 %v2907, %v2315
        %v2924 = vadd.f32 %v2908, %v2316
        %v2925 = vadd.f32 %v2909, %v2317
        %v2926 = vadd.f32 %v2910, %v2318
        %v2927 = vadd.f32 %v2911, %v2319
        %v2928 = vadd.f32 %v2912, %v2320
        %v2929 = vadd.f32 %v2913, %v2321
        %v2930 = vadd.f32 %v2914, %v2322
        %v2931 = vadd.f32 %v2915, %v2323
        %v2932 = vadd.f32 %v2916, %v2324
        %v2933 = vadd.f32 %v2917, %v2325
        %v2934 = vadd.f32 %v2918, %v2326
        %v2935 = vadd.f32 %v550, %v807
        %v2936 = vadd.f32 %v551, %v808
        %v2937 = vadd.f32 %v552, %v809
        %v2938 = vadd.f32 %v553, %v810
        %v2939 = vadd.f32 %v554, %v811
        %v2940 = vadd.f32 %v555, %v812
        %v2941 = vadd.f32 %v556, %v813
        %v2942 = vadd.f32 %v557, %v814
        %v2943 = vadd.f32 %v558, %v815
        %v2944 = vadd.f32 %v559, %v816
        %v2945 = vadd.f32 %v560, %v817
        %v2946 = vadd.f32 %v561, %v818
        %v2947 = vadd.f32 %v562, %v819
        %v2948 = vadd.f32 %v563, %v820
        %v2949 = vadd.f32 %v564, %v821
        %v2950 = vadd.f32 %v565, %v822
        %v2951 = vadd.f32 %v2935, 1e-10
        %v2952 = vadd.f32 %v2936, 1e-10
        %v2953 = vadd.f32 %v2937, 1e-10
        %v2954 = vadd.f32 %v2938, 1e-10
        %v2955 = vadd.f32 %v2939, 1e-10
        %v2956 = vadd.f32 %v2940, 1e-10
        %v2957 = vadd.f32 %v2941, 1e-10
        %v2958 = vadd.f32 %v2942, 1e-10
        %v2959 = vadd.f32 %v2943, 1e-10
        %v2960 = vadd.f32 %v2944, 1e-10
        %v2961 = vadd.f32 %v2945, 1e-10
        %v2962 = vadd.f32 %v2946, 1e-10
        %v2963 = vadd.f32 %v2947, 1e-10
        %v2964 = vadd.f32 %v2948, 1e-10
        %v2965 = vadd.f32 %v2949, 1e-10
        %v2966 = vadd.f32 %v2950, 1e-10
        %vm2967 = vcmp.lt.f32.partialorder %v2951, 8.0
        %vm2968 = vcmp.lt.f32.partialorder %v2952, 8.0
        %vm2969 = vcmp.lt.f32.partialorder %v2953, 8.0
        %vm2970 = vcmp.lt.f32.partialorder %v2954, 8.0
        %vm2971 = vcmp.lt.f32.partialorder %v2955, 8.0
        %vm2972 = vcmp.lt.f32.partialorder %v2956, 8.0
        %vm2973 = vcmp.lt.f32.partialorder %v2957, 8.0
        %vm2974 = vcmp.lt.f32.partialorder %v2958, 8.0
        %vm2975 = vcmp.lt.f32.partialorder %v2959, 8.0
        %vm2976 = vcmp.lt.f32.partialorder %v2960, 8.0
        %vm2977 = vcmp.lt.f32.partialorder %v2961, 8.0
        %vm2978 = vcmp.lt.f32.partialorder %v2962, 8.0
        %vm2979 = vcmp.lt.f32.partialorder %v2963, 8.0
        %vm2980 = vcmp.lt.f32.partialorder %v2964, 8.0
        %vm2981 = vcmp.lt.f32.partialorder %v2965, 8.0
        %vm2982 = vcmp.lt.f32.partialorder %v2966, 8.0
        %v2983 = vadd.f32 %v2951, 8.0
        %v2984 = vadd.f32 %v2952, 8.0
        %v2985 = vadd.f32 %v2953, 8.0
        %v2986 = vadd.f32 %v2954, 8.0
        %v2987 = vadd.f32 %v2955, 8.0
        %v2988 = vadd.f32 %v2956, 8.0
        %v2989 = vadd.f32 %v2957, 8.0
        %v2990 = vadd.f32 %v2958, 8.0
        %v2991 = vadd.f32 %v2959, 8.0
        %v2992 = vadd.f32 %v2960, 8.0
        %v2993 = vadd.f32 %v2961, 8.0
        %v2994 = vadd.f32 %v2962, 8.0
        %v2995 = vadd.f32 %v2963, 8.0
        %v2996 = vadd.f32 %v2964, 8.0
        %v2997 = vadd.f32 %v2965, 8.0
        %v2998 = vadd.f32 %v2966, 8.0
        %v2999 = vsel %vm2967, %v2983, %v2951
        %v3000 = vsel %vm2968, %v2984, %v2952
        %v3001 = vsel %vm2969, %v2985, %v2953
        %v3002 = vsel %vm2970, %v2986, %v2954
        %v3003 = vsel %vm2971, %v2987, %v2955
        %v3004 = vsel %vm2972, %v2988, %v2956
        %v3005 = vsel %vm2973, %v2989, %v2957
        %v3006 = vsel %vm2974, %v2990, %v2958
        %v3007 = vsel %vm2975, %v2991, %v2959
        %v3008 = vsel %vm2976, %v2992, %v2960
        %v3009 = vsel %vm2977, %v2993, %v2961
        %v3010 = vsel %vm2978, %v2994, %v2962
        %v3011 = vsel %vm2979, %v2995, %v2963
        %v3012 = vsel %vm2980, %v2996, %v2964
        %v3013 = vsel %vm2981, %v2997, %v2965
        %v3014 = vsel %vm2982, %v2998, %v2966
        %v3015 = vadd.f32 %v2951, 1.0
        %v3016 = vadd.f32 %v2952, 1.0
        %v3017 = vadd.f32 %v2953, 1.0
        %v3018 = vadd.f32 %v2954, 1.0
        %v3019 = vadd.f32 %v2955, 1.0
        %v3020 = vadd.f32 %v2956, 1.0
        %v3021 = vadd.f32 %v2957, 1.0
        %v3022 = vadd.f32 %v2958, 1.0
        %v3023 = vadd.f32 %v2959, 1.0
        %v3024 = vadd.f32 %v2960, 1.0
        %v3025 = vadd.f32 %v2961, 1.0
        %v3026 = vadd.f32 %v2962, 1.0
        %v3027 = vadd.f32 %v2963, 1.0
        %v3028 = vadd.f32 %v2964, 1.0
        %v3029 = vadd.f32 %v2965, 1.0
        %v3030 = vadd.f32 %v2966, 1.0
        %v3031 = vmul.f32 %v2951, %v3015
        %v3032 = vmul.f32 %v2952, %v3016
        %v3033 = vmul.f32 %v2953, %v3017
        %v3034 = vmul.f32 %v2954, %v3018
        %v3035 = vmul.f32 %v2955, %v3019
        %v3036 = vmul.f32 %v2956, %v3020
        %v3037 = vmul.f32 %v2957, %v3021
        %v3038 = vmul.f32 %v2958, %v3022
        %v3039 = vmul.f32 %v2959, %v3023
        %v3040 = vmul.f32 %v2960, %v3024
        %v3041 = vmul.f32 %v2961, %v3025
        %v3042 = vmul.f32 %v2962, %v3026
        %v3043 = vmul.f32 %v2963, %v3027
        %v3044 = vmul.f32 %v2964, %v3028
        %v3045 = vmul.f32 %v2965, %v3029
        %v3046 = vmul.f32 %v2966, %v3030
        %v3047 = vadd.f32 %v2951, 2.0
        %v3048 = vadd.f32 %v2952, 2.0
        %v3049 = vadd.f32 %v2953, 2.0
        %v3050 = vadd.f32 %v2954, 2.0
        %v3051 = vadd.f32 %v2955, 2.0
        %v3052 = vadd.f32 %v2956, 2.0
        %v3053 = vadd.f32 %v2957, 2.0
        %v3054 = vadd.f32 %v2958, 2.0
        %v3055 = vadd.f32 %v2959, 2.0
        %v3056 = vadd.f32 %v2960, 2.0
        %v3057 = vadd.f32 %v2961, 2.0
        %v3058 = vadd.f32 %v2962, 2.0
        %v3059 = vadd.f32 %v2963, 2.0
        %v3060 = vadd.f32 %v2964, 2.0
        %v3061 = vadd.f32 %v2965, 2.0
        %v3062 = vadd.f32 %v2966, 2.0
        %v3063 = vmul.f32 %v3031, %v3047
        %v3064 = vmul.f32 %v3032, %v3048
        %v3065 = vmul.f32 %v3033, %v3049
        %v3066 = vmul.f32 %v3034, %v3050
        %v3067 = vmul.f32 %v3035, %v3051
        %v3068 = vmul.f32 %v3036, %v3052
        %v3069 = vmul.f32 %v3037, %v3053
        %v3070 = vmul.f32 %v3038, %v3054
        %v3071 = vmul.f32 %v3039, %v3055
        %v3072 = vmul.f32 %v3040, %v3056
        %v3073 = vmul.f32 %v3041, %v3057
        %v3074 = vmul.f32 %v3042, %v3058
        %v3075 = vmul.f32 %v3043, %v3059
        %v3076 = vmul.f32 %v3044, %v3060
        %v3077 = vmul.f32 %v3045, %v3061
        %v3078 = vmul.f32 %v3046, %v3062
        %v3079 = vadd.f32 %v2951, 3.0
        %v3080 = vadd.f32 %v2952, 3.0
        %v3081 = vadd.f32 %v2953, 3.0
        %v3082 = vadd.f32 %v2954, 3.0
        %v3083 = vadd.f32 %v2955, 3.0
        %v3084 = vadd.f32 %v2956, 3.0
        %v3085 = vadd.f32 %v2957, 3.0
        %v3086 = vadd.f32 %v2958, 3.0
        %v3087 = vadd.f32 %v2959, 3.0
        %v3088 = vadd.f32 %v2960, 3.0
        %v3089 = vadd.f32 %v2961, 3.0
        %v3090 = vadd.f32 %v2962, 3.0
        %v3091 = vadd.f32 %v2963, 3.0
        %v3092 = vadd.f32 %v2964, 3.0
        %v3093 = vadd.f32 %v2965, 3.0
        %v3094 = vadd.f32 %v2966, 3.0
        %v3095 = vmul.f32 %v3063, %v3079
        %v3096 = vmul.f32 %v3064, %v3080
        %v3097 = vmul.f32 %v3065, %v3081
        %v3098 = vmul.f32 %v3066, %v3082
        %v3099 = vmul.f32 %v3067, %v3083
        %v3100 = vmul.f32 %v3068, %v3084
        %v3101 = vmul.f32 %v3069, %v3085
        %v3102 = vmul.f32 %v3070, %v3086
        %v3103 = vmul.f32 %v3071, %v3087
        %v3104 = vmul.f32 %v3072, %v3088
        %v3105 = vmul.f32 %v3073, %v3089
        %v3106 = vmul.f32 %v3074, %v3090
        %v3107 = vmul.f32 %v3075, %v3091
        %v3108 = vmul.f32 %v3076, %v3092
        %v3109 = vmul.f32 %v3077, %v3093
        %v3110 = vmul.f32 %v3078, %v3094
        %v3111 = vadd.f32 %v2951, 4.0
        %v3112 = vadd.f32 %v2952, 4.0
        %v3113 = vadd.f32 %v2953, 4.0
        %v3114 = vadd.f32 %v2954, 4.0
        %v3115 = vadd.f32 %v2955, 4.0
        %v3116 = vadd.f32 %v2956, 4.0
        %v3117 = vadd.f32 %v2957, 4.0
        %v3118 = vadd.f32 %v2958, 4.0
        %v3119 = vadd.f32 %v2959, 4.0
        %v3120 = vadd.f32 %v2960, 4.0
        %v3121 = vadd.f32 %v2961, 4.0
        %v3122 = vadd.f32 %v2962, 4.0
        %v3123 = vadd.f32 %v2963, 4.0
        %v3124 = vadd.f32 %v2964, 4.0
        %v3125 = vadd.f32 %v2965, 4.0
        %v3126 = vadd.f32 %v2966, 4.0
        %v3127 = vmul.f32 %v3095, %v3111
        %v3128 = vmul.f32 %v3096, %v3112
        %v3129 = vmul.f32 %v3097, %v3113
        %v3130 = vmul.f32 %v3098, %v3114
        %v3131 = vmul.f32 %v3099, %v3115
        %v3132 = vmul.f32 %v3100, %v3116
        %v3133 = vmul.f32 %v3101, %v3117
        %v3134 = vmul.f32 %v3102, %v3118
        %v3135 = vmul.f32 %v3103, %v3119
        %v3136 = vmul.f32 %v3104, %v3120
        %v3137 = vmul.f32 %v3105, %v3121
        %v3138 = vmul.f32 %v3106, %v3122
        %v3139 = vmul.f32 %v3107, %v3123
        %v3140 = vmul.f32 %v3108, %v3124
        %v3141 = vmul.f32 %v3109, %v3125
        %v3142 = vmul.f32 %v3110, %v3126
        %v3143 = vadd.f32 %v2951, 5.0
        %v3144 = vadd.f32 %v2952, 5.0
        %v3145 = vadd.f32 %v2953, 5.0
        %v3146 = vadd.f32 %v2954, 5.0
        %v3147 = vadd.f32 %v2955, 5.0
        %v3148 = vadd.f32 %v2956, 5.0
        %v3149 = vadd.f32 %v2957, 5.0
        %v3150 = vadd.f32 %v2958, 5.0
        %v3151 = vadd.f32 %v2959, 5.0
        %v3152 = vadd.f32 %v2960, 5.0
        %v3153 = vadd.f32 %v2961, 5.0
        %v3154 = vadd.f32 %v2962, 5.0
        %v3155 = vadd.f32 %v2963, 5.0
        %v3156 = vadd.f32 %v2964, 5.0
        %v3157 = vadd.f32 %v2965, 5.0
        %v3158 = vadd.f32 %v2966, 5.0
        %v3159 = vmul.f32 %v3127, %v3143
        %v3160 = vmul.f32 %v3128, %v3144
        %v3161 = vmul.f32 %v3129, %v3145
        %v3162 = vmul.f32 %v3130, %v3146
        %v3163 = vmul.f32 %v3131, %v3147
        %v3164 = vmul.f32 %v3132, %v3148
        %v3165 = vmul.f32 %v3133, %v3149
        %v3166 = vmul.f32 %v3134, %v3150
        %v3167 = vmul.f32 %v3135, %v3151
        %v3168 = vmul.f32 %v3136, %v3152
        %v3169 = vmul.f32 %v3137, %v3153
        %v3170 = vmul.f32 %v3138, %v3154
        %v3171 = vmul.f32 %v3139, %v3155
        %v3172 = vmul.f32 %v3140, %v3156
        %v3173 = vmul.f32 %v3141, %v3157
        %v3174 = vmul.f32 %v3142, %v3158
        %v3175 = vadd.f32 %v2951, 6.0
        %v3176 = vadd.f32 %v2952, 6.0
        %v3177 = vadd.f32 %v2953, 6.0
        %v3178 = vadd.f32 %v2954, 6.0
        %v3179 = vadd.f32 %v2955, 6.0
        %v3180 = vadd.f32 %v2956, 6.0
        %v3181 = vadd.f32 %v2957, 6.0
        %v3182 = vadd.f32 %v2958, 6.0
        %v3183 = vadd.f32 %v2959, 6.0
        %v3184 = vadd.f32 %v2960, 6.0
        %v3185 = vadd.f32 %v2961, 6.0
        %v3186 = vadd.f32 %v2962, 6.0
        %v3187 = vadd.f32 %v2963, 6.0
        %v3188 = vadd.f32 %v2964, 6.0
        %v3189 = vadd.f32 %v2965, 6.0
        %v3190 = vadd.f32 %v2966, 6.0
        %v3191 = vmul.f32 %v3159, %v3175
        %v3192 = vmul.f32 %v3160, %v3176
        %v3193 = vmul.f32 %v3161, %v3177
        %v3194 = vmul.f32 %v3162, %v3178
        %v3195 = vmul.f32 %v3163, %v3179
        %v3196 = vmul.f32 %v3164, %v3180
        %v3197 = vmul.f32 %v3165, %v3181
        %v3198 = vmul.f32 %v3166, %v3182
        %v3199 = vmul.f32 %v3167, %v3183
        %v3200 = vmul.f32 %v3168, %v3184
        %v3201 = vmul.f32 %v3169, %v3185
        %v3202 = vmul.f32 %v3170, %v3186
        %v3203 = vmul.f32 %v3171, %v3187
        %v3204 = vmul.f32 %v3172, %v3188
        %v3205 = vmul.f32 %v3173, %v3189
        %v3206 = vmul.f32 %v3174, %v3190
        %v3207 = vadd.f32 %v2951, 7.0
        %v3208 = vadd.f32 %v2952, 7.0
        %v3209 = vadd.f32 %v2953, 7.0
        %v3210 = vadd.f32 %v2954, 7.0
        %v3211 = vadd.f32 %v2955, 7.0
        %v3212 = vadd.f32 %v2956, 7.0
        %v3213 = vadd.f32 %v2957, 7.0
        %v3214 = vadd.f32 %v2958, 7.0
        %v3215 = vadd.f32 %v2959, 7.0
        %v3216 = vadd.f32 %v2960, 7.0
        %v3217 = vadd.f32 %v2961, 7.0
        %v3218 = vadd.f32 %v2962, 7.0
        %v3219 = vadd.f32 %v2963, 7.0
        %v3220 = vadd.f32 %v2964, 7.0
        %v3221 = vadd.f32 %v2965, 7.0
        %v3222 = vadd.f32 %v2966, 7.0
        %v3223 = vmul.f32 %v3191, %v3207
        %v3224 = vmul.f32 %v3192, %v3208
        %v3225 = vmul.f32 %v3193, %v3209
        %v3226 = vmul.f32 %v3194, %v3210
        %v3227 = vmul.f32 %v3195, %v3211
        %v3228 = vmul.f32 %v3196, %v3212
        %v3229 = vmul.f32 %v3197, %v3213
        %v3230 = vmul.f32 %v3198, %v3214
        %v3231 = vmul.f32 %v3199, %v3215
        %v3232 = vmul.f32 %v3200, %v3216
        %v3233 = vmul.f32 %v3201, %v3217
        %v3234 = vmul.f32 %v3202, %v3218
        %v3235 = vmul.f32 %v3203, %v3219
        %v3236 = vmul.f32 %v3204, %v3220
        %v3237 = vmul.f32 %v3205, %v3221
        %v3238 = vmul.f32 %v3206, %v3222
        %v3239 = vsel %vm2967, %v3223, 1.0
        %v3240 = vsel %vm2968, %v3224, 1.0
        %v3241 = vsel %vm2969, %v3225, 1.0
        %v3242 = vsel %vm2970, %v3226, 1.0
        %v3243 = vsel %vm2971, %v3227, 1.0
        %v3244 = vsel %vm2972, %v3228, 1.0
        %v3245 = vsel %vm2973, %v3229, 1.0
        %v3246 = vsel %vm2974, %v3230, 1.0
        %v3247 = vsel %vm2975, %v3231, 1.0
        %v3248 = vsel %vm2976, %v3232, 1.0
        %v3249 = vsel %vm2977, %v3233, 1.0
        %v3250 = vsel %vm2978, %v3234, 1.0
        %v3251 = vsel %vm2979, %v3235, 1.0
        %v3252 = vsel %vm2980, %v3236, 1.0
        %v3253 = vsel %vm2981, %v3237, 1.0
        %v3254 = vsel %vm2982, %v3238, 1.0
        %v3255 = vrcp.pop %v2999
        %v3256 = vrcp.pop %v3000
        %v3257 = vrcp.pop %v3001
        %v3258 = vrcp.pop %v3002
        %v3259 = vrcp.pop %v3003
        %v3260 = vrcp.pop %v3004
        %v3261 = vrcp.pop %v3005
        %v3262 = vrcp.pop %v3006
        %v3263 = vrcp.pop %v3007
        %v3264 = vrcp.pop %v3008
        %v3265 = vrcp.pop %v3009
        %v3266 = vrcp.pop %v3010
        %v3267 = vrcp.pop %v3011
        %v3268 = vrcp.pop %v3012
        %v3269 = vrcp.pop %v3013
        %v3270 = vrcp.pop %v3014
        %v3271 = vmul.f32 %v3255, %v3255
        %v3272 = vmul.f32 %v3256, %v3256
        %v3273 = vmul.f32 %v3257, %v3257
        %v3274 = vmul.f32 %v3258, %v3258
        %v3275 = vmul.f32 %v3259, %v3259
        %v3276 = vmul.f32 %v3260, %v3260
        %v3277 = vmul.f32 %v3261, %v3261
        %v3278 = vmul.f32 %v3262, %v3262
        %v3279 = vmul.f32 %v3263, %v3263
        %v3280 = vmul.f32 %v3264, %v3264
        %v3281 = vmul.f32 %v3265, %v3265
        %v3282 = vmul.f32 %v3266, %v3266
        %v3283 = vmul.f32 %v3267, %v3267
        %v3284 = vmul.f32 %v3268, %v3268
        %v3285 = vmul.f32 %v3269, %v3269
        %v3286 = vmul.f32 %v3270, %v3270
        %v3287 = vmul.f32 %v3271, -0.0005952381
        %v3288 = vmul.f32 %v3272, -0.0005952381
        %v3289 = vmul.f32 %v3273, -0.0005952381
        %v3290 = vmul.f32 %v3274, -0.0005952381
        %v3291 = vmul.f32 %v3275, -0.0005952381
        %v3292 = vmul.f32 %v3276, -0.0005952381
        %v3293 = vmul.f32 %v3277, -0.0005952381
        %v3294 = vmul.f32 %v3278, -0.0005952381
        %v3295 = vmul.f32 %v3279, -0.0005952381
        %v3296 = vmul.f32 %v3280, -0.0005952381
        %v3297 = vmul.f32 %v3281, -0.0005952381
        %v3298 = vmul.f32 %v3282, -0.0005952381
        %v3299 = vmul.f32 %v3283, -0.0005952381
        %v3300 = vmul.f32 %v3284, -0.0005952381
        %v3301 = vmul.f32 %v3285, -0.0005952381
        %v3302 = vmul.f32 %v3286, -0.0005952381
        %v3303 = vadd.f32 %v3287, 0.0007936508
        %v3304 = vadd.f32 %v3288, 0.0007936508
        %v3305 = vadd.f32 %v3289, 0.0007936508
        %v3306 = vadd.f32 %v3290, 0.0007936508
        %v3307 = vadd.f32 %v3291, 0.0007936508
        %v3308 = vadd.f32 %v3292, 0.0007936508
        %v3309 = vadd.f32 %v3293, 0.0007936508
        %v3310 = vadd.f32 %v3294, 0.0007936508
        %v3311 = vadd.f32 %v3295, 0.0007936508
        %v3312 = vadd.f32 %v3296, 0.0007936508
        %v3313 = vadd.f32 %v3297, 0.0007936508
        %v3314 = vadd.f32 %v3298, 0.0007936508
        %v3315 = vadd.f32 %v3299, 0.0007936508
        %v3316 = vadd.f32 %v3300, 0.0007936508
        %v3317 = vadd.f32 %v3301, 0.0007936508
        %v3318 = vadd.f32 %v3302, 0.0007936508
        %v3319 = vmul.f32 %v3271, %v3303
        %v3320 = vmul.f32 %v3272, %v3304
        %v3321 = vmul.f32 %v3273, %v3305
        %v3322 = vmul.f32 %v3274, %v3306
        %v3323 = vmul.f32 %v3275, %v3307
        %v3324 = vmul.f32 %v3276, %v3308
        %v3325 = vmul.f32 %v3277, %v3309
        %v3326 = vmul.f32 %v3278, %v3310
        %v3327 = vmul.f32 %v3279, %v3311
        %v3328 = vmul.f32 %v3280, %v3312
        %v3329 = vmul.f32 %v3281, %v3313
        %v3330 = vmul.f32 %v3282, %v3314
        %v3331 = vmul.f32 %v3283, %v3315
        %v3332 = vmul.f32 %v3284, %v3316
        %v3333 = vmul.f32 %v3285, %v3317
        %v3334 = vmul.f32 %v3286, %v3318
        %v3335 = vadd.f32 %v3319, -0.0027777778
        %v3336 = vadd.f32 %v3320, -0.0027777778
        %v3337 = vadd.f32 %v3321, -0.0027777778
        %v3338 = vadd.f32 %v3322, -0.0027777778
        %v3339 = vadd.f32 %v3323, -0.0027777778
        %v3340 = vadd.f32 %v3324, -0.0027777778
        %v3341 = vadd.f32 %v3325, -0.0027777778
        %v3342 = vadd.f32 %v3326, -0.0027777778
        %v3343 = vadd.f32 %v3327, -0.0027777778
        %v3344 = vadd.f32 %v3328, -0.0027777778
        %v3345 = vadd.f32 %v3329, -0.0027777778
        %v3346 = vadd.f32 %v3330, -0.0027777778
        %v3347 = vadd.f32 %v3331, -0.0027777778
        %v3348 = vadd.f32 %v3332, -0.0027777778
        %v3349 = vadd.f32 %v3333, -0.0027777778
        %v3350 = vadd.f32 %v3334, -0.0027777778
        %v3351 = vmul.f32 %v3271, %v3335
        %v3352 = vmul.f32 %v3272, %v3336
        %v3353 = vmul.f32 %v3273, %v3337
        %v3354 = vmul.f32 %v3274, %v3338
        %v3355 = vmul.f32 %v3275, %v3339
        %v3356 = vmul.f32 %v3276, %v3340
        %v3357 = vmul.f32 %v3277, %v3341
        %v3358 = vmul.f32 %v3278, %v3342
        %v3359 = vmul.f32 %v3279, %v3343
        %v3360 = vmul.f32 %v3280, %v3344
        %v3361 = vmul.f32 %v3281, %v3345
        %v3362 = vmul.f32 %v3282, %v3346
        %v3363 = vmul.f32 %v3283, %v3347
        %v3364 = vmul.f32 %v3284, %v3348
        %v3365 = vmul.f32 %v3285, %v3349
        %v3366 = vmul.f32 %v3286, %v3350
        %v3367 = vadd.f32 %v3351, 0.083333336
        %v3368 = vadd.f32 %v3352, 0.083333336
        %v3369 = vadd.f32 %v3353, 0.083333336
        %v3370 = vadd.f32 %v3354, 0.083333336
        %v3371 = vadd.f32 %v3355, 0.083333336
        %v3372 = vadd.f32 %v3356, 0.083333336
        %v3373 = vadd.f32 %v3357, 0.083333336
        %v3374 = vadd.f32 %v3358, 0.083333336
        %v3375 = vadd.f32 %v3359, 0.083333336
        %v3376 = vadd.f32 %v3360, 0.083333336
        %v3377 = vadd.f32 %v3361, 0.083333336
        %v3378 = vadd.f32 %v3362, 0.083333336
        %v3379 = vadd.f32 %v3363, 0.083333336
        %v3380 = vadd.f32 %v3364, 0.083333336
        %v3381 = vadd.f32 %v3365, 0.083333336
        %v3382 = vadd.f32 %v3366, 0.083333336
        %v3383 = vmul.f32 %v3255, %v3367
        %v3384 = vmul.f32 %v3256, %v3368
        %v3385 = vmul.f32 %v3257, %v3369
        %v3386 = vmul.f32 %v3258, %v3370
        %v3387 = vmul.f32 %v3259, %v3371
        %v3388 = vmul.f32 %v3260, %v3372
        %v3389 = vmul.f32 %v3261, %v3373
        %v3390 = vmul.f32 %v3262, %v3374
        %v3391 = vmul.f32 %v3263, %v3375
        %v3392 = vmul.f32 %v3264, %v3376
        %v3393 = vmul.f32 %v3265, %v3377
        %v3394 = vmul.f32 %v3266, %v3378
        %v3395 = vmul.f32 %v3267, %v3379
        %v3396 = vmul.f32 %v3268, %v3380
        %v3397 = vmul.f32 %v3269, %v3381
        %v3398 = vmul.f32 %v3270, %v3382
        %v3399 = vsub.f32 %v2999, 0.5
        %v3400 = vsub.f32 %v3000, 0.5
        %v3401 = vsub.f32 %v3001, 0.5
        %v3402 = vsub.f32 %v3002, 0.5
        %v3403 = vsub.f32 %v3003, 0.5
        %v3404 = vsub.f32 %v3004, 0.5
        %v3405 = vsub.f32 %v3005, 0.5
        %v3406 = vsub.f32 %v3006, 0.5
        %v3407 = vsub.f32 %v3007, 0.5
        %v3408 = vsub.f32 %v3008, 0.5
        %v3409 = vsub.f32 %v3009, 0.5
        %v3410 = vsub.f32 %v3010, 0.5
        %v3411 = vsub.f32 %v3011, 0.5
        %v3412 = vsub.f32 %v3012, 0.5
        %v3413 = vsub.f32 %v3013, 0.5
        %v3414 = vsub.f32 %v3014, 0.5
        %v3431 = vshra.s32 %v2999, 23
        %v3432 = vshra.s32 %v3000, 23
        %v3433 = vshra.s32 %v3001, 23
        %v3434 = vshra.s32 %v3002, 23
        %v3435 = vshra.s32 %v3003, 23
        %v3436 = vshra.s32 %v3004, 23
        %v3437 = vshra.s32 %v3005, 23
        %v3438 = vshra.s32 %v3006, 23
        %v3439 = vshra.s32 %v3007, 23
        %v3440 = vshra.s32 %v3008, 23
        %v3441 = vshra.s32 %v3009, 23
        %v3442 = vshra.s32 %v3010, 23
        %v3443 = vshra.s32 %v3011, 23
        %v3444 = vshra.s32 %v3012, 23
        %v3445 = vshra.s32 %v3013, 23
        %v3446 = vshra.s32 %v3014, 23
        %v3447 = vand.u32 %v3431, 255
        %v3448 = vand.u32 %v3432, 255
        %v3449 = vand.u32 %v3433, 255
        %v3450 = vand.u32 %v3434, 255
        %v3451 = vand.u32 %v3435, 255
        %v3452 = vand.u32 %v3436, 255
        %v3453 = vand.u32 %v3437, 255
        %v3454 = vand.u32 %v3438, 255
        %v3455 = vand.u32 %v3439, 255
        %v3456 = vand.u32 %v3440, 255
        %v3457 = vand.u32 %v3441, 255
        %v3458 = vand.u32 %v3442, 255
        %v3459 = vand.u32 %v3443, 255
        %v3460 = vand.u32 %v3444, 255
        %v3461 = vand.u32 %v3445, 255
        %v3462 = vand.u32 %v3446, 255
        %v3463 = vsub.s32 %v3447, 127
        %v3464 = vsub.s32 %v3448, 127
        %v3465 = vsub.s32 %v3449, 127
        %v3466 = vsub.s32 %v3450, 127
        %v3467 = vsub.s32 %v3451, 127
        %v3468 = vsub.s32 %v3452, 127
        %v3469 = vsub.s32 %v3453, 127
        %v3470 = vsub.s32 %v3454, 127
        %v3471 = vsub.s32 %v3455, 127
        %v3472 = vsub.s32 %v3456, 127
        %v3473 = vsub.s32 %v3457, 127
        %v3474 = vsub.s32 %v3458, 127
        %v3475 = vsub.s32 %v3459, 127
        %v3476 = vsub.s32 %v3460, 127
        %v3477 = vsub.s32 %v3461, 127
        %v3478 = vsub.s32 %v3462, 127
        %v3479 = vand.u32 %v2999, 8388607
        %v3480 = vand.u32 %v3000, 8388607
        %v3481 = vand.u32 %v3001, 8388607
        %v3482 = vand.u32 %v3002, 8388607
        %v3483 = vand.u32 %v3003, 8388607
        %v3484 = vand.u32 %v3004, 8388607
        %v3485 = vand.u32 %v3005, 8388607
        %v3486 = vand.u32 %v3006, 8388607
        %v3487 = vand.u32 %v3007, 8388607
        %v3488 = vand.u32 %v3008, 8388607
        %v3489 = vand.u32 %v3009, 8388607
        %v3490 = vand.u32 %v3010, 8388607
        %v3491 = vand.u32 %v3011, 8388607
        %v3492 = vand.u32 %v3012, 8388607
        %v3493 = vand.u32 %v3013, 8388607
        %v3494 = vand.u32 %v3014, 8388607
        %v3495 = vor.u32 %v3479, 1065353216
        %v3496 = vor.u32 %v3480, 1065353216
        %v3497 = vor.u32 %v3481, 1065353216
        %v3498 = vor.u32 %v3482, 1065353216
        %v3499 = vor.u32 %v3483, 1065353216
        %v3500 = vor.u32 %v3484, 1065353216
        %v3501 = vor.u32 %v3485, 1065353216
        %v3502 = vor.u32 %v3486, 1065353216
        %v3503 = vor.u32 %v3487, 1065353216
        %v3504 = vor.u32 %v3488, 1065353216
        %v3505 = vor.u32 %v3489, 1065353216
        %v3506 = vor.u32 %v3490, 1065353216
        %v3507 = vor.u32 %v3491, 1065353216
        %v3508 = vor.u32 %v3492, 1065353216
        %v3509 = vor.u32 %v3493, 1065353216
        %v3510 = vor.u32 %v3494, 1065353216
        %vm3527 = vcmp.gt.f32.partialorder %v3495, 1.4142135
        %vm3528 = vcmp.gt.f32.partialorder %v3496, 1.4142135
        %vm3529 = vcmp.gt.f32.partialorder %v3497, 1.4142135
        %vm3530 = vcmp.gt.f32.partialorder %v3498, 1.4142135
        %vm3531 = vcmp.gt.f32.partialorder %v3499, 1.4142135
        %vm3532 = vcmp.gt.f32.partialorder %v3500, 1.4142135
        %vm3533 = vcmp.gt.f32.partialorder %v3501, 1.4142135
        %vm3534 = vcmp.gt.f32.partialorder %v3502, 1.4142135
        %vm3535 = vcmp.gt.f32.partialorder %v3503, 1.4142135
        %vm3536 = vcmp.gt.f32.partialorder %v3504, 1.4142135
        %vm3537 = vcmp.gt.f32.partialorder %v3505, 1.4142135
        %vm3538 = vcmp.gt.f32.partialorder %v3506, 1.4142135
        %vm3539 = vcmp.gt.f32.partialorder %v3507, 1.4142135
        %vm3540 = vcmp.gt.f32.partialorder %v3508, 1.4142135
        %vm3541 = vcmp.gt.f32.partialorder %v3509, 1.4142135
        %vm3542 = vcmp.gt.f32.partialorder %v3510, 1.4142135
        %v3543 = vmul.f32 %v3495, 0.5
        %v3544 = vmul.f32 %v3496, 0.5
        %v3545 = vmul.f32 %v3497, 0.5
        %v3546 = vmul.f32 %v3498, 0.5
        %v3547 = vmul.f32 %v3499, 0.5
        %v3548 = vmul.f32 %v3500, 0.5
        %v3549 = vmul.f32 %v3501, 0.5
        %v3550 = vmul.f32 %v3502, 0.5
        %v3551 = vmul.f32 %v3503, 0.5
        %v3552 = vmul.f32 %v3504, 0.5
        %v3553 = vmul.f32 %v3505, 0.5
        %v3554 = vmul.f32 %v3506, 0.5
        %v3555 = vmul.f32 %v3507, 0.5
        %v3556 = vmul.f32 %v3508, 0.5
        %v3557 = vmul.f32 %v3509, 0.5
        %v3558 = vmul.f32 %v3510, 0.5
        %v3559 = vsel %vm3527, %v3543, %v3495
        %v3560 = vsel %vm3528, %v3544, %v3496
        %v3561 = vsel %vm3529, %v3545, %v3497
        %v3562 = vsel %vm3530, %v3546, %v3498
        %v3563 = vsel %vm3531, %v3547, %v3499
        %v3564 = vsel %vm3532, %v3548, %v3500
        %v3565 = vsel %vm3533, %v3549, %v3501
        %v3566 = vsel %vm3534, %v3550, %v3502
        %v3567 = vsel %vm3535, %v3551, %v3503
        %v3568 = vsel %vm3536, %v3552, %v3504
        %v3569 = vsel %vm3537, %v3553, %v3505
        %v3570 = vsel %vm3538, %v3554, %v3506
        %v3571 = vsel %vm3539, %v3555, %v3507
        %v3572 = vsel %vm3540, %v3556, %v3508
        %v3573 = vsel %vm3541, %v3557, %v3509
        %v3574 = vsel %vm3542, %v3558, %v3510
        %v3575 = vadd.s32 %v3463, 1
        %v3576 = vadd.s32 %v3464, 1
        %v3577 = vadd.s32 %v3465, 1
        %v3578 = vadd.s32 %v3466, 1
        %v3579 = vadd.s32 %v3467, 1
        %v3580 = vadd.s32 %v3468, 1
        %v3581 = vadd.s32 %v3469, 1
        %v3582 = vadd.s32 %v3470, 1
        %v3583 = vadd.s32 %v3471, 1
        %v3584 = vadd.s32 %v3472, 1
        %v3585 = vadd.s32 %v3473, 1
        %v3586 = vadd.s32 %v3474, 1
        %v3587 = vadd.s32 %v3475, 1
        %v3588 = vadd.s32 %v3476, 1
        %v3589 = vadd.s32 %v3477, 1
        %v3590 = vadd.s32 %v3478, 1
        %v3591 = vsel %vm3527, %v3575, %v3463
        %v3592 = vsel %vm3528, %v3576, %v3464
        %v3593 = vsel %vm3529, %v3577, %v3465
        %v3594 = vsel %vm3530, %v3578, %v3466
        %v3595 = vsel %vm3531, %v3579, %v3467
        %v3596 = vsel %vm3532, %v3580, %v3468
        %v3597 = vsel %vm3533, %v3581, %v3469
        %v3598 = vsel %vm3534, %v3582, %v3470
        %v3599 = vsel %vm3535, %v3583, %v3471
        %v3600 = vsel %vm3536, %v3584, %v3472
        %v3601 = vsel %vm3537, %v3585, %v3473
        %v3602 = vsel %vm3538, %v3586, %v3474
        %v3603 = vsel %vm3539, %v3587, %v3475
        %v3604 = vsel %vm3540, %v3588, %v3476
        %v3605 = vsel %vm3541, %v3589, %v3477
        %v3606 = vsel %vm3542, %v3590, %v3478
        %v3607 = vcvt.s32.f32 %v3591
        %v3608 = vcvt.s32.f32 %v3592
        %v3609 = vcvt.s32.f32 %v3593
        %v3610 = vcvt.s32.f32 %v3594
        %v3611 = vcvt.s32.f32 %v3595
        %v3612 = vcvt.s32.f32 %v3596
        %v3613 = vcvt.s32.f32 %v3597
        %v3614 = vcvt.s32.f32 %v3598
        %v3615 = vcvt.s32.f32 %v3599
        %v3616 = vcvt.s32.f32 %v3600
        %v3617 = vcvt.s32.f32 %v3601
        %v3618 = vcvt.s32.f32 %v3602
        %v3619 = vcvt.s32.f32 %v3603
        %v3620 = vcvt.s32.f32 %v3604
        %v3621 = vcvt.s32.f32 %v3605
        %v3622 = vcvt.s32.f32 %v3606
        %v3623 = vadd.f32 %v3559, 1.0
        %v3624 = vadd.f32 %v3560, 1.0
        %v3625 = vadd.f32 %v3561, 1.0
        %v3626 = vadd.f32 %v3562, 1.0
        %v3627 = vadd.f32 %v3563, 1.0
        %v3628 = vadd.f32 %v3564, 1.0
        %v3629 = vadd.f32 %v3565, 1.0
        %v3630 = vadd.f32 %v3566, 1.0
        %v3631 = vadd.f32 %v3567, 1.0
        %v3632 = vadd.f32 %v3568, 1.0
        %v3633 = vadd.f32 %v3569, 1.0
        %v3634 = vadd.f32 %v3570, 1.0
        %v3635 = vadd.f32 %v3571, 1.0
        %v3636 = vadd.f32 %v3572, 1.0
        %v3637 = vadd.f32 %v3573, 1.0
        %v3638 = vadd.f32 %v3574, 1.0
        %v3639 = vrcp.pop %v3623
        %v3640 = vrcp.pop %v3624
        %v3641 = vrcp.pop %v3625
        %v3642 = vrcp.pop %v3626
        %v3643 = vrcp.pop %v3627
        %v3644 = vrcp.pop %v3628
        %v3645 = vrcp.pop %v3629
        %v3646 = vrcp.pop %v3630
        %v3647 = vrcp.pop %v3631
        %v3648 = vrcp.pop %v3632
        %v3649 = vrcp.pop %v3633
        %v3650 = vrcp.pop %v3634
        %v3651 = vrcp.pop %v3635
        %v3652 = vrcp.pop %v3636
        %v3653 = vrcp.pop %v3637
        %v3654 = vrcp.pop %v3638
        %v3655 = vmul.f32 %v3623, %v3639
        %v3656 = vmul.f32 %v3624, %v3640
        %v3657 = vmul.f32 %v3625, %v3641
        %v3658 = vmul.f32 %v3626, %v3642
        %v3659 = vmul.f32 %v3627, %v3643
        %v3660 = vmul.f32 %v3628, %v3644
        %v3661 = vmul.f32 %v3629, %v3645
        %v3662 = vmul.f32 %v3630, %v3646
        %v3663 = vmul.f32 %v3631, %v3647
        %v3664 = vmul.f32 %v3632, %v3648
        %v3665 = vmul.f32 %v3633, %v3649
        %v3666 = vmul.f32 %v3634, %v3650
        %v3667 = vmul.f32 %v3635, %v3651
        %v3668 = vmul.f32 %v3636, %v3652
        %v3669 = vmul.f32 %v3637, %v3653
        %v3670 = vmul.f32 %v3638, %v3654
        %v3671 = vsub.f32 2.0, %v3655
        %v3672 = vsub.f32 2.0, %v3656
        %v3673 = vsub.f32 2.0, %v3657
        %v3674 = vsub.f32 2.0, %v3658
        %v3675 = vsub.f32 2.0, %v3659
        %v3676 = vsub.f32 2.0, %v3660
        %v3677 = vsub.f32 2.0, %v3661
        %v3678 = vsub.f32 2.0, %v3662
        %v3679 = vsub.f32 2.0, %v3663
        %v3680 = vsub.f32 2.0, %v3664
        %v3681 = vsub.f32 2.0, %v3665
        %v3682 = vsub.f32 2.0, %v3666
        %v3683 = vsub.f32 2.0, %v3667
        %v3684 = vsub.f32 2.0, %v3668
        %v3685 = vsub.f32 2.0, %v3669
        %v3686 = vsub.f32 2.0, %v3670
        %v3687 = vmul.f32 %v3639, %v3671
        %v3688 = vmul.f32 %v3640, %v3672
        %v3689 = vmul.f32 %v3641, %v3673
        %v3690 = vmul.f32 %v3642, %v3674
        %v3691 = vmul.f32 %v3643, %v3675
        %v3692 = vmul.f32 %v3644, %v3676
        %v3693 = vmul.f32 %v3645, %v3677
        %v3694 = vmul.f32 %v3646, %v3678
        %v3695 = vmul.f32 %v3647, %v3679
        %v3696 = vmul.f32 %v3648, %v3680
        %v3697 = vmul.f32 %v3649, %v3681
        %v3698 = vmul.f32 %v3650, %v3682
        %v3699 = vmul.f32 %v3651, %v3683
        %v3700 = vmul.f32 %v3652, %v3684
        %v3701 = vmul.f32 %v3653, %v3685
        %v3702 = vmul.f32 %v3654, %v3686
        %v3703 = vsub.f32 %v3559, 1.0
        %v3704 = vsub.f32 %v3560, 1.0
        %v3705 = vsub.f32 %v3561, 1.0
        %v3706 = vsub.f32 %v3562, 1.0
        %v3707 = vsub.f32 %v3563, 1.0
        %v3708 = vsub.f32 %v3564, 1.0
        %v3709 = vsub.f32 %v3565, 1.0
        %v3710 = vsub.f32 %v3566, 1.0
        %v3711 = vsub.f32 %v3567, 1.0
        %v3712 = vsub.f32 %v3568, 1.0
        %v3713 = vsub.f32 %v3569, 1.0
        %v3714 = vsub.f32 %v3570, 1.0
        %v3715 = vsub.f32 %v3571, 1.0
        %v3716 = vsub.f32 %v3572, 1.0
        %v3717 = vsub.f32 %v3573, 1.0
        %v3718 = vsub.f32 %v3574, 1.0
        %v3719 = vmul.f32 %v3703, %v3687
        %v3720 = vmul.f32 %v3704, %v3688
        %v3721 = vmul.f32 %v3705, %v3689
        %v3722 = vmul.f32 %v3706, %v3690
        %v3723 = vmul.f32 %v3707, %v3691
        %v3724 = vmul.f32 %v3708, %v3692
        %v3725 = vmul.f32 %v3709, %v3693
        %v3726 = vmul.f32 %v3710, %v3694
        %v3727 = vmul.f32 %v3711, %v3695
        %v3728 = vmul.f32 %v3712, %v3696
        %v3729 = vmul.f32 %v3713, %v3697
        %v3730 = vmul.f32 %v3714, %v3698
        %v3731 = vmul.f32 %v3715, %v3699
        %v3732 = vmul.f32 %v3716, %v3700
        %v3733 = vmul.f32 %v3717, %v3701
        %v3734 = vmul.f32 %v3718, %v3702
        %v3735 = vmul.f32 %v3719, %v3719
        %v3736 = vmul.f32 %v3720, %v3720
        %v3737 = vmul.f32 %v3721, %v3721
        %v3738 = vmul.f32 %v3722, %v3722
        %v3739 = vmul.f32 %v3723, %v3723
        %v3740 = vmul.f32 %v3724, %v3724
        %v3741 = vmul.f32 %v3725, %v3725
        %v3742 = vmul.f32 %v3726, %v3726
        %v3743 = vmul.f32 %v3727, %v3727
        %v3744 = vmul.f32 %v3728, %v3728
        %v3745 = vmul.f32 %v3729, %v3729
        %v3746 = vmul.f32 %v3730, %v3730
        %v3747 = vmul.f32 %v3731, %v3731
        %v3748 = vmul.f32 %v3732, %v3732
        %v3749 = vmul.f32 %v3733, %v3733
        %v3750 = vmul.f32 %v3734, %v3734
        %v3751 = vmul.f32 %v3735, 0.11111111
        %v3752 = vmul.f32 %v3736, 0.11111111
        %v3753 = vmul.f32 %v3737, 0.11111111
        %v3754 = vmul.f32 %v3738, 0.11111111
        %v3755 = vmul.f32 %v3739, 0.11111111
        %v3756 = vmul.f32 %v3740, 0.11111111
        %v3757 = vmul.f32 %v3741, 0.11111111
        %v3758 = vmul.f32 %v3742, 0.11111111
        %v3759 = vmul.f32 %v3743, 0.11111111
        %v3760 = vmul.f32 %v3744, 0.11111111
        %v3761 = vmul.f32 %v3745, 0.11111111
        %v3762 = vmul.f32 %v3746, 0.11111111
        %v3763 = vmul.f32 %v3747, 0.11111111
        %v3764 = vmul.f32 %v3748, 0.11111111
        %v3765 = vmul.f32 %v3749, 0.11111111
        %v3766 = vmul.f32 %v3750, 0.11111111
        %v3767 = vadd.f32 %v3751, 0.14285715
        %v3768 = vadd.f32 %v3752, 0.14285715
        %v3769 = vadd.f32 %v3753, 0.14285715
        %v3770 = vadd.f32 %v3754, 0.14285715
        %v3771 = vadd.f32 %v3755, 0.14285715
        %v3772 = vadd.f32 %v3756, 0.14285715
        %v3773 = vadd.f32 %v3757, 0.14285715
        %v3774 = vadd.f32 %v3758, 0.14285715
        %v3775 = vadd.f32 %v3759, 0.14285715
        %v3776 = vadd.f32 %v3760, 0.14285715
        %v3777 = vadd.f32 %v3761, 0.14285715
        %v3778 = vadd.f32 %v3762, 0.14285715
        %v3779 = vadd.f32 %v3763, 0.14285715
        %v3780 = vadd.f32 %v3764, 0.14285715
        %v3781 = vadd.f32 %v3765, 0.14285715
        %v3782 = vadd.f32 %v3766, 0.14285715
        %v3783 = vmul.f32 %v3735, %v3767
        %v3784 = vmul.f32 %v3736, %v3768
        %v3785 = vmul.f32 %v3737, %v3769
        %v3786 = vmul.f32 %v3738, %v3770
        %v3787 = vmul.f32 %v3739, %v3771
        %v3788 = vmul.f32 %v3740, %v3772
        %v3789 = vmul.f32 %v3741, %v3773
        %v3790 = vmul.f32 %v3742, %v3774
        %v3791 = vmul.f32 %v3743, %v3775
        %v3792 = vmul.f32 %v3744, %v3776
        %v3793 = vmul.f32 %v3745, %v3777
        %v3794 = vmul.f32 %v3746, %v3778
        %v3795 = vmul.f32 %v3747, %v3779
        %v3796 = vmul.f32 %v3748, %v3780
        %v3797 = vmul.f32 %v3749, %v3781
        %v3798 = vmul.f32 %v3750, %v3782
        %v3799 = vadd.f32 %v3783, 0.2
        %v3800 = vadd.f32 %v3784, 0.2
        %v3801 = vadd.f32 %v3785, 0.2
        %v3802 = vadd.f32 %v3786, 0.2
        %v3803 = vadd.f32 %v3787, 0.2
        %v3804 = vadd.f32 %v3788, 0.2
        %v3805 = vadd.f32 %v3789, 0.2
        %v3806 = vadd.f32 %v3790, 0.2
        %v3807 = vadd.f32 %v3791, 0.2
        %v3808 = vadd.f32 %v3792, 0.2
        %v3809 = vadd.f32 %v3793, 0.2
        %v3810 = vadd.f32 %v3794, 0.2
        %v3811 = vadd.f32 %v3795, 0.2
        %v3812 = vadd.f32 %v3796, 0.2
        %v3813 = vadd.f32 %v3797, 0.2
        %v3814 = vadd.f32 %v3798, 0.2
        %v3815 = vmul.f32 %v3735, %v3799
        %v3816 = vmul.f32 %v3736, %v3800
        %v3817 = vmul.f32 %v3737, %v3801
        %v3818 = vmul.f32 %v3738, %v3802
        %v3819 = vmul.f32 %v3739, %v3803
        %v3820 = vmul.f32 %v3740, %v3804
        %v3821 = vmul.f32 %v3741, %v3805
        %v3822 = vmul.f32 %v3742, %v3806
        %v3823 = vmul.f32 %v3743, %v3807
        %v3824 = vmul.f32 %v3744, %v3808
        %v3825 = vmul.f32 %v3745, %v3809
        %v3826 = vmul.f32 %v3746, %v3810
        %v3827 = vmul.f32 %v3747, %v3811
        %v3828 = vmul.f32 %v3748, %v3812
        %v3829 = vmul.f32 %v3749, %v3813
        %v3830 = vmul.f32 %v3750, %v3814
        %v3831 = vadd.f32 %v3815, 0.33333334
        %v3832 = vadd.f32 %v3816, 0.33333334
        %v3833 = vadd.f32 %v3817, 0.33333334
        %v3834 = vadd.f32 %v3818, 0.33333334
        %v3835 = vadd.f32 %v3819, 0.33333334
        %v3836 = vadd.f32 %v3820, 0.33333334
        %v3837 = vadd.f32 %v3821, 0.33333334
        %v3838 = vadd.f32 %v3822, 0.33333334
        %v3839 = vadd.f32 %v3823, 0.33333334
        %v3840 = vadd.f32 %v3824, 0.33333334
        %v3841 = vadd.f32 %v3825, 0.33333334
        %v3842 = vadd.f32 %v3826, 0.33333334
        %v3843 = vadd.f32 %v3827, 0.33333334
        %v3844 = vadd.f32 %v3828, 0.33333334
        %v3845 = vadd.f32 %v3829, 0.33333334
        %v3846 = vadd.f32 %v3830, 0.33333334
        %v3847 = vmul.f32 %v3735, %v3831
        %v3848 = vmul.f32 %v3736, %v3832
        %v3849 = vmul.f32 %v3737, %v3833
        %v3850 = vmul.f32 %v3738, %v3834
        %v3851 = vmul.f32 %v3739, %v3835
        %v3852 = vmul.f32 %v3740, %v3836
        %v3853 = vmul.f32 %v3741, %v3837
        %v3854 = vmul.f32 %v3742, %v3838
        %v3855 = vmul.f32 %v3743, %v3839
        %v3856 = vmul.f32 %v3744, %v3840
        %v3857 = vmul.f32 %v3745, %v3841
        %v3858 = vmul.f32 %v3746, %v3842
        %v3859 = vmul.f32 %v3747, %v3843
        %v3860 = vmul.f32 %v3748, %v3844
        %v3861 = vmul.f32 %v3749, %v3845
        %v3862 = vmul.f32 %v3750, %v3846
        %v3863 = vmul.f32 %v3607, 0.6931472
        %v3864 = vmul.f32 %v3608, 0.6931472
        %v3865 = vmul.f32 %v3609, 0.6931472
        %v3866 = vmul.f32 %v3610, 0.6931472
        %v3867 = vmul.f32 %v3611, 0.6931472
        %v3868 = vmul.f32 %v3612, 0.6931472
        %v3869 = vmul.f32 %v3613, 0.6931472
        %v3870 = vmul.f32 %v3614, 0.6931472
        %v3871 = vmul.f32 %v3615, 0.6931472
        %v3872 = vmul.f32 %v3616, 0.6931472
        %v3873 = vmul.f32 %v3617, 0.6931472
        %v3874 = vmul.f32 %v3618, 0.6931472
        %v3875 = vmul.f32 %v3619, 0.6931472
        %v3876 = vmul.f32 %v3620, 0.6931472
        %v3877 = vmul.f32 %v3621, 0.6931472
        %v3878 = vmul.f32 %v3622, 0.6931472
        %v3879 = vmul.f32 %v3719, %v3847
        %v3880 = vmul.f32 %v3720, %v3848
        %v3881 = vmul.f32 %v3721, %v3849
        %v3882 = vmul.f32 %v3722, %v3850
        %v3883 = vmul.f32 %v3723, %v3851
        %v3884 = vmul.f32 %v3724, %v3852
        %v3885 = vmul.f32 %v3725, %v3853
        %v3886 = vmul.f32 %v3726, %v3854
        %v3887 = vmul.f32 %v3727, %v3855
        %v3888 = vmul.f32 %v3728, %v3856
        %v3889 = vmul.f32 %v3729, %v3857
        %v3890 = vmul.f32 %v3730, %v3858
        %v3891 = vmul.f32 %v3731, %v3859
        %v3892 = vmul.f32 %v3732, %v3860
        %v3893 = vmul.f32 %v3733, %v3861
        %v3894 = vmul.f32 %v3734, %v3862
        %v3895 = vadd.f32 %v3719, %v3879
        %v3896 = vadd.f32 %v3720, %v3880
        %v3897 = vadd.f32 %v3721, %v3881
        %v3898 = vadd.f32 %v3722, %v3882
        %v3899 = vadd.f32 %v3723, %v3883
        %v3900 = vadd.f32 %v3724, %v3884
        %v3901 = vadd.f32 %v3725, %v3885
        %v3902 = vadd.f32 %v3726, %v3886
        %v3903 = vadd.f32 %v3727, %v3887
        %v3904 = vadd.f32 %v3728, %v3888
        %v3905 = vadd.f32 %v3729, %v3889
        %v3906 = vadd.f32 %v3730, %v3890
        %v3907 = vadd.f32 %v3731, %v3891
        %v3908 = vadd.f32 %v3732, %v3892
        %v3909 = vadd.f32 %v3733, %v3893
        %v3910 = vadd.f32 %v3734, %v3894
        %v3911 = vmul.f32 %v3895, 2.0
        %v3912 = vmul.f32 %v3896, 2.0
        %v3913 = vmul.f32 %v3897, 2.0
        %v3914 = vmul.f32 %v3898, 2.0
        %v3915 = vmul.f32 %v3899, 2.0
        %v3916 = vmul.f32 %v3900, 2.0
        %v3917 = vmul.f32 %v3901, 2.0
        %v3918 = vmul.f32 %v3902, 2.0
        %v3919 = vmul.f32 %v3903, 2.0
        %v3920 = vmul.f32 %v3904, 2.0
        %v3921 = vmul.f32 %v3905, 2.0
        %v3922 = vmul.f32 %v3906, 2.0
        %v3923 = vmul.f32 %v3907, 2.0
        %v3924 = vmul.f32 %v3908, 2.0
        %v3925 = vmul.f32 %v3909, 2.0
        %v3926 = vmul.f32 %v3910, 2.0
        %v3927 = vadd.f32 %v3863, %v3911
        %v3928 = vadd.f32 %v3864, %v3912
        %v3929 = vadd.f32 %v3865, %v3913
        %v3930 = vadd.f32 %v3866, %v3914
        %v3931 = vadd.f32 %v3867, %v3915
        %v3932 = vadd.f32 %v3868, %v3916
        %v3933 = vadd.f32 %v3869, %v3917
        %v3934 = vadd.f32 %v3870, %v3918
        %v3935 = vadd.f32 %v3871, %v3919
        %v3936 = vadd.f32 %v3872, %v3920
        %v3937 = vadd.f32 %v3873, %v3921
        %v3938 = vadd.f32 %v3874, %v3922
        %v3939 = vadd.f32 %v3875, %v3923
        %v3940 = vadd.f32 %v3876, %v3924
        %v3941 = vadd.f32 %v3877, %v3925
        %v3942 = vadd.f32 %v3878, %v3926
        %v3943 = vmul.f32 %v3399, %v3927
        %v3944 = vmul.f32 %v3400, %v3928
        %v3945 = vmul.f32 %v3401, %v3929
        %v3946 = vmul.f32 %v3402, %v3930
        %v3947 = vmul.f32 %v3403, %v3931
        %v3948 = vmul.f32 %v3404, %v3932
        %v3949 = vmul.f32 %v3405, %v3933
        %v3950 = vmul.f32 %v3406, %v3934
        %v3951 = vmul.f32 %v3407, %v3935
        %v3952 = vmul.f32 %v3408, %v3936
        %v3953 = vmul.f32 %v3409, %v3937
        %v3954 = vmul.f32 %v3410, %v3938
        %v3955 = vmul.f32 %v3411, %v3939
        %v3956 = vmul.f32 %v3412, %v3940
        %v3957 = vmul.f32 %v3413, %v3941
        %v3958 = vmul.f32 %v3414, %v3942
        %v3959 = vsub.f32 %v3943, %v2999
        %v3960 = vsub.f32 %v3944, %v3000
        %v3961 = vsub.f32 %v3945, %v3001
        %v3962 = vsub.f32 %v3946, %v3002
        %v3963 = vsub.f32 %v3947, %v3003
        %v3964 = vsub.f32 %v3948, %v3004
        %v3965 = vsub.f32 %v3949, %v3005
        %v3966 = vsub.f32 %v3950, %v3006
        %v3967 = vsub.f32 %v3951, %v3007
        %v3968 = vsub.f32 %v3952, %v3008
        %v3969 = vsub.f32 %v3953, %v3009
        %v3970 = vsub.f32 %v3954, %v3010
        %v3971 = vsub.f32 %v3955, %v3011
        %v3972 = vsub.f32 %v3956, %v3012
        %v3973 = vsub.f32 %v3957, %v3013
        %v3974 = vsub.f32 %v3958, %v3014
        %v3975 = vadd.f32 %v3959, 0.9189385
        %v3976 = vadd.f32 %v3960, 0.9189385
        %v3977 = vadd.f32 %v3961, 0.9189385
        %v3978 = vadd.f32 %v3962, 0.9189385
        %v3979 = vadd.f32 %v3963, 0.9189385
        %v3980 = vadd.f32 %v3964, 0.9189385
        %v3981 = vadd.f32 %v3965, 0.9189385
        %v3982 = vadd.f32 %v3966, 0.9189385
        %v3983 = vadd.f32 %v3967, 0.9189385
        %v3984 = vadd.f32 %v3968, 0.9189385
        %v3985 = vadd.f32 %v3969, 0.9189385
        %v3986 = vadd.f32 %v3970, 0.9189385
        %v3987 = vadd.f32 %v3971, 0.9189385
        %v3988 = vadd.f32 %v3972, 0.9189385
        %v3989 = vadd.f32 %v3973, 0.9189385
        %v3990 = vadd.f32 %v3974, 0.9189385
        %v3991 = vadd.f32 %v3975, %v3383
        %v3992 = vadd.f32 %v3976, %v3384
        %v3993 = vadd.f32 %v3977, %v3385
        %v3994 = vadd.f32 %v3978, %v3386
        %v3995 = vadd.f32 %v3979, %v3387
        %v3996 = vadd.f32 %v3980, %v3388
        %v3997 = vadd.f32 %v3981, %v3389
        %v3998 = vadd.f32 %v3982, %v3390
        %v3999 = vadd.f32 %v3983, %v3391
        %v4000 = vadd.f32 %v3984, %v3392
        %v4001 = vadd.f32 %v3985, %v3393
        %v4002 = vadd.f32 %v3986, %v3394
        %v4003 = vadd.f32 %v3987, %v3395
        %v4004 = vadd.f32 %v3988, %v3396
        %v4005 = vadd.f32 %v3989, %v3397
        %v4006 = vadd.f32 %v3990, %v3398
        %v4007 = vmul.f32 %v1111, %v2167
        %v4008 = vmul.f32 %v1112, %v2168
        %v4009 = vmul.f32 %v1113, %v2169
        %v4010 = vmul.f32 %v1114, %v2170
        %v4011 = vmul.f32 %v1115, %v2171
        %v4012 = vmul.f32 %v1116, %v2172
        %v4013 = vmul.f32 %v1117, %v2173
        %v4014 = vmul.f32 %v1118, %v2174
        %v4015 = vmul.f32 %v1119, %v2175
        %v4016 = vmul.f32 %v1120, %v2176
        %v4017 = vmul.f32 %v1121, %v2177
        %v4018 = vmul.f32 %v1122, %v2178
        %v4019 = vmul.f32 %v1123, %v2179
        %v4020 = vmul.f32 %v1124, %v2180
        %v4021 = vmul.f32 %v1125, %v2181
        %v4022 = vmul.f32 %v1126, %v2182
        %v4039 = vshra.s32 %v4007, 23
        %v4040 = vshra.s32 %v4008, 23
        %v4041 = vshra.s32 %v4009, 23
        %v4042 = vshra.s32 %v4010, 23
        %v4043 = vshra.s32 %v4011, 23
        %v4044 = vshra.s32 %v4012, 23
        %v4045 = vshra.s32 %v4013, 23
        %v4046 = vshra.s32 %v4014, 23
        %v4047 = vshra.s32 %v4015, 23
        %v4048 = vshra.s32 %v4016, 23
        %v4049 = vshra.s32 %v4017, 23
        %v4050 = vshra.s32 %v4018, 23
        %v4051 = vshra.s32 %v4019, 23
        %v4052 = vshra.s32 %v4020, 23
        %v4053 = vshra.s32 %v4021, 23
        %v4054 = vshra.s32 %v4022, 23
        %v4055 = vand.u32 %v4039, 255
        %v4056 = vand.u32 %v4040, 255
        %v4057 = vand.u32 %v4041, 255
        %v4058 = vand.u32 %v4042, 255
        %v4059 = vand.u32 %v4043, 255
        %v4060 = vand.u32 %v4044, 255
        %v4061 = vand.u32 %v4045, 255
        %v4062 = vand.u32 %v4046, 255
        %v4063 = vand.u32 %v4047, 255
        %v4064 = vand.u32 %v4048, 255
        %v4065 = vand.u32 %v4049, 255
        %v4066 = vand.u32 %v4050, 255
        %v4067 = vand.u32 %v4051, 255
        %v4068 = vand.u32 %v4052, 255
        %v4069 = vand.u32 %v4053, 255
        %v4070 = vand.u32 %v4054, 255
        %v4071 = vsub.s32 %v4055, 127
        %v4072 = vsub.s32 %v4056, 127
        %v4073 = vsub.s32 %v4057, 127
        %v4074 = vsub.s32 %v4058, 127
        %v4075 = vsub.s32 %v4059, 127
        %v4076 = vsub.s32 %v4060, 127
        %v4077 = vsub.s32 %v4061, 127
        %v4078 = vsub.s32 %v4062, 127
        %v4079 = vsub.s32 %v4063, 127
        %v4080 = vsub.s32 %v4064, 127
        %v4081 = vsub.s32 %v4065, 127
        %v4082 = vsub.s32 %v4066, 127
        %v4083 = vsub.s32 %v4067, 127
        %v4084 = vsub.s32 %v4068, 127
        %v4085 = vsub.s32 %v4069, 127
        %v4086 = vsub.s32 %v4070, 127
        %v4087 = vand.u32 %v4007, 8388607
        %v4088 = vand.u32 %v4008, 8388607
        %v4089 = vand.u32 %v4009, 8388607
        %v4090 = vand.u32 %v4010, 8388607
        %v4091 = vand.u32 %v4011, 8388607
        %v4092 = vand.u32 %v4012, 8388607
        %v4093 = vand.u32 %v4013, 8388607
        %v4094 = vand.u32 %v4014, 8388607
        %v4095 = vand.u32 %v4015, 8388607
        %v4096 = vand.u32 %v4016, 8388607
        %v4097 = vand.u32 %v4017, 8388607
        %v4098 = vand.u32 %v4018, 8388607
        %v4099 = vand.u32 %v4019, 8388607
        %v4100 = vand.u32 %v4020, 8388607
        %v4101 = vand.u32 %v4021, 8388607
        %v4102 = vand.u32 %v4022, 8388607
        %v4103 = vor.u32 %v4087, 1065353216
        %v4104 = vor.u32 %v4088, 1065353216
        %v4105 = vor.u32 %v4089, 1065353216
        %v4106 = vor.u32 %v4090, 1065353216
        %v4107 = vor.u32 %v4091, 1065353216
        %v4108 = vor.u32 %v4092, 1065353216
        %v4109 = vor.u32 %v4093, 1065353216
        %v4110 = vor.u32 %v4094, 1065353216
        %v4111 = vor.u32 %v4095, 1065353216
        %v4112 = vor.u32 %v4096, 1065353216
        %v4113 = vor.u32 %v4097, 1065353216
        %v4114 = vor.u32 %v4098, 1065353216
        %v4115 = vor.u32 %v4099, 1065353216
        %v4116 = vor.u32 %v4100, 1065353216
        %v4117 = vor.u32 %v4101, 1065353216
        %v4118 = vor.u32 %v4102, 1065353216
        %vm4135 = vcmp.gt.f32.partialorder %v4103, 1.4142135
        %vm4136 = vcmp.gt.f32.partialorder %v4104, 1.4142135
        %vm4137 = vcmp.gt.f32.partialorder %v4105, 1.4142135
        %vm4138 = vcmp.gt.f32.partialorder %v4106, 1.4142135
        %vm4139 = vcmp.gt.f32.partialorder %v4107, 1.4142135
        %vm4140 = vcmp.gt.f32.partialorder %v4108, 1.4142135
        %vm4141 = vcmp.gt.f32.partialorder %v4109, 1.4142135
        %vm4142 = vcmp.gt.f32.partialorder %v4110, 1.4142135
        %vm4143 = vcmp.gt.f32.partialorder %v4111, 1.4142135
        %vm4144 = vcmp.gt.f32.partialorder %v4112, 1.4142135
        %vm4145 = vcmp.gt.f32.partialorder %v4113, 1.4142135
        %vm4146 = vcmp.gt.f32.partialorder %v4114, 1.4142135
        %vm4147 = vcmp.gt.f32.partialorder %v4115, 1.4142135
        %vm4148 = vcmp.gt.f32.partialorder %v4116, 1.4142135
        %vm4149 = vcmp.gt.f32.partialorder %v4117, 1.4142135
        %vm4150 = vcmp.gt.f32.partialorder %v4118, 1.4142135
        %v4151 = vmul.f32 %v4103, 0.5
        %v4152 = vmul.f32 %v4104, 0.5
        %v4153 = vmul.f32 %v4105, 0.5
        %v4154 = vmul.f32 %v4106, 0.5
        %v4155 = vmul.f32 %v4107, 0.5
        %v4156 = vmul.f32 %v4108, 0.5
        %v4157 = vmul.f32 %v4109, 0.5
        %v4158 = vmul.f32 %v4110, 0.5
        %v4159 = vmul.f32 %v4111, 0.5
        %v4160 = vmul.f32 %v4112, 0.5
        %v4161 = vmul.f32 %v4113, 0.5
        %v4162 = vmul.f32 %v4114, 0.5
        %v4163 = vmul.f32 %v4115, 0.5
        %v4164 = vmul.f32 %v4116, 0.5
        %v4165 = vmul.f32 %v4117, 0.5
        %v4166 = vmul.f32 %v4118, 0.5
        %v4167 = vsel %vm4135, %v4151, %v4103
        %v4168 = vsel %vm4136, %v4152, %v4104
        %v4169 = vsel %vm4137, %v4153, %v4105
        %v4170 = vsel %vm4138, %v4154, %v4106
        %v4171 = vsel %vm4139, %v4155, %v4107
        %v4172 = vsel %vm4140, %v4156, %v4108
        %v4173 = vsel %vm4141, %v4157, %v4109
        %v4174 = vsel %vm4142, %v4158, %v4110
        %v4175 = vsel %vm4143, %v4159, %v4111
        %v4176 = vsel %vm4144, %v4160, %v4112
        %v4177 = vsel %vm4145, %v4161, %v4113
        %v4178 = vsel %vm4146, %v4162, %v4114
        %v4179 = vsel %vm4147, %v4163, %v4115
        %v4180 = vsel %vm4148, %v4164, %v4116
        %v4181 = vsel %vm4149, %v4165, %v4117
        %v4182 = vsel %vm4150, %v4166, %v4118
        %v4183 = vadd.s32 %v4071, 1
        %v4184 = vadd.s32 %v4072, 1
        %v4185 = vadd.s32 %v4073, 1
        %v4186 = vadd.s32 %v4074, 1
        %v4187 = vadd.s32 %v4075, 1
        %v4188 = vadd.s32 %v4076, 1
        %v4189 = vadd.s32 %v4077, 1
        %v4190 = vadd.s32 %v4078, 1
        %v4191 = vadd.s32 %v4079, 1
        %v4192 = vadd.s32 %v4080, 1
        %v4193 = vadd.s32 %v4081, 1
        %v4194 = vadd.s32 %v4082, 1
        %v4195 = vadd.s32 %v4083, 1
        %v4196 = vadd.s32 %v4084, 1
        %v4197 = vadd.s32 %v4085, 1
        %v4198 = vadd.s32 %v4086, 1
        %v4199 = vsel %vm4135, %v4183, %v4071
        %v4200 = vsel %vm4136, %v4184, %v4072
        %v4201 = vsel %vm4137, %v4185, %v4073
        %v4202 = vsel %vm4138, %v4186, %v4074
        %v4203 = vsel %vm4139, %v4187, %v4075
        %v4204 = vsel %vm4140, %v4188, %v4076
        %v4205 = vsel %vm4141, %v4189, %v4077
        %v4206 = vsel %vm4142, %v4190, %v4078
        %v4207 = vsel %vm4143, %v4191, %v4079
        %v4208 = vsel %vm4144, %v4192, %v4080
        %v4209 = vsel %vm4145, %v4193, %v4081
        %v4210 = vsel %vm4146, %v4194, %v4082
        %v4211 = vsel %vm4147, %v4195, %v4083
        %v4212 = vsel %vm4148, %v4196, %v4084
        %v4213 = vsel %vm4149, %v4197, %v4085
        %v4214 = vsel %vm4150, %v4198, %v4086
        %v4215 = vcvt.s32.f32 %v4199
        %v4216 = vcvt.s32.f32 %v4200
        %v4217 = vcvt.s32.f32 %v4201
        %v4218 = vcvt.s32.f32 %v4202
        %v4219 = vcvt.s32.f32 %v4203
        %v4220 = vcvt.s32.f32 %v4204
        %v4221 = vcvt.s32.f32 %v4205
        %v4222 = vcvt.s32.f32 %v4206
        %v4223 = vcvt.s32.f32 %v4207
        %v4224 = vcvt.s32.f32 %v4208
        %v4225 = vcvt.s32.f32 %v4209
        %v4226 = vcvt.s32.f32 %v4210
        %v4227 = vcvt.s32.f32 %v4211
        %v4228 = vcvt.s32.f32 %v4212
        %v4229 = vcvt.s32.f32 %v4213
        %v4230 = vcvt.s32.f32 %v4214
        %v4231 = vadd.f32 %v4167, 1.0
        %v4232 = vadd.f32 %v4168, 1.0
        %v4233 = vadd.f32 %v4169, 1.0
        %v4234 = vadd.f32 %v4170, 1.0
        %v4235 = vadd.f32 %v4171, 1.0
        %v4236 = vadd.f32 %v4172, 1.0
        %v4237 = vadd.f32 %v4173, 1.0
        %v4238 = vadd.f32 %v4174, 1.0
        %v4239 = vadd.f32 %v4175, 1.0
        %v4240 = vadd.f32 %v4176, 1.0
        %v4241 = vadd.f32 %v4177, 1.0
        %v4242 = vadd.f32 %v4178, 1.0
        %v4243 = vadd.f32 %v4179, 1.0
        %v4244 = vadd.f32 %v4180, 1.0
        %v4245 = vadd.f32 %v4181, 1.0
        %v4246 = vadd.f32 %v4182, 1.0
        %v4247 = vrcp.pop %v4231
        %v4248 = vrcp.pop %v4232
        %v4249 = vrcp.pop %v4233
        %v4250 = vrcp.pop %v4234
        %v4251 = vrcp.pop %v4235
        %v4252 = vrcp.pop %v4236
        %v4253 = vrcp.pop %v4237
        %v4254 = vrcp.pop %v4238
        %v4255 = vrcp.pop %v4239
        %v4256 = vrcp.pop %v4240
        %v4257 = vrcp.pop %v4241
        %v4258 = vrcp.pop %v4242
        %v4259 = vrcp.pop %v4243
        %v4260 = vrcp.pop %v4244
        %v4261 = vrcp.pop %v4245
        %v4262 = vrcp.pop %v4246
        %v4263 = vmul.f32 %v4231, %v4247
        %v4264 = vmul.f32 %v4232, %v4248
        %v4265 = vmul.f32 %v4233, %v4249
        %v4266 = vmul.f32 %v4234, %v4250
        %v4267 = vmul.f32 %v4235, %v4251
        %v4268 = vmul.f32 %v4236, %v4252
        %v4269 = vmul.f32 %v4237, %v4253
        %v4270 = vmul.f32 %v4238, %v4254
        %v4271 = vmul.f32 %v4239, %v4255
        %v4272 = vmul.f32 %v4240, %v4256
        %v4273 = vmul.f32 %v4241, %v4257
        %v4274 = vmul.f32 %v4242, %v4258
        %v4275 = vmul.f32 %v4243, %v4259
        %v4276 = vmul.f32 %v4244, %v4260
        %v4277 = vmul.f32 %v4245, %v4261
        %v4278 = vmul.f32 %v4246, %v4262
        %v4279 = vsub.f32 2.0, %v4263
        %v4280 = vsub.f32 2.0, %v4264
        %v4281 = vsub.f32 2.0, %v4265
        %v4282 = vsub.f32 2.0, %v4266
        %v4283 = vsub.f32 2.0, %v4267
        %v4284 = vsub.f32 2.0, %v4268
        %v4285 = vsub.f32 2.0, %v4269
        %v4286 = vsub.f32 2.0, %v4270
        %v4287 = vsub.f32 2.0, %v4271
        %v4288 = vsub.f32 2.0, %v4272
        %v4289 = vsub.f32 2.0, %v4273
        %v4290 = vsub.f32 2.0, %v4274
        %v4291 = vsub.f32 2.0, %v4275
        %v4292 = vsub.f32 2.0, %v4276
        %v4293 = vsub.f32 2.0, %v4277
        %v4294 = vsub.f32 2.0, %v4278
        %v4295 = vmul.f32 %v4247, %v4279
        %v4296 = vmul.f32 %v4248, %v4280
        %v4297 = vmul.f32 %v4249, %v4281
        %v4298 = vmul.f32 %v4250, %v4282
        %v4299 = vmul.f32 %v4251, %v4283
        %v4300 = vmul.f32 %v4252, %v4284
        %v4301 = vmul.f32 %v4253, %v4285
        %v4302 = vmul.f32 %v4254, %v4286
        %v4303 = vmul.f32 %v4255, %v4287
        %v4304 = vmul.f32 %v4256, %v4288
        %v4305 = vmul.f32 %v4257, %v4289
        %v4306 = vmul.f32 %v4258, %v4290
        %v4307 = vmul.f32 %v4259, %v4291
        %v4308 = vmul.f32 %v4260, %v4292
        %v4309 = vmul.f32 %v4261, %v4293
        %v4310 = vmul.f32 %v4262, %v4294
        %v4311 = vsub.f32 %v4167, 1.0
        %v4312 = vsub.f32 %v4168, 1.0
        %v4313 = vsub.f32 %v4169, 1.0
        %v4314 = vsub.f32 %v4170, 1.0
        %v4315 = vsub.f32 %v4171, 1.0
        %v4316 = vsub.f32 %v4172, 1.0
        %v4317 = vsub.f32 %v4173, 1.0
        %v4318 = vsub.f32 %v4174, 1.0
        %v4319 = vsub.f32 %v4175, 1.0
        %v4320 = vsub.f32 %v4176, 1.0
        %v4321 = vsub.f32 %v4177, 1.0
        %v4322 = vsub.f32 %v4178, 1.0
        %v4323 = vsub.f32 %v4179, 1.0
        %v4324 = vsub.f32 %v4180, 1.0
        %v4325 = vsub.f32 %v4181, 1.0
        %v4326 = vsub.f32 %v4182, 1.0
        %v4327 = vmul.f32 %v4311, %v4295
        %v4328 = vmul.f32 %v4312, %v4296
        %v4329 = vmul.f32 %v4313, %v4297
        %v4330 = vmul.f32 %v4314, %v4298
        %v4331 = vmul.f32 %v4315, %v4299
        %v4332 = vmul.f32 %v4316, %v4300
        %v4333 = vmul.f32 %v4317, %v4301
        %v4334 = vmul.f32 %v4318, %v4302
        %v4335 = vmul.f32 %v4319, %v4303
        %v4336 = vmul.f32 %v4320, %v4304
        %v4337 = vmul.f32 %v4321, %v4305
        %v4338 = vmul.f32 %v4322, %v4306
        %v4339 = vmul.f32 %v4323, %v4307
        %v4340 = vmul.f32 %v4324, %v4308
        %v4341 = vmul.f32 %v4325, %v4309
        %v4342 = vmul.f32 %v4326, %v4310
        %v4343 = vmul.f32 %v4327, %v4327
        %v4344 = vmul.f32 %v4328, %v4328
        %v4345 = vmul.f32 %v4329, %v4329
        %v4346 = vmul.f32 %v4330, %v4330
        %v4347 = vmul.f32 %v4331, %v4331
        %v4348 = vmul.f32 %v4332, %v4332
        %v4349 = vmul.f32 %v4333, %v4333
        %v4350 = vmul.f32 %v4334, %v4334
        %v4351 = vmul.f32 %v4335, %v4335
        %v4352 = vmul.f32 %v4336, %v4336
        %v4353 = vmul.f32 %v4337, %v4337
        %v4354 = vmul.f32 %v4338, %v4338
        %v4355 = vmul.f32 %v4339, %v4339
        %v4356 = vmul.f32 %v4340, %v4340
        %v4357 = vmul.f32 %v4341, %v4341
        %v4358 = vmul.f32 %v4342, %v4342
        %v4359 = vmul.f32 %v4343, 0.11111111
        %v4360 = vmul.f32 %v4344, 0.11111111
        %v4361 = vmul.f32 %v4345, 0.11111111
        %v4362 = vmul.f32 %v4346, 0.11111111
        %v4363 = vmul.f32 %v4347, 0.11111111
        %v4364 = vmul.f32 %v4348, 0.11111111
        %v4365 = vmul.f32 %v4349, 0.11111111
        %v4366 = vmul.f32 %v4350, 0.11111111
        %v4367 = vmul.f32 %v4351, 0.11111111
        %v4368 = vmul.f32 %v4352, 0.11111111
        %v4369 = vmul.f32 %v4353, 0.11111111
        %v4370 = vmul.f32 %v4354, 0.11111111
        %v4371 = vmul.f32 %v4355, 0.11111111
        %v4372 = vmul.f32 %v4356, 0.11111111
        %v4373 = vmul.f32 %v4357, 0.11111111
        %v4374 = vmul.f32 %v4358, 0.11111111
        %v4375 = vadd.f32 %v4359, 0.14285715
        %v4376 = vadd.f32 %v4360, 0.14285715
        %v4377 = vadd.f32 %v4361, 0.14285715
        %v4378 = vadd.f32 %v4362, 0.14285715
        %v4379 = vadd.f32 %v4363, 0.14285715
        %v4380 = vadd.f32 %v4364, 0.14285715
        %v4381 = vadd.f32 %v4365, 0.14285715
        %v4382 = vadd.f32 %v4366, 0.14285715
        %v4383 = vadd.f32 %v4367, 0.14285715
        %v4384 = vadd.f32 %v4368, 0.14285715
        %v4385 = vadd.f32 %v4369, 0.14285715
        %v4386 = vadd.f32 %v4370, 0.14285715
        %v4387 = vadd.f32 %v4371, 0.14285715
        %v4388 = vadd.f32 %v4372, 0.14285715
        %v4389 = vadd.f32 %v4373, 0.14285715
        %v4390 = vadd.f32 %v4374, 0.14285715
        %v4391 = vmul.f32 %v4343, %v4375
        %v4392 = vmul.f32 %v4344, %v4376
        %v4393 = vmul.f32 %v4345, %v4377
        %v4394 = vmul.f32 %v4346, %v4378
        %v4395 = vmul.f32 %v4347, %v4379
        %v4396 = vmul.f32 %v4348, %v4380
        %v4397 = vmul.f32 %v4349, %v4381
        %v4398 = vmul.f32 %v4350, %v4382
        %v4399 = vmul.f32 %v4351, %v4383
        %v4400 = vmul.f32 %v4352, %v4384
        %v4401 = vmul.f32 %v4353, %v4385
        %v4402 = vmul.f32 %v4354, %v4386
        %v4403 = vmul.f32 %v4355, %v4387
        %v4404 = vmul.f32 %v4356, %v4388
        %v4405 = vmul.f32 %v4357, %v4389
        %v4406 = vmul.f32 %v4358, %v4390
        %v4407 = vadd.f32 %v4391, 0.2
        %v4408 = vadd.f32 %v4392, 0.2
        %v4409 = vadd.f32 %v4393, 0.2
        %v4410 = vadd.f32 %v4394, 0.2
        %v4411 = vadd.f32 %v4395, 0.2
        %v4412 = vadd.f32 %v4396, 0.2
        %v4413 = vadd.f32 %v4397, 0.2
        %v4414 = vadd.f32 %v4398, 0.2
        %v4415 = vadd.f32 %v4399, 0.2
        %v4416 = vadd.f32 %v4400, 0.2
        %v4417 = vadd.f32 %v4401, 0.2
        %v4418 = vadd.f32 %v4402, 0.2
        %v4419 = vadd.f32 %v4403, 0.2
        %v4420 = vadd.f32 %v4404, 0.2
        %v4421 = vadd.f32 %v4405, 0.2
        %v4422 = vadd.f32 %v4406, 0.2
        %v4423 = vmul.f32 %v4343, %v4407
        %v4424 = vmul.f32 %v4344, %v4408
        %v4425 = vmul.f32 %v4345, %v4409
        %v4426 = vmul.f32 %v4346, %v4410
        %v4427 = vmul.f32 %v4347, %v4411
        %v4428 = vmul.f32 %v4348, %v4412
        %v4429 = vmul.f32 %v4349, %v4413
        %v4430 = vmul.f32 %v4350, %v4414
        %v4431 = vmul.f32 %v4351, %v4415
        %v4432 = vmul.f32 %v4352, %v4416
        %v4433 = vmul.f32 %v4353, %v4417
        %v4434 = vmul.f32 %v4354, %v4418
        %v4435 = vmul.f32 %v4355, %v4419
        %v4436 = vmul.f32 %v4356, %v4420
        %v4437 = vmul.f32 %v4357, %v4421
        %v4438 = vmul.f32 %v4358, %v4422
        %v4439 = vadd.f32 %v4423, 0.33333334
        %v4440 = vadd.f32 %v4424, 0.33333334
        %v4441 = vadd.f32 %v4425, 0.33333334
        %v4442 = vadd.f32 %v4426, 0.33333334
        %v4443 = vadd.f32 %v4427, 0.33333334
        %v4444 = vadd.f32 %v4428, 0.33333334
        %v4445 = vadd.f32 %v4429, 0.33333334
        %v4446 = vadd.f32 %v4430, 0.33333334
        %v4447 = vadd.f32 %v4431, 0.33333334
        %v4448 = vadd.f32 %v4432, 0.33333334
        %v4449 = vadd.f32 %v4433, 0.33333334
        %v4450 = vadd.f32 %v4434, 0.33333334
        %v4451 = vadd.f32 %v4435, 0.33333334
        %v4452 = vadd.f32 %v4436, 0.33333334
        %v4453 = vadd.f32 %v4437, 0.33333334
        %v4454 = vadd.f32 %v4438, 0.33333334
        %v4455 = vmul.f32 %v4343, %v4439
        %v4456 = vmul.f32 %v4344, %v4440
        %v4457 = vmul.f32 %v4345, %v4441
        %v4458 = vmul.f32 %v4346, %v4442
        %v4459 = vmul.f32 %v4347, %v4443
        %v4460 = vmul.f32 %v4348, %v4444
        %v4461 = vmul.f32 %v4349, %v4445
        %v4462 = vmul.f32 %v4350, %v4446
        %v4463 = vmul.f32 %v4351, %v4447
        %v4464 = vmul.f32 %v4352, %v4448
        %v4465 = vmul.f32 %v4353, %v4449
        %v4466 = vmul.f32 %v4354, %v4450
        %v4467 = vmul.f32 %v4355, %v4451
        %v4468 = vmul.f32 %v4356, %v4452
        %v4469 = vmul.f32 %v4357, %v4453
        %v4470 = vmul.f32 %v4358, %v4454
        %v4471 = vmul.f32 %v4215, 0.6931472
        %v4472 = vmul.f32 %v4216, 0.6931472
        %v4473 = vmul.f32 %v4217, 0.6931472
        %v4474 = vmul.f32 %v4218, 0.6931472
        %v4475 = vmul.f32 %v4219, 0.6931472
        %v4476 = vmul.f32 %v4220, 0.6931472
        %v4477 = vmul.f32 %v4221, 0.6931472
        %v4478 = vmul.f32 %v4222, 0.6931472
        %v4479 = vmul.f32 %v4223, 0.6931472
        %v4480 = vmul.f32 %v4224, 0.6931472
        %v4481 = vmul.f32 %v4225, 0.6931472
        %v4482 = vmul.f32 %v4226, 0.6931472
        %v4483 = vmul.f32 %v4227, 0.6931472
        %v4484 = vmul.f32 %v4228, 0.6931472
        %v4485 = vmul.f32 %v4229, 0.6931472
        %v4486 = vmul.f32 %v4230, 0.6931472
        %v4487 = vmul.f32 %v4327, %v4455
        %v4488 = vmul.f32 %v4328, %v4456
        %v4489 = vmul.f32 %v4329, %v4457
        %v4490 = vmul.f32 %v4330, %v4458
        %v4491 = vmul.f32 %v4331, %v4459
        %v4492 = vmul.f32 %v4332, %v4460
        %v4493 = vmul.f32 %v4333, %v4461
        %v4494 = vmul.f32 %v4334, %v4462
        %v4495 = vmul.f32 %v4335, %v4463
        %v4496 = vmul.f32 %v4336, %v4464
        %v4497 = vmul.f32 %v4337, %v4465
        %v4498 = vmul.f32 %v4338, %v4466
        %v4499 = vmul.f32 %v4339, %v4467
        %v4500 = vmul.f32 %v4340, %v4468
        %v4501 = vmul.f32 %v4341, %v4469
        %v4502 = vmul.f32 %v4342, %v4470
        %v4503 = vadd.f32 %v4327, %v4487
        %v4504 = vadd.f32 %v4328, %v4488
        %v4505 = vadd.f32 %v4329, %v4489
        %v4506 = vadd.f32 %v4330, %v4490
        %v4507 = vadd.f32 %v4331, %v4491
        %v4508 = vadd.f32 %v4332, %v4492
        %v4509 = vadd.f32 %v4333, %v4493
        %v4510 = vadd.f32 %v4334, %v4494
        %v4511 = vadd.f32 %v4335, %v4495
        %v4512 = vadd.f32 %v4336, %v4496
        %v4513 = vadd.f32 %v4337, %v4497
        %v4514 = vadd.f32 %v4338, %v4498
        %v4515 = vadd.f32 %v4339, %v4499
        %v4516 = vadd.f32 %v4340, %v4500
        %v4517 = vadd.f32 %v4341, %v4501
        %v4518 = vadd.f32 %v4342, %v4502
        %v4519 = vmul.f32 %v4503, 2.0
        %v4520 = vmul.f32 %v4504, 2.0
        %v4521 = vmul.f32 %v4505, 2.0
        %v4522 = vmul.f32 %v4506, 2.0
        %v4523 = vmul.f32 %v4507, 2.0
        %v4524 = vmul.f32 %v4508, 2.0
        %v4525 = vmul.f32 %v4509, 2.0
        %v4526 = vmul.f32 %v4510, 2.0
        %v4527 = vmul.f32 %v4511, 2.0
        %v4528 = vmul.f32 %v4512, 2.0
        %v4529 = vmul.f32 %v4513, 2.0
        %v4530 = vmul.f32 %v4514, 2.0
        %v4531 = vmul.f32 %v4515, 2.0
        %v4532 = vmul.f32 %v4516, 2.0
        %v4533 = vmul.f32 %v4517, 2.0
        %v4534 = vmul.f32 %v4518, 2.0
        %v4535 = vadd.f32 %v4471, %v4519
        %v4536 = vadd.f32 %v4472, %v4520
        %v4537 = vadd.f32 %v4473, %v4521
        %v4538 = vadd.f32 %v4474, %v4522
        %v4539 = vadd.f32 %v4475, %v4523
        %v4540 = vadd.f32 %v4476, %v4524
        %v4541 = vadd.f32 %v4477, %v4525
        %v4542 = vadd.f32 %v4478, %v4526
        %v4543 = vadd.f32 %v4479, %v4527
        %v4544 = vadd.f32 %v4480, %v4528
        %v4545 = vadd.f32 %v4481, %v4529
        %v4546 = vadd.f32 %v4482, %v4530
        %v4547 = vadd.f32 %v4483, %v4531
        %v4548 = vadd.f32 %v4484, %v4532
        %v4549 = vadd.f32 %v4485, %v4533
        %v4550 = vadd.f32 %v4486, %v4534
        %v4567 = vshra.s32 %v3239, 23
        %v4568 = vshra.s32 %v3240, 23
        %v4569 = vshra.s32 %v3241, 23
        %v4570 = vshra.s32 %v3242, 23
        %v4571 = vshra.s32 %v3243, 23
        %v4572 = vshra.s32 %v3244, 23
        %v4573 = vshra.s32 %v3245, 23
        %v4574 = vshra.s32 %v3246, 23
        %v4575 = vshra.s32 %v3247, 23
        %v4576 = vshra.s32 %v3248, 23
        %v4577 = vshra.s32 %v3249, 23
        %v4578 = vshra.s32 %v3250, 23
        %v4579 = vshra.s32 %v3251, 23
        %v4580 = vshra.s32 %v3252, 23
        %v4581 = vshra.s32 %v3253, 23
        %v4582 = vshra.s32 %v3254, 23
        %v4583 = vand.u32 %v4567, 255
        %v4584 = vand.u32 %v4568, 255
        %v4585 = vand.u32 %v4569, 255
        %v4586 = vand.u32 %v4570, 255
        %v4587 = vand.u32 %v4571, 255
        %v4588 = vand.u32 %v4572, 255
        %v4589 = vand.u32 %v4573, 255
        %v4590 = vand.u32 %v4574, 255
        %v4591 = vand.u32 %v4575, 255
        %v4592 = vand.u32 %v4576, 255
        %v4593 = vand.u32 %v4577, 255
        %v4594 = vand.u32 %v4578, 255
        %v4595 = vand.u32 %v4579, 255
        %v4596 = vand.u32 %v4580, 255
        %v4597 = vand.u32 %v4581, 255
        %v4598 = vand.u32 %v4582, 255
        %v4599 = vsub.s32 %v4583, 127
        %v4600 = vsub.s32 %v4584, 127
        %v4601 = vsub.s32 %v4585, 127
        %v4602 = vsub.s32 %v4586, 127
        %v4603 = vsub.s32 %v4587, 127
        %v4604 = vsub.s32 %v4588, 127
        %v4605 = vsub.s32 %v4589, 127
        %v4606 = vsub.s32 %v4590, 127
        %v4607 = vsub.s32 %v4591, 127
        %v4608 = vsub.s32 %v4592, 127
        %v4609 = vsub.s32 %v4593, 127
        %v4610 = vsub.s32 %v4594, 127
        %v4611 = vsub.s32 %v4595, 127
        %v4612 = vsub.s32 %v4596, 127
        %v4613 = vsub.s32 %v4597, 127
        %v4614 = vsub.s32 %v4598, 127
        %v4615 = vand.u32 %v3239, 8388607
        %v4616 = vand.u32 %v3240, 8388607
        %v4617 = vand.u32 %v3241, 8388607
        %v4618 = vand.u32 %v3242, 8388607
        %v4619 = vand.u32 %v3243, 8388607
        %v4620 = vand.u32 %v3244, 8388607
        %v4621 = vand.u32 %v3245, 8388607
        %v4622 = vand.u32 %v3246, 8388607
        %v4623 = vand.u32 %v3247, 8388607
        %v4624 = vand.u32 %v3248, 8388607
        %v4625 = vand.u32 %v3249, 8388607
        %v4626 = vand.u32 %v3250, 8388607
        %v4627 = vand.u32 %v3251, 8388607
        %v4628 = vand.u32 %v3252, 8388607
        %v4629 = vand.u32 %v3253, 8388607
        %v4630 = vand.u32 %v3254, 8388607
        %v4631 = vor.u32 %v4615, 1065353216
        %v4632 = vor.u32 %v4616, 1065353216
        %v4633 = vor.u32 %v4617, 1065353216
        %v4634 = vor.u32 %v4618, 1065353216
        %v4635 = vor.u32 %v4619, 1065353216
        %v4636 = vor.u32 %v4620, 1065353216
        %v4637 = vor.u32 %v4621, 1065353216
        %v4638 = vor.u32 %v4622, 1065353216
        %v4639 = vor.u32 %v4623, 1065353216
        %v4640 = vor.u32 %v4624, 1065353216
        %v4641 = vor.u32 %v4625, 1065353216
        %v4642 = vor.u32 %v4626, 1065353216
        %v4643 = vor.u32 %v4627, 1065353216
        %v4644 = vor.u32 %v4628, 1065353216
        %v4645 = vor.u32 %v4629, 1065353216
        %v4646 = vor.u32 %v4630, 1065353216
        %vm4663 = vcmp.gt.f32.partialorder %v4631, 1.4142135
        %vm4664 = vcmp.gt.f32.partialorder %v4632, 1.4142135
        %vm4665 = vcmp.gt.f32.partialorder %v4633, 1.4142135
        %vm4666 = vcmp.gt.f32.partialorder %v4634, 1.4142135
        %vm4667 = vcmp.gt.f32.partialorder %v4635, 1.4142135
        %vm4668 = vcmp.gt.f32.partialorder %v4636, 1.4142135
        %vm4669 = vcmp.gt.f32.partialorder %v4637, 1.4142135
        %vm4670 = vcmp.gt.f32.partialorder %v4638, 1.4142135
        %vm4671 = vcmp.gt.f32.partialorder %v4639, 1.4142135
        %vm4672 = vcmp.gt.f32.partialorder %v4640, 1.4142135
        %vm4673 = vcmp.gt.f32.partialorder %v4641, 1.4142135
        %vm4674 = vcmp.gt.f32.partialorder %v4642, 1.4142135
        %vm4675 = vcmp.gt.f32.partialorder %v4643, 1.4142135
        %vm4676 = vcmp.gt.f32.partialorder %v4644, 1.4142135
        %vm4677 = vcmp.gt.f32.partialorder %v4645, 1.4142135
        %vm4678 = vcmp.gt.f32.partialorder %v4646, 1.4142135
        %v4679 = vmul.f32 %v4631, 0.5
        %v4680 = vmul.f32 %v4632, 0.5
        %v4681 = vmul.f32 %v4633, 0.5
        %v4682 = vmul.f32 %v4634, 0.5
        %v4683 = vmul.f32 %v4635, 0.5
        %v4684 = vmul.f32 %v4636, 0.5
        %v4685 = vmul.f32 %v4637, 0.5
        %v4686 = vmul.f32 %v4638, 0.5
        %v4687 = vmul.f32 %v4639, 0.5
        %v4688 = vmul.f32 %v4640, 0.5
        %v4689 = vmul.f32 %v4641, 0.5
        %v4690 = vmul.f32 %v4642, 0.5
        %v4691 = vmul.f32 %v4643, 0.5
        %v4692 = vmul.f32 %v4644, 0.5
        %v4693 = vmul.f32 %v4645, 0.5
        %v4694 = vmul.f32 %v4646, 0.5
        %v4695 = vsel %vm4663, %v4679, %v4631
        %v4696 = vsel %vm4664, %v4680, %v4632
        %v4697 = vsel %vm4665, %v4681, %v4633
        %v4698 = vsel %vm4666, %v4682, %v4634
        %v4699 = vsel %vm4667, %v4683, %v4635
        %v4700 = vsel %vm4668, %v4684, %v4636
        %v4701 = vsel %vm4669, %v4685, %v4637
        %v4702 = vsel %vm4670, %v4686, %v4638
        %v4703 = vsel %vm4671, %v4687, %v4639
        %v4704 = vsel %vm4672, %v4688, %v4640
        %v4705 = vsel %vm4673, %v4689, %v4641
        %v4706 = vsel %vm4674, %v4690, %v4642
        %v4707 = vsel %vm4675, %v4691, %v4643
        %v4708 = vsel %vm4676, %v4692, %v4644
        %v4709 = vsel %vm4677, %v4693, %v4645
        %v4710 = vsel %vm4678, %v4694, %v4646
        %v4711 = vadd.s32 %v4599, 1
        %v4712 = vadd.s32 %v4600, 1
        %v4713 = vadd.s32 %v4601, 1
        %v4714 = vadd.s32 %v4602, 1
        %v4715 = vadd.s32 %v4603, 1
        %v4716 = vadd.s32 %v4604, 1
        %v4717 = vadd.s32 %v4605, 1
        %v4718 = vadd.s32 %v4606, 1
        %v4719 = vadd.s32 %v4607, 1
        %v4720 = vadd.s32 %v4608, 1
        %v4721 = vadd.s32 %v4609, 1
        %v4722 = vadd.s32 %v4610, 1
        %v4723 = vadd.s32 %v4611, 1
        %v4724 = vadd.s32 %v4612, 1
        %v4725 = vadd.s32 %v4613, 1
        %v4726 = vadd.s32 %v4614, 1
        %v4727 = vsel %vm4663, %v4711, %v4599
        %v4728 = vsel %vm4664, %v4712, %v4600
        %v4729 = vsel %vm4665, %v4713, %v4601
        %v4730 = vsel %vm4666, %v4714, %v4602
        %v4731 = vsel %vm4667, %v4715, %v4603
        %v4732 = vsel %vm4668, %v4716, %v4604
        %v4733 = vsel %vm4669, %v4717, %v4605
        %v4734 = vsel %vm4670, %v4718, %v4606
        %v4735 = vsel %vm4671, %v4719, %v4607
        %v4736 = vsel %vm4672, %v4720, %v4608
        %v4737 = vsel %vm4673, %v4721, %v4609
        %v4738 = vsel %vm4674, %v4722, %v4610
        %v4739 = vsel %vm4675, %v4723, %v4611
        %v4740 = vsel %vm4676, %v4724, %v4612
        %v4741 = vsel %vm4677, %v4725, %v4613
        %v4742 = vsel %vm4678, %v4726, %v4614
        %v4743 = vcvt.s32.f32 %v4727
        %v4744 = vcvt.s32.f32 %v4728
        %v4745 = vcvt.s32.f32 %v4729
        %v4746 = vcvt.s32.f32 %v4730
        %v4747 = vcvt.s32.f32 %v4731
        %v4748 = vcvt.s32.f32 %v4732
        %v4749 = vcvt.s32.f32 %v4733
        %v4750 = vcvt.s32.f32 %v4734
        %v4751 = vcvt.s32.f32 %v4735
        %v4752 = vcvt.s32.f32 %v4736
        %v4753 = vcvt.s32.f32 %v4737
        %v4754 = vcvt.s32.f32 %v4738
        %v4755 = vcvt.s32.f32 %v4739
        %v4756 = vcvt.s32.f32 %v4740
        %v4757 = vcvt.s32.f32 %v4741
        %v4758 = vcvt.s32.f32 %v4742
        %v4759 = vadd.f32 %v4695, 1.0
        %v4760 = vadd.f32 %v4696, 1.0
        %v4761 = vadd.f32 %v4697, 1.0
        %v4762 = vadd.f32 %v4698, 1.0
        %v4763 = vadd.f32 %v4699, 1.0
        %v4764 = vadd.f32 %v4700, 1.0
        %v4765 = vadd.f32 %v4701, 1.0
        %v4766 = vadd.f32 %v4702, 1.0
        %v4767 = vadd.f32 %v4703, 1.0
        %v4768 = vadd.f32 %v4704, 1.0
        %v4769 = vadd.f32 %v4705, 1.0
        %v4770 = vadd.f32 %v4706, 1.0
        %v4771 = vadd.f32 %v4707, 1.0
        %v4772 = vadd.f32 %v4708, 1.0
        %v4773 = vadd.f32 %v4709, 1.0
        %v4774 = vadd.f32 %v4710, 1.0
        %v4775 = vrcp.pop %v4759
        %v4776 = vrcp.pop %v4760
        %v4777 = vrcp.pop %v4761
        %v4778 = vrcp.pop %v4762
        %v4779 = vrcp.pop %v4763
        %v4780 = vrcp.pop %v4764
        %v4781 = vrcp.pop %v4765
        %v4782 = vrcp.pop %v4766
        %v4783 = vrcp.pop %v4767
        %v4784 = vrcp.pop %v4768
        %v4785 = vrcp.pop %v4769
        %v4786 = vrcp.pop %v4770
        %v4787 = vrcp.pop %v4771
        %v4788 = vrcp.pop %v4772
        %v4789 = vrcp.pop %v4773
        %v4790 = vrcp.pop %v4774
        %v4791 = vmul.f32 %v4759, %v4775
        %v4792 = vmul.f32 %v4760, %v4776
        %v4793 = vmul.f32 %v4761, %v4777
        %v4794 = vmul.f32 %v4762, %v4778
        %v4795 = vmul.f32 %v4763, %v4779
        %v4796 = vmul.f32 %v4764, %v4780
        %v4797 = vmul.f32 %v4765, %v4781
        %v4798 = vmul.f32 %v4766, %v4782
        %v4799 = vmul.f32 %v4767, %v4783
        %v4800 = vmul.f32 %v4768, %v4784
        %v4801 = vmul.f32 %v4769, %v4785
        %v4802 = vmul.f32 %v4770, %v4786
        %v4803 = vmul.f32 %v4771, %v4787
        %v4804 = vmul.f32 %v4772, %v4788
        %v4805 = vmul.f32 %v4773, %v4789
        %v4806 = vmul.f32 %v4774, %v4790
        %v4807 = vsub.f32 2.0, %v4791
        %v4808 = vsub.f32 2.0, %v4792
        %v4809 = vsub.f32 2.0, %v4793
        %v4810 = vsub.f32 2.0, %v4794
        %v4811 = vsub.f32 2.0, %v4795
        %v4812 = vsub.f32 2.0, %v4796
        %v4813 = vsub.f32 2.0, %v4797
        %v4814 = vsub.f32 2.0, %v4798
        %v4815 = vsub.f32 2.0, %v4799
        %v4816 = vsub.f32 2.0, %v4800
        %v4817 = vsub.f32 2.0, %v4801
        %v4818 = vsub.f32 2.0, %v4802
        %v4819 = vsub.f32 2.0, %v4803
        %v4820 = vsub.f32 2.0, %v4804
        %v4821 = vsub.f32 2.0, %v4805
        %v4822 = vsub.f32 2.0, %v4806
        %v4823 = vmul.f32 %v4775, %v4807
        %v4824 = vmul.f32 %v4776, %v4808
        %v4825 = vmul.f32 %v4777, %v4809
        %v4826 = vmul.f32 %v4778, %v4810
        %v4827 = vmul.f32 %v4779, %v4811
        %v4828 = vmul.f32 %v4780, %v4812
        %v4829 = vmul.f32 %v4781, %v4813
        %v4830 = vmul.f32 %v4782, %v4814
        %v4831 = vmul.f32 %v4783, %v4815
        %v4832 = vmul.f32 %v4784, %v4816
        %v4833 = vmul.f32 %v4785, %v4817
        %v4834 = vmul.f32 %v4786, %v4818
        %v4835 = vmul.f32 %v4787, %v4819
        %v4836 = vmul.f32 %v4788, %v4820
        %v4837 = vmul.f32 %v4789, %v4821
        %v4838 = vmul.f32 %v4790, %v4822
        %v4839 = vsub.f32 %v4695, 1.0
        %v4840 = vsub.f32 %v4696, 1.0
        %v4841 = vsub.f32 %v4697, 1.0
        %v4842 = vsub.f32 %v4698, 1.0
        %v4843 = vsub.f32 %v4699, 1.0
        %v4844 = vsub.f32 %v4700, 1.0
        %v4845 = vsub.f32 %v4701, 1.0
        %v4846 = vsub.f32 %v4702, 1.0
        %v4847 = vsub.f32 %v4703, 1.0
        %v4848 = vsub.f32 %v4704, 1.0
        %v4849 = vsub.f32 %v4705, 1.0
        %v4850 = vsub.f32 %v4706, 1.0
        %v4851 = vsub.f32 %v4707, 1.0
        %v4852 = vsub.f32 %v4708, 1.0
        %v4853 = vsub.f32 %v4709, 1.0
        %v4854 = vsub.f32 %v4710, 1.0
        %v4855 = vmul.f32 %v4839, %v4823
        %v4856 = vmul.f32 %v4840, %v4824
        %v4857 = vmul.f32 %v4841, %v4825
        %v4858 = vmul.f32 %v4842, %v4826
        %v4859 = vmul.f32 %v4843, %v4827
        %v4860 = vmul.f32 %v4844, %v4828
        %v4861 = vmul.f32 %v4845, %v4829
        %v4862 = vmul.f32 %v4846, %v4830
        %v4863 = vmul.f32 %v4847, %v4831
        %v4864 = vmul.f32 %v4848, %v4832
        %v4865 = vmul.f32 %v4849, %v4833
        %v4866 = vmul.f32 %v4850, %v4834
        %v4867 = vmul.f32 %v4851, %v4835
        %v4868 = vmul.f32 %v4852, %v4836
        %v4869 = vmul.f32 %v4853, %v4837
        %v4870 = vmul.f32 %v4854, %v4838
        %v4871 = vmul.f32 %v4855, %v4855
        %v4872 = vmul.f32 %v4856, %v4856
        %v4873 = vmul.f32 %v4857, %v4857
        %v4874 = vmul.f32 %v4858, %v4858
        %v4875 = vmul.f32 %v4859, %v4859
        %v4876 = vmul.f32 %v4860, %v4860
        %v4877 = vmul.f32 %v4861, %v4861
        %v4878 = vmul.f32 %v4862, %v4862
        %v4879 = vmul.f32 %v4863, %v4863
        %v4880 = vmul.f32 %v4864, %v4864
        %v4881 = vmul.f32 %v4865, %v4865
        %v4882 = vmul.f32 %v4866, %v4866
        %v4883 = vmul.f32 %v4867, %v4867
        %v4884 = vmul.f32 %v4868, %v4868
        %v4885 = vmul.f32 %v4869, %v4869
        %v4886 = vmul.f32 %v4870, %v4870
        %v4887 = vmul.f32 %v4871, 0.11111111
        %v4888 = vmul.f32 %v4872, 0.11111111
        %v4889 = vmul.f32 %v4873, 0.11111111
        %v4890 = vmul.f32 %v4874, 0.11111111
        %v4891 = vmul.f32 %v4875, 0.11111111
        %v4892 = vmul.f32 %v4876, 0.11111111
        %v4893 = vmul.f32 %v4877, 0.11111111
        %v4894 = vmul.f32 %v4878, 0.11111111
        %v4895 = vmul.f32 %v4879, 0.11111111
        %v4896 = vmul.f32 %v4880, 0.11111111
        %v4897 = vmul.f32 %v4881, 0.11111111
        %v4898 = vmul.f32 %v4882, 0.11111111
        %v4899 = vmul.f32 %v4883, 0.11111111
        %v4900 = vmul.f32 %v4884, 0.11111111
        %v4901 = vmul.f32 %v4885, 0.11111111
        %v4902 = vmul.f32 %v4886, 0.11111111
        %v4903 = vadd.f32 %v4887, 0.14285715
        %v4904 = vadd.f32 %v4888, 0.14285715
        %v4905 = vadd.f32 %v4889, 0.14285715
        %v4906 = vadd.f32 %v4890, 0.14285715
        %v4907 = vadd.f32 %v4891, 0.14285715
        %v4908 = vadd.f32 %v4892, 0.14285715
        %v4909 = vadd.f32 %v4893, 0.14285715
        %v4910 = vadd.f32 %v4894, 0.14285715
        %v4911 = vadd.f32 %v4895, 0.14285715
        %v4912 = vadd.f32 %v4896, 0.14285715
        %v4913 = vadd.f32 %v4897, 0.14285715
        %v4914 = vadd.f32 %v4898, 0.14285715
        %v4915 = vadd.f32 %v4899, 0.14285715
        %v4916 = vadd.f32 %v4900, 0.14285715
        %v4917 = vadd.f32 %v4901, 0.14285715
        %v4918 = vadd.f32 %v4902, 0.14285715
        %v4919 = vmul.f32 %v4871, %v4903
        %v4920 = vmul.f32 %v4872, %v4904
        %v4921 = vmul.f32 %v4873, %v4905
        %v4922 = vmul.f32 %v4874, %v4906
        %v4923 = vmul.f32 %v4875, %v4907
        %v4924 = vmul.f32 %v4876, %v4908
        %v4925 = vmul.f32 %v4877, %v4909
        %v4926 = vmul.f32 %v4878, %v4910
        %v4927 = vmul.f32 %v4879, %v4911
        %v4928 = vmul.f32 %v4880, %v4912
        %v4929 = vmul.f32 %v4881, %v4913
        %v4930 = vmul.f32 %v4882, %v4914
        %v4931 = vmul.f32 %v4883, %v4915
        %v4932 = vmul.f32 %v4884, %v4916
        %v4933 = vmul.f32 %v4885, %v4917
        %v4934 = vmul.f32 %v4886, %v4918
        %v4935 = vadd.f32 %v4919, 0.2
        %v4936 = vadd.f32 %v4920, 0.2
        %v4937 = vadd.f32 %v4921, 0.2
        %v4938 = vadd.f32 %v4922, 0.2
        %v4939 = vadd.f32 %v4923, 0.2
        %v4940 = vadd.f32 %v4924, 0.2
        %v4941 = vadd.f32 %v4925, 0.2
        %v4942 = vadd.f32 %v4926, 0.2
        %v4943 = vadd.f32 %v4927, 0.2
        %v4944 = vadd.f32 %v4928, 0.2
        %v4945 = vadd.f32 %v4929, 0.2
        %v4946 = vadd.f32 %v4930, 0.2
        %v4947 = vadd.f32 %v4931, 0.2
        %v4948 = vadd.f32 %v4932, 0.2
        %v4949 = vadd.f32 %v4933, 0.2
        %v4950 = vadd.f32 %v4934, 0.2
        %v4951 = vmul.f32 %v4871, %v4935
        %v4952 = vmul.f32 %v4872, %v4936
        %v4953 = vmul.f32 %v4873, %v4937
        %v4954 = vmul.f32 %v4874, %v4938
        %v4955 = vmul.f32 %v4875, %v4939
        %v4956 = vmul.f32 %v4876, %v4940
        %v4957 = vmul.f32 %v4877, %v4941
        %v4958 = vmul.f32 %v4878, %v4942
        %v4959 = vmul.f32 %v4879, %v4943
        %v4960 = vmul.f32 %v4880, %v4944
        %v4961 = vmul.f32 %v4881, %v4945
        %v4962 = vmul.f32 %v4882, %v4946
        %v4963 = vmul.f32 %v4883, %v4947
        %v4964 = vmul.f32 %v4884, %v4948
        %v4965 = vmul.f32 %v4885, %v4949
        %v4966 = vmul.f32 %v4886, %v4950
        %v4967 = vadd.f32 %v4951, 0.33333334
        %v4968 = vadd.f32 %v4952, 0.33333334
        %v4969 = vadd.f32 %v4953, 0.33333334
        %v4970 = vadd.f32 %v4954, 0.33333334
        %v4971 = vadd.f32 %v4955, 0.33333334
        %v4972 = vadd.f32 %v4956, 0.33333334
        %v4973 = vadd.f32 %v4957, 0.33333334
        %v4974 = vadd.f32 %v4958, 0.33333334
        %v4975 = vadd.f32 %v4959, 0.33333334
        %v4976 = vadd.f32 %v4960, 0.33333334
        %v4977 = vadd.f32 %v4961, 0.33333334
        %v4978 = vadd.f32 %v4962, 0.33333334
        %v4979 = vadd.f32 %v4963, 0.33333334
        %v4980 = vadd.f32 %v4964, 0.33333334
        %v4981 = vadd.f32 %v4965, 0.33333334
        %v4982 = vadd.f32 %v4966, 0.33333334
        %v4983 = vmul.f32 %v4871, %v4967
        %v4984 = vmul.f32 %v4872, %v4968
        %v4985 = vmul.f32 %v4873, %v4969
        %v4986 = vmul.f32 %v4874, %v4970
        %v4987 = vmul.f32 %v4875, %v4971
        %v4988 = vmul.f32 %v4876, %v4972
        %v4989 = vmul.f32 %v4877, %v4973
        %v4990 = vmul.f32 %v4878, %v4974
        %v4991 = vmul.f32 %v4879, %v4975
        %v4992 = vmul.f32 %v4880, %v4976
        %v4993 = vmul.f32 %v4881, %v4977
        %v4994 = vmul.f32 %v4882, %v4978
        %v4995 = vmul.f32 %v4883, %v4979
        %v4996 = vmul.f32 %v4884, %v4980
        %v4997 = vmul.f32 %v4885, %v4981
        %v4998 = vmul.f32 %v4886, %v4982
        %v4999 = vmul.f32 %v4743, 0.6931472
        %v5000 = vmul.f32 %v4744, 0.6931472
        %v5001 = vmul.f32 %v4745, 0.6931472
        %v5002 = vmul.f32 %v4746, 0.6931472
        %v5003 = vmul.f32 %v4747, 0.6931472
        %v5004 = vmul.f32 %v4748, 0.6931472
        %v5005 = vmul.f32 %v4749, 0.6931472
        %v5006 = vmul.f32 %v4750, 0.6931472
        %v5007 = vmul.f32 %v4751, 0.6931472
        %v5008 = vmul.f32 %v4752, 0.6931472
        %v5009 = vmul.f32 %v4753, 0.6931472
        %v5010 = vmul.f32 %v4754, 0.6931472
        %v5011 = vmul.f32 %v4755, 0.6931472
        %v5012 = vmul.f32 %v4756, 0.6931472
        %v5013 = vmul.f32 %v4757, 0.6931472
        %v5014 = vmul.f32 %v4758, 0.6931472
        %v5015 = vmul.f32 %v4855, %v4983
        %v5016 = vmul.f32 %v4856, %v4984
        %v5017 = vmul.f32 %v4857, %v4985
        %v5018 = vmul.f32 %v4858, %v4986
        %v5019 = vmul.f32 %v4859, %v4987
        %v5020 = vmul.f32 %v4860, %v4988
        %v5021 = vmul.f32 %v4861, %v4989
        %v5022 = vmul.f32 %v4862, %v4990
        %v5023 = vmul.f32 %v4863, %v4991
        %v5024 = vmul.f32 %v4864, %v4992
        %v5025 = vmul.f32 %v4865, %v4993
        %v5026 = vmul.f32 %v4866, %v4994
        %v5027 = vmul.f32 %v4867, %v4995
        %v5028 = vmul.f32 %v4868, %v4996
        %v5029 = vmul.f32 %v4869, %v4997
        %v5030 = vmul.f32 %v4870, %v4998
        %v5031 = vadd.f32 %v4855, %v5015
        %v5032 = vadd.f32 %v4856, %v5016
        %v5033 = vadd.f32 %v4857, %v5017
        %v5034 = vadd.f32 %v4858, %v5018
        %v5035 = vadd.f32 %v4859, %v5019
        %v5036 = vadd.f32 %v4860, %v5020
        %v5037 = vadd.f32 %v4861, %v5021
        %v5038 = vadd.f32 %v4862, %v5022
        %v5039 = vadd.f32 %v4863, %v5023
        %v5040 = vadd.f32 %v4864, %v5024
        %v5041 = vadd.f32 %v4865, %v5025
        %v5042 = vadd.f32 %v4866, %v5026
        %v5043 = vadd.f32 %v4867, %v5027
        %v5044 = vadd.f32 %v4868, %v5028
        %v5045 = vadd.f32 %v4869, %v5029
        %v5046 = vadd.f32 %v4870, %v5030
        %v5047 = vmul.f32 %v5031, 2.0
        %v5048 = vmul.f32 %v5032, 2.0
        %v5049 = vmul.f32 %v5033, 2.0
        %v5050 = vmul.f32 %v5034, 2.0
        %v5051 = vmul.f32 %v5035, 2.0
        %v5052 = vmul.f32 %v5036, 2.0
        %v5053 = vmul.f32 %v5037, 2.0
        %v5054 = vmul.f32 %v5038, 2.0
        %v5055 = vmul.f32 %v5039, 2.0
        %v5056 = vmul.f32 %v5040, 2.0
        %v5057 = vmul.f32 %v5041, 2.0
        %v5058 = vmul.f32 %v5042, 2.0
        %v5059 = vmul.f32 %v5043, 2.0
        %v5060 = vmul.f32 %v5044, 2.0
        %v5061 = vmul.f32 %v5045, 2.0
        %v5062 = vmul.f32 %v5046, 2.0
        %v5063 = vadd.f32 %v4999, %v5047
        %v5064 = vadd.f32 %v5000, %v5048
        %v5065 = vadd.f32 %v5001, %v5049
        %v5066 = vadd.f32 %v5002, %v5050
        %v5067 = vadd.f32 %v5003, %v5051
        %v5068 = vadd.f32 %v5004, %v5052
        %v5069 = vadd.f32 %v5005, %v5053
        %v5070 = vadd.f32 %v5006, %v5054
        %v5071 = vadd.f32 %v5007, %v5055
        %v5072 = vadd.f32 %v5008, %v5056
        %v5073 = vadd.f32 %v5009, %v5057
        %v5074 = vadd.f32 %v5010, %v5058
        %v5075 = vadd.f32 %v5011, %v5059
        %v5076 = vadd.f32 %v5012, %v5060
        %v5077 = vadd.f32 %v5013, %v5061
        %v5078 = vadd.f32 %v5014, %v5062
        %v5079 = vsub.f32 %v4535, %v5063
        %v5080 = vsub.f32 %v4536, %v5064
        %v5081 = vsub.f32 %v4537, %v5065
        %v5082 = vsub.f32 %v4538, %v5066
        %v5083 = vsub.f32 %v4539, %v5067
        %v5084 = vsub.f32 %v4540, %v5068
        %v5085 = vsub.f32 %v4541, %v5069
        %v5086 = vsub.f32 %v4542, %v5070
        %v5087 = vsub.f32 %v4543, %v5071
        %v5088 = vsub.f32 %v4544, %v5072
        %v5089 = vsub.f32 %v4545, %v5073
        %v5090 = vsub.f32 %v4546, %v5074
        %v5091 = vsub.f32 %v4547, %v5075
        %v5092 = vsub.f32 %v4548, %v5076
        %v5093 = vsub.f32 %v4549, %v5077
        %v5094 = vsub.f32 %v4550, %v5078
        %v5095 = vadd.f32 %v1863, %v2919
        %v5096 = vadd.f32 %v1864, %v2920
        %v5097 = vadd.f32 %v1865, %v2921
        %v5098 = vadd.f32 %v1866, %v2922
        %v5099 = vadd.f32 %v1867, %v2923
        %v5100 = vadd.f32 %v1868, %v2924
        %v5101 = vadd.f32 %v1869, %v2925
        %v5102 = vadd.f32 %v1870, %v2926
        %v5103 = vadd.f32 %v1871, %v2927
        %v5104 = vadd.f32 %v1872, %v2928
        %v5105 = vadd.f32 %v1873, %v2929
        %v5106 = vadd.f32 %v1874, %v2930
        %v5107 = vadd.f32 %v1875, %v2931
        %v5108 = vadd.f32 %v1876, %v2932
        %v5109 = vadd.f32 %v1877, %v2933
        %v5110 = vadd.f32 %v1878, %v2934
        %v5111 = vsub.f32 %v5095, %v3991
        %v5112 = vsub.f32 %v5096, %v3992
        %v5113 = vsub.f32 %v5097, %v3993
        %v5114 = vsub.f32 %v5098, %v3994
        %v5115 = vsub.f32 %v5099, %v3995
        %v5116 = vsub.f32 %v5100, %v3996
        %v5117 = vsub.f32 %v5101, %v3997
        %v5118 = vsub.f32 %v5102, %v3998
        %v5119 = vsub.f32 %v5103, %v3999
        %v5120 = vsub.f32 %v5104, %v4000
        %v5121 = vsub.f32 %v5105, %v4001
        %v5122 = vsub.f32 %v5106, %v4002
        %v5123 = vsub.f32 %v5107, %v4003
        %v5124 = vsub.f32 %v5108, %v4004
        %v5125 = vsub.f32 %v5109, %v4005
        %v5126 = vsub.f32 %v5110, %v4006
        %v5127 = vsub.f32 %v5111, %v5079
        %v5128 = vsub.f32 %v5112, %v5080
        %v5129 = vsub.f32 %v5113, %v5081
        %v5130 = vsub.f32 %v5114, %v5082
        %v5131 = vsub.f32 %v5115, %v5083
        %v5132 = vsub.f32 %v5116, %v5084
        %v5133 = vsub.f32 %v5117, %v5085
        %v5134 = vsub.f32 %v5118, %v5086
        %v5135 = vsub.f32 %v5119, %v5087
        %v5136 = vsub.f32 %v5120, %v5088
        %v5137 = vsub.f32 %v5121, %v5089
        %v5138 = vsub.f32 %v5122, %v5090
        %v5139 = vsub.f32 %v5123, %v5091
        %v5140 = vsub.f32 %v5124, %v5092
        %v5141 = vsub.f32 %v5125, %v5093
        %v5142 = vsub.f32 %v5126, %v5094
        %v5143 = vrcp.pop %v823
        %v5144 = vrcp.pop %v824
        %v5145 = vrcp.pop %v825
        %v5146 = vrcp.pop %v826
        %v5147 = vrcp.pop %v827
        %v5148 = vrcp.pop %v828
        %v5149 = vrcp.pop %v829
        %v5150 = vrcp.pop %v830
        %v5151 = vrcp.pop %v831
        %v5152 = vrcp.pop %v832
        %v5153 = vrcp.pop %v833
        %v5154 = vrcp.pop %v834
        %v5155 = vrcp.pop %v835
        %v5156 = vrcp.pop %v836
        %v5157 = vrcp.pop %v837
        %v5158 = vrcp.pop %v838
        %v5159 = vmul.f32 %v823, %v5143
        %v5160 = vmul.f32 %v824, %v5144
        %v5161 = vmul.f32 %v825, %v5145
        %v5162 = vmul.f32 %v826, %v5146
        %v5163 = vmul.f32 %v827, %v5147
        %v5164 = vmul.f32 %v828, %v5148
        %v5165 = vmul.f32 %v829, %v5149
        %v5166 = vmul.f32 %v830, %v5150
        %v5167 = vmul.f32 %v831, %v5151
        %v5168 = vmul.f32 %v832, %v5152
        %v5169 = vmul.f32 %v833, %v5153
        %v5170 = vmul.f32 %v834, %v5154
        %v5171 = vmul.f32 %v835, %v5155
        %v5172 = vmul.f32 %v836, %v5156
        %v5173 = vmul.f32 %v837, %v5157
        %v5174 = vmul.f32 %v838, %v5158
        %v5175 = vsub.f32 2.0, %v5159
        %v5176 = vsub.f32 2.0, %v5160
        %v5177 = vsub.f32 2.0, %v5161
        %v5178 = vsub.f32 2.0, %v5162
        %v5179 = vsub.f32 2.0, %v5163
        %v5180 = vsub.f32 2.0, %v5164
        %v5181 = vsub.f32 2.0, %v5165
        %v5182 = vsub.f32 2.0, %v5166
        %v5183 = vsub.f32 2.0, %v5167
        %v5184 = vsub.f32 2.0, %v5168
        %v5185 = vsub.f32 2.0, %v5169
        %v5186 = vsub.f32 2.0, %v5170
        %v5187 = vsub.f32 2.0, %v5171
        %v5188 = vsub.f32 2.0, %v5172
        %v5189 = vsub.f32 2.0, %v5173
        %v5190 = vsub.f32 2.0, %v5174
        %v5191 = vmul.f32 %v5143, %v5175
        %v5192 = vmul.f32 %v5144, %v5176
        %v5193 = vmul.f32 %v5145, %v5177
        %v5194 = vmul.f32 %v5146, %v5178
        %v5195 = vmul.f32 %v5147, %v5179
        %v5196 = vmul.f32 %v5148, %v5180
        %v5197 = vmul.f32 %v5149, %v5181
        %v5198 = vmul.f32 %v5150, %v5182
        %v5199 = vmul.f32 %v5151, %v5183
        %v5200 = vmul.f32 %v5152, %v5184
        %v5201 = vmul.f32 %v5153, %v5185
        %v5202 = vmul.f32 %v5154, %v5186
        %v5203 = vmul.f32 %v5155, %v5187
        %v5204 = vmul.f32 %v5156, %v5188
        %v5205 = vmul.f32 %v5157, %v5189
        %v5206 = vmul.f32 %v5158, %v5190
        %v5207 = vmul.f32 %v791, %v5191
        %v5208 = vmul.f32 %v792, %v5192
        %v5209 = vmul.f32 %v793, %v5193
        %v5210 = vmul.f32 %v794, %v5194
        %v5211 = vmul.f32 %v795, %v5195
        %v5212 = vmul.f32 %v796, %v5196
        %v5213 = vmul.f32 %v797, %v5197
        %v5214 = vmul.f32 %v798, %v5198
        %v5215 = vmul.f32 %v799, %v5199
        %v5216 = vmul.f32 %v800, %v5200
        %v5217 = vmul.f32 %v801, %v5201
        %v5218 = vmul.f32 %v802, %v5202
        %v5219 = vmul.f32 %v803, %v5203
        %v5220 = vmul.f32 %v804, %v5204
        %v5221 = vmul.f32 %v805, %v5205
        %v5222 = vmul.f32 %v806, %v5206
        %v5223 = vadd.f32 %v5207, 1.0
        %v5224 = vadd.f32 %v5208, 1.0
        %v5225 = vadd.f32 %v5209, 1.0
        %v5226 = vadd.f32 %v5210, 1.0
        %v5227 = vadd.f32 %v5211, 1.0
        %v5228 = vadd.f32 %v5212, 1.0
        %v5229 = vadd.f32 %v5213, 1.0
        %v5230 = vadd.f32 %v5214, 1.0
        %v5231 = vadd.f32 %v5215, 1.0
        %v5232 = vadd.f32 %v5216, 1.0
        %v5233 = vadd.f32 %v5217, 1.0
        %v5234 = vadd.f32 %v5218, 1.0
        %v5235 = vadd.f32 %v5219, 1.0
        %v5236 = vadd.f32 %v5220, 1.0
        %v5237 = vadd.f32 %v5221, 1.0
        %v5238 = vadd.f32 %v5222, 1.0
        %v5239 = vlog2.pop %v5223
        %v5240 = vmul.f32 %v5239, 0.6931472
        %v5241 = vlog2.pop %v5224
        %v5242 = vmul.f32 %v5241, 0.6931472
        %v5243 = vlog2.pop %v5225
        %v5244 = vmul.f32 %v5243, 0.6931472
        %v5245 = vlog2.pop %v5226
        %v5246 = vmul.f32 %v5245, 0.6931472
        %v5247 = vlog2.pop %v5227
        %v5248 = vmul.f32 %v5247, 0.6931472
        %v5249 = vlog2.pop %v5228
        %v5250 = vmul.f32 %v5249, 0.6931472
        %v5251 = vlog2.pop %v5229
        %v5252 = vmul.f32 %v5251, 0.6931472
        %v5253 = vlog2.pop %v5230
        %v5254 = vmul.f32 %v5253, 0.6931472
        %v5255 = vlog2.pop %v5231
        %v5256 = vmul.f32 %v5255, 0.6931472
        %v5257 = vlog2.pop %v5232
        %v5258 = vmul.f32 %v5257, 0.6931472
        %v5259 = vlog2.pop %v5233
        %v5260 = vmul.f32 %v5259, 0.6931472
        %v5261 = vlog2.pop %v5234
        %v5262 = vmul.f32 %v5261, 0.6931472
        %v5263 = vlog2.pop %v5235
        %v5264 = vmul.f32 %v5263, 0.6931472
        %v5265 = vlog2.pop %v5236
        %v5266 = vmul.f32 %v5265, 0.6931472
        %v5267 = vlog2.pop %v5237
        %v5268 = vmul.f32 %v5267, 0.6931472
        %v5269 = vlog2.pop %v5238
        %v5270 = vmul.f32 %v5269, 0.6931472
        %v5271 = vlog2.pop %v823
        %v5272 = vmul.f32 %v5271, 0.6931472
        %v5273 = vlog2.pop %v824
        %v5274 = vmul.f32 %v5273, 0.6931472
        %v5275 = vlog2.pop %v825
        %v5276 = vmul.f32 %v5275, 0.6931472
        %v5277 = vlog2.pop %v826
        %v5278 = vmul.f32 %v5277, 0.6931472
        %v5279 = vlog2.pop %v827
        %v5280 = vmul.f32 %v5279, 0.6931472
        %v5281 = vlog2.pop %v828
        %v5282 = vmul.f32 %v5281, 0.6931472
        %v5283 = vlog2.pop %v829
        %v5284 = vmul.f32 %v5283, 0.6931472
        %v5285 = vlog2.pop %v830
        %v5286 = vmul.f32 %v5285, 0.6931472
        %v5287 = vlog2.pop %v831
        %v5288 = vmul.f32 %v5287, 0.6931472
        %v5289 = vlog2.pop %v832
        %v5290 = vmul.f32 %v5289, 0.6931472
        %v5291 = vlog2.pop %v833
        %v5292 = vmul.f32 %v5291, 0.6931472
        %v5293 = vlog2.pop %v834
        %v5294 = vmul.f32 %v5293, 0.6931472
        %v5295 = vlog2.pop %v835
        %v5296 = vmul.f32 %v5295, 0.6931472
        %v5297 = vlog2.pop %v836
        %v5298 = vmul.f32 %v5297, 0.6931472
        %v5299 = vlog2.pop %v837
        %v5300 = vmul.f32 %v5299, 0.6931472
        %v5301 = vlog2.pop %v838
        %v5302 = vmul.f32 %v5301, 0.6931472
        %v5303 = vadd.f32 %v791, 1e-10
        %v5304 = vadd.f32 %v792, 1e-10
        %v5305 = vadd.f32 %v793, 1e-10
        %v5306 = vadd.f32 %v794, 1e-10
        %v5307 = vadd.f32 %v795, 1e-10
        %v5308 = vadd.f32 %v796, 1e-10
        %v5309 = vadd.f32 %v797, 1e-10
        %v5310 = vadd.f32 %v798, 1e-10
        %v5311 = vadd.f32 %v799, 1e-10
        %v5312 = vadd.f32 %v800, 1e-10
        %v5313 = vadd.f32 %v801, 1e-10
        %v5314 = vadd.f32 %v802, 1e-10
        %v5315 = vadd.f32 %v803, 1e-10
        %v5316 = vadd.f32 %v804, 1e-10
        %v5317 = vadd.f32 %v805, 1e-10
        %v5318 = vadd.f32 %v806, 1e-10
        %v5319 = vlog2.pop %v5303
        %v5320 = vmul.f32 %v5319, 0.6931472
        %v5321 = vlog2.pop %v5304
        %v5322 = vmul.f32 %v5321, 0.6931472
        %v5323 = vlog2.pop %v5305
        %v5324 = vmul.f32 %v5323, 0.6931472
        %v5325 = vlog2.pop %v5306
        %v5326 = vmul.f32 %v5325, 0.6931472
        %v5327 = vlog2.pop %v5307
        %v5328 = vmul.f32 %v5327, 0.6931472
        %v5329 = vlog2.pop %v5308
        %v5330 = vmul.f32 %v5329, 0.6931472
        %v5331 = vlog2.pop %v5309
        %v5332 = vmul.f32 %v5331, 0.6931472
        %v5333 = vlog2.pop %v5310
        %v5334 = vmul.f32 %v5333, 0.6931472
        %v5335 = vlog2.pop %v5311
        %v5336 = vmul.f32 %v5335, 0.6931472
        %v5337 = vlog2.pop %v5312
        %v5338 = vmul.f32 %v5337, 0.6931472
        %v5339 = vlog2.pop %v5313
        %v5340 = vmul.f32 %v5339, 0.6931472
        %v5341 = vlog2.pop %v5314
        %v5342 = vmul.f32 %v5341, 0.6931472
        %v5343 = vlog2.pop %v5315
        %v5344 = vmul.f32 %v5343, 0.6931472
        %v5345 = vlog2.pop %v5316
        %v5346 = vmul.f32 %v5345, 0.6931472
        %v5347 = vlog2.pop %v5317
        %v5348 = vmul.f32 %v5347, 0.6931472
        %v5349 = vlog2.pop %v5318
        %v5350 = vmul.f32 %v5349, 0.6931472
        %v5351 = vmul.f32 %v2935, %v5240
        %v5352 = vmul.f32 %v2936, %v5242
        %v5353 = vmul.f32 %v2937, %v5244
        %v5354 = vmul.f32 %v2938, %v5246
        %v5355 = vmul.f32 %v2939, %v5248
        %v5356 = vmul.f32 %v2940, %v5250
        %v5357 = vmul.f32 %v2941, %v5252
        %v5358 = vmul.f32 %v2942, %v5254
        %v5359 = vmul.f32 %v2943, %v5256
        %v5360 = vmul.f32 %v2944, %v5258
        %v5361 = vmul.f32 %v2945, %v5260
        %v5362 = vmul.f32 %v2946, %v5262
        %v5363 = vmul.f32 %v2947, %v5264
        %v5364 = vmul.f32 %v2948, %v5266
        %v5365 = vmul.f32 %v2949, %v5268
        %v5366 = vmul.f32 %v2950, %v5270
        %v5367 = vsub.f32 %v5272, %v5320
        %v5368 = vsub.f32 %v5274, %v5322
        %v5369 = vsub.f32 %v5276, %v5324
        %v5370 = vsub.f32 %v5278, %v5326
        %v5371 = vsub.f32 %v5280, %v5328
        %v5372 = vsub.f32 %v5282, %v5330
        %v5373 = vsub.f32 %v5284, %v5332
        %v5374 = vsub.f32 %v5286, %v5334
        %v5375 = vsub.f32 %v5288, %v5336
        %v5376 = vsub.f32 %v5290, %v5338
        %v5377 = vsub.f32 %v5292, %v5340
        %v5378 = vsub.f32 %v5294, %v5342
        %v5379 = vsub.f32 %v5296, %v5344
        %v5380 = vsub.f32 %v5298, %v5346
        %v5381 = vsub.f32 %v5300, %v5348
        %v5382 = vsub.f32 %v5302, %v5350
        %v5383 = vmul.f32 %v550, %v5367
        %v5384 = vmul.f32 %v551, %v5368
        %v5385 = vmul.f32 %v552, %v5369
        %v5386 = vmul.f32 %v553, %v5370
        %v5387 = vmul.f32 %v554, %v5371
        %v5388 = vmul.f32 %v555, %v5372
        %v5389 = vmul.f32 %v556, %v5373
        %v5390 = vmul.f32 %v557, %v5374
        %v5391 = vmul.f32 %v558, %v5375
        %v5392 = vmul.f32 %v559, %v5376
        %v5393 = vmul.f32 %v560, %v5377
        %v5394 = vmul.f32 %v561, %v5378
        %v5395 = vmul.f32 %v562, %v5379
        %v5396 = vmul.f32 %v563, %v5380
        %v5397 = vmul.f32 %v564, %v5381
        %v5398 = vmul.f32 %v565, %v5382
        %v5399 = vadd.f32 %v5351, %v5383
        %v5400 = vadd.f32 %v5352, %v5384
        %v5401 = vadd.f32 %v5353, %v5385
        %v5402 = vadd.f32 %v5354, %v5386
        %v5403 = vadd.f32 %v5355, %v5387
        %v5404 = vadd.f32 %v5356, %v5388
        %v5405 = vadd.f32 %v5357, %v5389
        %v5406 = vadd.f32 %v5358, %v5390
        %v5407 = vadd.f32 %v5359, %v5391
        %v5408 = vadd.f32 %v5360, %v5392
        %v5409 = vadd.f32 %v5361, %v5393
        %v5410 = vadd.f32 %v5362, %v5394
        %v5411 = vadd.f32 %v5363, %v5395
        %v5412 = vadd.f32 %v5364, %v5396
        %v5413 = vadd.f32 %v5365, %v5397
        %v5414 = vadd.f32 %v5366, %v5398
        %v5415 = vadd.f32 %v5127, %v5399
        %v5416 = vadd.f32 %v5128, %v5400
        %v5417 = vadd.f32 %v5129, %v5401
        %v5418 = vadd.f32 %v5130, %v5402
        %v5419 = vadd.f32 %v5131, %v5403
        %v5420 = vadd.f32 %v5132, %v5404
        %v5421 = vadd.f32 %v5133, %v5405
        %v5422 = vadd.f32 %v5134, %v5406
        %v5423 = vadd.f32 %v5135, %v5407
        %v5424 = vadd.f32 %v5136, %v5408
        %v5425 = vadd.f32 %v5137, %v5409
        %v5426 = vadd.f32 %v5138, %v5410
        %v5427 = vadd.f32 %v5139, %v5411
        %v5428 = vadd.f32 %v5140, %v5412
        %v5429 = vadd.f32 %v5141, %v5413
        %v5430 = vadd.f32 %v5142, %v5414
        %vm5431 = vcmp.ne.f32.partialorder %v5415, %v5415
        %vm5432 = vcmp.ne.f32.partialorder %v5416, %v5416
        %vm5433 = vcmp.ne.f32.partialorder %v5417, %v5417
        %vm5434 = vcmp.ne.f32.partialorder %v5418, %v5418
        %vm5435 = vcmp.ne.f32.partialorder %v5419, %v5419
        %vm5436 = vcmp.ne.f32.partialorder %v5420, %v5420
        %vm5437 = vcmp.ne.f32.partialorder %v5421, %v5421
        %vm5438 = vcmp.ne.f32.partialorder %v5422, %v5422
        %vm5439 = vcmp.ne.f32.partialorder %v5423, %v5423
        %vm5440 = vcmp.ne.f32.partialorder %v5424, %v5424
        %vm5441 = vcmp.ne.f32.partialorder %v5425, %v5425
        %vm5442 = vcmp.ne.f32.partialorder %v5426, %v5426
        %vm5443 = vcmp.ne.f32.partialorder %v5427, %v5427
        %vm5444 = vcmp.ne.f32.partialorder %v5428, %v5428
        %vm5445 = vcmp.ne.f32.partialorder %v5429, %v5429
        %vm5446 = vcmp.ne.f32.partialorder %v5430, %v5430
        %v5447 = vsel %vm5431, %v646, %v5415
        %v5448 = vsel %vm5432, %v646, %v5416
        %v5449 = vsel %vm5433, %v646, %v5417
        %v5450 = vsel %vm5434, %v646, %v5418
        %v5451 = vsel %vm5435, %v646, %v5419
        %v5452 = vsel %vm5436, %v646, %v5420
        %v5453 = vsel %vm5437, %v646, %v5421
        %v5454 = vsel %vm5438, %v646, %v5422
        %v5455 = vsel %vm5439, %v646, %v5423
        %v5456 = vsel %vm5440, %v646, %v5424
        %v5457 = vsel %vm5441, %v646, %v5425
        %v5458 = vsel %vm5442, %v646, %v5426
        %v5459 = vsel %vm5443, %v646, %v5427
        %v5460 = vsel %vm5444, %v646, %v5428
        %v5461 = vsel %vm5445, %v646, %v5429
        %v5462 = vsel %vm5446, %v646, %v5430
        %v5463 = vsub.f32 1.0, %v727
        %v5464 = vsub.f32 1.0, %v728
        %v5465 = vsub.f32 1.0, %v729
        %v5466 = vsub.f32 1.0, %v730
        %v5467 = vsub.f32 1.0, %v731
        %v5468 = vsub.f32 1.0, %v732
        %v5469 = vsub.f32 1.0, %v733
        %v5470 = vsub.f32 1.0, %v734
        %v5471 = vsub.f32 1.0, %v735
        %v5472 = vsub.f32 1.0, %v736
        %v5473 = vsub.f32 1.0, %v737
        %v5474 = vsub.f32 1.0, %v738
        %v5475 = vsub.f32 1.0, %v739
        %v5476 = vsub.f32 1.0, %v740
        %v5477 = vsub.f32 1.0, %v741
        %v5478 = vsub.f32 1.0, %v742
        %v5479 = vadd.f32 %v5463, 1e-10
        %v5480 = vadd.f32 %v5464, 1e-10
        %v5481 = vadd.f32 %v5465, 1e-10
        %v5482 = vadd.f32 %v5466, 1e-10
        %v5483 = vadd.f32 %v5467, 1e-10
        %v5484 = vadd.f32 %v5468, 1e-10
        %v5485 = vadd.f32 %v5469, 1e-10
        %v5486 = vadd.f32 %v5470, 1e-10
        %v5487 = vadd.f32 %v5471, 1e-10
        %v5488 = vadd.f32 %v5472, 1e-10
        %v5489 = vadd.f32 %v5473, 1e-10
        %v5490 = vadd.f32 %v5474, 1e-10
        %v5491 = vadd.f32 %v5475, 1e-10
        %v5492 = vadd.f32 %v5476, 1e-10
        %v5493 = vadd.f32 %v5477, 1e-10
        %v5494 = vadd.f32 %v5478, 1e-10
        %v5495 = vlog2.pop %v5479
        %v5496 = vmul.f32 %v5495, 0.6931472
        %v5497 = vlog2.pop %v5480
        %v5498 = vmul.f32 %v5497, 0.6931472
        %v5499 = vlog2.pop %v5481
        %v5500 = vmul.f32 %v5499, 0.6931472
        %v5501 = vlog2.pop %v5482
        %v5502 = vmul.f32 %v5501, 0.6931472
        %v5503 = vlog2.pop %v5483
        %v5504 = vmul.f32 %v5503, 0.6931472
        %v5505 = vlog2.pop %v5484
        %v5506 = vmul.f32 %v5505, 0.6931472
        %v5507 = vlog2.pop %v5485
        %v5508 = vmul.f32 %v5507, 0.6931472
        %v5509 = vlog2.pop %v5486
        %v5510 = vmul.f32 %v5509, 0.6931472
        %v5511 = vlog2.pop %v5487
        %v5512 = vmul.f32 %v5511, 0.6931472
        %v5513 = vlog2.pop %v5488
        %v5514 = vmul.f32 %v5513, 0.6931472
        %v5515 = vlog2.pop %v5489
        %v5516 = vmul.f32 %v5515, 0.6931472
        %v5517 = vlog2.pop %v5490
        %v5518 = vmul.f32 %v5517, 0.6931472
        %v5519 = vlog2.pop %v5491
        %v5520 = vmul.f32 %v5519, 0.6931472
        %v5521 = vlog2.pop %v5492
        %v5522 = vmul.f32 %v5521, 0.6931472
        %v5523 = vlog2.pop %v5493
        %v5524 = vmul.f32 %v5523, 0.6931472
        %v5525 = vlog2.pop %v5494
        %v5526 = vmul.f32 %v5525, 0.6931472
        %v5527 = vsub.f32 %v5447, %v5496
        %v5528 = vsub.f32 %v5448, %v5498
        %v5529 = vsub.f32 %v5449, %v5500
        %v5530 = vsub.f32 %v5450, %v5502
        %v5531 = vsub.f32 %v5451, %v5504
        %v5532 = vsub.f32 %v5452, %v5506
        %v5533 = vsub.f32 %v5453, %v5508
        %v5534 = vsub.f32 %v5454, %v5510
        %v5535 = vsub.f32 %v5455, %v5512
        %v5536 = vsub.f32 %v5456, %v5514
        %v5537 = vsub.f32 %v5457, %v5516
        %v5538 = vsub.f32 %v5458, %v5518
        %v5539 = vsub.f32 %v5459, %v5520
        %v5540 = vsub.f32 %v5460, %v5522
        %v5541 = vsub.f32 %v5461, %v5524
        %v5542 = vsub.f32 %v5462, %v5526
        %v5543 = vsub.f32 0.0, %v807
        %v5544 = vsub.f32 0.0, %v808
        %v5545 = vsub.f32 0.0, %v809
        %v5546 = vsub.f32 0.0, %v810
        %v5547 = vsub.f32 0.0, %v811
        %v5548 = vsub.f32 0.0, %v812
        %v5549 = vsub.f32 0.0, %v813
        %v5550 = vsub.f32 0.0, %v814
        %v5551 = vsub.f32 0.0, %v815
        %v5552 = vsub.f32 0.0, %v816
        %v5553 = vsub.f32 0.0, %v817
        %v5554 = vsub.f32 0.0, %v818
        %v5555 = vsub.f32 0.0, %v819
        %v5556 = vsub.f32 0.0, %v820
        %v5557 = vsub.f32 0.0, %v821
        %v5558 = vsub.f32 0.0, %v822
        %v5559 = vmul.f32 %v5543, %v5240
        %v5560 = vmul.f32 %v5544, %v5242
        %v5561 = vmul.f32 %v5545, %v5244
        %v5562 = vmul.f32 %v5546, %v5246
        %v5563 = vmul.f32 %v5547, %v5248
        %v5564 = vmul.f32 %v5548, %v5250
        %v5565 = vmul.f32 %v5549, %v5252
        %v5566 = vmul.f32 %v5550, %v5254
        %v5567 = vmul.f32 %v5551, %v5256
        %v5568 = vmul.f32 %v5552, %v5258
        %v5569 = vmul.f32 %v5553, %v5260
        %v5570 = vmul.f32 %v5554, %v5262
        %v5571 = vmul.f32 %v5555, %v5264
        %v5572 = vmul.f32 %v5556, %v5266
        %v5573 = vmul.f32 %v5557, %v5268
        %v5574 = vmul.f32 %v5558, %v5270
        %v5575 = vmul.f32 %v5559, 1.442695
        %v5576 = vpow.pop %v5575
        %v5577 = vmul.f32 %v5560, 1.442695
        %v5578 = vpow.pop %v5577
        %v5579 = vmul.f32 %v5561, 1.442695
        %v5580 = vpow.pop %v5579
        %v5581 = vmul.f32 %v5562, 1.442695
        %v5582 = vpow.pop %v5581
        %v5583 = vmul.f32 %v5563, 1.442695
        %v5584 = vpow.pop %v5583
        %v5585 = vmul.f32 %v5564, 1.442695
        %v5586 = vpow.pop %v5585
        %v5587 = vmul.f32 %v5565, 1.442695
        %v5588 = vpow.pop %v5587
        %v5589 = vmul.f32 %v5566, 1.442695
        %v5590 = vpow.pop %v5589
        %v5591 = vmul.f32 %v5567, 1.442695
        %v5592 = vpow.pop %v5591
        %v5593 = vmul.f32 %v5568, 1.442695
        %v5594 = vpow.pop %v5593
        %v5595 = vmul.f32 %v5569, 1.442695
        %v5596 = vpow.pop %v5595
        %v5597 = vmul.f32 %v5570, 1.442695
        %v5598 = vpow.pop %v5597
        %v5599 = vmul.f32 %v5571, 1.442695
        %v5600 = vpow.pop %v5599
        %v5601 = vmul.f32 %v5572, 1.442695
        %v5602 = vpow.pop %v5601
        %v5603 = vmul.f32 %v5573, 1.442695
        %v5604 = vpow.pop %v5603
        %v5605 = vmul.f32 %v5574, 1.442695
        %v5606 = vpow.pop %v5605
        %v5607 = vmul.f32 %v5463, %v5576
        %v5608 = vmul.f32 %v5464, %v5578
        %v5609 = vmul.f32 %v5465, %v5580
        %v5610 = vmul.f32 %v5466, %v5582
        %v5611 = vmul.f32 %v5467, %v5584
        %v5612 = vmul.f32 %v5468, %v5586
        %v5613 = vmul.f32 %v5469, %v5588
        %v5614 = vmul.f32 %v5470, %v5590
        %v5615 = vmul.f32 %v5471, %v5592
        %v5616 = vmul.f32 %v5472, %v5594
        %v5617 = vmul.f32 %v5473, %v5596
        %v5618 = vmul.f32 %v5474, %v5598
        %v5619 = vmul.f32 %v5475, %v5600
        %v5620 = vmul.f32 %v5476, %v5602
        %v5621 = vmul.f32 %v5477, %v5604
        %v5622 = vmul.f32 %v5478, %v5606
        %v5623 = vadd.f32 %v727, %v5607
        %v5624 = vadd.f32 %v728, %v5608
        %v5625 = vadd.f32 %v729, %v5609
        %v5626 = vadd.f32 %v730, %v5610
        %v5627 = vadd.f32 %v731, %v5611
        %v5628 = vadd.f32 %v732, %v5612
        %v5629 = vadd.f32 %v733, %v5613
        %v5630 = vadd.f32 %v734, %v5614
        %v5631 = vadd.f32 %v735, %v5615
        %v5632 = vadd.f32 %v736, %v5616
        %v5633 = vadd.f32 %v737, %v5617
        %v5634 = vadd.f32 %v738, %v5618
        %v5635 = vadd.f32 %v739, %v5619
        %v5636 = vadd.f32 %v740, %v5620
        %v5637 = vadd.f32 %v741, %v5621
        %v5638 = vadd.f32 %v742, %v5622
        %v5639 = vadd.f32 %v5623, 1e-10
        %v5640 = vadd.f32 %v5624, 1e-10
        %v5641 = vadd.f32 %v5625, 1e-10
        %v5642 = vadd.f32 %v5626, 1e-10
        %v5643 = vadd.f32 %v5627, 1e-10
        %v5644 = vadd.f32 %v5628, 1e-10
        %v5645 = vadd.f32 %v5629, 1e-10
        %v5646 = vadd.f32 %v5630, 1e-10
        %v5647 = vadd.f32 %v5631, 1e-10
        %v5648 = vadd.f32 %v5632, 1e-10
        %v5649 = vadd.f32 %v5633, 1e-10
        %v5650 = vadd.f32 %v5634, 1e-10
        %v5651 = vadd.f32 %v5635, 1e-10
        %v5652 = vadd.f32 %v5636, 1e-10
        %v5653 = vadd.f32 %v5637, 1e-10
        %v5654 = vadd.f32 %v5638, 1e-10
        %v5655 = vlog2.pop %v5639
        %v5656 = vmul.f32 %v5655, 0.6931472
        %v5657 = vlog2.pop %v5640
        %v5658 = vmul.f32 %v5657, 0.6931472
        %v5659 = vlog2.pop %v5641
        %v5660 = vmul.f32 %v5659, 0.6931472
        %v5661 = vlog2.pop %v5642
        %v5662 = vmul.f32 %v5661, 0.6931472
        %v5663 = vlog2.pop %v5643
        %v5664 = vmul.f32 %v5663, 0.6931472
        %v5665 = vlog2.pop %v5644
        %v5666 = vmul.f32 %v5665, 0.6931472
        %v5667 = vlog2.pop %v5645
        %v5668 = vmul.f32 %v5667, 0.6931472
        %v5669 = vlog2.pop %v5646
        %v5670 = vmul.f32 %v5669, 0.6931472
        %v5671 = vlog2.pop %v5647
        %v5672 = vmul.f32 %v5671, 0.6931472
        %v5673 = vlog2.pop %v5648
        %v5674 = vmul.f32 %v5673, 0.6931472
        %v5675 = vlog2.pop %v5649
        %v5676 = vmul.f32 %v5675, 0.6931472
        %v5677 = vlog2.pop %v5650
        %v5678 = vmul.f32 %v5677, 0.6931472
        %v5679 = vlog2.pop %v5651
        %v5680 = vmul.f32 %v5679, 0.6931472
        %v5681 = vlog2.pop %v5652
        %v5682 = vmul.f32 %v5681, 0.6931472
        %v5683 = vlog2.pop %v5653
        %v5684 = vmul.f32 %v5683, 0.6931472
        %v5685 = vlog2.pop %v5654
        %v5686 = vmul.f32 %v5685, 0.6931472
        %v5687 = vsub.f32 0.0, %v5656
        %v5688 = vsub.f32 0.0, %v5658
        %v5689 = vsub.f32 0.0, %v5660
        %v5690 = vsub.f32 0.0, %v5662
        %v5691 = vsub.f32 0.0, %v5664
        %v5692 = vsub.f32 0.0, %v5666
        %v5693 = vsub.f32 0.0, %v5668
        %v5694 = vsub.f32 0.0, %v5670
        %v5695 = vsub.f32 0.0, %v5672
        %v5696 = vsub.f32 0.0, %v5674
        %v5697 = vsub.f32 0.0, %v5676
        %v5698 = vsub.f32 0.0, %v5678
        %v5699 = vsub.f32 0.0, %v5680
        %v5700 = vsub.f32 0.0, %v5682
        %v5701 = vsub.f32 0.0, %v5684
        %v5702 = vsub.f32 0.0, %v5686
        %vm5703 = vcmp.lt.f32.partialorder %v550, 1e-08
        %vm5704 = vcmp.lt.f32.partialorder %v551, 1e-08
        %vm5705 = vcmp.lt.f32.partialorder %v552, 1e-08
        %vm5706 = vcmp.lt.f32.partialorder %v553, 1e-08
        %vm5707 = vcmp.lt.f32.partialorder %v554, 1e-08
        %vm5708 = vcmp.lt.f32.partialorder %v555, 1e-08
        %vm5709 = vcmp.lt.f32.partialorder %v556, 1e-08
        %vm5710 = vcmp.lt.f32.partialorder %v557, 1e-08
        %vm5711 = vcmp.lt.f32.partialorder %v558, 1e-08
        %vm5712 = vcmp.lt.f32.partialorder %v559, 1e-08
        %vm5713 = vcmp.lt.f32.partialorder %v560, 1e-08
        %vm5714 = vcmp.lt.f32.partialorder %v561, 1e-08
        %vm5715 = vcmp.lt.f32.partialorder %v562, 1e-08
        %vm5716 = vcmp.lt.f32.partialorder %v563, 1e-08
        %vm5717 = vcmp.lt.f32.partialorder %v564, 1e-08
        %vm5718 = vcmp.lt.f32.partialorder %v565, 1e-08
        %v5719 = vsel %vm5703, %v5687, %v5527
        %v5720 = vsel %vm5704, %v5688, %v5528
        %v5721 = vsel %vm5705, %v5689, %v5529
        %v5722 = vsel %vm5706, %v5690, %v5530
        %v5723 = vsel %vm5707, %v5691, %v5531
        %v5724 = vsel %vm5708, %v5692, %v5532
        %v5725 = vsel %vm5709, %v5693, %v5533
        %v5726 = vsel %vm5710, %v5694, %v5534
        %v5727 = vsel %vm5711, %v5695, %v5535
        %v5728 = vsel %vm5712, %v5696, %v5536
        %v5729 = vsel %vm5713, %v5697, %v5537
        %v5730 = vsel %vm5714, %v5698, %v5538
        %v5731 = vsel %vm5715, %v5699, %v5539
        %v5732 = vsel %vm5716, %v5700, %v5540
        %v5733 = vsel %vm5717, %v5701, %v5541
        %v5734 = vsel %vm5718, %v5702, %v5542
        %vm5735 = vcmp.ne.f32.partialorder %v5719, %v5719
        %vm5736 = vcmp.ne.f32.partialorder %v5720, %v5720
        %vm5737 = vcmp.ne.f32.partialorder %v5721, %v5721
        %vm5738 = vcmp.ne.f32.partialorder %v5722, %v5722
        %vm5739 = vcmp.ne.f32.partialorder %v5723, %v5723
        %vm5740 = vcmp.ne.f32.partialorder %v5724, %v5724
        %vm5741 = vcmp.ne.f32.partialorder %v5725, %v5725
        %vm5742 = vcmp.ne.f32.partialorder %v5726, %v5726
        %vm5743 = vcmp.ne.f32.partialorder %v5727, %v5727
        %vm5744 = vcmp.ne.f32.partialorder %v5728, %v5728
        %vm5745 = vcmp.ne.f32.partialorder %v5729, %v5729
        %vm5746 = vcmp.ne.f32.partialorder %v5730, %v5730
        %vm5747 = vcmp.ne.f32.partialorder %v5731, %v5731
        %vm5748 = vcmp.ne.f32.partialorder %v5732, %v5732
        %vm5749 = vcmp.ne.f32.partialorder %v5733, %v5733
        %vm5750 = vcmp.ne.f32.partialorder %v5734, %v5734
        %v5751 = vsel %vm5735, %v646, %v5719
        %v5752 = vsel %vm5736, %v646, %v5720
        %v5753 = vsel %vm5737, %v646, %v5721
        %v5754 = vsel %vm5738, %v646, %v5722
        %v5755 = vsel %vm5739, %v646, %v5723
        %v5756 = vsel %vm5740, %v646, %v5724
        %v5757 = vsel %vm5741, %v646, %v5725
        %v5758 = vsel %vm5742, %v646, %v5726
        %v5759 = vsel %vm5743, %v646, %v5727
        %v5760 = vsel %vm5744, %v646, %v5728
        %v5761 = vsel %vm5745, %v646, %v5729
        %v5762 = vsel %vm5746, %v646, %v5730
        %v5763 = vsel %vm5747, %v646, %v5731
        %v5764 = vsel %vm5748, %v646, %v5732
        %v5765 = vsel %vm5749, %v646, %v5733
        %v5766 = vsel %vm5750, %v646, %v5734
        %s5767 = smul.u32 %s32, 2
        %s5768 = sadd.s32 %s5767, %s33
        %s5769 = smul.u32 %s5768, 64
        %v5770 = vlaneseq
        %v5771 = vshrl.u32 %v5770, 7
        %v5772 = vadd.s32 %v5771, 8
        %v5773 = vadd.s32 %v5771, 16
        %v5774 = vadd.s32 %v5771, 24
        %v5775 = vadd.s32 %v5771, 32
        %v5776 = vadd.s32 %v5771, 40
        %v5777 = vadd.s32 %v5771, 48
        %v5778 = vadd.s32 %v5771, 56
        %v5779 = vstv %s5769
        %v5780 = vadd.s32 %v5771, %v5779
        %v5781 = vadd.s32 %v5772, %v5779
        %v5782 = vadd.s32 %v5773, %v5779
        %v5783 = vadd.s32 %v5774, %v5779
        %v5784 = vadd.s32 %v5775, %v5779
        %v5785 = vadd.s32 %v5776, %v5779
        %v5786 = vadd.s32 %v5777, %v5779
        %v5787 = vadd.s32 %v5778, %v5779
        %vm5788 = vcmp.lt.s32.totalorder %v5780, 100
        %vm5789 = vcmp.lt.s32.totalorder %v5781, 100
        %vm5790 = vcmp.lt.s32.totalorder %v5782, 100
        %vm5791 = vcmp.lt.s32.totalorder %v5783, 100
        %vm5792 = vcmp.lt.s32.totalorder %v5784, 100
        %vm5793 = vcmp.lt.s32.totalorder %v5785, 100
        %vm5794 = vcmp.lt.s32.totalorder %v5786, 100
        %vm5795 = vcmp.lt.s32.totalorder %v5787, 100
        %s5796 = smul.u32 %s34, 256
        %v5797 = vlaneseq
        %v5798 = vand.u32 %v5797, 127
        %v5799 = vadd.s32 %v5798, 128
        %v5800 = vstv %s5796
        %v5801 = vadd.s32 %v5798, %v5800
        %v5802 = vadd.s32 %v5799, %v5800
        %vm5803 = vcmp.lt.s32.totalorder %v5801, 384
        %vm5804 = vcmp.lt.s32.totalorder %v5802, 384
        %vm5805 = vmand %vm5788, %vm5803
        %vm5806 = vmand %vm5788, %vm5804
        %vm5807 = vmand %vm5789, %vm5803
        %vm5808 = vmand %vm5789, %vm5804
        %vm5809 = vmand %vm5790, %vm5803
        %vm5810 = vmand %vm5790, %vm5804
        %vm5811 = vmand %vm5791, %vm5803
        %vm5812 = vmand %vm5791, %vm5804
        %vm5813 = vmand %vm5792, %vm5803
        %vm5814 = vmand %vm5792, %vm5804
        %vm5815 = vmand %vm5793, %vm5803
        %vm5816 = vmand %vm5793, %vm5804
        %vm5817 = vmand %vm5794, %vm5803
        %vm5818 = vmand %vm5794, %vm5804
        %vm5819 = vmand %vm5795, %vm5803
        %vm5820 = vmand %vm5795, %vm5804
        %v5821 = vsel %vm5805, %v5751, 0.0
        %v5822 = vsel %vm5806, %v5752, 0.0
        %v5823 = vsel %vm5807, %v5753, 0.0
        %v5824 = vsel %vm5808, %v5754, 0.0
        %v5825 = vsel %vm5809, %v5755, 0.0
        %v5826 = vsel %vm5810, %v5756, 0.0
        %v5827 = vsel %vm5811, %v5757, 0.0
        %v5828 = vsel %vm5812, %v5758, 0.0
        %v5829 = vsel %vm5813, %v5759, 0.0
        %v5830 = vsel %vm5814, %v5760, 0.0
        %v5831 = vsel %vm5815, %v5761, 0.0
        %v5832 = vsel %vm5816, %v5762, 0.0
        %v5833 = vsel %vm5817, %v5763, 0.0
        %v5834 = vsel %vm5818, %v5764, 0.0
        %v5835 = vsel %vm5819, %v5765, 0.0
        %v5836 = vsel %vm5820, %v5766, 0.0
        %v5837 = vadd.f32 %v5821, %v5823
        %v5838 = vadd.f32 %v5822, %v5824
        %v5839 = vadd.f32 %v5837, %v5825
        %v5840 = vadd.f32 %v5838, %v5826
        %v5841 = vadd.f32 %v5839, %v5827
        %v5842 = vadd.f32 %v5840, %v5828
        %v5843 = vadd.f32 %v5841, %v5829
        %v5844 = vadd.f32 %v5842, %v5830
        %v5845 = vadd.f32 %v5843, %v5831
        %v5846 = vadd.f32 %v5844, %v5832
        %v5847 = vadd.f32 %v5845, %v5833
        %v5848 = vadd.f32 %v5846, %v5834
        %v5849 = vadd.f32 %v5847, %v5835
        %v5850 = vadd.f32 %v5848, %v5836
        %v5851 = vld [vmem:[#allocation2] sm:$0xff]
        %v5852 = vld [vmem:[#allocation2 + $0x8] sm:$0xff]
        %v5853 = vadd.f32 %v5851, %v5849
        %v5854 = vadd.f32 %v5852, %v5850
        %5855 = vst [vmem:[#allocation2] sm:$0xff] %v5853
        %5856 = vst [vmem:[#allocation2 + $0x8] sm:$0xff] %v5854
        %p5857 = scmp.eq.s32.totalorder %s33, 1
        %p5858 = scmp.eq.s32.totalorder %s34, 1
        %p5859 = pnand %p5857, %p5858
        %p5860 = pneg %p5859
        // Predicated region
        $region61: #{tpu_custom_call.1} parent=39 // pred_check
          _
        $region62: #{tpu_custom_call.1} parent=39 // pred_check_branch
          %5862 = sbr.rel (%p5859) target = $region64
        $region63: #{tpu_custom_call.1} parent=39 // pred_region
          %v5863 = vld [vmem:[#allocation2] sm:$0xff]
          %v5864 = vld [vmem:[#allocation2 + $0x8] sm:$0xff]
          %v5865 = vadd.f32 %v5863, %v5864
          %5866 = vst [vmem:[#allocation12] sm:$0xff] %v5865
        $region64: #{tpu_custom_call.1} parent=39 // pred_fallthru
          _
        // Predicated region
        $region65: #{tpu_custom_call.1} parent=39 // pred_check
          %p5867 = pneg %p229
        $region66: #{tpu_custom_call.1} parent=39 // pred_check_branch
          %5869 = sbr.rel (%p5867) target = $region68
        $region67: #{tpu_custom_call.1} parent=39 // pred_region
          %s5871 = ssub.s32 128, 128
          %5872 = vsyncadd [#allocation6], %s5871
          %s5873 = smul.addr %s32, 128
          %s5874 = scalar_lea.hbm %s5, %s5873
          %s5876 = sshll.u32 [#allocation12], 4
          %s5877 = int_to_ptr.vmem [resolvable:$true] %s5876
          %5879 = dma.vmem_to_hbm [thread:$0]  %s5877, 128, %s5874, [#allocation6]
        $region68: #{tpu_custom_call.1} parent=39 // pred_fallthru
          _
        // Predicated region
        $region69: #{tpu_custom_call.1} parent=39 // pred_check
          %p5880 = pneg %p229
        $region70: #{tpu_custom_call.1} parent=39 // pred_check_branch
          %5882 = sbr.rel (%p5880) target = $region72
        $region71: #{tpu_custom_call.1} parent=39 // pred_region
          %5883 = dma.done [#allocation6], 128
        $region72: #{tpu_custom_call.1} parent=39 // pred_fallthru
          _
      $region40: #{tpu_custom_call.1} parent=5 // pred_fallthru
        _
      %p5884 = scmp.le.s32.totalorder 2, %s22
      // Predicated region
      $region73: #{tpu_custom_call.1} parent=5 // pred_check
        %p5885 = pneg %p5884
      $region74: #{tpu_custom_call.1} parent=5 // pred_check_branch
        %5887 = sbr.rel (%p5885) target = $region76
      $region75: #{tpu_custom_call.1} parent=5 // pred_region
        %s5888 = ssub.s32 %s22, 2
      $region76: #{tpu_custom_call.1} parent=5 // pred_fallthru
        _
    $region6: #{tpu_custom_call.1} parent=1 // loop_footer
      %s26 = sadd.s32 1, %s22
    $region7: #{tpu_custom_call.1} parent=1 // loop_footer_branch
      %21 = sbr.rel target = $region3
    $region8: #{tpu_custom_call.1} parent=1 // loop_exit
      _
    %5889 = vsyncpa [#allocation5], 1
    %s5890 = scalar_lea.sflag [#allocation5], 1
    %5891 = vsyncpa %s5890, 1
    %5892 = vsyncpa [#allocation8], 1
    %s5893 = scalar_lea.sflag [#allocation8], 1
    %5894 = vsyncpa %s5893, 1
    %5895 = vsyncpa [#allocation11], 1
    %s5896 = scalar_lea.sflag [#allocation11], 1
    %5897 = vsyncpa %s5896, 1
    %5898 = vsyncpa [#allocation6], 1
    %s5899 = scalar_lea.sflag [#allocation6], 1
    %5900 = vsyncpa %s5899, 1

</llo_original>
